<compile_context>
chip_gen: v6e
topology: v6e:2x2x1
jax: 0.10.0
libtpu: 0.0.40
codegen_flags: <defaults>
</compile_context>

<pallas_src>
import jax
import jax.numpy as jnp
from jax.experimental import pallas as pl
from jax.experimental.pallas import tpu as pltpu

# ---------------- small, module-consistent dimensions ----------------
B = 2            # batch_size
S = 8            # seq_len1 (encoder length)
T = 6            # seq_len_target (<= max_output_length)
E = 32           # embedding_dim
H = 128          # hidden_dim
L = 3            # num_layers
V = 128          # no_output_tokens (restricted decoder vocab)
VOCAB_FULL = 256 # full tokenizer vocab (embedding table rows)
F32 = jnp.float32


def decoder_kernel(
    x_ref, tgt0_ref,
    w1x_ref, w2_ref, b1_ref,
    wih0c_ref, wih0x_ref, whh0_ref, bl0_ref,
    wih1_ref, whh1_ref, bl1_ref,
    wih2_ref, whh2_ref, bl2_ref,
    wfh_ref, bf_ref, otk_ref,
    out_ref,
):
    # Small step-invariant operands kept live in vregs (one vreg each).
    w2 = w2_ref[...]                                  # (1, H)
    b1 = b1_ref[...]                                  # (1, H)
    bf = bf_ref[...]                                  # (1, V)

    # Step-invariant attention x-projection: one (S,E)@(E,H) dot per row,
    # computed once before the recurrence (setup cost only).
    xrow = [x_ref[b] for b in range(B)]               # (S, E) each
    xh = [jnp.dot(xrow[b], w1x_ref[...], preferred_element_type=F32)
          for b in range(B)]                          # (S, H) each

    # Register-carried recurrent state for the whole batch.
    h0 = jnp.zeros((B, H), F32); c0 = jnp.zeros((B, H), F32)
    h1 = jnp.zeros((B, H), F32); c1 = jnp.zeros((B, H), F32)
    h2 = jnp.zeros((B, H), F32); c2 = jnp.zeros((B, H), F32)
    cur = tgt0_ref[...]                               # (B, E) embedding of target_seq[:, 0]
    hh = jnp.broadcast_to(b1, (B, H))                 # h[-1] == 0 at t=0  ->  hh = b1
    iota = jax.lax.broadcasted_iota(jnp.int32, (B, V), 1)   # hoisted out of the loop

    def cell(gin, h_prev, c_prev, whh_ref, b_ref):
        # Recurrent dot depends only on previous-step state -> off the
        # post-attention critical path (scheduler hoists it).
        gates = gin + jnp.dot(h_prev, whh_ref[...],
                              preferred_element_type=F32) + b_ref[...]
        i_g = jax.nn.sigmoid(gates[:, 0 * H:1 * H])
        f_g = jax.nn.sigmoid(gates[:, 1 * H:2 * H])
        g_g = jnp.tanh(gates[:, 2 * H:3 * H])
        o_g = jax.nn.sigmoid(gates[:, 3 * H:4 * H])
        c_new = f_g * c_prev + i_g * g_g
        h_new = o_g * jnp.tanh(c_new)
        return h_new, c_new

    rows = []
    for _t in range(T):                               # T is small & static -> unrolled
        # ---- attention per batch row (independent chains -> ILP) --------
        ctx_rows = []
        for b in range(B):
            a1 = jnp.maximum(xh[b] + hh[b:b + 1, :], 0.0)              # (S, H)
            sc = jnp.sum(a1 * w2, axis=-1, keepdims=True)              # (S, 1) (b2 cancels)
            m = jnp.max(sc, axis=0, keepdims=True)                     # (1, 1)
            logden = jnp.log(jnp.sum(jnp.exp(sc - m), axis=0, keepdims=True))
            attn = sc - m - logden                                     # log-softmax over S
            # NOTE: the reference module multiplies by LogSoftmax (not
            # Softmax) of the attention scores before summing -- reproduced.
            ctx_rows.append(jnp.sum(attn * xrow[b], axis=0, keepdims=True))
        context = jnp.concatenate(ctx_rows, axis=0)                    # (B, E)

        # ---- 3-layer LSTM cell step (torch gate order i, f, g, o) -------
        # cur contribution uses last step's feedback only -> off crit path.
        g0 = (jnp.dot(cur, wih0c_ref[...], preferred_element_type=F32)
              + jnp.dot(context, wih0x_ref[...], preferred_element_type=F32))
        h0, c0 = cell(g0, h0, c0, whh0_ref, bl0_ref)
        h1, c1 = cell(jnp.dot(h0, wih1_ref[...], preferred_element_type=F32),
                      h1, c1, whh1_ref, bl1_ref)
        h2, c2 = cell(jnp.dot(h1, wih2_ref[...], preferred_element_type=F32),
                      h2, c2, whh2_ref, bl2_ref)
        # TODO(synk): nn.LSTM inter-layer dropout (p=0.3 in training) is stochastic; omitted.

        # ---- fused fc_final + next-step attention hidden projection -----
        y = jnp.dot(h2, wfh_ref[...], preferred_element_type=F32)      # (B, V + H)
        logits = y[:, :V] + bf                                         # (B, V)
        hh = y[:, V:] + b1                                             # next step's h[-1]@w1h + b1

        lm = jnp.max(logits, axis=1, keepdims=True)
        logp = logits - lm - jnp.log(jnp.sum(jnp.exp(logits - lm),
                                             axis=1, keepdims=True))
        rows.append(logp)                                              # (B, V)

        # ---- greedy feedback: argmax(logp) == argmax(logits); reuse lm --
        first_arg = jnp.min(jnp.where(logits == lm, iota, V), axis=1, keepdims=True)
        onehot = (iota == first_arg).astype(F32)
        cur = jnp.dot(onehot, otk_ref[...], preferred_element_type=F32)  # (B, E)

    # Single lane-dense writeback of all steps (step-major); host transposes.
    out_ref[...] = jnp.concatenate(rows, axis=0)                       # (T*B, V)


def lstm_attn_decoder_forward(x, tgt0_emb, kernel_params):
    inputs = (x, tgt0_emb) + tuple(kernel_params)
    out = pl.pallas_call(
        decoder_kernel,
        out_shape=jax.ShapeDtypeStruct((T * B, V), F32),
        in_specs=[pl.BlockSpec(memory_space=pltpu.MemorySpace.VMEM)
                  for _ in inputs],
        out_specs=pl.BlockSpec(memory_space=pltpu.MemorySpace.VMEM),
    )(*inputs)
    # Layout plumbing outside the kernel: (T*B, V) step-major -> (B, T, V).
    return out.reshape(T, B, V).transpose(1, 0, 2)


def init_params(key):
    ks = jax.random.split(key, 11)
    sc = 0.1
    # Attention_MLP: Linear(E+H, H) -> ReLU -> Linear(H, 1)   (weights stored transposed)
    w1 = jax.random.normal(ks[0], (E + H, H), F32) * sc
    b1 = jax.random.normal(ks[1], (1, H), F32) * sc
    w2 = jax.random.normal(ks[2], (1, H), F32) * sc
    b2 = jax.random.normal(ks[3], (1, 1), F32) * sc
    w1x, w1h = w1[:E], w1[E:]

    def lstm_layer(k, in_dim):
        k1, k2, k3 = jax.random.split(k, 3)
        wih = jax.random.normal(k1, (in_dim, 4 * H), F32) * sc
        whh = jax.random.normal(k2, (H, 4 * H), F32) * sc
        b = jax.random.normal(k3, (1, 4 * H), F32) * sc   # b_ih + b_hh combined
        return wih, whh, b

    wih0, whh0, bl0 = lstm_layer(ks[4], 2 * E)   # layer 0 input = 2*embedding_dim
    wih1, whh1, bl1 = lstm_layer(ks[5], H)
    wih2, whh2, bl2 = lstm_layer(ks[6], H)

    wf = jax.random.normal(ks[7], (H, V), F32) * sc
    bf = jax.random.normal(ks[8], (1, V), F32) * sc

    emb_table = jax.random.normal(ks[9], (VOCAB_FULL, E), F32) * sc
    token_set = jax.random.permutation(ks[10], VOCAB_FULL)[:V]   # decoderTokens.token_set
    otk = emb_table[token_set]                                   # embedding of restricted vocab

    ref_params = (w1x, w1h, b1, w2, b2,
                  wih0, whh0, bl0, wih1, whh1, bl1, wih2, whh2, bl2,
                  wf, bf, otk)

    # Kernel-side fusions:
    #   * [fc_final | attention-hidden] share the h[-1] operand.
    #   * layer-0 input weight split into cur / context parts.
    wfh = jnp.concatenate([wf, w1h], axis=1)                     # (H, V + H)
    kernel_params = (w1x, w2, b1,
                     wih0[:E], wih0[E:], whh0, bl0,
                     wih1, whh1, bl1,
                     wih2, whh2, bl2,
                     wfh, bf, otk)
    return emb_table, ref_params, kernel_params


def reference_forward(x, tgt0_emb, ref_params):
    (w1x, w1h, b1, w2, b2,
     wih0, whh0, bl0, wih1, whh1, bl1, wih2, whh2, bl2,
     wf, bf, otk) = ref_params
    h = [jnp.zeros((B, H), F32) for _ in range(L)]
    c = [jnp.zeros((B, H), F32) for _ in range(L)]
    cur = tgt0_emb
    outs = []
    for _ in range(T):
        hh = h[-1] @ w1h + b1
        a1 = jax.nn.relu(jnp.einsum('bse,eh->bsh', x, w1x) + hh[:, None, :])
        scores = jnp.sum(a1 * w2[None], axis=-1) + b2[0, 0]       # (B, S)
        attn = jax.nn.log_softmax(scores, axis=1)
        ctx = jnp.sum(attn[:, :, None] * x, axis=1)

        def cell(gin, hk, ck, whh, b):
            gates = gin + hk @ whh + b
            i_g = jax.nn.sigmoid(gates[:, :H])
            f_g = jax.nn.sigmoid(gates[:, H:2 * H])
            g_g = jnp.tanh(gates[:, 2 * H:3 * H])
            o_g = jax.nn.sigmoid(gates[:, 3 * H:])
            cn = f_g * ck + i_g * g_g
            return o_g * jnp.tanh(cn), cn

        g0 = jnp.concatenate([cur, ctx], axis=1) @ wih0
        h[0], c[0] = cell(g0, h[0], c[0], whh0, bl0)
        h[1], c[1] = cell(h[0] @ wih1, h[1], c[1], whh1, bl1)
        h[2], c[2] = cell(h[1] @ wih2, h[2], c[2], whh2, bl2)

        logits = h[2] @ wf + bf
        logp = jax.nn.log_softmax(logits, axis=1)
        outs.append(logp)
        cur = otk[jnp.argmax(logp, axis=1)]
    return jnp.stack(outs, axis=1)


if __name__ == "__main__":
    key = jax.random.PRNGKey(0)
    k_par, k_x, k_tgt = jax.random.split(key, 3)
    emb_table, ref_params, kernel_params = init_params(k_par)

    x = jax.random.normal(k_x, (B, S, E), F32)
    target_seq = jax.random.randint(k_tgt, (B, T), 0, VOCAB_FULL)
    tgt0_emb = emb_table[target_seq[:, 0]]        # embedding_layer(target_seq[:, 0])

    out = jax.block_until_ready(lstm_attn_decoder_forward(x, tgt0_emb, kernel_params))
    ref = reference_forward(x, tgt0_emb, ref_params)

    assert out.shape == (B, T, V), out.shape
    assert bool(jnp.all(jnp.isfinite(out)))
    assert bool(jnp.allclose(out, ref, atol=2e-3, rtol=2e-3)), "mismatch vs reference"
    print("KERNEL_OK")
</pallas_src>

<mosaic_0001>
module attributes {stable_mosaic.version = 11 : i64} {
  func.func @decoder_kernel(%arg0: memref<2x8x32xf32, #tpu.memory_space<vmem>>, %arg1: memref<2x32xf32, #tpu.memory_space<vmem>>, %arg2: memref<32x128xf32, #tpu.memory_space<vmem>>, %arg3: memref<1x128xf32, #tpu.memory_space<vmem>>, %arg4: memref<1x128xf32, #tpu.memory_space<vmem>>, %arg5: memref<32x512xf32, #tpu.memory_space<vmem>>, %arg6: memref<32x512xf32, #tpu.memory_space<vmem>>, %arg7: memref<128x512xf32, #tpu.memory_space<vmem>>, %arg8: memref<1x512xf32, #tpu.memory_space<vmem>>, %arg9: memref<128x512xf32, #tpu.memory_space<vmem>>, %arg10: memref<128x512xf32, #tpu.memory_space<vmem>>, %arg11: memref<1x512xf32, #tpu.memory_space<vmem>>, %arg12: memref<128x512xf32, #tpu.memory_space<vmem>>, %arg13: memref<128x512xf32, #tpu.memory_space<vmem>>, %arg14: memref<1x512xf32, #tpu.memory_space<vmem>>, %arg15: memref<128x256xf32, #tpu.memory_space<vmem>>, %arg16: memref<1x128xf32, #tpu.memory_space<vmem>>, %arg17: memref<128x32xf32, #tpu.memory_space<vmem>>, %arg18: memref<12x128xf32, #tpu.memory_space<vmem>>) attributes {dimension_semantics = [], scalar_prefetch = 0 : i64, scratch_operands = 0 : i64, tpu.core_type = #tpu.core_type<tc>} {
    %c0 = arith.constant 0 : index
    %c0_0 = arith.constant 0 : index
    %0 = vector.load %arg3[%c0, %c0_0] : memref<1x128xf32, #tpu.memory_space<vmem>>, vector<1x128xf32>
    %c0_1 = arith.constant 0 : index
    %c0_2 = arith.constant 0 : index
    %1 = vector.load %arg4[%c0_1, %c0_2] : memref<1x128xf32, #tpu.memory_space<vmem>>, vector<1x128xf32>
    %c0_3 = arith.constant 0 : index
    %c0_4 = arith.constant 0 : index
    %2 = vector.load %arg16[%c0_3, %c0_4] : memref<1x128xf32, #tpu.memory_space<vmem>>, vector<1x128xf32>
    %c0_5 = arith.constant 0 : index
    %c0_6 = arith.constant 0 : index
    %c0_7 = arith.constant 0 : index
    %3 = vector.load %arg0[%c0_5, %c0_6, %c0_7] : memref<2x8x32xf32, #tpu.memory_space<vmem>>, vector<1x8x32xf32>
    %4 = vector.shape_cast %3 : vector<1x8x32xf32> to vector<8x32xf32>
    %c1 = arith.constant 1 : index
    %c0_8 = arith.constant 0 : index
    %c0_9 = arith.constant 0 : index
    %5 = vector.load %arg0[%c1, %c0_8, %c0_9] : memref<2x8x32xf32, #tpu.memory_space<vmem>>, vector<1x8x32xf32>
    %6 = vector.shape_cast %5 : vector<1x8x32xf32> to vector<8x32xf32>
    %c0_10 = arith.constant 0 : index
    %c0_11 = arith.constant 0 : index
    %7 = vector.load %arg2[%c0_10, %c0_11] : memref<32x128xf32, #tpu.memory_space<vmem>>, vector<32x128xf32>
    %cst = arith.constant dense<0.000000e+00> : vector<8x128xf32>
    %8 = tpu.matmul %4, %7, %cst {dimension_numbers = #tpu.dot_dimension_numbers<[1], [0], [0], [1], [0, 0, 1, 1], [], []>} : vector<8x32xf32>, vector<32x128xf32>, vector<8x128xf32> -> vector<8x128xf32>
    %c0_12 = arith.constant 0 : index
    %c0_13 = arith.constant 0 : index
    %9 = vector.load %arg2[%c0_12, %c0_13] : memref<32x128xf32, #tpu.memory_space<vmem>>, vector<32x128xf32>
    %cst_14 = arith.constant dense<0.000000e+00> : vector<8x128xf32>
    %10 = tpu.matmul %6, %9, %cst_14 {dimension_numbers = #tpu.dot_dimension_numbers<[1], [0], [0], [1], [0, 0, 1, 1], [], []>} : vector<8x32xf32>, vector<32x128xf32>, vector<8x128xf32> -> vector<8x128xf32>
    %cst_15 = arith.constant 0.000000e+00 : f32
    %11 = vector.broadcast %cst_15 : f32 to vector<2x128xf32>
    %cst_16 = arith.constant 0.000000e+00 : f32
    %12 = vector.broadcast %cst_16 : f32 to vector<2x128xf32>
    %cst_17 = arith.constant 0.000000e+00 : f32
    %13 = vector.broadcast %cst_17 : f32 to vector<2x128xf32>
    %cst_18 = arith.constant 0.000000e+00 : f32
    %14 = vector.broadcast %cst_18 : f32 to vector<2x128xf32>
    %cst_19 = arith.constant 0.000000e+00 : f32
    %15 = vector.broadcast %cst_19 : f32 to vector<2x128xf32>
    %cst_20 = arith.constant 0.000000e+00 : f32
    %16 = vector.broadcast %cst_20 : f32 to vector<2x128xf32>
    %c0_21 = arith.constant 0 : index
    %c0_22 = arith.constant 0 : index
    %17 = vector.load %arg1[%c0_21, %c0_22] : memref<2x32xf32, #tpu.memory_space<vmem>>, vector<2x32xf32>
    %18 = vector.shape_cast %1 : vector<1x128xf32> to vector<1x128xf32>
    %19 = vector.broadcast %18 : vector<1x128xf32> to vector<2x128xf32>
    %20 = tpu.iota {dimensions = array<i32: 1>} : vector<2x128xi32>
    %21 = vector.extract_strided_slice %19 {offsets = [0, 0], sizes = [1, 128], strides = [1, 1]} : vector<2x128xf32> to vector<1x128xf32>
    %22 = vector.broadcast %21 : vector<1x128xf32> to vector<8x128xf32>
    %23 = arith.addf %8, %22 : vector<8x128xf32>
    %cst_23 = arith.constant 0.000000e+00 : f32
    %24 = vector.broadcast %cst_23 : f32 to vector<8x128xf32>
    %25 = arith.maximumf %23, %24 : vector<8x128xf32>
    %26 = vector.broadcast %0 : vector<1x128xf32> to vector<8x128xf32>
    %27 = arith.mulf %25, %26 : vector<8x128xf32>
    %cst_24 = arith.constant dense<0.000000e+00> : vector<8xf32>
    %28 = vector.multi_reduction <add>, %27, %cst_24 [1] : vector<8x128xf32> to vector<8xf32>
    %29 = vector.shape_cast %28 : vector<8xf32> to vector<8x1xf32>
    %cst_25 = arith.constant dense<0xFF800000> : vector<1xf32>
    %30 = vector.multi_reduction <maximumf>, %29, %cst_25 [0] : vector<8x1xf32> to vector<1xf32>
    %31 = vector.shape_cast %30 : vector<1xf32> to vector<1x1xf32>
    %32 = vector.broadcast %31 : vector<1x1xf32> to vector<8x1xf32>
    %33 = arith.subf %29, %32 : vector<8x1xf32>
    %34 = math.exp %33 : vector<8x1xf32>
    %cst_26 = arith.constant dense<0.000000e+00> : vector<1xf32>
    %35 = vector.multi_reduction <add>, %34, %cst_26 [0] : vector<8x1xf32> to vector<1xf32>
    %36 = vector.shape_cast %35 : vector<1xf32> to vector<1x1xf32>
    %37 = math.log %36 : vector<1x1xf32>
    %38 = vector.broadcast %31 : vector<1x1xf32> to vector<8x1xf32>
    %39 = arith.subf %29, %38 : vector<8x1xf32>
    %40 = vector.broadcast %37 : vector<1x1xf32> to vector<8x1xf32>
    %41 = arith.subf %39, %40 : vector<8x1xf32>
    %42 = vector.broadcast %41 : vector<8x1xf32> to vector<8x32xf32>
    %43 = arith.mulf %42, %4 : vector<8x32xf32>
    %cst_27 = arith.constant dense<0.000000e+00> : vector<32xf32>
    %44 = vector.multi_reduction <add>, %43, %cst_27 [0] : vector<8x32xf32> to vector<32xf32>
    %45 = vector.shape_cast %44 : vector<32xf32> to vector<1x32xf32>
    %46 = vector.extract_strided_slice %19 {offsets = [1, 0], sizes = [1, 128], strides = [1, 1]} : vector<2x128xf32> to vector<1x128xf32>
    %47 = vector.broadcast %46 : vector<1x128xf32> to vector<8x128xf32>
    %48 = arith.addf %10, %47 : vector<8x128xf32>
    %cst_28 = arith.constant 0.000000e+00 : f32
    %49 = vector.broadcast %cst_28 : f32 to vector<8x128xf32>
    %50 = arith.maximumf %48, %49 : vector<8x128xf32>
    %51 = vector.broadcast %0 : vector<1x128xf32> to vector<8x128xf32>
    %52 = arith.mulf %50, %51 : vector<8x128xf32>
    %cst_29 = arith.constant dense<0.000000e+00> : vector<8xf32>
    %53 = vector.multi_reduction <add>, %52, %cst_29 [1] : vector<8x128xf32> to vector<8xf32>
    %54 = vector.shape_cast %53 : vector<8xf32> to vector<8x1xf32>
    %cst_30 = arith.constant dense<0xFF800000> : vector<1xf32>
    %55 = vector.multi_reduction <maximumf>, %54, %cst_30 [0] : vector<8x1xf32> to vector<1xf32>
    %56 = vector.shape_cast %55 : vector<1xf32> to vector<1x1xf32>
    %57 = vector.broadcast %56 : vector<1x1xf32> to vector<8x1xf32>
    %58 = arith.subf %54, %57 : vector<8x1xf32>
    %59 = math.exp %58 : vector<8x1xf32>
    %cst_31 = arith.constant dense<0.000000e+00> : vector<1xf32>
    %60 = vector.multi_reduction <add>, %59, %cst_31 [0] : vector<8x1xf32> to vector<1xf32>
    %61 = vector.shape_cast %60 : vector<1xf32> to vector<1x1xf32>
    %62 = math.log %61 : vector<1x1xf32>
    %63 = vector.broadcast %56 : vector<1x1xf32> to vector<8x1xf32>
    %64 = arith.subf %54, %63 : vector<8x1xf32>
    %65 = vector.broadcast %62 : vector<1x1xf32> to vector<8x1xf32>
    %66 = arith.subf %64, %65 : vector<8x1xf32>
    %67 = vector.broadcast %66 : vector<8x1xf32> to vector<8x32xf32>
    %68 = arith.mulf %67, %6 : vector<8x32xf32>
    %cst_32 = arith.constant dense<0.000000e+00> : vector<32xf32>
    %69 = vector.multi_reduction <add>, %68, %cst_32 [0] : vector<8x32xf32> to vector<32xf32>
    %70 = vector.shape_cast %69 : vector<32xf32> to vector<1x32xf32>
    %71 = tpu.concatenate %45, %70 in 0 : vector<1x32xf32>, vector<1x32xf32> -> vector<2x32xf32>
    %c0_33 = arith.constant 0 : index
    %c0_34 = arith.constant 0 : index
    %72 = vector.load %arg5[%c0_33, %c0_34] : memref<32x512xf32, #tpu.memory_space<vmem>>, vector<32x512xf32>
    %cst_35 = arith.constant dense<0.000000e+00> : vector<2x512xf32>
    %73 = tpu.matmul %17, %72, %cst_35 {dimension_numbers = #tpu.dot_dimension_numbers<[1], [0], [0], [1], [0, 0, 1, 1], [], []>} : vector<2x32xf32>, vector<32x512xf32>, vector<2x512xf32> -> vector<2x512xf32>
    %c0_36 = arith.constant 0 : index
    %c0_37 = arith.constant 0 : index
    %74 = vector.load %arg6[%c0_36, %c0_37] : memref<32x512xf32, #tpu.memory_space<vmem>>, vector<32x512xf32>
    %cst_38 = arith.constant dense<0.000000e+00> : vector<2x512xf32>
    %75 = tpu.matmul %71, %74, %cst_38 {dimension_numbers = #tpu.dot_dimension_numbers<[1], [0], [0], [1], [0, 0, 1, 1], [], []>} : vector<2x32xf32>, vector<32x512xf32>, vector<2x512xf32> -> vector<2x512xf32>
    %76 = arith.addf %73, %75 : vector<2x512xf32>
    %c0_39 = arith.constant 0 : index
    %c0_40 = arith.constant 0 : index
    %77 = vector.load %arg7[%c0_39, %c0_40] : memref<128x512xf32, #tpu.memory_space<vmem>>, vector<128x512xf32>
    %cst_41 = arith.constant dense<0.000000e+00> : vector<2x512xf32>
    %78 = tpu.matmul %11, %77, %cst_41 {dimension_numbers = #tpu.dot_dimension_numbers<[1], [0], [0], [1], [0, 0, 1, 1], [], []>} : vector<2x128xf32>, vector<128x512xf32>, vector<2x512xf32> -> vector<2x512xf32>
    %79 = arith.addf %76, %78 : vector<2x512xf32>
    %c0_42 = arith.constant 0 : index
    %c0_43 = arith.constant 0 : index
    %80 = vector.load %arg8[%c0_42, %c0_43] : memref<1x512xf32, #tpu.memory_space<vmem>>, vector<1x512xf32>
    %81 = vector.broadcast %80 : vector<1x512xf32> to vector<2x512xf32>
    %82 = arith.addf %79, %81 : vector<2x512xf32>
    %83 = vector.extract_strided_slice %82 {offsets = [0, 0], sizes = [2, 128], strides = [1, 1]} : vector<2x512xf32> to vector<2x128xf32>
    %84 = arith.negf %83 : vector<2x128xf32>
    %85 = math.exp %84 : vector<2x128xf32>
    %cst_44 = arith.constant 1.000000e+00 : f32
    %86 = vector.broadcast %cst_44 : f32 to vector<2x128xf32>
    %87 = arith.addf %86, %85 : vector<2x128xf32>
    %88 = arith.divf %86, %87 : vector<2x128xf32>
    %89 = vector.extract_strided_slice %82 {offsets = [0, 128], sizes = [2, 128], strides = [1, 1]} : vector<2x512xf32> to vector<2x128xf32>
    %90 = arith.negf %89 : vector<2x128xf32>
    %91 = math.exp %90 : vector<2x128xf32>
    %cst_45 = arith.constant 1.000000e+00 : f32
    %92 = vector.broadcast %cst_45 : f32 to vector<2x128xf32>
    %93 = arith.addf %92, %91 : vector<2x128xf32>
    %94 = arith.divf %92, %93 : vector<2x128xf32>
    %95 = vector.extract_strided_slice %82 {offsets = [0, 256], sizes = [2, 128], strides = [1, 1]} : vector<2x512xf32> to vector<2x128xf32>
    %96 = math.tanh %95 : vector<2x128xf32>
    %97 = vector.extract_strided_slice %82 {offsets = [0, 384], sizes = [2, 128], strides = [1, 1]} : vector<2x512xf32> to vector<2x128xf32>
    %98 = arith.negf %97 : vector<2x128xf32>
    %99 = math.exp %98 : vector<2x128xf32>
    %cst_46 = arith.constant 1.000000e+00 : f32
    %100 = vector.broadcast %cst_46 : f32 to vector<2x128xf32>
    %101 = arith.addf %100, %99 : vector<2x128xf32>
    %102 = arith.divf %100, %101 : vector<2x128xf32>
    %103 = arith.mulf %94, %12 : vector<2x128xf32>
    %104 = arith.mulf %88, %96 : vector<2x128xf32>
    %105 = arith.addf %103, %104 : vector<2x128xf32>
    %106 = math.tanh %105 : vector<2x128xf32>
    %107 = arith.mulf %102, %106 : vector<2x128xf32>
    %c0_47 = arith.constant 0 : index
    %c0_48 = arith.constant 0 : index
    %108 = vector.load %arg9[%c0_47, %c0_48] : memref<128x512xf32, #tpu.memory_space<vmem>>, vector<128x512xf32>
    %cst_49 = arith.constant dense<0.000000e+00> : vector<2x512xf32>
    %109 = tpu.matmul %107, %108, %cst_49 {dimension_numbers = #tpu.dot_dimension_numbers<[1], [0], [0], [1], [0, 0, 1, 1], [], []>} : vector<2x128xf32>, vector<128x512xf32>, vector<2x512xf32> -> vector<2x512xf32>
    %c0_50 = arith.constant 0 : index
    %c0_51 = arith.constant 0 : index
    %110 = vector.load %arg10[%c0_50, %c0_51] : memref<128x512xf32, #tpu.memory_space<vmem>>, vector<128x512xf32>
    %cst_52 = arith.constant dense<0.000000e+00> : vector<2x512xf32>
    %111 = tpu.matmul %13, %110, %cst_52 {dimension_numbers = #tpu.dot_dimension_numbers<[1], [0], [0], [1], [0, 0, 1, 1], [], []>} : vector<2x128xf32>, vector<128x512xf32>, vector<2x512xf32> -> vector<2x512xf32>
    %112 = arith.addf %109, %111 : vector<2x512xf32>
    %c0_53 = arith.constant 0 : index
    %c0_54 = arith.constant 0 : index
    %113 = vector.load %arg11[%c0_53, %c0_54] : memref<1x512xf32, #tpu.memory_space<vmem>>, vector<1x512xf32>
    %114 = vector.broadcast %113 : vector<1x512xf32> to vector<2x512xf32>
    %115 = arith.addf %112, %114 : vector<2x512xf32>
    %116 = vector.extract_strided_slice %115 {offsets = [0, 0], sizes = [2, 128], strides = [1, 1]} : vector<2x512xf32> to vector<2x128xf32>
    %117 = arith.negf %116 : vector<2x128xf32>
    %118 = math.exp %117 : vector<2x128xf32>
    %cst_55 = arith.constant 1.000000e+00 : f32
    %119 = vector.broadcast %cst_55 : f32 to vector<2x128xf32>
    %120 = arith.addf %119, %118 : vector<2x128xf32>
    %121 = arith.divf %119, %120 : vector<2x128xf32>
    %122 = vector.extract_strided_slice %115 {offsets = [0, 128], sizes = [2, 128], strides = [1, 1]} : vector<2x512xf32> to vector<2x128xf32>
    %123 = arith.negf %122 : vector<2x128xf32>
    %124 = math.exp %123 : vector<2x128xf32>
    %cst_56 = arith.constant 1.000000e+00 : f32
    %125 = vector.broadcast %cst_56 : f32 to vector<2x128xf32>
    %126 = arith.addf %125, %124 : vector<2x128xf32>
    %127 = arith.divf %125, %126 : vector<2x128xf32>
    %128 = vector.extract_strided_slice %115 {offsets = [0, 256], sizes = [2, 128], strides = [1, 1]} : vector<2x512xf32> to vector<2x128xf32>
    %129 = math.tanh %128 : vector<2x128xf32>
    %130 = vector.extract_strided_slice %115 {offsets = [0, 384], sizes = [2, 128], strides = [1, 1]} : vector<2x512xf32> to vector<2x128xf32>
    %131 = arith.negf %130 : vector<2x128xf32>
    %132 = math.exp %131 : vector<2x128xf32>
    %cst_57 = arith.constant 1.000000e+00 : f32
    %133 = vector.broadcast %cst_57 : f32 to vector<2x128xf32>
    %134 = arith.addf %133, %132 : vector<2x128xf32>
    %135 = arith.divf %133, %134 : vector<2x128xf32>
    %136 = arith.mulf %127, %14 : vector<2x128xf32>
    %137 = arith.mulf %121, %129 : vector<2x128xf32>
    %138 = arith.addf %136, %137 : vector<2x128xf32>
    %139 = math.tanh %138 : vector<2x128xf32>
    %140 = arith.mulf %135, %139 : vector<2x128xf32>
    %c0_58 = arith.constant 0 : index
    %c0_59 = arith.constant 0 : index
    %141 = vector.load %arg12[%c0_58, %c0_59] : memref<128x512xf32, #tpu.memory_space<vmem>>, vector<128x512xf32>
    %cst_60 = arith.constant dense<0.000000e+00> : vector<2x512xf32>
    %142 = tpu.matmul %140, %141, %cst_60 {dimension_numbers = #tpu.dot_dimension_numbers<[1], [0], [0], [1], [0, 0, 1, 1], [], []>} : vector<2x128xf32>, vector<128x512xf32>, vector<2x512xf32> -> vector<2x512xf32>
    %c0_61 = arith.constant 0 : index
    %c0_62 = arith.constant 0 : index
    %143 = vector.load %arg13[%c0_61, %c0_62] : memref<128x512xf32, #tpu.memory_space<vmem>>, vector<128x512xf32>
    %cst_63 = arith.constant dense<0.000000e+00> : vector<2x512xf32>
    %144 = tpu.matmul %15, %143, %cst_63 {dimension_numbers = #tpu.dot_dimension_numbers<[1], [0], [0], [1], [0, 0, 1, 1], [], []>} : vector<2x128xf32>, vector<128x512xf32>, vector<2x512xf32> -> vector<2x512xf32>
    %145 = arith.addf %142, %144 : vector<2x512xf32>
    %c0_64 = arith.constant 0 : index
    %c0_65 = arith.constant 0 : index
    %146 = vector.load %arg14[%c0_64, %c0_65] : memref<1x512xf32, #tpu.memory_space<vmem>>, vector<1x512xf32>
    %147 = vector.broadcast %146 : vector<1x512xf32> to vector<2x512xf32>
    %148 = arith.addf %145, %147 : vector<2x512xf32>
    %149 = vector.extract_strided_slice %148 {offsets = [0, 0], sizes = [2, 128], strides = [1, 1]} : vector<2x512xf32> to vector<2x128xf32>
    %150 = arith.negf %149 : vector<2x128xf32>
    %151 = math.exp %150 : vector<2x128xf32>
    %cst_66 = arith.constant 1.000000e+00 : f32
    %152 = vector.broadcast %cst_66 : f32 to vector<2x128xf32>
    %153 = arith.addf %152, %151 : vector<2x128xf32>
    %154 = arith.divf %152, %153 : vector<2x128xf32>
    %155 = vector.extract_strided_slice %148 {offsets = [0, 128], sizes = [2, 128], strides = [1, 1]} : vector<2x512xf32> to vector<2x128xf32>
    %156 = arith.negf %155 : vector<2x128xf32>
    %157 = math.exp %156 : vector<2x128xf32>
    %cst_67 = arith.constant 1.000000e+00 : f32
    %158 = vector.broadcast %cst_67 : f32 to vector<2x128xf32>
    %159 = arith.addf %158, %157 : vector<2x128xf32>
    %160 = arith.divf %158, %159 : vector<2x128xf32>
    %161 = vector.extract_strided_slice %148 {offsets = [0, 256], sizes = [2, 128], strides = [1, 1]} : vector<2x512xf32> to vector<2x128xf32>
    %162 = math.tanh %161 : vector<2x128xf32>
    %163 = vector.extract_strided_slice %148 {offsets = [0, 384], sizes = [2, 128], strides = [1, 1]} : vector<2x512xf32> to vector<2x128xf32>
    %164 = arith.negf %163 : vector<2x128xf32>
    %165 = math.exp %164 : vector<2x128xf32>
    %cst_68 = arith.constant 1.000000e+00 : f32
    %166 = vector.broadcast %cst_68 : f32 to vector<2x128xf32>
    %167 = arith.addf %166, %165 : vector<2x128xf32>
    %168 = arith.divf %166, %167 : vector<2x128xf32>
    %169 = arith.mulf %160, %16 : vector<2x128xf32>
    %170 = arith.mulf %154, %162 : vector<2x128xf32>
    %171 = arith.addf %169, %170 : vector<2x128xf32>
    %172 = math.tanh %171 : vector<2x128xf32>
    %173 = arith.mulf %168, %172 : vector<2x128xf32>
    %c0_69 = arith.constant 0 : index
    %c0_70 = arith.constant 0 : index
    %174 = vector.load %arg15[%c0_69, %c0_70] : memref<128x256xf32, #tpu.memory_space<vmem>>, vector<128x256xf32>
    %cst_71 = arith.constant dense<0.000000e+00> : vector<2x256xf32>
    %175 = tpu.matmul %173, %174, %cst_71 {dimension_numbers = #tpu.dot_dimension_numbers<[1], [0], [0], [1], [0, 0, 1, 1], [], []>} : vector<2x128xf32>, vector<128x256xf32>, vector<2x256xf32> -> vector<2x256xf32>
    %176 = vector.extract_strided_slice %175 {offsets = [0, 0], sizes = [2, 128], strides = [1, 1]} : vector<2x256xf32> to vector<2x128xf32>
    %177 = vector.broadcast %2 : vector<1x128xf32> to vector<2x128xf32>
    %178 = arith.addf %176, %177 : vector<2x128xf32>
    %179 = vector.extract_strided_slice %175 {offsets = [0, 128], sizes = [2, 128], strides = [1, 1]} : vector<2x256xf32> to vector<2x128xf32>
    %180 = vector.broadcast %1 : vector<1x128xf32> to vector<2x128xf32>
    %181 = arith.addf %179, %180 : vector<2x128xf32>
    %cst_72 = arith.constant dense<0xFF800000> : vector<2xf32>
    %182 = vector.multi_reduction <maximumf>, %178, %cst_72 [1] : vector<2x128xf32> to vector<2xf32>
    %183 = vector.shape_cast %182 : vector<2xf32> to vector<2x1xf32>
    %184 = vector.broadcast %183 : vector<2x1xf32> to vector<2x128xf32>
    %185 = arith.subf %178, %184 : vector<2x128xf32>
    %186 = vector.broadcast %183 : vector<2x1xf32> to vector<2x128xf32>
    %187 = arith.subf %178, %186 : vector<2x128xf32>
    %188 = math.exp %187 : vector<2x128xf32>
    %cst_73 = arith.constant dense<0.000000e+00> : vector<2xf32>
    %189 = vector.multi_reduction <add>, %188, %cst_73 [1] : vector<2x128xf32> to vector<2xf32>
    %190 = vector.shape_cast %189 : vector<2xf32> to vector<2x1xf32>
    %191 = math.log %190 : vector<2x1xf32>
    %192 = vector.broadcast %191 : vector<2x1xf32> to vector<2x128xf32>
    %193 = arith.subf %185, %192 : vector<2x128xf32>
    %194 = vector.broadcast %183 : vector<2x1xf32> to vector<2x128xf32>
    %195 = arith.cmpf oeq, %178, %194 : vector<2x128xf32>
    %c128_i32 = arith.constant 128 : i32
    %196 = vector.broadcast %c128_i32 : i32 to vector<2x128xi32>
    %197 = arith.select %195, %20, %196 : vector<2x128xi1>, vector<2x128xi32>
    %cst_74 = arith.constant dense<2147483647> : vector<2xi32>
    %198 = vector.multi_reduction <minsi>, %197, %cst_74 [1] : vector<2x128xi32> to vector<2xi32>
    %199 = vector.shape_cast %198 : vector<2xi32> to vector<2x1xi32>
    %200 = vector.broadcast %199 : vector<2x1xi32> to vector<2x128xi32>
    %201 = arith.cmpi eq, %20, %200 : vector<2x128xi32>
    %202 = arith.extui %201 : vector<2x128xi1> to vector<2x128xi32>
    %203 = arith.sitofp %202 : vector<2x128xi32> to vector<2x128xf32>
    %c0_75 = arith.constant 0 : index
    %c0_76 = arith.constant 0 : index
    %204 = vector.load %arg17[%c0_75, %c0_76] : memref<128x32xf32, #tpu.memory_space<vmem>>, vector<128x32xf32>
    %cst_77 = arith.constant dense<0.000000e+00> : vector<2x32xf32>
    %205 = tpu.matmul %203, %204, %cst_77 {dimension_numbers = #tpu.dot_dimension_numbers<[1], [0], [0], [1], [0, 0, 1, 1], [], []>} : vector<2x128xf32>, vector<128x32xf32>, vector<2x32xf32> -> vector<2x32xf32>
    %206 = vector.extract_strided_slice %181 {offsets = [0, 0], sizes = [1, 128], strides = [1, 1]} : vector<2x128xf32> to vector<1x128xf32>
    %207 = vector.broadcast %206 : vector<1x128xf32> to vector<8x128xf32>
    %208 = arith.addf %8, %207 : vector<8x128xf32>
    %cst_78 = arith.constant 0.000000e+00 : f32
    %209 = vector.broadcast %cst_78 : f32 to vector<8x128xf32>
    %210 = arith.maximumf %208, %209 : vector<8x128xf32>
    %211 = vector.broadcast %0 : vector<1x128xf32> to vector<8x128xf32>
    %212 = arith.mulf %210, %211 : vector<8x128xf32>
    %cst_79 = arith.constant dense<0.000000e+00> : vector<8xf32>
    %213 = vector.multi_reduction <add>, %212, %cst_79 [1] : vector<8x128xf32> to vector<8xf32>
    %214 = vector.shape_cast %213 : vector<8xf32> to vector<8x1xf32>
    %cst_80 = arith.constant dense<0xFF800000> : vector<1xf32>
    %215 = vector.multi_reduction <maximumf>, %214, %cst_80 [0] : vector<8x1xf32> to vector<1xf32>
    %216 = vector.shape_cast %215 : vector<1xf32> to vector<1x1xf32>
    %217 = vector.broadcast %216 : vector<1x1xf32> to vector<8x1xf32>
    %218 = arith.subf %214, %217 : vector<8x1xf32>
    %219 = math.exp %218 : vector<8x1xf32>
    %cst_81 = arith.constant dense<0.000000e+00> : vector<1xf32>
    %220 = vector.multi_reduction <add>, %219, %cst_81 [0] : vector<8x1xf32> to vector<1xf32>
    %221 = vector.shape_cast %220 : vector<1xf32> to vector<1x1xf32>
    %222 = math.log %221 : vector<1x1xf32>
    %223 = vector.broadcast %216 : vector<1x1xf32> to vector<8x1xf32>
    %224 = arith.subf %214, %223 : vector<8x1xf32>
    %225 = vector.broadcast %222 : vector<1x1xf32> to vector<8x1xf32>
    %226 = arith.subf %224, %225 : vector<8x1xf32>
    %227 = vector.broadcast %226 : vector<8x1xf32> to vector<8x32xf32>
    %228 = arith.mulf %227, %4 : vector<8x32xf32>
    %cst_82 = arith.constant dense<0.000000e+00> : vector<32xf32>
    %229 = vector.multi_reduction <add>, %228, %cst_82 [0] : vector<8x32xf32> to vector<32xf32>
    %230 = vector.shape_cast %229 : vector<32xf32> to vector<1x32xf32>
    %231 = vector.extract_strided_slice %181 {offsets = [1, 0], sizes = [1, 128], strides = [1, 1]} : vector<2x128xf32> to vector<1x128xf32>
    %232 = vector.broadcast %231 : vector<1x128xf32> to vector<8x128xf32>
    %233 = arith.addf %10, %232 : vector<8x128xf32>
    %cst_83 = arith.constant 0.000000e+00 : f32
    %234 = vector.broadcast %cst_83 : f32 to vector<8x128xf32>
    %235 = arith.maximumf %233, %234 : vector<8x128xf32>
    %236 = vector.broadcast %0 : vector<1x128xf32> to vector<8x128xf32>
    %237 = arith.mulf %235, %236 : vector<8x128xf32>
    %cst_84 = arith.constant dense<0.000000e+00> : vector<8xf32>
    %238 = vector.multi_reduction <add>, %237, %cst_84 [1] : vector<8x128xf32> to vector<8xf32>
    %239 = vector.shape_cast %238 : vector<8xf32> to vector<8x1xf32>
    %cst_85 = arith.constant dense<0xFF800000> : vector<1xf32>
    %240 = vector.multi_reduction <maximumf>, %239, %cst_85 [0] : vector<8x1xf32> to vector<1xf32>
    %241 = vector.shape_cast %240 : vector<1xf32> to vector<1x1xf32>
    %242 = vector.broadcast %241 : vector<1x1xf32> to vector<8x1xf32>
    %243 = arith.subf %239, %242 : vector<8x1xf32>
    %244 = math.exp %243 : vector<8x1xf32>
    %cst_86 = arith.constant dense<0.000000e+00> : vector<1xf32>
    %245 = vector.multi_reduction <add>, %244, %cst_86 [0] : vector<8x1xf32> to vector<1xf32>
    %246 = vector.shape_cast %245 : vector<1xf32> to vector<1x1xf32>
    %247 = math.log %246 : vector<1x1xf32>
    %248 = vector.broadcast %241 : vector<1x1xf32> to vector<8x1xf32>
    %249 = arith.subf %239, %248 : vector<8x1xf32>
    %250 = vector.broadcast %247 : vector<1x1xf32> to vector<8x1xf32>
    %251 = arith.subf %249, %250 : vector<8x1xf32>
    %252 = vector.broadcast %251 : vector<8x1xf32> to vector<8x32xf32>
    %253 = arith.mulf %252, %6 : vector<8x32xf32>
    %cst_87 = arith.constant dense<0.000000e+00> : vector<32xf32>
    %254 = vector.multi_reduction <add>, %253, %cst_87 [0] : vector<8x32xf32> to vector<32xf32>
    %255 = vector.shape_cast %254 : vector<32xf32> to vector<1x32xf32>
    %256 = tpu.concatenate %230, %255 in 0 : vector<1x32xf32>, vector<1x32xf32> -> vector<2x32xf32>
    %c0_88 = arith.constant 0 : index
    %c0_89 = arith.constant 0 : index
    %257 = vector.load %arg5[%c0_88, %c0_89] : memref<32x512xf32, #tpu.memory_space<vmem>>, vector<32x512xf32>
    %cst_90 = arith.constant dense<0.000000e+00> : vector<2x512xf32>
    %258 = tpu.matmul %205, %257, %cst_90 {dimension_numbers = #tpu.dot_dimension_numbers<[1], [0], [0], [1], [0, 0, 1, 1], [], []>} : vector<2x32xf32>, vector<32x512xf32>, vector<2x512xf32> -> vector<2x512xf32>
    %c0_91 = arith.constant 0 : index
    %c0_92 = arith.constant 0 : index
    %259 = vector.load %arg6[%c0_91, %c0_92] : memref<32x512xf32, #tpu.memory_space<vmem>>, vector<32x512xf32>
    %cst_93 = arith.constant dense<0.000000e+00> : vector<2x512xf32>
    %260 = tpu.matmul %256, %259, %cst_93 {dimension_numbers = #tpu.dot_dimension_numbers<[1], [0], [0], [1], [0, 0, 1, 1], [], []>} : vector<2x32xf32>, vector<32x512xf32>, vector<2x512xf32> -> vector<2x512xf32>
    %261 = arith.addf %258, %260 : vector<2x512xf32>
    %c0_94 = arith.constant 0 : index
    %c0_95 = arith.constant 0 : index
    %262 = vector.load %arg7[%c0_94, %c0_95] : memref<128x512xf32, #tpu.memory_space<vmem>>, vector<128x512xf32>
    %cst_96 = arith.constant dense<0.000000e+00> : vector<2x512xf32>
    %263 = tpu.matmul %107, %262, %cst_96 {dimension_numbers = #tpu.dot_dimension_numbers<[1], [0], [0], [1], [0, 0, 1, 1], [], []>} : vector<2x128xf32>, vector<128x512xf32>, vector<2x512xf32> -> vector<2x512xf32>
    %264 = arith.addf %261, %263 : vector<2x512xf32>
    %c0_97 = arith.constant 0 : index
    %c0_98 = arith.constant 0 : index
    %265 = vector.load %arg8[%c0_97, %c0_98] : memref<1x512xf32, #tpu.memory_space<vmem>>, vector<1x512xf32>
    %266 = vector.broadcast %265 : vector<1x512xf32> to vector<2x512xf32>
    %267 = arith.addf %264, %266 : vector<2x512xf32>
    %268 = vector.extract_strided_slice %267 {offsets = [0, 0], sizes = [2, 128], strides = [1, 1]} : vector<2x512xf32> to vector<2x128xf32>
    %269 = arith.negf %268 : vector<2x128xf32>
    %270 = math.exp %269 : vector<2x128xf32>
    %cst_99 = arith.constant 1.000000e+00 : f32
    %271 = vector.broadcast %cst_99 : f32 to vector<2x128xf32>
    %272 = arith.addf %271, %270 : vector<2x128xf32>
    %273 = arith.divf %271, %272 : vector<2x128xf32>
    %274 = vector.extract_strided_slice %267 {offsets = [0, 128], sizes = [2, 128], strides = [1, 1]} : vector<2x512xf32> to vector<2x128xf32>
    %275 = arith.negf %274 : vector<2x128xf32>
    %276 = math.exp %275 : vector<2x128xf32>
    %cst_100 = arith.constant 1.000000e+00 : f32
    %277 = vector.broadcast %cst_100 : f32 to vector<2x128xf32>
    %278 = arith.addf %277, %276 : vector<2x128xf32>
    %279 = arith.divf %277, %278 : vector<2x128xf32>
    %280 = vector.extract_strided_slice %267 {offsets = [0, 256], sizes = [2, 128], strides = [1, 1]} : vector<2x512xf32> to vector<2x128xf32>
    %281 = math.tanh %280 : vector<2x128xf32>
    %282 = vector.extract_strided_slice %267 {offsets = [0, 384], sizes = [2, 128], strides = [1, 1]} : vector<2x512xf32> to vector<2x128xf32>
    %283 = arith.negf %282 : vector<2x128xf32>
    %284 = math.exp %283 : vector<2x128xf32>
    %cst_101 = arith.constant 1.000000e+00 : f32
    %285 = vector.broadcast %cst_101 : f32 to vector<2x128xf32>
    %286 = arith.addf %285, %284 : vector<2x128xf32>
    %287 = arith.divf %285, %286 : vector<2x128xf32>
    %288 = arith.mulf %279, %105 : vector<2x128xf32>
    %289 = arith.mulf %273, %281 : vector<2x128xf32>
    %290 = arith.addf %288, %289 : vector<2x128xf32>
    %291 = math.tanh %290 : vector<2x128xf32>
    %292 = arith.mulf %287, %291 : vector<2x128xf32>
    %c0_102 = arith.constant 0 : index
    %c0_103 = arith.constant 0 : index
    %293 = vector.load %arg9[%c0_102, %c0_103] : memref<128x512xf32, #tpu.memory_space<vmem>>, vector<128x512xf32>
    %cst_104 = arith.constant dense<0.000000e+00> : vector<2x512xf32>
    %294 = tpu.matmul %292, %293, %cst_104 {dimension_numbers = #tpu.dot_dimension_numbers<[1], [0], [0], [1], [0, 0, 1, 1], [], []>} : vector<2x128xf32>, vector<128x512xf32>, vector<2x512xf32> -> vector<2x512xf32>
    %c0_105 = arith.constant 0 : index
    %c0_106 = arith.constant 0 : index
    %295 = vector.load %arg10[%c0_105, %c0_106] : memref<128x512xf32, #tpu.memory_space<vmem>>, vector<128x512xf32>
    %cst_107 = arith.constant dense<0.000000e+00> : vector<2x512xf32>
    %296 = tpu.matmul %140, %295, %cst_107 {dimension_numbers = #tpu.dot_dimension_numbers<[1], [0], [0], [1], [0, 0, 1, 1], [], []>} : vector<2x128xf32>, vector<128x512xf32>, vector<2x512xf32> -> vector<2x512xf32>
    %297 = arith.addf %294, %296 : vector<2x512xf32>
    %c0_108 = arith.constant 0 : index
    %c0_109 = arith.constant 0 : index
    %298 = vector.load %arg11[%c0_108, %c0_109] : memref<1x512xf32, #tpu.memory_space<vmem>>, vector<1x512xf32>
    %299 = vector.broadcast %298 : vector<1x512xf32> to vector<2x512xf32>
    %300 = arith.addf %297, %299 : vector<2x512xf32>
    %301 = vector.extract_strided_slice %300 {offsets = [0, 0], sizes = [2, 128], strides = [1, 1]} : vector<2x512xf32> to vector<2x128xf32>
    %302 = arith.negf %301 : vector<2x128xf32>
    %303 = math.exp %302 : vector<2x128xf32>
    %cst_110 = arith.constant 1.000000e+00 : f32
    %304 = vector.broadcast %cst_110 : f32 to vector<2x128xf32>
    %305 = arith.addf %304, %303 : vector<2x128xf32>
    %306 = arith.divf %304, %305 : vector<2x128xf32>
    %307 = vector.extract_strided_slice %300 {offsets = [0, 128], sizes = [2, 128], strides = [1, 1]} : vector<2x512xf32> to vector<2x128xf32>
    %308 = arith.negf %307 : vector<2x128xf32>
    %309 = math.exp %308 : vector<2x128xf32>
    %cst_111 = arith.constant 1.000000e+00 : f32
    %310 = vector.broadcast %cst_111 : f32 to vector<2x128xf32>
    %311 = arith.addf %310, %309 : vector<2x128xf32>
    %312 = arith.divf %310, %311 : vector<2x128xf32>
    %313 = vector.extract_strided_slice %300 {offsets = [0, 256], sizes = [2, 128], strides = [1, 1]} : vector<2x512xf32> to vector<2x128xf32>
    %314 = math.tanh %313 : vector<2x128xf32>
    %315 = vector.extract_strided_slice %300 {offsets = [0, 384], sizes = [2, 128], strides = [1, 1]} : vector<2x512xf32> to vector<2x128xf32>
    %316 = arith.negf %315 : vector<2x128xf32>
    %317 = math.exp %316 : vector<2x128xf32>
    %cst_112 = arith.constant 1.000000e+00 : f32
    %318 = vector.broadcast %cst_112 : f32 to vector<2x128xf32>
    %319 = arith.addf %318, %317 : vector<2x128xf32>
    %320 = arith.divf %318, %319 : vector<2x128xf32>
    %321 = arith.mulf %312, %138 : vector<2x128xf32>
    %322 = arith.mulf %306, %314 : vector<2x128xf32>
    %323 = arith.addf %321, %322 : vector<2x128xf32>
    %324 = math.tanh %323 : vector<2x128xf32>
    %325 = arith.mulf %320, %324 : vector<2x128xf32>
    %c0_113 = arith.constant 0 : index
    %c0_114 = arith.constant 0 : index
    %326 = vector.load %arg12[%c0_113, %c0_114] : memref<128x512xf32, #tpu.memory_space<vmem>>, vector<128x512xf32>
    %cst_115 = arith.constant dense<0.000000e+00> : vector<2x512xf32>
    %327 = tpu.matmul %325, %326, %cst_115 {dimension_numbers = #tpu.dot_dimension_numbers<[1], [0], [0], [1], [0, 0, 1, 1], [], []>} : vector<2x128xf32>, vector<128x512xf32>, vector<2x512xf32> -> vector<2x512xf32>
    %c0_116 = arith.constant 0 : index
    %c0_117 = arith.constant 0 : index
    %328 = vector.load %arg13[%c0_116, %c0_117] : memref<128x512xf32, #tpu.memory_space<vmem>>, vector<128x512xf32>
    %cst_118 = arith.constant dense<0.000000e+00> : vector<2x512xf32>
    %329 = tpu.matmul %173, %328, %cst_118 {dimension_numbers = #tpu.dot_dimension_numbers<[1], [0], [0], [1], [0, 0, 1, 1], [], []>} : vector<2x128xf32>, vector<128x512xf32>, vector<2x512xf32> -> vector<2x512xf32>
    %330 = arith.addf %327, %329 : vector<2x512xf32>
    %c0_119 = arith.constant 0 : index
    %c0_120 = arith.constant 0 : index
    %331 = vector.load %arg14[%c0_119, %c0_120] : memref<1x512xf32, #tpu.memory_space<vmem>>, vector<1x512xf32>
    %332 = vector.broadcast %331 : vector<1x512xf32> to vector<2x512xf32>
    %333 = arith.addf %330, %332 : vector<2x512xf32>
    %334 = vector.extract_strided_slice %333 {offsets = [0, 0], sizes = [2, 128], strides = [1, 1]} : vector<2x512xf32> to vector<2x128xf32>
    %335 = arith.negf %334 : vector<2x128xf32>
    %336 = math.exp %335 : vector<2x128xf32>
    %cst_121 = arith.constant 1.000000e+00 : f32
    %337 = vector.broadcast %cst_121 : f32 to vector<2x128xf32>
    %338 = arith.addf %337, %336 : vector<2x128xf32>
    %339 = arith.divf %337, %338 : vector<2x128xf32>
    %340 = vector.extract_strided_slice %333 {offsets = [0, 128], sizes = [2, 128], strides = [1, 1]} : vector<2x512xf32> to vector<2x128xf32>
    %341 = arith.negf %340 : vector<2x128xf32>
    %342 = math.exp %341 : vector<2x128xf32>
    %cst_122 = arith.constant 1.000000e+00 : f32
    %343 = vector.broadcast %cst_122 : f32 to vector<2x128xf32>
    %344 = arith.addf %343, %342 : vector<2x128xf32>
    %345 = arith.divf %343, %344 : vector<2x128xf32>
    %346 = vector.extract_strided_slice %333 {offsets = [0, 256], sizes = [2, 128], strides = [1, 1]} : vector<2x512xf32> to vector<2x128xf32>
    %347 = math.tanh %346 : vector<2x128xf32>
    %348 = vector.extract_strided_slice %333 {offsets = [0, 384], sizes = [2, 128], strides = [1, 1]} : vector<2x512xf32> to vector<2x128xf32>
    %349 = arith.negf %348 : vector<2x128xf32>
    %350 = math.exp %349 : vector<2x128xf32>
    %cst_123 = arith.constant 1.000000e+00 : f32
    %351 = vector.broadcast %cst_123 : f32 to vector<2x128xf32>
    %352 = arith.addf %351, %350 : vector<2x128xf32>
    %353 = arith.divf %351, %352 : vector<2x128xf32>
    %354 = arith.mulf %345, %171 : vector<2x128xf32>
    %355 = arith.mulf %339, %347 : vector<2x128xf32>
    %356 = arith.addf %354, %355 : vector<2x128xf32>
    %357 = math.tanh %356 : vector<2x128xf32>
    %358 = arith.mulf %353, %357 : vector<2x128xf32>
    %c0_124 = arith.constant 0 : index
    %c0_125 = arith.constant 0 : index
    %359 = vector.load %arg15[%c0_124, %c0_125] : memref<128x256xf32, #tpu.memory_space<vmem>>, vector<128x256xf32>
    %cst_126 = arith.constant dense<0.000000e+00> : vector<2x256xf32>
    %360 = tpu.matmul %358, %359, %cst_126 {dimension_numbers = #tpu.dot_dimension_numbers<[1], [0], [0], [1], [0, 0, 1, 1], [], []>} : vector<2x128xf32>, vector<128x256xf32>, vector<2x256xf32> -> vector<2x256xf32>
    %361 = vector.extract_strided_slice %360 {offsets = [0, 0], sizes = [2, 128], strides = [1, 1]} : vector<2x256xf32> to vector<2x128xf32>
    %362 = vector.broadcast %2 : vector<1x128xf32> to vector<2x128xf32>
    %363 = arith.addf %361, %362 : vector<2x128xf32>
    %364 = vector.extract_strided_slice %360 {offsets = [0, 128], sizes = [2, 128], strides = [1, 1]} : vector<2x256xf32> to vector<2x128xf32>
    %365 = vector.broadcast %1 : vector<1x128xf32> to vector<2x128xf32>
    %366 = arith.addf %364, %365 : vector<2x128xf32>
    %cst_127 = arith.constant dense<0xFF800000> : vector<2xf32>
    %367 = vector.multi_reduction <maximumf>, %363, %cst_127 [1] : vector<2x128xf32> to vector<2xf32>
    %368 = vector.shape_cast %367 : vector<2xf32> to vector<2x1xf32>
    %369 = vector.broadcast %368 : vector<2x1xf32> to vector<2x128xf32>
    %370 = arith.subf %363, %369 : vector<2x128xf32>
    %371 = vector.broadcast %368 : vector<2x1xf32> to vector<2x128xf32>
    %372 = arith.subf %363, %371 : vector<2x128xf32>
    %373 = math.exp %372 : vector<2x128xf32>
    %cst_128 = arith.constant dense<0.000000e+00> : vector<2xf32>
    %374 = vector.multi_reduction <add>, %373, %cst_128 [1] : vector<2x128xf32> to vector<2xf32>
    %375 = vector.shape_cast %374 : vector<2xf32> to vector<2x1xf32>
    %376 = math.log %375 : vector<2x1xf32>
    %377 = vector.broadcast %376 : vector<2x1xf32> to vector<2x128xf32>
    %378 = arith.subf %370, %377 : vector<2x128xf32>
    %379 = vector.broadcast %368 : vector<2x1xf32> to vector<2x128xf32>
    %380 = arith.cmpf oeq, %363, %379 : vector<2x128xf32>
    %c128_i32_129 = arith.constant 128 : i32
    %381 = vector.broadcast %c128_i32_129 : i32 to vector<2x128xi32>
    %382 = arith.select %380, %20, %381 : vector<2x128xi1>, vector<2x128xi32>
    %cst_130 = arith.constant dense<2147483647> : vector<2xi32>
    %383 = vector.multi_reduction <minsi>, %382, %cst_130 [1] : vector<2x128xi32> to vector<2xi32>
    %384 = vector.shape_cast %383 : vector<2xi32> to vector<2x1xi32>
    %385 = vector.broadcast %384 : vector<2x1xi32> to vector<2x128xi32>
    %386 = arith.cmpi eq, %20, %385 : vector<2x128xi32>
    %387 = arith.extui %386 : vector<2x128xi1> to vector<2x128xi32>
    %388 = arith.sitofp %387 : vector<2x128xi32> to vector<2x128xf32>
    %c0_131 = arith.constant 0 : index
    %c0_132 = arith.constant 0 : index
    %389 = vector.load %arg17[%c0_131, %c0_132] : memref<128x32xf32, #tpu.memory_space<vmem>>, vector<128x32xf32>
    %cst_133 = arith.constant dense<0.000000e+00> : vector<2x32xf32>
    %390 = tpu.matmul %388, %389, %cst_133 {dimension_numbers = #tpu.dot_dimension_numbers<[1], [0], [0], [1], [0, 0, 1, 1], [], []>} : vector<2x128xf32>, vector<128x32xf32>, vector<2x32xf32> -> vector<2x32xf32>
    %391 = vector.extract_strided_slice %366 {offsets = [0, 0], sizes = [1, 128], strides = [1, 1]} : vector<2x128xf32> to vector<1x128xf32>
    %392 = vector.broadcast %391 : vector<1x128xf32> to vector<8x128xf32>
    %393 = arith.addf %8, %392 : vector<8x128xf32>
    %cst_134 = arith.constant 0.000000e+00 : f32
    %394 = vector.broadcast %cst_134 : f32 to vector<8x128xf32>
    %395 = arith.maximumf %393, %394 : vector<8x128xf32>
    %396 = vector.broadcast %0 : vector<1x128xf32> to vector<8x128xf32>
    %397 = arith.mulf %395, %396 : vector<8x128xf32>
    %cst_135 = arith.constant dense<0.000000e+00> : vector<8xf32>
    %398 = vector.multi_reduction <add>, %397, %cst_135 [1] : vector<8x128xf32> to vector<8xf32>
    %399 = vector.shape_cast %398 : vector<8xf32> to vector<8x1xf32>
    %cst_136 = arith.constant dense<0xFF800000> : vector<1xf32>
    %400 = vector.multi_reduction <maximumf>, %399, %cst_136 [0] : vector<8x1xf32> to vector<1xf32>
    %401 = vector.shape_cast %400 : vector<1xf32> to vector<1x1xf32>
    %402 = vector.broadcast %401 : vector<1x1xf32> to vector<8x1xf32>
    %403 = arith.subf %399, %402 : vector<8x1xf32>
    %404 = math.exp %403 : vector<8x1xf32>
    %cst_137 = arith.constant dense<0.000000e+00> : vector<1xf32>
    %405 = vector.multi_reduction <add>, %404, %cst_137 [0] : vector<8x1xf32> to vector<1xf32>
    %406 = vector.shape_cast %405 : vector<1xf32> to vector<1x1xf32>
    %407 = math.log %406 : vector<1x1xf32>
    %408 = vector.broadcast %401 : vector<1x1xf32> to vector<8x1xf32>
    %409 = arith.subf %399, %408 : vector<8x1xf32>
    %410 = vector.broadcast %407 : vector<1x1xf32> to vector<8x1xf32>
    %411 = arith.subf %409, %410 : vector<8x1xf32>
    %412 = vector.broadcast %411 : vector<8x1xf32> to vector<8x32xf32>
    %413 = arith.mulf %412, %4 : vector<8x32xf32>
    %cst_138 = arith.constant dense<0.000000e+00> : vector<32xf32>
    %414 = vector.multi_reduction <add>, %413, %cst_138 [0] : vector<8x32xf32> to vector<32xf32>
    %415 = vector.shape_cast %414 : vector<32xf32> to vector<1x32xf32>
    %416 = vector.extract_strided_slice %366 {offsets = [1, 0], sizes = [1, 128], strides = [1, 1]} : vector<2x128xf32> to vector<1x128xf32>
    %417 = vector.broadcast %416 : vector<1x128xf32> to vector<8x128xf32>
    %418 = arith.addf %10, %417 : vector<8x128xf32>
    %cst_139 = arith.constant 0.000000e+00 : f32
    %419 = vector.broadcast %cst_139 : f32 to vector<8x128xf32>
    %420 = arith.maximumf %418, %419 : vector<8x128xf32>
    %421 = vector.broadcast %0 : vector<1x128xf32> to vector<8x128xf32>
    %422 = arith.mulf %420, %421 : vector<8x128xf32>
    %cst_140 = arith.constant dense<0.000000e+00> : vector<8xf32>
    %423 = vector.multi_reduction <add>, %422, %cst_140 [1] : vector<8x128xf32> to vector<8xf32>
    %424 = vector.shape_cast %423 : vector<8xf32> to vector<8x1xf32>
    %cst_141 = arith.constant dense<0xFF800000> : vector<1xf32>
    %425 = vector.multi_reduction <maximumf>, %424, %cst_141 [0] : vector<8x1xf32> to vector<1xf32>
    %426 = vector.shape_cast %425 : vector<1xf32> to vector<1x1xf32>
    %427 = vector.broadcast %426 : vector<1x1xf32> to vector<8x1xf32>
    %428 = arith.subf %424, %427 : vector<8x1xf32>
    %429 = math.exp %428 : vector<8x1xf32>
    %cst_142 = arith.constant dense<0.000000e+00> : vector<1xf32>
    %430 = vector.multi_reduction <add>, %429, %cst_142 [0] : vector<8x1xf32> to vector<1xf32>
    %431 = vector.shape_cast %430 : vector<1xf32> to vector<1x1xf32>
    %432 = math.log %431 : vector<1x1xf32>
    %433 = vector.broadcast %426 : vector<1x1xf32> to vector<8x1xf32>
    %434 = arith.subf %424, %433 : vector<8x1xf32>
    %435 = vector.broadcast %432 : vector<1x1xf32> to vector<8x1xf32>
    %436 = arith.subf %434, %435 : vector<8x1xf32>
    %437 = vector.broadcast %436 : vector<8x1xf32> to vector<8x32xf32>
    %438 = arith.mulf %437, %6 : vector<8x32xf32>
    %cst_143 = arith.constant dense<0.000000e+00> : vector<32xf32>
    %439 = vector.multi_reduction <add>, %438, %cst_143 [0] : vector<8x32xf32> to vector<32xf32>
    %440 = vector.shape_cast %439 : vector<32xf32> to vector<1x32xf32>
    %441 = tpu.concatenate %415, %440 in 0 : vector<1x32xf32>, vector<1x32xf32> -> vector<2x32xf32>
    %c0_144 = arith.constant 0 : index
    %c0_145 = arith.constant 0 : index
    %442 = vector.load %arg5[%c0_144, %c0_145] : memref<32x512xf32, #tpu.memory_space<vmem>>, vector<32x512xf32>
    %cst_146 = arith.constant dense<0.000000e+00> : vector<2x512xf32>
    %443 = tpu.matmul %390, %442, %cst_146 {dimension_numbers = #tpu.dot_dimension_numbers<[1], [0], [0], [1], [0, 0, 1, 1], [], []>} : vector<2x32xf32>, vector<32x512xf32>, vector<2x512xf32> -> vector<2x512xf32>
    %c0_147 = arith.constant 0 : index
    %c0_148 = arith.constant 0 : index
    %444 = vector.load %arg6[%c0_147, %c0_148] : memref<32x512xf32, #tpu.memory_space<vmem>>, vector<32x512xf32>
    %cst_149 = arith.constant dense<0.000000e+00> : vector<2x512xf32>
    %445 = tpu.matmul %441, %444, %cst_149 {dimension_numbers = #tpu.dot_dimension_numbers<[1], [0], [0], [1], [0, 0, 1, 1], [], []>} : vector<2x32xf32>, vector<32x512xf32>, vector<2x512xf32> -> vector<2x512xf32>
    %446 = arith.addf %443, %445 : vector<2x512xf32>
    %c0_150 = arith.constant 0 : index
    %c0_151 = arith.constant 0 : index
    %447 = vector.load %arg7[%c0_150, %c0_151] : memref<128x512xf32, #tpu.memory_space<vmem>>, vector<128x512xf32>
    %cst_152 = arith.constant dense<0.000000e+00> : vector<2x512xf32>
    %448 = tpu.matmul %292, %447, %cst_152 {dimension_numbers = #tpu.dot_dimension_numbers<[1], [0], [0], [1], [0, 0, 1, 1], [], []>} : vector<2x128xf32>, vector<128x512xf32>, vector<2x512xf32> -> vector<2x512xf32>
    %449 = arith.addf %446, %448 : vector<2x512xf32>
    %c0_153 = arith.constant 0 : index
    %c0_154 = arith.constant 0 : index
    %450 = vector.load %arg8[%c0_153, %c0_154] : memref<1x512xf32, #tpu.memory_space<vmem>>, vector<1x512xf32>
    %451 = vector.broadcast %450 : vector<1x512xf32> to vector<2x512xf32>
    %452 = arith.addf %449, %451 : vector<2x512xf32>
    %453 = vector.extract_strided_slice %452 {offsets = [0, 0], sizes = [2, 128], strides = [1, 1]} : vector<2x512xf32> to vector<2x128xf32>
    %454 = arith.negf %453 : vector<2x128xf32>
    %455 = math.exp %454 : vector<2x128xf32>
    %cst_155 = arith.constant 1.000000e+00 : f32
    %456 = vector.broadcast %cst_155 : f32 to vector<2x128xf32>
    %457 = arith.addf %456, %455 : vector<2x128xf32>
    %458 = arith.divf %456, %457 : vector<2x128xf32>
    %459 = vector.extract_strided_slice %452 {offsets = [0, 128], sizes = [2, 128], strides = [1, 1]} : vector<2x512xf32> to vector<2x128xf32>
    %460 = arith.negf %459 : vector<2x128xf32>
    %461 = math.exp %460 : vector<2x128xf32>
    %cst_156 = arith.constant 1.000000e+00 : f32
    %462 = vector.broadcast %cst_156 : f32 to vector<2x128xf32>
    %463 = arith.addf %462, %461 : vector<2x128xf32>
    %464 = arith.divf %462, %463 : vector<2x128xf32>
    %465 = vector.extract_strided_slice %452 {offsets = [0, 256], sizes = [2, 128], strides = [1, 1]} : vector<2x512xf32> to vector<2x128xf32>
    %466 = math.tanh %465 : vector<2x128xf32>
    %467 = vector.extract_strided_slice %452 {offsets = [0, 384], sizes = [2, 128], strides = [1, 1]} : vector<2x512xf32> to vector<2x128xf32>
    %468 = arith.negf %467 : vector<2x128xf32>
    %469 = math.exp %468 : vector<2x128xf32>
    %cst_157 = arith.constant 1.000000e+00 : f32
    %470 = vector.broadcast %cst_157 : f32 to vector<2x128xf32>
    %471 = arith.addf %470, %469 : vector<2x128xf32>
    %472 = arith.divf %470, %471 : vector<2x128xf32>
    %473 = arith.mulf %464, %290 : vector<2x128xf32>
    %474 = arith.mulf %458, %466 : vector<2x128xf32>
    %475 = arith.addf %473, %474 : vector<2x128xf32>
    %476 = math.tanh %475 : vector<2x128xf32>
    %477 = arith.mulf %472, %476 : vector<2x128xf32>
    %c0_158 = arith.constant 0 : index
    %c0_159 = arith.constant 0 : index
    %478 = vector.load %arg9[%c0_158, %c0_159] : memref<128x512xf32, #tpu.memory_space<vmem>>, vector<128x512xf32>
    %cst_160 = arith.constant dense<0.000000e+00> : vector<2x512xf32>
    %479 = tpu.matmul %477, %478, %cst_160 {dimension_numbers = #tpu.dot_dimension_numbers<[1], [0], [0], [1], [0, 0, 1, 1], [], []>} : vector<2x128xf32>, vector<128x512xf32>, vector<2x512xf32> -> vector<2x512xf32>
    %c0_161 = arith.constant 0 : index
    %c0_162 = arith.constant 0 : index
    %480 = vector.load %arg10[%c0_161, %c0_162] : memref<128x512xf32, #tpu.memory_space<vmem>>, vector<128x512xf32>
    %cst_163 = arith.constant dense<0.000000e+00> : vector<2x512xf32>
    %481 = tpu.matmul %325, %480, %cst_163 {dimension_numbers = #tpu.dot_dimension_numbers<[1], [0], [0], [1], [0, 0, 1, 1], [], []>} : vector<2x128xf32>, vector<128x512xf32>, vector<2x512xf32> -> vector<2x512xf32>
    %482 = arith.addf %479, %481 : vector<2x512xf32>
    %c0_164 = arith.constant 0 : index
    %c0_165 = arith.constant 0 : index
    %483 = vector.load %arg11[%c0_164, %c0_165] : memref<1x512xf32, #tpu.memory_space<vmem>>, vector<1x512xf32>
    %484 = vector.broadcast %483 : vector<1x512xf32> to vector<2x512xf32>
    %485 = arith.addf %482, %484 : vector<2x512xf32>
    %486 = vector.extract_strided_slice %485 {offsets = [0, 0], sizes = [2, 128], strides = [1, 1]} : vector<2x512xf32> to vector<2x128xf32>
    %487 = arith.negf %486 : vector<2x128xf32>
    %488 = math.exp %487 : vector<2x128xf32>
    %cst_166 = arith.constant 1.000000e+00 : f32
    %489 = vector.broadcast %cst_166 : f32 to vector<2x128xf32>
    %490 = arith.addf %489, %488 : vector<2x128xf32>
    %491 = arith.divf %489, %490 : vector<2x128xf32>
    %492 = vector.extract_strided_slice %485 {offsets = [0, 128], sizes = [2, 128], strides = [1, 1]} : vector<2x512xf32> to vector<2x128xf32>
    %493 = arith.negf %492 : vector<2x128xf32>
    %494 = math.exp %493 : vector<2x128xf32>
    %cst_167 = arith.constant 1.000000e+00 : f32
    %495 = vector.broadcast %cst_167 : f32 to vector<2x128xf32>
    %496 = arith.addf %495, %494 : vector<2x128xf32>
    %497 = arith.divf %495, %496 : vector<2x128xf32>
    %498 = vector.extract_strided_slice %485 {offsets = [0, 256], sizes = [2, 128], strides = [1, 1]} : vector<2x512xf32> to vector<2x128xf32>
    %499 = math.tanh %498 : vector<2x128xf32>
    %500 = vector.extract_strided_slice %485 {offsets = [0, 384], sizes = [2, 128], strides = [1, 1]} : vector<2x512xf32> to vector<2x128xf32>
    %501 = arith.negf %500 : vector<2x128xf32>
    %502 = math.exp %501 : vector<2x128xf32>
    %cst_168 = arith.constant 1.000000e+00 : f32
    %503 = vector.broadcast %cst_168 : f32 to vector<2x128xf32>
    %504 = arith.addf %503, %502 : vector<2x128xf32>
    %505 = arith.divf %503, %504 : vector<2x128xf32>
    %506 = arith.mulf %497, %323 : vector<2x128xf32>
    %507 = arith.mulf %491, %499 : vector<2x128xf32>
    %508 = arith.addf %506, %507 : vector<2x128xf32>
    %509 = math.tanh %508 : vector<2x128xf32>
    %510 = arith.mulf %505, %509 : vector<2x128xf32>
    %c0_169 = arith.constant 0 : index
    %c0_170 = arith.constant 0 : index
    %511 = vector.load %arg12[%c0_169, %c0_170] : memref<128x512xf32, #tpu.memory_space<vmem>>, vector<128x512xf32>
    %cst_171 = arith.constant dense<0.000000e+00> : vector<2x512xf32>
    %512 = tpu.matmul %510, %511, %cst_171 {dimension_numbers = #tpu.dot_dimension_numbers<[1], [0], [0], [1], [0, 0, 1, 1], [], []>} : vector<2x128xf32>, vector<128x512xf32>, vector<2x512xf32> -> vector<2x512xf32>
    %c0_172 = arith.constant 0 : index
    %c0_173 = arith.constant 0 : index
    %513 = vector.load %arg13[%c0_172, %c0_173] : memref<128x512xf32, #tpu.memory_space<vmem>>, vector<128x512xf32>
    %cst_174 = arith.constant dense<0.000000e+00> : vector<2x512xf32>
    %514 = tpu.matmul %358, %513, %cst_174 {dimension_numbers = #tpu.dot_dimension_numbers<[1], [0], [0], [1], [0, 0, 1, 1], [], []>} : vector<2x128xf32>, vector<128x512xf32>, vector<2x512xf32> -> vector<2x512xf32>
    %515 = arith.addf %512, %514 : vector<2x512xf32>
    %c0_175 = arith.constant 0 : index
    %c0_176 = arith.constant 0 : index
    %516 = vector.load %arg14[%c0_175, %c0_176] : memref<1x512xf32, #tpu.memory_space<vmem>>, vector<1x512xf32>
    %517 = vector.broadcast %516 : vector<1x512xf32> to vector<2x512xf32>
    %518 = arith.addf %515, %517 : vector<2x512xf32>
    %519 = vector.extract_strided_slice %518 {offsets = [0, 0], sizes = [2, 128], strides = [1, 1]} : vector<2x512xf32> to vector<2x128xf32>
    %520 = arith.negf %519 : vector<2x128xf32>
    %521 = math.exp %520 : vector<2x128xf32>
    %cst_177 = arith.constant 1.000000e+00 : f32
    %522 = vector.broadcast %cst_177 : f32 to vector<2x128xf32>
    %523 = arith.addf %522, %521 : vector<2x128xf32>
    %524 = arith.divf %522, %523 : vector<2x128xf32>
    %525 = vector.extract_strided_slice %518 {offsets = [0, 128], sizes = [2, 128], strides = [1, 1]} : vector<2x512xf32> to vector<2x128xf32>
    %526 = arith.negf %525 : vector<2x128xf32>
    %527 = math.exp %526 : vector<2x128xf32>
    %cst_178 = arith.constant 1.000000e+00 : f32
    %528 = vector.broadcast %cst_178 : f32 to vector<2x128xf32>
    %529 = arith.addf %528, %527 : vector<2x128xf32>
    %530 = arith.divf %528, %529 : vector<2x128xf32>
    %531 = vector.extract_strided_slice %518 {offsets = [0, 256], sizes = [2, 128], strides = [1, 1]} : vector<2x512xf32> to vector<2x128xf32>
    %532 = math.tanh %531 : vector<2x128xf32>
    %533 = vector.extract_strided_slice %518 {offsets = [0, 384], sizes = [2, 128], strides = [1, 1]} : vector<2x512xf32> to vector<2x128xf32>
    %534 = arith.negf %533 : vector<2x128xf32>
    %535 = math.exp %534 : vector<2x128xf32>
    %cst_179 = arith.constant 1.000000e+00 : f32
    %536 = vector.broadcast %cst_179 : f32 to vector<2x128xf32>
    %537 = arith.addf %536, %535 : vector<2x128xf32>
    %538 = arith.divf %536, %537 : vector<2x128xf32>
    %539 = arith.mulf %530, %356 : vector<2x128xf32>
    %540 = arith.mulf %524, %532 : vector<2x128xf32>
    %541 = arith.addf %539, %540 : vector<2x128xf32>
    %542 = math.tanh %541 : vector<2x128xf32>
    %543 = arith.mulf %538, %542 : vector<2x128xf32>
    %c0_180 = arith.constant 0 : index
    %c0_181 = arith.constant 0 : index
    %544 = vector.load %arg15[%c0_180, %c0_181] : memref<128x256xf32, #tpu.memory_space<vmem>>, vector<128x256xf32>
    %cst_182 = arith.constant dense<0.000000e+00> : vector<2x256xf32>
    %545 = tpu.matmul %543, %544, %cst_182 {dimension_numbers = #tpu.dot_dimension_numbers<[1], [0], [0], [1], [0, 0, 1, 1], [], []>} : vector<2x128xf32>, vector<128x256xf32>, vector<2x256xf32> -> vector<2x256xf32>
    %546 = vector.extract_strided_slice %545 {offsets = [0, 0], sizes = [2, 128], strides = [1, 1]} : vector<2x256xf32> to vector<2x128xf32>
    %547 = vector.broadcast %2 : vector<1x128xf32> to vector<2x128xf32>
    %548 = arith.addf %546, %547 : vector<2x128xf32>
    %549 = vector.extract_strided_slice %545 {offsets = [0, 128], sizes = [2, 128], strides = [1, 1]} : vector<2x256xf32> to vector<2x128xf32>
    %550 = vector.broadcast %1 : vector<1x128xf32> to vector<2x128xf32>
    %551 = arith.addf %549, %550 : vector<2x128xf32>
    %cst_183 = arith.constant dense<0xFF800000> : vector<2xf32>
    %552 = vector.multi_reduction <maximumf>, %548, %cst_183 [1] : vector<2x128xf32> to vector<2xf32>
    %553 = vector.shape_cast %552 : vector<2xf32> to vector<2x1xf32>
    %554 = vector.broadcast %553 : vector<2x1xf32> to vector<2x128xf32>
    %555 = arith.subf %548, %554 : vector<2x128xf32>
    %556 = vector.broadcast %553 : vector<2x1xf32> to vector<2x128xf32>
    %557 = arith.subf %548, %556 : vector<2x128xf32>
    %558 = math.exp %557 : vector<2x128xf32>
    %cst_184 = arith.constant dense<0.000000e+00> : vector<2xf32>
    %559 = vector.multi_reduction <add>, %558, %cst_184 [1] : vector<2x128xf32> to vector<2xf32>
    %560 = vector.shape_cast %559 : vector<2xf32> to vector<2x1xf32>
    %561 = math.log %560 : vector<2x1xf32>
    %562 = vector.broadcast %561 : vector<2x1xf32> to vector<2x128xf32>
    %563 = arith.subf %555, %562 : vector<2x128xf32>
    %564 = vector.broadcast %553 : vector<2x1xf32> to vector<2x128xf32>
    %565 = arith.cmpf oeq, %548, %564 : vector<2x128xf32>
    %c128_i32_185 = arith.constant 128 : i32
    %566 = vector.broadcast %c128_i32_185 : i32 to vector<2x128xi32>
    %567 = arith.select %565, %20, %566 : vector<2x128xi1>, vector<2x128xi32>
    %cst_186 = arith.constant dense<2147483647> : vector<2xi32>
    %568 = vector.multi_reduction <minsi>, %567, %cst_186 [1] : vector<2x128xi32> to vector<2xi32>
    %569 = vector.shape_cast %568 : vector<2xi32> to vector<2x1xi32>
    %570 = vector.broadcast %569 : vector<2x1xi32> to vector<2x128xi32>
    %571 = arith.cmpi eq, %20, %570 : vector<2x128xi32>
    %572 = arith.extui %571 : vector<2x128xi1> to vector<2x128xi32>
    %573 = arith.sitofp %572 : vector<2x128xi32> to vector<2x128xf32>
    %c0_187 = arith.constant 0 : index
    %c0_188 = arith.constant 0 : index
    %574 = vector.load %arg17[%c0_187, %c0_188] : memref<128x32xf32, #tpu.memory_space<vmem>>, vector<128x32xf32>
    %cst_189 = arith.constant dense<0.000000e+00> : vector<2x32xf32>
    %575 = tpu.matmul %573, %574, %cst_189 {dimension_numbers = #tpu.dot_dimension_numbers<[1], [0], [0], [1], [0, 0, 1, 1], [], []>} : vector<2x128xf32>, vector<128x32xf32>, vector<2x32xf32> -> vector<2x32xf32>
    %576 = vector.extract_strided_slice %551 {offsets = [0, 0], sizes = [1, 128], strides = [1, 1]} : vector<2x128xf32> to vector<1x128xf32>
    %577 = vector.broadcast %576 : vector<1x128xf32> to vector<8x128xf32>
    %578 = arith.addf %8, %577 : vector<8x128xf32>
    %cst_190 = arith.constant 0.000000e+00 : f32
    %579 = vector.broadcast %cst_190 : f32 to vector<8x128xf32>
    %580 = arith.maximumf %578, %579 : vector<8x128xf32>
    %581 = vector.broadcast %0 : vector<1x128xf32> to vector<8x128xf32>
    %582 = arith.mulf %580, %581 : vector<8x128xf32>
    %cst_191 = arith.constant dense<0.000000e+00> : vector<8xf32>
    %583 = vector.multi_reduction <add>, %582, %cst_191 [1] : vector<8x128xf32> to vector<8xf32>
    %584 = vector.shape_cast %583 : vector<8xf32> to vector<8x1xf32>
    %cst_192 = arith.constant dense<0xFF800000> : vector<1xf32>
    %585 = vector.multi_reduction <maximumf>, %584, %cst_192 [0] : vector<8x1xf32> to vector<1xf32>
    %586 = vector.shape_cast %585 : vector<1xf32> to vector<1x1xf32>
    %587 = vector.broadcast %586 : vector<1x1xf32> to vector<8x1xf32>
    %588 = arith.subf %584, %587 : vector<8x1xf32>
    %589 = math.exp %588 : vector<8x1xf32>
    %cst_193 = arith.constant dense<0.000000e+00> : vector<1xf32>
    %590 = vector.multi_reduction <add>, %589, %cst_193 [0] : vector<8x1xf32> to vector<1xf32>
    %591 = vector.shape_cast %590 : vector<1xf32> to vector<1x1xf32>
    %592 = math.log %591 : vector<1x1xf32>
    %593 = vector.broadcast %586 : vector<1x1xf32> to vector<8x1xf32>
    %594 = arith.subf %584, %593 : vector<8x1xf32>
    %595 = vector.broadcast %592 : vector<1x1xf32> to vector<8x1xf32>
    %596 = arith.subf %594, %595 : vector<8x1xf32>
    %597 = vector.broadcast %596 : vector<8x1xf32> to vector<8x32xf32>
    %598 = arith.mulf %597, %4 : vector<8x32xf32>
    %cst_194 = arith.constant dense<0.000000e+00> : vector<32xf32>
    %599 = vector.multi_reduction <add>, %598, %cst_194 [0] : vector<8x32xf32> to vector<32xf32>
    %600 = vector.shape_cast %599 : vector<32xf32> to vector<1x32xf32>
    %601 = vector.extract_strided_slice %551 {offsets = [1, 0], sizes = [1, 128], strides = [1, 1]} : vector<2x128xf32> to vector<1x128xf32>
    %602 = vector.broadcast %601 : vector<1x128xf32> to vector<8x128xf32>
    %603 = arith.addf %10, %602 : vector<8x128xf32>
    %cst_195 = arith.constant 0.000000e+00 : f32
    %604 = vector.broadcast %cst_195 : f32 to vector<8x128xf32>
    %605 = arith.maximumf %603, %604 : vector<8x128xf32>
    %606 = vector.broadcast %0 : vector<1x128xf32> to vector<8x128xf32>
    %607 = arith.mulf %605, %606 : vector<8x128xf32>
    %cst_196 = arith.constant dense<0.000000e+00> : vector<8xf32>
    %608 = vector.multi_reduction <add>, %607, %cst_196 [1] : vector<8x128xf32> to vector<8xf32>
    %609 = vector.shape_cast %608 : vector<8xf32> to vector<8x1xf32>
    %cst_197 = arith.constant dense<0xFF800000> : vector<1xf32>
    %610 = vector.multi_reduction <maximumf>, %609, %cst_197 [0] : vector<8x1xf32> to vector<1xf32>
    %611 = vector.shape_cast %610 : vector<1xf32> to vector<1x1xf32>
    %612 = vector.broadcast %611 : vector<1x1xf32> to vector<8x1xf32>
    %613 = arith.subf %609, %612 : vector<8x1xf32>
    %614 = math.exp %613 : vector<8x1xf32>
    %cst_198 = arith.constant dense<0.000000e+00> : vector<1xf32>
    %615 = vector.multi_reduction <add>, %614, %cst_198 [0] : vector<8x1xf32> to vector<1xf32>
    %616 = vector.shape_cast %615 : vector<1xf32> to vector<1x1xf32>
    %617 = math.log %616 : vector<1x1xf32>
    %618 = vector.broadcast %611 : vector<1x1xf32> to vector<8x1xf32>
    %619 = arith.subf %609, %618 : vector<8x1xf32>
    %620 = vector.broadcast %617 : vector<1x1xf32> to vector<8x1xf32>
    %621 = arith.subf %619, %620 : vector<8x1xf32>
    %622 = vector.broadcast %621 : vector<8x1xf32> to vector<8x32xf32>
    %623 = arith.mulf %622, %6 : vector<8x32xf32>
    %cst_199 = arith.constant dense<0.000000e+00> : vector<32xf32>
    %624 = vector.multi_reduction <add>, %623, %cst_199 [0] : vector<8x32xf32> to vector<32xf32>
    %625 = vector.shape_cast %624 : vector<32xf32> to vector<1x32xf32>
    %626 = tpu.concatenate %600, %625 in 0 : vector<1x32xf32>, vector<1x32xf32> -> vector<2x32xf32>
    %c0_200 = arith.constant 0 : index
    %c0_201 = arith.constant 0 : index
    %627 = vector.load %arg5[%c0_200, %c0_201] : memref<32x512xf32, #tpu.memory_space<vmem>>, vector<32x512xf32>
    %cst_202 = arith.constant dense<0.000000e+00> : vector<2x512xf32>
    %628 = tpu.matmul %575, %627, %cst_202 {dimension_numbers = #tpu.dot_dimension_numbers<[1], [0], [0], [1], [0, 0, 1, 1], [], []>} : vector<2x32xf32>, vector<32x512xf32>, vector<2x512xf32> -> vector<2x512xf32>
    %c0_203 = arith.constant 0 : index
    %c0_204 = arith.constant 0 : index
    %629 = vector.load %arg6[%c0_203, %c0_204] : memref<32x512xf32, #tpu.memory_space<vmem>>, vector<32x512xf32>
    %cst_205 = arith.constant dense<0.000000e+00> : vector<2x512xf32>
    %630 = tpu.matmul %626, %629, %cst_205 {dimension_numbers = #tpu.dot_dimension_numbers<[1], [0], [0], [1], [0, 0, 1, 1], [], []>} : vector<2x32xf32>, vector<32x512xf32>, vector<2x512xf32> -> vector<2x512xf32>
    %631 = arith.addf %628, %630 : vector<2x512xf32>
    %c0_206 = arith.constant 0 : index
    %c0_207 = arith.constant 0 : index
    %632 = vector.load %arg7[%c0_206, %c0_207] : memref<128x512xf32, #tpu.memory_space<vmem>>, vector<128x512xf32>
    %cst_208 = arith.constant dense<0.000000e+00> : vector<2x512xf32>
    %633 = tpu.matmul %477, %632, %cst_208 {dimension_numbers = #tpu.dot_dimension_numbers<[1], [0], [0], [1], [0, 0, 1, 1], [], []>} : vector<2x128xf32>, vector<128x512xf32>, vector<2x512xf32> -> vector<2x512xf32>
    %634 = arith.addf %631, %633 : vector<2x512xf32>
    %c0_209 = arith.constant 0 : index
    %c0_210 = arith.constant 0 : index
    %635 = vector.load %arg8[%c0_209, %c0_210] : memref<1x512xf32, #tpu.memory_space<vmem>>, vector<1x512xf32>
    %636 = vector.broadcast %635 : vector<1x512xf32> to vector<2x512xf32>
    %637 = arith.addf %634, %636 : vector<2x512xf32>
    %638 = vector.extract_strided_slice %637 {offsets = [0, 0], sizes = [2, 128], strides = [1, 1]} : vector<2x512xf32> to vector<2x128xf32>
    %639 = arith.negf %638 : vector<2x128xf32>
    %640 = math.exp %639 : vector<2x128xf32>
    %cst_211 = arith.constant 1.000000e+00 : f32
    %641 = vector.broadcast %cst_211 : f32 to vector<2x128xf32>
    %642 = arith.addf %641, %640 : vector<2x128xf32>
    %643 = arith.divf %641, %642 : vector<2x128xf32>
    %644 = vector.extract_strided_slice %637 {offsets = [0, 128], sizes = [2, 128], strides = [1, 1]} : vector<2x512xf32> to vector<2x128xf32>
    %645 = arith.negf %644 : vector<2x128xf32>
    %646 = math.exp %645 : vector<2x128xf32>
    %cst_212 = arith.constant 1.000000e+00 : f32
    %647 = vector.broadcast %cst_212 : f32 to vector<2x128xf32>
    %648 = arith.addf %647, %646 : vector<2x128xf32>
    %649 = arith.divf %647, %648 : vector<2x128xf32>
    %650 = vector.extract_strided_slice %637 {offsets = [0, 256], sizes = [2, 128], strides = [1, 1]} : vector<2x512xf32> to vector<2x128xf32>
    %651 = math.tanh %650 : vector<2x128xf32>
    %652 = vector.extract_strided_slice %637 {offsets = [0, 384], sizes = [2, 128], strides = [1, 1]} : vector<2x512xf32> to vector<2x128xf32>
    %653 = arith.negf %652 : vector<2x128xf32>
    %654 = math.exp %653 : vector<2x128xf32>
    %cst_213 = arith.constant 1.000000e+00 : f32
    %655 = vector.broadcast %cst_213 : f32 to vector<2x128xf32>
    %656 = arith.addf %655, %654 : vector<2x128xf32>
    %657 = arith.divf %655, %656 : vector<2x128xf32>
    %658 = arith.mulf %649, %475 : vector<2x128xf32>
    %659 = arith.mulf %643, %651 : vector<2x128xf32>
    %660 = arith.addf %658, %659 : vector<2x128xf32>
    %661 = math.tanh %660 : vector<2x128xf32>
    %662 = arith.mulf %657, %661 : vector<2x128xf32>
    %c0_214 = arith.constant 0 : index
    %c0_215 = arith.constant 0 : index
    %663 = vector.load %arg9[%c0_214, %c0_215] : memref<128x512xf32, #tpu.memory_space<vmem>>, vector<128x512xf32>
    %cst_216 = arith.constant dense<0.000000e+00> : vector<2x512xf32>
    %664 = tpu.matmul %662, %663, %cst_216 {dimension_numbers = #tpu.dot_dimension_numbers<[1], [0], [0], [1], [0, 0, 1, 1], [], []>} : vector<2x128xf32>, vector<128x512xf32>, vector<2x512xf32> -> vector<2x512xf32>
    %c0_217 = arith.constant 0 : index
    %c0_218 = arith.constant 0 : index
    %665 = vector.load %arg10[%c0_217, %c0_218] : memref<128x512xf32, #tpu.memory_space<vmem>>, vector<128x512xf32>
    %cst_219 = arith.constant dense<0.000000e+00> : vector<2x512xf32>
    %666 = tpu.matmul %510, %665, %cst_219 {dimension_numbers = #tpu.dot_dimension_numbers<[1], [0], [0], [1], [0, 0, 1, 1], [], []>} : vector<2x128xf32>, vector<128x512xf32>, vector<2x512xf32> -> vector<2x512xf32>
    %667 = arith.addf %664, %666 : vector<2x512xf32>
    %c0_220 = arith.constant 0 : index
    %c0_221 = arith.constant 0 : index
    %668 = vector.load %arg11[%c0_220, %c0_221] : memref<1x512xf32, #tpu.memory_space<vmem>>, vector<1x512xf32>
    %669 = vector.broadcast %668 : vector<1x512xf32> to vector<2x512xf32>
    %670 = arith.addf %667, %669 : vector<2x512xf32>
    %671 = vector.extract_strided_slice %670 {offsets = [0, 0], sizes = [2, 128], strides = [1, 1]} : vector<2x512xf32> to vector<2x128xf32>
    %672 = arith.negf %671 : vector<2x128xf32>
    %673 = math.exp %672 : vector<2x128xf32>
    %cst_222 = arith.constant 1.000000e+00 : f32
    %674 = vector.broadcast %cst_222 : f32 to vector<2x128xf32>
    %675 = arith.addf %674, %673 : vector<2x128xf32>
    %676 = arith.divf %674, %675 : vector<2x128xf32>
    %677 = vector.extract_strided_slice %670 {offsets = [0, 128], sizes = [2, 128], strides = [1, 1]} : vector<2x512xf32> to vector<2x128xf32>
    %678 = arith.negf %677 : vector<2x128xf32>
    %679 = math.exp %678 : vector<2x128xf32>
    %cst_223 = arith.constant 1.000000e+00 : f32
    %680 = vector.broadcast %cst_223 : f32 to vector<2x128xf32>
    %681 = arith.addf %680, %679 : vector<2x128xf32>
    %682 = arith.divf %680, %681 : vector<2x128xf32>
    %683 = vector.extract_strided_slice %670 {offsets = [0, 256], sizes = [2, 128], strides = [1, 1]} : vector<2x512xf32> to vector<2x128xf32>
    %684 = math.tanh %683 : vector<2x128xf32>
    %685 = vector.extract_strided_slice %670 {offsets = [0, 384], sizes = [2, 128], strides = [1, 1]} : vector<2x512xf32> to vector<2x128xf32>
    %686 = arith.negf %685 : vector<2x128xf32>
    %687 = math.exp %686 : vector<2x128xf32>
    %cst_224 = arith.constant 1.000000e+00 : f32
    %688 = vector.broadcast %cst_224 : f32 to vector<2x128xf32>
    %689 = arith.addf %688, %687 : vector<2x128xf32>
    %690 = arith.divf %688, %689 : vector<2x128xf32>
    %691 = arith.mulf %682, %508 : vector<2x128xf32>
    %692 = arith.mulf %676, %684 : vector<2x128xf32>
    %693 = arith.addf %691, %692 : vector<2x128xf32>
    %694 = math.tanh %693 : vector<2x128xf32>
    %695 = arith.mulf %690, %694 : vector<2x128xf32>
    %c0_225 = arith.constant 0 : index
    %c0_226 = arith.constant 0 : index
    %696 = vector.load %arg12[%c0_225, %c0_226] : memref<128x512xf32, #tpu.memory_space<vmem>>, vector<128x512xf32>
    %cst_227 = arith.constant dense<0.000000e+00> : vector<2x512xf32>
    %697 = tpu.matmul %695, %696, %cst_227 {dimension_numbers = #tpu.dot_dimension_numbers<[1], [0], [0], [1], [0, 0, 1, 1], [], []>} : vector<2x128xf32>, vector<128x512xf32>, vector<2x512xf32> -> vector<2x512xf32>
    %c0_228 = arith.constant 0 : index
    %c0_229 = arith.constant 0 : index
    %698 = vector.load %arg13[%c0_228, %c0_229] : memref<128x512xf32, #tpu.memory_space<vmem>>, vector<128x512xf32>
    %cst_230 = arith.constant dense<0.000000e+00> : vector<2x512xf32>
    %699 = tpu.matmul %543, %698, %cst_230 {dimension_numbers = #tpu.dot_dimension_numbers<[1], [0], [0], [1], [0, 0, 1, 1], [], []>} : vector<2x128xf32>, vector<128x512xf32>, vector<2x512xf32> -> vector<2x512xf32>
    %700 = arith.addf %697, %699 : vector<2x512xf32>
    %c0_231 = arith.constant 0 : index
    %c0_232 = arith.constant 0 : index
    %701 = vector.load %arg14[%c0_231, %c0_232] : memref<1x512xf32, #tpu.memory_space<vmem>>, vector<1x512xf32>
    %702 = vector.broadcast %701 : vector<1x512xf32> to vector<2x512xf32>
    %703 = arith.addf %700, %702 : vector<2x512xf32>
    %704 = vector.extract_strided_slice %703 {offsets = [0, 0], sizes = [2, 128], strides = [1, 1]} : vector<2x512xf32> to vector<2x128xf32>
    %705 = arith.negf %704 : vector<2x128xf32>
    %706 = math.exp %705 : vector<2x128xf32>
    %cst_233 = arith.constant 1.000000e+00 : f32
    %707 = vector.broadcast %cst_233 : f32 to vector<2x128xf32>
    %708 = arith.addf %707, %706 : vector<2x128xf32>
    %709 = arith.divf %707, %708 : vector<2x128xf32>
    %710 = vector.extract_strided_slice %703 {offsets = [0, 128], sizes = [2, 128], strides = [1, 1]} : vector<2x512xf32> to vector<2x128xf32>
    %711 = arith.negf %710 : vector<2x128xf32>
    %712 = math.exp %711 : vector<2x128xf32>
    %cst_234 = arith.constant 1.000000e+00 : f32
    %713 = vector.broadcast %cst_234 : f32 to vector<2x128xf32>
    %714 = arith.addf %713, %712 : vector<2x128xf32>
    %715 = arith.divf %713, %714 : vector<2x128xf32>
    %716 = vector.extract_strided_slice %703 {offsets = [0, 256], sizes = [2, 128], strides = [1, 1]} : vector<2x512xf32> to vector<2x128xf32>
    %717 = math.tanh %716 : vector<2x128xf32>
    %718 = vector.extract_strided_slice %703 {offsets = [0, 384], sizes = [2, 128], strides = [1, 1]} : vector<2x512xf32> to vector<2x128xf32>
    %719 = arith.negf %718 : vector<2x128xf32>
    %720 = math.exp %719 : vector<2x128xf32>
    %cst_235 = arith.constant 1.000000e+00 : f32
    %721 = vector.broadcast %cst_235 : f32 to vector<2x128xf32>
    %722 = arith.addf %721, %720 : vector<2x128xf32>
    %723 = arith.divf %721, %722 : vector<2x128xf32>
    %724 = arith.mulf %715, %541 : vector<2x128xf32>
    %725 = arith.mulf %709, %717 : vector<2x128xf32>
    %726 = arith.addf %724, %725 : vector<2x128xf32>
    %727 = math.tanh %726 : vector<2x128xf32>
    %728 = arith.mulf %723, %727 : vector<2x128xf32>
    %c0_236 = arith.constant 0 : index
    %c0_237 = arith.constant 0 : index
    %729 = vector.load %arg15[%c0_236, %c0_237] : memref<128x256xf32, #tpu.memory_space<vmem>>, vector<128x256xf32>
    %cst_238 = arith.constant dense<0.000000e+00> : vector<2x256xf32>
    %730 = tpu.matmul %728, %729, %cst_238 {dimension_numbers = #tpu.dot_dimension_numbers<[1], [0], [0], [1], [0, 0, 1, 1], [], []>} : vector<2x128xf32>, vector<128x256xf32>, vector<2x256xf32> -> vector<2x256xf32>
    %731 = vector.extract_strided_slice %730 {offsets = [0, 0], sizes = [2, 128], strides = [1, 1]} : vector<2x256xf32> to vector<2x128xf32>
    %732 = vector.broadcast %2 : vector<1x128xf32> to vector<2x128xf32>
    %733 = arith.addf %731, %732 : vector<2x128xf32>
    %734 = vector.extract_strided_slice %730 {offsets = [0, 128], sizes = [2, 128], strides = [1, 1]} : vector<2x256xf32> to vector<2x128xf32>
    %735 = vector.broadcast %1 : vector<1x128xf32> to vector<2x128xf32>
    %736 = arith.addf %734, %735 : vector<2x128xf32>
    %cst_239 = arith.constant dense<0xFF800000> : vector<2xf32>
    %737 = vector.multi_reduction <maximumf>, %733, %cst_239 [1] : vector<2x128xf32> to vector<2xf32>
    %738 = vector.shape_cast %737 : vector<2xf32> to vector<2x1xf32>
    %739 = vector.broadcast %738 : vector<2x1xf32> to vector<2x128xf32>
    %740 = arith.subf %733, %739 : vector<2x128xf32>
    %741 = vector.broadcast %738 : vector<2x1xf32> to vector<2x128xf32>
    %742 = arith.subf %733, %741 : vector<2x128xf32>
    %743 = math.exp %742 : vector<2x128xf32>
    %cst_240 = arith.constant dense<0.000000e+00> : vector<2xf32>
    %744 = vector.multi_reduction <add>, %743, %cst_240 [1] : vector<2x128xf32> to vector<2xf32>
    %745 = vector.shape_cast %744 : vector<2xf32> to vector<2x1xf32>
    %746 = math.log %745 : vector<2x1xf32>
    %747 = vector.broadcast %746 : vector<2x1xf32> to vector<2x128xf32>
    %748 = arith.subf %740, %747 : vector<2x128xf32>
    %749 = vector.broadcast %738 : vector<2x1xf32> to vector<2x128xf32>
    %750 = arith.cmpf oeq, %733, %749 : vector<2x128xf32>
    %c128_i32_241 = arith.constant 128 : i32
    %751 = vector.broadcast %c128_i32_241 : i32 to vector<2x128xi32>
    %752 = arith.select %750, %20, %751 : vector<2x128xi1>, vector<2x128xi32>
    %cst_242 = arith.constant dense<2147483647> : vector<2xi32>
    %753 = vector.multi_reduction <minsi>, %752, %cst_242 [1] : vector<2x128xi32> to vector<2xi32>
    %754 = vector.shape_cast %753 : vector<2xi32> to vector<2x1xi32>
    %755 = vector.broadcast %754 : vector<2x1xi32> to vector<2x128xi32>
    %756 = arith.cmpi eq, %20, %755 : vector<2x128xi32>
    %757 = arith.extui %756 : vector<2x128xi1> to vector<2x128xi32>
    %758 = arith.sitofp %757 : vector<2x128xi32> to vector<2x128xf32>
    %c0_243 = arith.constant 0 : index
    %c0_244 = arith.constant 0 : index
    %759 = vector.load %arg17[%c0_243, %c0_244] : memref<128x32xf32, #tpu.memory_space<vmem>>, vector<128x32xf32>
    %cst_245 = arith.constant dense<0.000000e+00> : vector<2x32xf32>
    %760 = tpu.matmul %758, %759, %cst_245 {dimension_numbers = #tpu.dot_dimension_numbers<[1], [0], [0], [1], [0, 0, 1, 1], [], []>} : vector<2x128xf32>, vector<128x32xf32>, vector<2x32xf32> -> vector<2x32xf32>
    %761 = vector.extract_strided_slice %736 {offsets = [0, 0], sizes = [1, 128], strides = [1, 1]} : vector<2x128xf32> to vector<1x128xf32>
    %762 = vector.broadcast %761 : vector<1x128xf32> to vector<8x128xf32>
    %763 = arith.addf %8, %762 : vector<8x128xf32>
    %cst_246 = arith.constant 0.000000e+00 : f32
    %764 = vector.broadcast %cst_246 : f32 to vector<8x128xf32>
    %765 = arith.maximumf %763, %764 : vector<8x128xf32>
    %766 = vector.broadcast %0 : vector<1x128xf32> to vector<8x128xf32>
    %767 = arith.mulf %765, %766 : vector<8x128xf32>
    %cst_247 = arith.constant dense<0.000000e+00> : vector<8xf32>
    %768 = vector.multi_reduction <add>, %767, %cst_247 [1] : vector<8x128xf32> to vector<8xf32>
    %769 = vector.shape_cast %768 : vector<8xf32> to vector<8x1xf32>
    %cst_248 = arith.constant dense<0xFF800000> : vector<1xf32>
    %770 = vector.multi_reduction <maximumf>, %769, %cst_248 [0] : vector<8x1xf32> to vector<1xf32>
    %771 = vector.shape_cast %770 : vector<1xf32> to vector<1x1xf32>
    %772 = vector.broadcast %771 : vector<1x1xf32> to vector<8x1xf32>
    %773 = arith.subf %769, %772 : vector<8x1xf32>
    %774 = math.exp %773 : vector<8x1xf32>
    %cst_249 = arith.constant dense<0.000000e+00> : vector<1xf32>
    %775 = vector.multi_reduction <add>, %774, %cst_249 [0] : vector<8x1xf32> to vector<1xf32>
    %776 = vector.shape_cast %775 : vector<1xf32> to vector<1x1xf32>
    %777 = math.log %776 : vector<1x1xf32>
    %778 = vector.broadcast %771 : vector<1x1xf32> to vector<8x1xf32>
    %779 = arith.subf %769, %778 : vector<8x1xf32>
    %780 = vector.broadcast %777 : vector<1x1xf32> to vector<8x1xf32>
    %781 = arith.subf %779, %780 : vector<8x1xf32>
    %782 = vector.broadcast %781 : vector<8x1xf32> to vector<8x32xf32>
    %783 = arith.mulf %782, %4 : vector<8x32xf32>
    %cst_250 = arith.constant dense<0.000000e+00> : vector<32xf32>
    %784 = vector.multi_reduction <add>, %783, %cst_250 [0] : vector<8x32xf32> to vector<32xf32>
    %785 = vector.shape_cast %784 : vector<32xf32> to vector<1x32xf32>
    %786 = vector.extract_strided_slice %736 {offsets = [1, 0], sizes = [1, 128], strides = [1, 1]} : vector<2x128xf32> to vector<1x128xf32>
    %787 = vector.broadcast %786 : vector<1x128xf32> to vector<8x128xf32>
    %788 = arith.addf %10, %787 : vector<8x128xf32>
    %cst_251 = arith.constant 0.000000e+00 : f32
    %789 = vector.broadcast %cst_251 : f32 to vector<8x128xf32>
    %790 = arith.maximumf %788, %789 : vector<8x128xf32>
    %791 = vector.broadcast %0 : vector<1x128xf32> to vector<8x128xf32>
    %792 = arith.mulf %790, %791 : vector<8x128xf32>
    %cst_252 = arith.constant dense<0.000000e+00> : vector<8xf32>
    %793 = vector.multi_reduction <add>, %792, %cst_252 [1] : vector<8x128xf32> to vector<8xf32>
    %794 = vector.shape_cast %793 : vector<8xf32> to vector<8x1xf32>
    %cst_253 = arith.constant dense<0xFF800000> : vector<1xf32>
    %795 = vector.multi_reduction <maximumf>, %794, %cst_253 [0] : vector<8x1xf32> to vector<1xf32>
    %796 = vector.shape_cast %795 : vector<1xf32> to vector<1x1xf32>
    %797 = vector.broadcast %796 : vector<1x1xf32> to vector<8x1xf32>
    %798 = arith.subf %794, %797 : vector<8x1xf32>
    %799 = math.exp %798 : vector<8x1xf32>
    %cst_254 = arith.constant dense<0.000000e+00> : vector<1xf32>
    %800 = vector.multi_reduction <add>, %799, %cst_254 [0] : vector<8x1xf32> to vector<1xf32>
    %801 = vector.shape_cast %800 : vector<1xf32> to vector<1x1xf32>
    %802 = math.log %801 : vector<1x1xf32>
    %803 = vector.broadcast %796 : vector<1x1xf32> to vector<8x1xf32>
    %804 = arith.subf %794, %803 : vector<8x1xf32>
    %805 = vector.broadcast %802 : vector<1x1xf32> to vector<8x1xf32>
    %806 = arith.subf %804, %805 : vector<8x1xf32>
    %807 = vector.broadcast %806 : vector<8x1xf32> to vector<8x32xf32>
    %808 = arith.mulf %807, %6 : vector<8x32xf32>
    %cst_255 = arith.constant dense<0.000000e+00> : vector<32xf32>
    %809 = vector.multi_reduction <add>, %808, %cst_255 [0] : vector<8x32xf32> to vector<32xf32>
    %810 = vector.shape_cast %809 : vector<32xf32> to vector<1x32xf32>
    %811 = tpu.concatenate %785, %810 in 0 : vector<1x32xf32>, vector<1x32xf32> -> vector<2x32xf32>
    %c0_256 = arith.constant 0 : index
    %c0_257 = arith.constant 0 : index
    %812 = vector.load %arg5[%c0_256, %c0_257] : memref<32x512xf32, #tpu.memory_space<vmem>>, vector<32x512xf32>
    %cst_258 = arith.constant dense<0.000000e+00> : vector<2x512xf32>
    %813 = tpu.matmul %760, %812, %cst_258 {dimension_numbers = #tpu.dot_dimension_numbers<[1], [0], [0], [1], [0, 0, 1, 1], [], []>} : vector<2x32xf32>, vector<32x512xf32>, vector<2x512xf32> -> vector<2x512xf32>
    %c0_259 = arith.constant 0 : index
    %c0_260 = arith.constant 0 : index
    %814 = vector.load %arg6[%c0_259, %c0_260] : memref<32x512xf32, #tpu.memory_space<vmem>>, vector<32x512xf32>
    %cst_261 = arith.constant dense<0.000000e+00> : vector<2x512xf32>
    %815 = tpu.matmul %811, %814, %cst_261 {dimension_numbers = #tpu.dot_dimension_numbers<[1], [0], [0], [1], [0, 0, 1, 1], [], []>} : vector<2x32xf32>, vector<32x512xf32>, vector<2x512xf32> -> vector<2x512xf32>
    %816 = arith.addf %813, %815 : vector<2x512xf32>
    %c0_262 = arith.constant 0 : index
    %c0_263 = arith.constant 0 : index
    %817 = vector.load %arg7[%c0_262, %c0_263] : memref<128x512xf32, #tpu.memory_space<vmem>>, vector<128x512xf32>
    %cst_264 = arith.constant dense<0.000000e+00> : vector<2x512xf32>
    %818 = tpu.matmul %662, %817, %cst_264 {dimension_numbers = #tpu.dot_dimension_numbers<[1], [0], [0], [1], [0, 0, 1, 1], [], []>} : vector<2x128xf32>, vector<128x512xf32>, vector<2x512xf32> -> vector<2x512xf32>
    %819 = arith.addf %816, %818 : vector<2x512xf32>
    %c0_265 = arith.constant 0 : index
    %c0_266 = arith.constant 0 : index
    %820 = vector.load %arg8[%c0_265, %c0_266] : memref<1x512xf32, #tpu.memory_space<vmem>>, vector<1x512xf32>
    %821 = vector.broadcast %820 : vector<1x512xf32> to vector<2x512xf32>
    %822 = arith.addf %819, %821 : vector<2x512xf32>
    %823 = vector.extract_strided_slice %822 {offsets = [0, 0], sizes = [2, 128], strides = [1, 1]} : vector<2x512xf32> to vector<2x128xf32>
    %824 = arith.negf %823 : vector<2x128xf32>
    %825 = math.exp %824 : vector<2x128xf32>
    %cst_267 = arith.constant 1.000000e+00 : f32
    %826 = vector.broadcast %cst_267 : f32 to vector<2x128xf32>
    %827 = arith.addf %826, %825 : vector<2x128xf32>
    %828 = arith.divf %826, %827 : vector<2x128xf32>
    %829 = vector.extract_strided_slice %822 {offsets = [0, 128], sizes = [2, 128], strides = [1, 1]} : vector<2x512xf32> to vector<2x128xf32>
    %830 = arith.negf %829 : vector<2x128xf32>
    %831 = math.exp %830 : vector<2x128xf32>
    %cst_268 = arith.constant 1.000000e+00 : f32
    %832 = vector.broadcast %cst_268 : f32 to vector<2x128xf32>
    %833 = arith.addf %832, %831 : vector<2x128xf32>
    %834 = arith.divf %832, %833 : vector<2x128xf32>
    %835 = vector.extract_strided_slice %822 {offsets = [0, 256], sizes = [2, 128], strides = [1, 1]} : vector<2x512xf32> to vector<2x128xf32>
    %836 = math.tanh %835 : vector<2x128xf32>
    %837 = vector.extract_strided_slice %822 {offsets = [0, 384], sizes = [2, 128], strides = [1, 1]} : vector<2x512xf32> to vector<2x128xf32>
    %838 = arith.negf %837 : vector<2x128xf32>
    %839 = math.exp %838 : vector<2x128xf32>
    %cst_269 = arith.constant 1.000000e+00 : f32
    %840 = vector.broadcast %cst_269 : f32 to vector<2x128xf32>
    %841 = arith.addf %840, %839 : vector<2x128xf32>
    %842 = arith.divf %840, %841 : vector<2x128xf32>
    %843 = arith.mulf %834, %660 : vector<2x128xf32>
    %844 = arith.mulf %828, %836 : vector<2x128xf32>
    %845 = arith.addf %843, %844 : vector<2x128xf32>
    %846 = math.tanh %845 : vector<2x128xf32>
    %847 = arith.mulf %842, %846 : vector<2x128xf32>
    %c0_270 = arith.constant 0 : index
    %c0_271 = arith.constant 0 : index
    %848 = vector.load %arg9[%c0_270, %c0_271] : memref<128x512xf32, #tpu.memory_space<vmem>>, vector<128x512xf32>
    %cst_272 = arith.constant dense<0.000000e+00> : vector<2x512xf32>
    %849 = tpu.matmul %847, %848, %cst_272 {dimension_numbers = #tpu.dot_dimension_numbers<[1], [0], [0], [1], [0, 0, 1, 1], [], []>} : vector<2x128xf32>, vector<128x512xf32>, vector<2x512xf32> -> vector<2x512xf32>
    %c0_273 = arith.constant 0 : index
    %c0_274 = arith.constant 0 : index
    %850 = vector.load %arg10[%c0_273, %c0_274] : memref<128x512xf32, #tpu.memory_space<vmem>>, vector<128x512xf32>
    %cst_275 = arith.constant dense<0.000000e+00> : vector<2x512xf32>
    %851 = tpu.matmul %695, %850, %cst_275 {dimension_numbers = #tpu.dot_dimension_numbers<[1], [0], [0], [1], [0, 0, 1, 1], [], []>} : vector<2x128xf32>, vector<128x512xf32>, vector<2x512xf32> -> vector<2x512xf32>
    %852 = arith.addf %849, %851 : vector<2x512xf32>
    %c0_276 = arith.constant 0 : index
    %c0_277 = arith.constant 0 : index
    %853 = vector.load %arg11[%c0_276, %c0_277] : memref<1x512xf32, #tpu.memory_space<vmem>>, vector<1x512xf32>
    %854 = vector.broadcast %853 : vector<1x512xf32> to vector<2x512xf32>
    %855 = arith.addf %852, %854 : vector<2x512xf32>
    %856 = vector.extract_strided_slice %855 {offsets = [0, 0], sizes = [2, 128], strides = [1, 1]} : vector<2x512xf32> to vector<2x128xf32>
    %857 = arith.negf %856 : vector<2x128xf32>
    %858 = math.exp %857 : vector<2x128xf32>
    %cst_278 = arith.constant 1.000000e+00 : f32
    %859 = vector.broadcast %cst_278 : f32 to vector<2x128xf32>
    %860 = arith.addf %859, %858 : vector<2x128xf32>
    %861 = arith.divf %859, %860 : vector<2x128xf32>
    %862 = vector.extract_strided_slice %855 {offsets = [0, 128], sizes = [2, 128], strides = [1, 1]} : vector<2x512xf32> to vector<2x128xf32>
    %863 = arith.negf %862 : vector<2x128xf32>
    %864 = math.exp %863 : vector<2x128xf32>
    %cst_279 = arith.constant 1.000000e+00 : f32
    %865 = vector.broadcast %cst_279 : f32 to vector<2x128xf32>
    %866 = arith.addf %865, %864 : vector<2x128xf32>
    %867 = arith.divf %865, %866 : vector<2x128xf32>
    %868 = vector.extract_strided_slice %855 {offsets = [0, 256], sizes = [2, 128], strides = [1, 1]} : vector<2x512xf32> to vector<2x128xf32>
    %869 = math.tanh %868 : vector<2x128xf32>
    %870 = vector.extract_strided_slice %855 {offsets = [0, 384], sizes = [2, 128], strides = [1, 1]} : vector<2x512xf32> to vector<2x128xf32>
    %871 = arith.negf %870 : vector<2x128xf32>
    %872 = math.exp %871 : vector<2x128xf32>
    %cst_280 = arith.constant 1.000000e+00 : f32
    %873 = vector.broadcast %cst_280 : f32 to vector<2x128xf32>
    %874 = arith.addf %873, %872 : vector<2x128xf32>
    %875 = arith.divf %873, %874 : vector<2x128xf32>
    %876 = arith.mulf %867, %693 : vector<2x128xf32>
    %877 = arith.mulf %861, %869 : vector<2x128xf32>
    %878 = arith.addf %876, %877 : vector<2x128xf32>
    %879 = math.tanh %878 : vector<2x128xf32>
    %880 = arith.mulf %875, %879 : vector<2x128xf32>
    %c0_281 = arith.constant 0 : index
    %c0_282 = arith.constant 0 : index
    %881 = vector.load %arg12[%c0_281, %c0_282] : memref<128x512xf32, #tpu.memory_space<vmem>>, vector<128x512xf32>
    %cst_283 = arith.constant dense<0.000000e+00> : vector<2x512xf32>
    %882 = tpu.matmul %880, %881, %cst_283 {dimension_numbers = #tpu.dot_dimension_numbers<[1], [0], [0], [1], [0, 0, 1, 1], [], []>} : vector<2x128xf32>, vector<128x512xf32>, vector<2x512xf32> -> vector<2x512xf32>
    %c0_284 = arith.constant 0 : index
    %c0_285 = arith.constant 0 : index
    %883 = vector.load %arg13[%c0_284, %c0_285] : memref<128x512xf32, #tpu.memory_space<vmem>>, vector<128x512xf32>
    %cst_286 = arith.constant dense<0.000000e+00> : vector<2x512xf32>
    %884 = tpu.matmul %728, %883, %cst_286 {dimension_numbers = #tpu.dot_dimension_numbers<[1], [0], [0], [1], [0, 0, 1, 1], [], []>} : vector<2x128xf32>, vector<128x512xf32>, vector<2x512xf32> -> vector<2x512xf32>
    %885 = arith.addf %882, %884 : vector<2x512xf32>
    %c0_287 = arith.constant 0 : index
    %c0_288 = arith.constant 0 : index
    %886 = vector.load %arg14[%c0_287, %c0_288] : memref<1x512xf32, #tpu.memory_space<vmem>>, vector<1x512xf32>
    %887 = vector.broadcast %886 : vector<1x512xf32> to vector<2x512xf32>
    %888 = arith.addf %885, %887 : vector<2x512xf32>
    %889 = vector.extract_strided_slice %888 {offsets = [0, 0], sizes = [2, 128], strides = [1, 1]} : vector<2x512xf32> to vector<2x128xf32>
    %890 = arith.negf %889 : vector<2x128xf32>
    %891 = math.exp %890 : vector<2x128xf32>
    %cst_289 = arith.constant 1.000000e+00 : f32
    %892 = vector.broadcast %cst_289 : f32 to vector<2x128xf32>
    %893 = arith.addf %892, %891 : vector<2x128xf32>
    %894 = arith.divf %892, %893 : vector<2x128xf32>
    %895 = vector.extract_strided_slice %888 {offsets = [0, 128], sizes = [2, 128], strides = [1, 1]} : vector<2x512xf32> to vector<2x128xf32>
    %896 = arith.negf %895 : vector<2x128xf32>
    %897 = math.exp %896 : vector<2x128xf32>
    %cst_290 = arith.constant 1.000000e+00 : f32
    %898 = vector.broadcast %cst_290 : f32 to vector<2x128xf32>
    %899 = arith.addf %898, %897 : vector<2x128xf32>
    %900 = arith.divf %898, %899 : vector<2x128xf32>
    %901 = vector.extract_strided_slice %888 {offsets = [0, 256], sizes = [2, 128], strides = [1, 1]} : vector<2x512xf32> to vector<2x128xf32>
    %902 = math.tanh %901 : vector<2x128xf32>
    %903 = vector.extract_strided_slice %888 {offsets = [0, 384], sizes = [2, 128], strides = [1, 1]} : vector<2x512xf32> to vector<2x128xf32>
    %904 = arith.negf %903 : vector<2x128xf32>
    %905 = math.exp %904 : vector<2x128xf32>
    %cst_291 = arith.constant 1.000000e+00 : f32
    %906 = vector.broadcast %cst_291 : f32 to vector<2x128xf32>
    %907 = arith.addf %906, %905 : vector<2x128xf32>
    %908 = arith.divf %906, %907 : vector<2x128xf32>
    %909 = arith.mulf %900, %726 : vector<2x128xf32>
    %910 = arith.mulf %894, %902 : vector<2x128xf32>
    %911 = arith.addf %909, %910 : vector<2x128xf32>
    %912 = math.tanh %911 : vector<2x128xf32>
    %913 = arith.mulf %908, %912 : vector<2x128xf32>
    %c0_292 = arith.constant 0 : index
    %c0_293 = arith.constant 0 : index
    %914 = vector.load %arg15[%c0_292, %c0_293] : memref<128x256xf32, #tpu.memory_space<vmem>>, vector<128x256xf32>
    %cst_294 = arith.constant dense<0.000000e+00> : vector<2x256xf32>
    %915 = tpu.matmul %913, %914, %cst_294 {dimension_numbers = #tpu.dot_dimension_numbers<[1], [0], [0], [1], [0, 0, 1, 1], [], []>} : vector<2x128xf32>, vector<128x256xf32>, vector<2x256xf32> -> vector<2x256xf32>
    %916 = vector.extract_strided_slice %915 {offsets = [0, 0], sizes = [2, 128], strides = [1, 1]} : vector<2x256xf32> to vector<2x128xf32>
    %917 = vector.broadcast %2 : vector<1x128xf32> to vector<2x128xf32>
    %918 = arith.addf %916, %917 : vector<2x128xf32>
    %919 = vector.extract_strided_slice %915 {offsets = [0, 128], sizes = [2, 128], strides = [1, 1]} : vector<2x256xf32> to vector<2x128xf32>
    %920 = vector.broadcast %1 : vector<1x128xf32> to vector<2x128xf32>
    %921 = arith.addf %919, %920 : vector<2x128xf32>
    %cst_295 = arith.constant dense<0xFF800000> : vector<2xf32>
    %922 = vector.multi_reduction <maximumf>, %918, %cst_295 [1] : vector<2x128xf32> to vector<2xf32>
    %923 = vector.shape_cast %922 : vector<2xf32> to vector<2x1xf32>
    %924 = vector.broadcast %923 : vector<2x1xf32> to vector<2x128xf32>
    %925 = arith.subf %918, %924 : vector<2x128xf32>
    %926 = vector.broadcast %923 : vector<2x1xf32> to vector<2x128xf32>
    %927 = arith.subf %918, %926 : vector<2x128xf32>
    %928 = math.exp %927 : vector<2x128xf32>
    %cst_296 = arith.constant dense<0.000000e+00> : vector<2xf32>
    %929 = vector.multi_reduction <add>, %928, %cst_296 [1] : vector<2x128xf32> to vector<2xf32>
    %930 = vector.shape_cast %929 : vector<2xf32> to vector<2x1xf32>
    %931 = math.log %930 : vector<2x1xf32>
    %932 = vector.broadcast %931 : vector<2x1xf32> to vector<2x128xf32>
    %933 = arith.subf %925, %932 : vector<2x128xf32>
    %934 = vector.broadcast %923 : vector<2x1xf32> to vector<2x128xf32>
    %935 = arith.cmpf oeq, %918, %934 : vector<2x128xf32>
    %c128_i32_297 = arith.constant 128 : i32
    %936 = vector.broadcast %c128_i32_297 : i32 to vector<2x128xi32>
    %937 = arith.select %935, %20, %936 : vector<2x128xi1>, vector<2x128xi32>
    %cst_298 = arith.constant dense<2147483647> : vector<2xi32>
    %938 = vector.multi_reduction <minsi>, %937, %cst_298 [1] : vector<2x128xi32> to vector<2xi32>
    %939 = vector.shape_cast %938 : vector<2xi32> to vector<2x1xi32>
    %940 = vector.broadcast %939 : vector<2x1xi32> to vector<2x128xi32>
    %941 = arith.cmpi eq, %20, %940 : vector<2x128xi32>
    %942 = arith.extui %941 : vector<2x128xi1> to vector<2x128xi32>
    %943 = arith.sitofp %942 : vector<2x128xi32> to vector<2x128xf32>
    %c0_299 = arith.constant 0 : index
    %c0_300 = arith.constant 0 : index
    %944 = vector.load %arg17[%c0_299, %c0_300] : memref<128x32xf32, #tpu.memory_space<vmem>>, vector<128x32xf32>
    %cst_301 = arith.constant dense<0.000000e+00> : vector<2x32xf32>
    %945 = tpu.matmul %943, %944, %cst_301 {dimension_numbers = #tpu.dot_dimension_numbers<[1], [0], [0], [1], [0, 0, 1, 1], [], []>} : vector<2x128xf32>, vector<128x32xf32>, vector<2x32xf32> -> vector<2x32xf32>
    %946 = vector.extract_strided_slice %921 {offsets = [0, 0], sizes = [1, 128], strides = [1, 1]} : vector<2x128xf32> to vector<1x128xf32>
    %947 = vector.broadcast %946 : vector<1x128xf32> to vector<8x128xf32>
    %948 = arith.addf %8, %947 : vector<8x128xf32>
    %cst_302 = arith.constant 0.000000e+00 : f32
    %949 = vector.broadcast %cst_302 : f32 to vector<8x128xf32>
    %950 = arith.maximumf %948, %949 : vector<8x128xf32>
    %951 = vector.broadcast %0 : vector<1x128xf32> to vector<8x128xf32>
    %952 = arith.mulf %950, %951 : vector<8x128xf32>
    %cst_303 = arith.constant dense<0.000000e+00> : vector<8xf32>
    %953 = vector.multi_reduction <add>, %952, %cst_303 [1] : vector<8x128xf32> to vector<8xf32>
    %954 = vector.shape_cast %953 : vector<8xf32> to vector<8x1xf32>
    %cst_304 = arith.constant dense<0xFF800000> : vector<1xf32>
    %955 = vector.multi_reduction <maximumf>, %954, %cst_304 [0] : vector<8x1xf32> to vector<1xf32>
    %956 = vector.shape_cast %955 : vector<1xf32> to vector<1x1xf32>
    %957 = vector.broadcast %956 : vector<1x1xf32> to vector<8x1xf32>
    %958 = arith.subf %954, %957 : vector<8x1xf32>
    %959 = math.exp %958 : vector<8x1xf32>
    %cst_305 = arith.constant dense<0.000000e+00> : vector<1xf32>
    %960 = vector.multi_reduction <add>, %959, %cst_305 [0] : vector<8x1xf32> to vector<1xf32>
    %961 = vector.shape_cast %960 : vector<1xf32> to vector<1x1xf32>
    %962 = math.log %961 : vector<1x1xf32>
    %963 = vector.broadcast %956 : vector<1x1xf32> to vector<8x1xf32>
    %964 = arith.subf %954, %963 : vector<8x1xf32>
    %965 = vector.broadcast %962 : vector<1x1xf32> to vector<8x1xf32>
    %966 = arith.subf %964, %965 : vector<8x1xf32>
    %967 = vector.broadcast %966 : vector<8x1xf32> to vector<8x32xf32>
    %968 = arith.mulf %967, %4 : vector<8x32xf32>
    %cst_306 = arith.constant dense<0.000000e+00> : vector<32xf32>
    %969 = vector.multi_reduction <add>, %968, %cst_306 [0] : vector<8x32xf32> to vector<32xf32>
    %970 = vector.shape_cast %969 : vector<32xf32> to vector<1x32xf32>
    %971 = vector.extract_strided_slice %921 {offsets = [1, 0], sizes = [1, 128], strides = [1, 1]} : vector<2x128xf32> to vector<1x128xf32>
    %972 = vector.broadcast %971 : vector<1x128xf32> to vector<8x128xf32>
    %973 = arith.addf %10, %972 : vector<8x128xf32>
    %cst_307 = arith.constant 0.000000e+00 : f32
    %974 = vector.broadcast %cst_307 : f32 to vector<8x128xf32>
    %975 = arith.maximumf %973, %974 : vector<8x128xf32>
    %976 = vector.broadcast %0 : vector<1x128xf32> to vector<8x128xf32>
    %977 = arith.mulf %975, %976 : vector<8x128xf32>
    %cst_308 = arith.constant dense<0.000000e+00> : vector<8xf32>
    %978 = vector.multi_reduction <add>, %977, %cst_308 [1] : vector<8x128xf32> to vector<8xf32>
    %979 = vector.shape_cast %978 : vector<8xf32> to vector<8x1xf32>
    %cst_309 = arith.constant dense<0xFF800000> : vector<1xf32>
    %980 = vector.multi_reduction <maximumf>, %979, %cst_309 [0] : vector<8x1xf32> to vector<1xf32>
    %981 = vector.shape_cast %980 : vector<1xf32> to vector<1x1xf32>
    %982 = vector.broadcast %981 : vector<1x1xf32> to vector<8x1xf32>
    %983 = arith.subf %979, %982 : vector<8x1xf32>
    %984 = math.exp %983 : vector<8x1xf32>
    %cst_310 = arith.constant dense<0.000000e+00> : vector<1xf32>
    %985 = vector.multi_reduction <add>, %984, %cst_310 [0] : vector<8x1xf32> to vector<1xf32>
    %986 = vector.shape_cast %985 : vector<1xf32> to vector<1x1xf32>
    %987 = math.log %986 : vector<1x1xf32>
    %988 = vector.broadcast %981 : vector<1x1xf32> to vector<8x1xf32>
    %989 = arith.subf %979, %988 : vector<8x1xf32>
    %990 = vector.broadcast %987 : vector<1x1xf32> to vector<8x1xf32>
    %991 = arith.subf %989, %990 : vector<8x1xf32>
    %992 = vector.broadcast %991 : vector<8x1xf32> to vector<8x32xf32>
    %993 = arith.mulf %992, %6 : vector<8x32xf32>
    %cst_311 = arith.constant dense<0.000000e+00> : vector<32xf32>
    %994 = vector.multi_reduction <add>, %993, %cst_311 [0] : vector<8x32xf32> to vector<32xf32>
    %995 = vector.shape_cast %994 : vector<32xf32> to vector<1x32xf32>
    %996 = tpu.concatenate %970, %995 in 0 : vector<1x32xf32>, vector<1x32xf32> -> vector<2x32xf32>
    %c0_312 = arith.constant 0 : index
    %c0_313 = arith.constant 0 : index
    %997 = vector.load %arg5[%c0_312, %c0_313] : memref<32x512xf32, #tpu.memory_space<vmem>>, vector<32x512xf32>
    %cst_314 = arith.constant dense<0.000000e+00> : vector<2x512xf32>
    %998 = tpu.matmul %945, %997, %cst_314 {dimension_numbers = #tpu.dot_dimension_numbers<[1], [0], [0], [1], [0, 0, 1, 1], [], []>} : vector<2x32xf32>, vector<32x512xf32>, vector<2x512xf32> -> vector<2x512xf32>
    %c0_315 = arith.constant 0 : index
    %c0_316 = arith.constant 0 : index
    %999 = vector.load %arg6[%c0_315, %c0_316] : memref<32x512xf32, #tpu.memory_space<vmem>>, vector<32x512xf32>
    %cst_317 = arith.constant dense<0.000000e+00> : vector<2x512xf32>
    %1000 = tpu.matmul %996, %999, %cst_317 {dimension_numbers = #tpu.dot_dimension_numbers<[1], [0], [0], [1], [0, 0, 1, 1], [], []>} : vector<2x32xf32>, vector<32x512xf32>, vector<2x512xf32> -> vector<2x512xf32>
    %1001 = arith.addf %998, %1000 : vector<2x512xf32>
    %c0_318 = arith.constant 0 : index
    %c0_319 = arith.constant 0 : index
    %1002 = vector.load %arg7[%c0_318, %c0_319] : memref<128x512xf32, #tpu.memory_space<vmem>>, vector<128x512xf32>
    %cst_320 = arith.constant dense<0.000000e+00> : vector<2x512xf32>
    %1003 = tpu.matmul %847, %1002, %cst_320 {dimension_numbers = #tpu.dot_dimension_numbers<[1], [0], [0], [1], [0, 0, 1, 1], [], []>} : vector<2x128xf32>, vector<128x512xf32>, vector<2x512xf32> -> vector<2x512xf32>
    %1004 = arith.addf %1001, %1003 : vector<2x512xf32>
    %c0_321 = arith.constant 0 : index
    %c0_322 = arith.constant 0 : index
    %1005 = vector.load %arg8[%c0_321, %c0_322] : memref<1x512xf32, #tpu.memory_space<vmem>>, vector<1x512xf32>
    %1006 = vector.broadcast %1005 : vector<1x512xf32> to vector<2x512xf32>
    %1007 = arith.addf %1004, %1006 : vector<2x512xf32>
    %1008 = vector.extract_strided_slice %1007 {offsets = [0, 0], sizes = [2, 128], strides = [1, 1]} : vector<2x512xf32> to vector<2x128xf32>
    %1009 = arith.negf %1008 : vector<2x128xf32>
    %1010 = math.exp %1009 : vector<2x128xf32>
    %cst_323 = arith.constant 1.000000e+00 : f32
    %1011 = vector.broadcast %cst_323 : f32 to vector<2x128xf32>
    %1012 = arith.addf %1011, %1010 : vector<2x128xf32>
    %1013 = arith.divf %1011, %1012 : vector<2x128xf32>
    %1014 = vector.extract_strided_slice %1007 {offsets = [0, 128], sizes = [2, 128], strides = [1, 1]} : vector<2x512xf32> to vector<2x128xf32>
    %1015 = arith.negf %1014 : vector<2x128xf32>
    %1016 = math.exp %1015 : vector<2x128xf32>
    %cst_324 = arith.constant 1.000000e+00 : f32
    %1017 = vector.broadcast %cst_324 : f32 to vector<2x128xf32>
    %1018 = arith.addf %1017, %1016 : vector<2x128xf32>
    %1019 = arith.divf %1017, %1018 : vector<2x128xf32>
    %1020 = vector.extract_strided_slice %1007 {offsets = [0, 256], sizes = [2, 128], strides = [1, 1]} : vector<2x512xf32> to vector<2x128xf32>
    %1021 = math.tanh %1020 : vector<2x128xf32>
    %1022 = vector.extract_strided_slice %1007 {offsets = [0, 384], sizes = [2, 128], strides = [1, 1]} : vector<2x512xf32> to vector<2x128xf32>
    %1023 = arith.negf %1022 : vector<2x128xf32>
    %1024 = math.exp %1023 : vector<2x128xf32>
    %cst_325 = arith.constant 1.000000e+00 : f32
    %1025 = vector.broadcast %cst_325 : f32 to vector<2x128xf32>
    %1026 = arith.addf %1025, %1024 : vector<2x128xf32>
    %1027 = arith.divf %1025, %1026 : vector<2x128xf32>
    %1028 = arith.mulf %1019, %845 : vector<2x128xf32>
    %1029 = arith.mulf %1013, %1021 : vector<2x128xf32>
    %1030 = arith.addf %1028, %1029 : vector<2x128xf32>
    %1031 = math.tanh %1030 : vector<2x128xf32>
    %1032 = arith.mulf %1027, %1031 : vector<2x128xf32>
    %c0_326 = arith.constant 0 : index
    %c0_327 = arith.constant 0 : index
    %1033 = vector.load %arg9[%c0_326, %c0_327] : memref<128x512xf32, #tpu.memory_space<vmem>>, vector<128x512xf32>
    %cst_328 = arith.constant dense<0.000000e+00> : vector<2x512xf32>
    %1034 = tpu.matmul %1032, %1033, %cst_328 {dimension_numbers = #tpu.dot_dimension_numbers<[1], [0], [0], [1], [0, 0, 1, 1], [], []>} : vector<2x128xf32>, vector<128x512xf32>, vector<2x512xf32> -> vector<2x512xf32>
    %c0_329 = arith.constant 0 : index
    %c0_330 = arith.constant 0 : index
    %1035 = vector.load %arg10[%c0_329, %c0_330] : memref<128x512xf32, #tpu.memory_space<vmem>>, vector<128x512xf32>
    %cst_331 = arith.constant dense<0.000000e+00> : vector<2x512xf32>
    %1036 = tpu.matmul %880, %1035, %cst_331 {dimension_numbers = #tpu.dot_dimension_numbers<[1], [0], [0], [1], [0, 0, 1, 1], [], []>} : vector<2x128xf32>, vector<128x512xf32>, vector<2x512xf32> -> vector<2x512xf32>
    %1037 = arith.addf %1034, %1036 : vector<2x512xf32>
    %c0_332 = arith.constant 0 : index
    %c0_333 = arith.constant 0 : index
    %1038 = vector.load %arg11[%c0_332, %c0_333] : memref<1x512xf32, #tpu.memory_space<vmem>>, vector<1x512xf32>
    %1039 = vector.broadcast %1038 : vector<1x512xf32> to vector<2x512xf32>
    %1040 = arith.addf %1037, %1039 : vector<2x512xf32>
    %1041 = vector.extract_strided_slice %1040 {offsets = [0, 0], sizes = [2, 128], strides = [1, 1]} : vector<2x512xf32> to vector<2x128xf32>
    %1042 = arith.negf %1041 : vector<2x128xf32>
    %1043 = math.exp %1042 : vector<2x128xf32>
    %cst_334 = arith.constant 1.000000e+00 : f32
    %1044 = vector.broadcast %cst_334 : f32 to vector<2x128xf32>
    %1045 = arith.addf %1044, %1043 : vector<2x128xf32>
    %1046 = arith.divf %1044, %1045 : vector<2x128xf32>
    %1047 = vector.extract_strided_slice %1040 {offsets = [0, 128], sizes = [2, 128], strides = [1, 1]} : vector<2x512xf32> to vector<2x128xf32>
    %1048 = arith.negf %1047 : vector<2x128xf32>
    %1049 = math.exp %1048 : vector<2x128xf32>
    %cst_335 = arith.constant 1.000000e+00 : f32
    %1050 = vector.broadcast %cst_335 : f32 to vector<2x128xf32>
    %1051 = arith.addf %1050, %1049 : vector<2x128xf32>
    %1052 = arith.divf %1050, %1051 : vector<2x128xf32>
    %1053 = vector.extract_strided_slice %1040 {offsets = [0, 256], sizes = [2, 128], strides = [1, 1]} : vector<2x512xf32> to vector<2x128xf32>
    %1054 = math.tanh %1053 : vector<2x128xf32>
    %1055 = vector.extract_strided_slice %1040 {offsets = [0, 384], sizes = [2, 128], strides = [1, 1]} : vector<2x512xf32> to vector<2x128xf32>
    %1056 = arith.negf %1055 : vector<2x128xf32>
    %1057 = math.exp %1056 : vector<2x128xf32>
    %cst_336 = arith.constant 1.000000e+00 : f32
    %1058 = vector.broadcast %cst_336 : f32 to vector<2x128xf32>
    %1059 = arith.addf %1058, %1057 : vector<2x128xf32>
    %1060 = arith.divf %1058, %1059 : vector<2x128xf32>
    %1061 = arith.mulf %1052, %878 : vector<2x128xf32>
    %1062 = arith.mulf %1046, %1054 : vector<2x128xf32>
    %1063 = arith.addf %1061, %1062 : vector<2x128xf32>
    %1064 = math.tanh %1063 : vector<2x128xf32>
    %1065 = arith.mulf %1060, %1064 : vector<2x128xf32>
    %c0_337 = arith.constant 0 : index
    %c0_338 = arith.constant 0 : index
    %1066 = vector.load %arg12[%c0_337, %c0_338] : memref<128x512xf32, #tpu.memory_space<vmem>>, vector<128x512xf32>
    %cst_339 = arith.constant dense<0.000000e+00> : vector<2x512xf32>
    %1067 = tpu.matmul %1065, %1066, %cst_339 {dimension_numbers = #tpu.dot_dimension_numbers<[1], [0], [0], [1], [0, 0, 1, 1], [], []>} : vector<2x128xf32>, vector<128x512xf32>, vector<2x512xf32> -> vector<2x512xf32>
    %c0_340 = arith.constant 0 : index
    %c0_341 = arith.constant 0 : index
    %1068 = vector.load %arg13[%c0_340, %c0_341] : memref<128x512xf32, #tpu.memory_space<vmem>>, vector<128x512xf32>
    %cst_342 = arith.constant dense<0.000000e+00> : vector<2x512xf32>
    %1069 = tpu.matmul %913, %1068, %cst_342 {dimension_numbers = #tpu.dot_dimension_numbers<[1], [0], [0], [1], [0, 0, 1, 1], [], []>} : vector<2x128xf32>, vector<128x512xf32>, vector<2x512xf32> -> vector<2x512xf32>
    %1070 = arith.addf %1067, %1069 : vector<2x512xf32>
    %c0_343 = arith.constant 0 : index
    %c0_344 = arith.constant 0 : index
    %1071 = vector.load %arg14[%c0_343, %c0_344] : memref<1x512xf32, #tpu.memory_space<vmem>>, vector<1x512xf32>
    %1072 = vector.broadcast %1071 : vector<1x512xf32> to vector<2x512xf32>
    %1073 = arith.addf %1070, %1072 : vector<2x512xf32>
    %1074 = vector.extract_strided_slice %1073 {offsets = [0, 0], sizes = [2, 128], strides = [1, 1]} : vector<2x512xf32> to vector<2x128xf32>
    %1075 = arith.negf %1074 : vector<2x128xf32>
    %1076 = math.exp %1075 : vector<2x128xf32>
    %cst_345 = arith.constant 1.000000e+00 : f32
    %1077 = vector.broadcast %cst_345 : f32 to vector<2x128xf32>
    %1078 = arith.addf %1077, %1076 : vector<2x128xf32>
    %1079 = arith.divf %1077, %1078 : vector<2x128xf32>
    %1080 = vector.extract_strided_slice %1073 {offsets = [0, 128], sizes = [2, 128], strides = [1, 1]} : vector<2x512xf32> to vector<2x128xf32>
    %1081 = arith.negf %1080 : vector<2x128xf32>
    %1082 = math.exp %1081 : vector<2x128xf32>
    %cst_346 = arith.constant 1.000000e+00 : f32
    %1083 = vector.broadcast %cst_346 : f32 to vector<2x128xf32>
    %1084 = arith.addf %1083, %1082 : vector<2x128xf32>
    %1085 = arith.divf %1083, %1084 : vector<2x128xf32>
    %1086 = vector.extract_strided_slice %1073 {offsets = [0, 256], sizes = [2, 128], strides = [1, 1]} : vector<2x512xf32> to vector<2x128xf32>
    %1087 = math.tanh %1086 : vector<2x128xf32>
    %1088 = vector.extract_strided_slice %1073 {offsets = [0, 384], sizes = [2, 128], strides = [1, 1]} : vector<2x512xf32> to vector<2x128xf32>
    %1089 = arith.negf %1088 : vector<2x128xf32>
    %1090 = math.exp %1089 : vector<2x128xf32>
    %cst_347 = arith.constant 1.000000e+00 : f32
    %1091 = vector.broadcast %cst_347 : f32 to vector<2x128xf32>
    %1092 = arith.addf %1091, %1090 : vector<2x128xf32>
    %1093 = arith.divf %1091, %1092 : vector<2x128xf32>
    %1094 = arith.mulf %1085, %911 : vector<2x128xf32>
    %1095 = arith.mulf %1079, %1087 : vector<2x128xf32>
    %1096 = arith.addf %1094, %1095 : vector<2x128xf32>
    %1097 = math.tanh %1096 : vector<2x128xf32>
    %1098 = arith.mulf %1093, %1097 : vector<2x128xf32>
    %c0_348 = arith.constant 0 : index
    %c0_349 = arith.constant 0 : index
    %1099 = vector.load %arg15[%c0_348, %c0_349] : memref<128x256xf32, #tpu.memory_space<vmem>>, vector<128x256xf32>
    %cst_350 = arith.constant dense<0.000000e+00> : vector<2x256xf32>
    %1100 = tpu.matmul %1098, %1099, %cst_350 {dimension_numbers = #tpu.dot_dimension_numbers<[1], [0], [0], [1], [0, 0, 1, 1], [], []>} : vector<2x128xf32>, vector<128x256xf32>, vector<2x256xf32> -> vector<2x256xf32>
    %1101 = vector.extract_strided_slice %1100 {offsets = [0, 0], sizes = [2, 128], strides = [1, 1]} : vector<2x256xf32> to vector<2x128xf32>
    %1102 = vector.broadcast %2 : vector<1x128xf32> to vector<2x128xf32>
    %1103 = arith.addf %1101, %1102 : vector<2x128xf32>
    %cst_351 = arith.constant dense<0xFF800000> : vector<2xf32>
    %1104 = vector.multi_reduction <maximumf>, %1103, %cst_351 [1] : vector<2x128xf32> to vector<2xf32>
    %1105 = vector.shape_cast %1104 : vector<2xf32> to vector<2x1xf32>
    %1106 = vector.broadcast %1105 : vector<2x1xf32> to vector<2x128xf32>
    %1107 = arith.subf %1103, %1106 : vector<2x128xf32>
    %1108 = vector.broadcast %1105 : vector<2x1xf32> to vector<2x128xf32>
    %1109 = arith.subf %1103, %1108 : vector<2x128xf32>
    %1110 = math.exp %1109 : vector<2x128xf32>
    %cst_352 = arith.constant dense<0.000000e+00> : vector<2xf32>
    %1111 = vector.multi_reduction <add>, %1110, %cst_352 [1] : vector<2x128xf32> to vector<2xf32>
    %1112 = vector.shape_cast %1111 : vector<2xf32> to vector<2x1xf32>
    %1113 = math.log %1112 : vector<2x1xf32>
    %1114 = vector.broadcast %1113 : vector<2x1xf32> to vector<2x128xf32>
    %1115 = arith.subf %1107, %1114 : vector<2x128xf32>
    %1116 = tpu.concatenate %193, %378, %563, %748, %933, %1115 in 0 : vector<2x128xf32>, vector<2x128xf32>, vector<2x128xf32>, vector<2x128xf32>, vector<2x128xf32>, vector<2x128xf32> -> vector<12x128xf32>
    %c0_353 = arith.constant 0 : index
    %c0_354 = arith.constant 0 : index
    %1117 = vector.load %arg18[%c0_353, %c0_354] : memref<12x128xf32, #tpu.memory_space<vmem>>, vector<12x128xf32>
    tpu.vector_store %arg18[%c0_353, %c0_354], %1116 {strides = array<i32>} : memref<12x128xf32, #tpu.memory_space<vmem>>, vector<12x128xf32>,
    return
  }
}

</mosaic_0001>

<llo_original>
// kernel: tpu_custom_call.1
$region0: #{tpu_custom_call.1}
  #allocation0 [shape = 'u32[]', space=smem, size = 0x4, offset = 0x4, fixed_abs, tag = 'smem constant byte address 0x4 - core index']
  #allocation1 [shape = 'u32[144,128]{1,0:T(1,128)}', space=vmem, size = 0x12000, scoped, tag = 'internal scratch']
  %s0 = inlined_call_operand.hbm [shape: f32[2,8,32], index: 0, kind: input, shape index: {}]
  %s1 = inlined_call_operand.hbm [shape: f32[2,32], index: 1, kind: input, shape index: {}]
  %s2 = inlined_call_operand.vmem [shape: f32[32,128], index: 2, kind: input, shape index: {}]
  %s3 = inlined_call_operand.vmem [shape: f32[1,128], index: 3, kind: input, shape index: {}]
  %s4 = inlined_call_operand.hbm [shape: f32[1,128], index: 4, kind: input, shape index: {}]
  %s5 = inlined_call_operand.vmem [shape: f32[32,512], index: 5, kind: input, shape index: {}]
  %s6 = inlined_call_operand.hbm [shape: f32[32,512], index: 6, kind: input, shape index: {}]
  %s7 = inlined_call_operand.hbm [shape: f32[128,512], index: 7, kind: input, shape index: {}]
  %s8 = inlined_call_operand.vmem [shape: f32[1,512], index: 8, kind: input, shape index: {}]
  %s9 = inlined_call_operand.hbm [shape: f32[128,512], index: 9, kind: input, shape index: {}]
  %s10 = inlined_call_operand.hbm [shape: f32[128,512], index: 10, kind: input, shape index: {}]
  %s11 = inlined_call_operand.vmem [shape: f32[1,512], index: 11, kind: input, shape index: {}]
  %s12 = inlined_call_operand.hbm [shape: f32[128,512], index: 12, kind: input, shape index: {}]
  %s13 = inlined_call_operand.hbm [shape: f32[128,512], index: 13, kind: input, shape index: {}]
  %s14 = inlined_call_operand.vmem [shape: f32[1,512], index: 14, kind: input, shape index: {}]
  %s15 = inlined_call_operand.hbm [shape: f32[128,256], index: 15, kind: input, shape index: {}]
  %s16 = inlined_call_operand.vmem [shape: f32[1,128], index: 16, kind: input, shape index: {}]
  %s17 = inlined_call_operand.vmem [shape: f32[128,32], index: 17, kind: input, shape index: {}]
  %s18 = inlined_call_operand.hbm [shape: f32[12,128], index: 18, kind: output, shape index: {}]
  %s19 = sld [smem:[#allocation0]]
  $region122: #{tpu_custom_call.1} parent=0
    _
  %s21 = ssub.s32 1, %s19
  %s22 = scalar_select 0, %s21, %s19
  $region1: #{tpu_custom_call.1} parent=0
    #allocation2 [shape = 'u8[8192]{0}', space=vmem, size = 0x2000, scoped, tag = 'input window, operand 0, single buffered']
    #allocation3 [shape = 's32[1]{0}', space=sflag, size = 0x4, scoped, tag = 'scoped memory for tpu_custom_call.1']
    #allocation4 [shape = 's32[1]{0}', space=sflag, size = 0x4, scoped, tag = 'scoped memory for tpu_custom_call.1']
    #allocation5 [shape = 'u8[1024]{0}', space=vmem, size = 0x400, scoped, tag = 'input window, operand 1, single buffered']
    #allocation6 [shape = 's32[1]{0}', space=sflag, size = 0x4, scoped, tag = 'scoped memory for tpu_custom_call.1']
    #allocation7 [shape = 'u8[512]{0}', space=vmem, size = 0x400, scoped, tag = 'input window, operand 4, single buffered']
    #allocation8 [shape = 'u8[65536]{0}', space=vmem, size = 0x10000, scoped, tag = 'input window, operand 6, single buffered']
    #allocation9 [shape = 's32[1]{0}', space=sflag, size = 0x4, scoped, tag = 'scoped memory for tpu_custom_call.1']
    #allocation10 [shape = 'u8[262144]{0}', space=vmem, size = 0x40000, scoped, tag = 'input window, operand 7, single buffered']
    #allocation11 [shape = 'u8[262144]{0}', space=vmem, size = 0x40000, scoped, tag = 'input window, operand 9, single buffered']
    #allocation12 [shape = 's32[1]{0}', space=sflag, size = 0x4, scoped, tag = 'scoped memory for tpu_custom_call.1']
    #allocation13 [shape = 'u8[262144]{0}', space=vmem, size = 0x40000, scoped, tag = 'input window, operand 10, single buffered']
    #allocation14 [shape = 'u8[262144]{0}', space=vmem, size = 0x40000, scoped, tag = 'input window, operand 12, single buffered']
    #allocation15 [shape = 's32[1]{0}', space=sflag, size = 0x4, scoped, tag = 'scoped memory for tpu_custom_call.1']
    #allocation16 [shape = 'u8[262144]{0}', space=vmem, size = 0x40000, scoped, tag = 'input window, operand 13, single buffered']
    #allocation17 [shape = 'u8[131072]{0}', space=vmem, size = 0x20000, scoped, tag = 'input window, operand 15, single buffered']
    #allocation18 [shape = 's32[1]{0}', space=sflag, size = 0x4, scoped, tag = 'scoped memory for tpu_custom_call.1']
    #allocation19 [shape = 'u8[8192]{0}', space=vmem, size = 0x2000, scoped, tag = 'output window, operand 0, single buffered']
    %23 = vsyncpa [#allocation3], 0
    %24 = vsyncpa [#allocation6], 0
    %25 = vsyncpa [#allocation9], 0
    %26 = vsyncpa [#allocation12], 0
    %27 = vsyncpa [#allocation15], 0
    %28 = vsyncpa [#allocation18], 0
    %29 = vsyncpa [#allocation4], 0
    // Predicated region
    $region2: #{tpu_custom_call.1} parent=1 // pred_check
      _
    $region3: #{tpu_custom_call.1} parent=1 // pred_check_branch
      %31 = sbr.rel (0) target = $region5
    $region4: #{tpu_custom_call.1} parent=1 // pred_region
      %s33 = ssub.s32 256, 256
      %34 = vsyncadd [#allocation3], %s33
      %s35 = sshll.u32 [#allocation2], 4
      %s36 = int_to_ptr.vmem [resolvable:$true] %s35
      %41 = dma.hbm_to_vmem [thread:$0]  %s0, 256, %s36, [#allocation3], 128, 128, 8
    $region5: #{tpu_custom_call.1} parent=1 // pred_fallthru
      _
    // Predicated region
    $region6: #{tpu_custom_call.1} parent=1 // pred_check
      _
    $region7: #{tpu_custom_call.1} parent=1 // pred_check_branch
      %43 = sbr.rel (0) target = $region9
    $region8: #{tpu_custom_call.1} parent=1 // pred_region
      %s45 = ssub.s32 32, 32
      %46 = vsyncadd [#allocation6], %s45
      %s48 = sshll.u32 [#allocation5], 4
      %s49 = int_to_ptr.vmem [resolvable:$true] %s48
      %51 = dma.hbm_to_vmem [thread:$0]  %s1, 32, %s49, [#allocation6]
    $region9: #{tpu_custom_call.1} parent=1 // pred_fallthru
      _
    // Predicated region
    $region10: #{tpu_custom_call.1} parent=1 // pred_check
      _
    $region11: #{tpu_custom_call.1} parent=1 // pred_check_branch
      %53 = sbr.rel (0) target = $region13
    $region12: #{tpu_custom_call.1} parent=1 // pred_region
      _
    $region13: #{tpu_custom_call.1} parent=1 // pred_fallthru
      _
    // Predicated region
    $region14: #{tpu_custom_call.1} parent=1 // pred_check
      _
    $region15: #{tpu_custom_call.1} parent=1 // pred_check_branch
      %55 = sbr.rel (0) target = $region17
    $region16: #{tpu_custom_call.1} parent=1 // pred_region
      _
    $region17: #{tpu_custom_call.1} parent=1 // pred_fallthru
      _
    // Predicated region
    $region18: #{tpu_custom_call.1} parent=1 // pred_check
      _
    $region19: #{tpu_custom_call.1} parent=1 // pred_check_branch
      %57 = sbr.rel (0) target = $region21
    $region20: #{tpu_custom_call.1} parent=1 // pred_region
      %s59 = ssub.s32 16, 16
      %60 = vsyncadd [#allocation6], %s59
      %s62 = sshll.u32 [#allocation7], 4
      %s63 = int_to_ptr.vmem [resolvable:$true] %s62
      %65 = dma.hbm_to_vmem [thread:$0]  %s4, 16, %s63, [#allocation6]
    $region21: #{tpu_custom_call.1} parent=1 // pred_fallthru
      _
    // Predicated region
    $region22: #{tpu_custom_call.1} parent=1 // pred_check
      _
    $region23: #{tpu_custom_call.1} parent=1 // pred_check_branch
      %67 = sbr.rel (0) target = $region25
    $region24: #{tpu_custom_call.1} parent=1 // pred_region
      _
    $region25: #{tpu_custom_call.1} parent=1 // pred_fallthru
      _
    // Predicated region
    $region26: #{tpu_custom_call.1} parent=1 // pred_check
      _
    $region27: #{tpu_custom_call.1} parent=1 // pred_check_branch
      %69 = sbr.rel (0) target = $region29
    $region28: #{tpu_custom_call.1} parent=1 // pred_region
      %s71 = ssub.s32 2048, 2048
      %72 = vsyncadd [#allocation9], %s71
      %s73 = sshll.u32 [#allocation8], 4
      %s74 = int_to_ptr.vmem [resolvable:$true] %s73
      %79 = dma.hbm_to_vmem [thread:$0]  %s6, 2048, %s74, [#allocation9], 512, 512, 32
    $region29: #{tpu_custom_call.1} parent=1 // pred_fallthru
      _
    // Predicated region
    $region30: #{tpu_custom_call.1} parent=1 // pred_check
      _
    $region31: #{tpu_custom_call.1} parent=1 // pred_check_branch
      %81 = sbr.rel (0) target = $region33
    $region32: #{tpu_custom_call.1} parent=1 // pred_region
      %s83 = ssub.s32 8192, 8192
      %84 = vsyncadd [#allocation9], %s83
      %s85 = sshll.u32 [#allocation10], 4
      %s86 = int_to_ptr.vmem [resolvable:$true] %s85
      %91 = dma.hbm_to_vmem [thread:$0]  %s7, 8192, %s86, [#allocation9], 512, 512, 32
    $region33: #{tpu_custom_call.1} parent=1 // pred_fallthru
      _
    // Predicated region
    $region34: #{tpu_custom_call.1} parent=1 // pred_check
      _
    $region35: #{tpu_custom_call.1} parent=1 // pred_check_branch
      %93 = sbr.rel (0) target = $region37
    $region36: #{tpu_custom_call.1} parent=1 // pred_region
      _
    $region37: #{tpu_custom_call.1} parent=1 // pred_fallthru
      _
    // Predicated region
    $region38: #{tpu_custom_call.1} parent=1 // pred_check
      _
    $region39: #{tpu_custom_call.1} parent=1 // pred_check_branch
      %95 = sbr.rel (0) target = $region41
    $region40: #{tpu_custom_call.1} parent=1 // pred_region
      %s97 = ssub.s32 8192, 8192
      %98 = vsyncadd [#allocation12], %s97
      %s99 = sshll.u32 [#allocation11], 4
      %s100 = int_to_ptr.vmem [resolvable:$true] %s99
      %105 = dma.hbm_to_vmem [thread:$0]  %s9, 8192, %s100, [#allocation12], 512, 512, 32
    $region41: #{tpu_custom_call.1} parent=1 // pred_fallthru
      _
    // Predicated region
    $region42: #{tpu_custom_call.1} parent=1 // pred_check
      _
    $region43: #{tpu_custom_call.1} parent=1 // pred_check_branch
      %107 = sbr.rel (0) target = $region45
    $region44: #{tpu_custom_call.1} parent=1 // pred_region
      %s109 = ssub.s32 8192, 8192
      %110 = vsyncadd [#allocation12], %s109
      %s111 = sshll.u32 [#allocation13], 4
      %s112 = int_to_ptr.vmem [resolvable:$true] %s111
      %117 = dma.hbm_to_vmem [thread:$0]  %s10, 8192, %s112, [#allocation12], 512, 512, 32
    $region45: #{tpu_custom_call.1} parent=1 // pred_fallthru
      _
    // Predicated region
    $region46: #{tpu_custom_call.1} parent=1 // pred_check
      _
    $region47: #{tpu_custom_call.1} parent=1 // pred_check_branch
      %119 = sbr.rel (0) target = $region49
    $region48: #{tpu_custom_call.1} parent=1 // pred_region
      _
    $region49: #{tpu_custom_call.1} parent=1 // pred_fallthru
      _
    // Predicated region
    $region50: #{tpu_custom_call.1} parent=1 // pred_check
      _
    $region51: #{tpu_custom_call.1} parent=1 // pred_check_branch
      %121 = sbr.rel (0) target = $region53
    $region52: #{tpu_custom_call.1} parent=1 // pred_region
      %s123 = ssub.s32 8192, 8192
      %124 = vsyncadd [#allocation15], %s123
      %s125 = sshll.u32 [#allocation14], 4
      %s126 = int_to_ptr.vmem [resolvable:$true] %s125
      %131 = dma.hbm_to_vmem [thread:$0]  %s12, 8192, %s126, [#allocation15], 512, 512, 32
    $region53: #{tpu_custom_call.1} parent=1 // pred_fallthru
      _
    // Predicated region
    $region54: #{tpu_custom_call.1} parent=1 // pred_check
      _
    $region55: #{tpu_custom_call.1} parent=1 // pred_check_branch
      %133 = sbr.rel (0) target = $region57
    $region56: #{tpu_custom_call.1} parent=1 // pred_region
      %s135 = ssub.s32 8192, 8192
      %136 = vsyncadd [#allocation15], %s135
      %s137 = sshll.u32 [#allocation16], 4
      %s138 = int_to_ptr.vmem [resolvable:$true] %s137
      %143 = dma.hbm_to_vmem [thread:$0]  %s13, 8192, %s138, [#allocation15], 512, 512, 32
    $region57: #{tpu_custom_call.1} parent=1 // pred_fallthru
      _
    // Predicated region
    $region58: #{tpu_custom_call.1} parent=1 // pred_check
      _
    $region59: #{tpu_custom_call.1} parent=1 // pred_check_branch
      %145 = sbr.rel (0) target = $region61
    $region60: #{tpu_custom_call.1} parent=1 // pred_region
      _
    $region61: #{tpu_custom_call.1} parent=1 // pred_fallthru
      _
    // Predicated region
    $region62: #{tpu_custom_call.1} parent=1 // pred_check
      _
    $region63: #{tpu_custom_call.1} parent=1 // pred_check_branch
      %147 = sbr.rel (0) target = $region65
    $region64: #{tpu_custom_call.1} parent=1 // pred_region
      %s149 = ssub.s32 4096, 4096
      %150 = vsyncadd [#allocation18], %s149
      %s151 = sshll.u32 [#allocation17], 4
      %s152 = int_to_ptr.vmem [resolvable:$true] %s151
      %157 = dma.hbm_to_vmem [thread:$0]  %s15, 4096, %s152, [#allocation18], 256, 256, 16
    $region65: #{tpu_custom_call.1} parent=1 // pred_fallthru
      _
    // Predicated region
    $region66: #{tpu_custom_call.1} parent=1 // pred_check
      _
    $region67: #{tpu_custom_call.1} parent=1 // pred_check_branch
      %159 = sbr.rel (0) target = $region69
    $region68: #{tpu_custom_call.1} parent=1 // pred_region
      _
    $region69: #{tpu_custom_call.1} parent=1 // pred_fallthru
      _
    // Predicated region
    $region70: #{tpu_custom_call.1} parent=1 // pred_check
      _
    $region71: #{tpu_custom_call.1} parent=1 // pred_check_branch
      %161 = sbr.rel (0) target = $region73
    $region72: #{tpu_custom_call.1} parent=1 // pred_region
      _
    $region73: #{tpu_custom_call.1} parent=1 // pred_fallthru
      _
    // Predicated region
    $region74: #{tpu_custom_call.1} parent=1 // pred_check
      _
    $region75: #{tpu_custom_call.1} parent=1 // pred_check_branch
      %163 = sbr.rel (0) target = $region77
    $region76: #{tpu_custom_call.1} parent=1 // pred_region
      %164 = dma.done [#allocation3], 256
    $region77: #{tpu_custom_call.1} parent=1 // pred_fallthru
      _
    // Predicated region
    $region78: #{tpu_custom_call.1} parent=1 // pred_check
      _
    $region79: #{tpu_custom_call.1} parent=1 // pred_check_branch
      %166 = sbr.rel (0) target = $region81
    $region80: #{tpu_custom_call.1} parent=1 // pred_region
      %167 = dma.done [#allocation6], 32
    $region81: #{tpu_custom_call.1} parent=1 // pred_fallthru
      _
    // Predicated region
    $region82: #{tpu_custom_call.1} parent=1 // pred_check
      _
    $region83: #{tpu_custom_call.1} parent=1 // pred_check_branch
      %169 = sbr.rel (0) target = $region85
    $region84: #{tpu_custom_call.1} parent=1 // pred_region
      %170 = dma.done [#allocation6], 16
    $region85: #{tpu_custom_call.1} parent=1 // pred_fallthru
      _
    // Predicated region
    $region86: #{tpu_custom_call.1} parent=1 // pred_check
      _
    $region87: #{tpu_custom_call.1} parent=1 // pred_check_branch
      %172 = sbr.rel (0) target = $region89
    $region88: #{tpu_custom_call.1} parent=1 // pred_region
      %173 = dma.done [#allocation9], 2048
    $region89: #{tpu_custom_call.1} parent=1 // pred_fallthru
      _
    // Predicated region
    $region90: #{tpu_custom_call.1} parent=1 // pred_check
      _
    $region91: #{tpu_custom_call.1} parent=1 // pred_check_branch
      %175 = sbr.rel (0) target = $region93
    $region92: #{tpu_custom_call.1} parent=1 // pred_region
      %176 = dma.done [#allocation9], 8192
    $region93: #{tpu_custom_call.1} parent=1 // pred_fallthru
      _
    // Predicated region
    $region94: #{tpu_custom_call.1} parent=1 // pred_check
      _
    $region95: #{tpu_custom_call.1} parent=1 // pred_check_branch
      %178 = sbr.rel (0) target = $region97
    $region96: #{tpu_custom_call.1} parent=1 // pred_region
      %179 = dma.done [#allocation12], 8192
    $region97: #{tpu_custom_call.1} parent=1 // pred_fallthru
      _
    // Predicated region
    $region98: #{tpu_custom_call.1} parent=1 // pred_check
      _
    $region99: #{tpu_custom_call.1} parent=1 // pred_check_branch
      %181 = sbr.rel (0) target = $region101
    $region100: #{tpu_custom_call.1} parent=1 // pred_region
      %182 = dma.done [#allocation12], 8192
    $region101: #{tpu_custom_call.1} parent=1 // pred_fallthru
      _
    // Predicated region
    $region102: #{tpu_custom_call.1} parent=1 // pred_check
      _
    $region103: #{tpu_custom_call.1} parent=1 // pred_check_branch
      %184 = sbr.rel (0) target = $region105
    $region104: #{tpu_custom_call.1} parent=1 // pred_region
      %185 = dma.done [#allocation15], 8192
    $region105: #{tpu_custom_call.1} parent=1 // pred_fallthru
      _
    // Predicated region
    $region106: #{tpu_custom_call.1} parent=1 // pred_check
      _
    $region107: #{tpu_custom_call.1} parent=1 // pred_check_branch
      %187 = sbr.rel (0) target = $region109
    $region108: #{tpu_custom_call.1} parent=1 // pred_region
      %188 = dma.done [#allocation15], 8192
    $region109: #{tpu_custom_call.1} parent=1 // pred_fallthru
      _
    // Predicated region
    $region110: #{tpu_custom_call.1} parent=1 // pred_check
      _
    $region111: #{tpu_custom_call.1} parent=1 // pred_check_branch
      %190 = sbr.rel (0) target = $region113
    $region112: #{tpu_custom_call.1} parent=1 // pred_region
      %191 = dma.done [#allocation18], 4096
    $region113: #{tpu_custom_call.1} parent=1 // pred_fallthru
      _
    %v192 = vld [vmem:[%s3] sm:$0x1]
    %v193 = vld [vmem:[#allocation7] sm:$0x1]
    %v194 = vld [vmem:[%s16] sm:$0x1]
    %v195 = vld [vmem:[#allocation2] sm:$0xff]
    %s196 = scalar_lea.vmem [#allocation2], 8
    %v197 = vld [vmem:[%s196] sm:$0xff]
    %v198 = vld [vmem:[%s2] sm:$0xff]
    %v199 = vld [vmem:[%s2 + $0x8] sm:$0xff]
    %v200 = vld [vmem:[%s2 + $0x10] sm:$0xff]
    %v201 = vld [vmem:[%s2 + $0x18] sm:$0xff]
    %vm202 = vcmask 261120
    %v204 = vsel %vm202, %v195, 0
    %206 = vmatprep.subr.mxu0 0.0
    %207 = vmatpush1.msra.mxu0 0.0
    %208 = vmatprep.subr.mxu0 0.0
    %209 = vmatpush1.msra.mxu0 0.0
    %210 = vmatprep.subr.mxu0 0.0
    %211 = vmatpush1.msra.mxu0 0.0
    %212 = vmatprep.subr.mxu0 0.0
    %213 = vmatpush1.msra.mxu0 0.0
    %214 = vmatprep.subr.mxu0 0.0
    %215 = vmatpush1.msra.mxu0 0.0
    %216 = vmatprep.subr.mxu0 0.0
    %217 = vmatpush1.msra.mxu0 0.0
    %218 = vmatprep.subr.mxu0 0.0
    %219 = vmatpush1.msra.mxu0 0.0
    %220 = vmatprep.subr.mxu0 0.0
    %221 = vmatpush1.msra.mxu0 0.0
    %222 = vmatprep.subr.mxu0 0.0
    %223 = vmatpush1.msra.mxu0 0.0
    %224 = vmatprep.subr.mxu0 0.0
    %225 = vmatpush1.msra.mxu0 0.0
    %226 = vmatprep.subr.mxu0 0.0
    %227 = vmatpush1.msra.mxu0 0.0
    %228 = vmatprep.subr.mxu0 0.0
    %229 = vmatpush1.msra.mxu0 0.0
    %230 = vmatprep.subr.mxu0 0.0
    %231 = vmatpush1.msra.mxu0 %v201
    %232 = vmatprep.subr.mxu0 0.0
    %233 = vmatpush1.msra.mxu0 %v200
    %234 = vmatprep.subr.mxu0 0.0
    %235 = vmatpush1.msra.mxu0 %v199
    %236 = vmatprep.subr.mxu0 0.0
    %237 = vmatpush1.msra.mxu0 %v198
    %238 = vmatprep.subr.mxu0 0.0
    %239 = vmatpush2.msra.mxu0 0.0
    %240 = vmatprep.subr.mxu0 0.0
    %241 = vmatpush2.msra.mxu0 0.0
    %242 = vmatprep.subr.mxu0 0.0
    %243 = vmatpush2.msra.mxu0 0.0
    %244 = vmatprep.subr.mxu0 0.0
    %245 = vmatpush2.msra.mxu0 0.0
    %246 = vmatprep.subr.mxu0 0.0
    %247 = vmatpush2.msra.mxu0 0.0
    %248 = vmatprep.subr.mxu0 0.0
    %249 = vmatpush2.msra.mxu0 0.0
    %250 = vmatprep.subr.mxu0 0.0
    %251 = vmatpush2.msra.mxu0 0.0
    %252 = vmatprep.subr.mxu0 0.0
    %253 = vmatpush2.msra.mxu0 0.0
    %254 = vmatprep.subr.mxu0 0.0
    %255 = vmatpush2.msra.mxu0 0.0
    %256 = vmatprep.subr.mxu0 0.0
    %257 = vmatpush2.msra.mxu0 0.0
    %258 = vmatprep.subr.mxu0 0.0
    %259 = vmatpush2.msra.mxu0 0.0
    %260 = vmatprep.subr.mxu0 0.0
    %261 = vmatpush2.msra.mxu0 0.0
    %262 = vmatprep.subr.mxu0 0.0
    %263 = vmatpush2.msra.mxu0 0.0
    %264 = vmatprep.subr.mxu0 0.0
    %265 = vmatpush2.msra.mxu0 0.0
    %266 = vmatprep.subr.mxu0 0.0
    %267 = vmatpush2.msra.mxu0 0.0
    %268 = vmatprep.subr.mxu0 0.0
    %269 = vmatpush2.msra.mxu0 0.0
    %270 = vmatprep.mubr.f32.mxu0 0.0
    %271 = vmatmul.mubr.f32.gmra.mxu0 %v204
    %v272 = vpop.f32.mrf.mxu0
    %v273 = vadd.f32 0.0, %v272
    %v274 = vpop.f32.mrf.mxu0
    %275 = vdwg.mxu0
    %v277 = vsel %vm202, %v197, 0
    %279 = vmatprep.subr.mxu0 0.0
    %280 = vmatpush1.msra.mxu0 0.0
    %281 = vmatprep.subr.mxu0 0.0
    %282 = vmatpush1.msra.mxu0 0.0
    %283 = vmatprep.subr.mxu0 0.0
    %284 = vmatpush1.msra.mxu0 0.0
    %285 = vmatprep.subr.mxu0 0.0
    %286 = vmatpush1.msra.mxu0 0.0
    %287 = vmatprep.subr.mxu0 0.0
    %288 = vmatpush1.msra.mxu0 0.0
    %289 = vmatprep.subr.mxu0 0.0
    %290 = vmatpush1.msra.mxu0 0.0
    %291 = vmatprep.subr.mxu0 0.0
    %292 = vmatpush1.msra.mxu0 0.0
    %293 = vmatprep.subr.mxu0 0.0
    %294 = vmatpush1.msra.mxu0 0.0
    %295 = vmatprep.subr.mxu0 0.0
    %296 = vmatpush1.msra.mxu0 0.0
    %297 = vmatprep.subr.mxu0 0.0
    %298 = vmatpush1.msra.mxu0 0.0
    %299 = vmatprep.subr.mxu0 0.0
    %300 = vmatpush1.msra.mxu0 0.0
    %301 = vmatprep.subr.mxu0 0.0
    %302 = vmatpush1.msra.mxu0 0.0
    %303 = vmatprep.subr.mxu0 0.0
    %304 = vmatpush1.msra.mxu0 %v201
    %305 = vmatprep.subr.mxu0 0.0
    %306 = vmatpush1.msra.mxu0 %v200
    %307 = vmatprep.subr.mxu0 0.0
    %308 = vmatpush1.msra.mxu0 %v199
    %309 = vmatprep.subr.mxu0 0.0
    %310 = vmatpush1.msra.mxu0 %v198
    %311 = vmatprep.subr.mxu0 0.0
    %312 = vmatpush2.msra.mxu0 0.0
    %313 = vmatprep.subr.mxu0 0.0
    %314 = vmatpush2.msra.mxu0 0.0
    %315 = vmatprep.subr.mxu0 0.0
    %316 = vmatpush2.msra.mxu0 0.0
    %317 = vmatprep.subr.mxu0 0.0
    %318 = vmatpush2.msra.mxu0 0.0
    %319 = vmatprep.subr.mxu0 0.0
    %320 = vmatpush2.msra.mxu0 0.0
    %321 = vmatprep.subr.mxu0 0.0
    %322 = vmatpush2.msra.mxu0 0.0
    %323 = vmatprep.subr.mxu0 0.0
    %324 = vmatpush2.msra.mxu0 0.0
    %325 = vmatprep.subr.mxu0 0.0
    %326 = vmatpush2.msra.mxu0 0.0
    %327 = vmatprep.subr.mxu0 0.0
    %328 = vmatpush2.msra.mxu0 0.0
    %329 = vmatprep.subr.mxu0 0.0
    %330 = vmatpush2.msra.mxu0 0.0
    %331 = vmatprep.subr.mxu0 0.0
    %332 = vmatpush2.msra.mxu0 0.0
    %333 = vmatprep.subr.mxu0 0.0
    %334 = vmatpush2.msra.mxu0 0.0
    %335 = vmatprep.subr.mxu0 0.0
    %336 = vmatpush2.msra.mxu0 0.0
    %337 = vmatprep.subr.mxu0 0.0
    %338 = vmatpush2.msra.mxu0 0.0
    %339 = vmatprep.subr.mxu0 0.0
    %340 = vmatpush2.msra.mxu0 0.0
    %341 = vmatprep.subr.mxu0 0.0
    %342 = vmatpush2.msra.mxu0 0.0
    %343 = vmatprep.mubr.f32.mxu0 0.0
    %344 = vmatmul.mubr.f32.gmra.mxu0 %v277
    %v345 = vpop.f32.mrf.mxu0
    %v346 = vadd.f32 0.0, %v345
    %v347 = vpop.f32.mrf.mxu0
    %348 = vdwg.mxu0
    %v349 = vld [vmem:[#allocation5] sm:$0x3]
    %v350 = vlaneseq
    %v351 = vand.u32 %v350, 127
    %v353 = vlaneseq
    %v354 = vshrl.u32 %v353, 7
    %v355 = vsub.s32 0, %v354
    %v356 = vrot.slane %v193, %v355
    %v358 = vadd.f32 %v273, %v356
    %v359 = vmax.f32 %v358, 0.0
    %v361 = vlaneseq
    %v362 = vshrl.u32 %v361, 7
    %v363 = vsub.s32 0, %v362
    %v364 = vrot.slane %v192, %v363
    %v366 = vmul.f32 %v359, %v364
    %367 = vadd.xlane.f32.xlu0 %v366
    %v368 = vpop.xlane.xlu0 %367
    %v369 = vrot.slane %v368, 4
    %v370 = vmax.f32 %v368, %v369
    %v371 = vrot.slane %v370, 2
    %v372 = vmax.f32 %v370, %v371
    %v373 = vrot.slane %v372, 1
    %v374 = vmax.f32 %v372, %v373
    %v375 = vsub.f32 %v368, %v374
    %v376 = vmul.f32 %v375, 1.442695
    %v377 = vpow.pop %v376
    %v378 = vrot.slane %v377, 4
    %v379 = vadd.f32 %v377, %v378
    %v380 = vrot.slane %v379, 2
    %v381 = vadd.f32 %v379, %v380
    %v382 = vrot.slane %v381, 1
    %v383 = vadd.f32 %v381, %v382
    %v384 = vlog2.pop %v383
    %v385 = vmul.f32 %v384, 0.6931472
    %v386 = vsub.f32 %v375, %v385
    %v387 = vmul.f32 %v386, %v195
    %v388 = vsel %vm202, %v387, 0.0
    %v389 = vrot.slane %v388, 4
    %v390 = vadd.f32 %v388, %v389
    %v391 = vrot.slane %v390, 2
    %v392 = vadd.f32 %v390, %v391
    %v393 = vrot.slane %v392, 1
    %v394 = vadd.f32 %v392, %v393
    %v395 = vadd.f32 %v346, %v356
    %v396 = vmax.f32 %v395, 0.0
    %v397 = vmul.f32 %v396, %v364
    %398 = vadd.xlane.f32.xlu0 %v397
    %v399 = vpop.xlane.xlu0 %398
    %v400 = vrot.slane %v399, 4
    %v401 = vmax.f32 %v399, %v400
    %v402 = vrot.slane %v401, 2
    %v403 = vmax.f32 %v401, %v402
    %v404 = vrot.slane %v403, 1
    %v405 = vmax.f32 %v403, %v404
    %v406 = vsub.f32 %v399, %v405
    %v407 = vmul.f32 %v406, 1.442695
    %v408 = vpow.pop %v407
    %v409 = vrot.slane %v408, 4
    %v410 = vadd.f32 %v408, %v409
    %v411 = vrot.slane %v410, 2
    %v412 = vadd.f32 %v410, %v411
    %v413 = vrot.slane %v412, 1
    %v414 = vadd.f32 %v412, %v413
    %v415 = vlog2.pop %v414
    %v416 = vmul.f32 %v415, 0.6931472
    %v417 = vsub.f32 %v406, %v416
    %v418 = vmul.f32 %v417, %v197
    %v419 = vsel %vm202, %v418, 0.0
    %v420 = vrot.slane %v419, 4
    %v421 = vadd.f32 %v419, %v420
    %v422 = vrot.slane %v421, 2
    %v423 = vadd.f32 %v421, %v422
    %v424 = vrot.slane %v423, 1
    %v425 = vadd.f32 %v423, %v424
    %vm426 = vcmask 1040384
    %v427 = vsel %vm426, %v394, %v425
    %v428 = vld [vmem:[%s5] sm:$0xff]
    %v429 = vld [vmem:[%s5 + $0x8] sm:$0xff]
    %v430 = vld [vmem:[%s5 + $0x10] sm:$0xff]
    %v431 = vld [vmem:[%s5 + $0x18] sm:$0xff]
    %v432 = vld [vmem:[%s5 + $0x20] sm:$0xff]
    %v433 = vld [vmem:[%s5 + $0x28] sm:$0xff]
    %v434 = vld [vmem:[%s5 + $0x30] sm:$0xff]
    %v435 = vld [vmem:[%s5 + $0x38] sm:$0xff]
    %v436 = vld [vmem:[%s5 + $0x40] sm:$0xff]
    %v437 = vld [vmem:[%s5 + $0x48] sm:$0xff]
    %v438 = vld [vmem:[%s5 + $0x50] sm:$0xff]
    %v439 = vld [vmem:[%s5 + $0x58] sm:$0xff]
    %v440 = vld [vmem:[%s5 + $0x60] sm:$0xff]
    %v441 = vld [vmem:[%s5 + $0x68] sm:$0xff]
    %v442 = vld [vmem:[%s5 + $0x70] sm:$0xff]
    %v443 = vld [vmem:[%s5 + $0x78] sm:$0xff]
    %v444 = vld [vmem:[#allocation8] sm:$0xff]
    %v445 = vld [vmem:[#allocation8 + $0x8] sm:$0xff]
    %v446 = vld [vmem:[#allocation8 + $0x10] sm:$0xff]
    %v447 = vld [vmem:[#allocation8 + $0x18] sm:$0xff]
    %v448 = vld [vmem:[#allocation8 + $0x20] sm:$0xff]
    %v449 = vld [vmem:[#allocation8 + $0x28] sm:$0xff]
    %v450 = vld [vmem:[#allocation8 + $0x30] sm:$0xff]
    %v451 = vld [vmem:[#allocation8 + $0x38] sm:$0xff]
    %v452 = vld [vmem:[#allocation8 + $0x40] sm:$0xff]
    %v453 = vld [vmem:[#allocation8 + $0x48] sm:$0xff]
    %v454 = vld [vmem:[#allocation8 + $0x50] sm:$0xff]
    %v455 = vld [vmem:[#allocation8 + $0x58] sm:$0xff]
    %v456 = vld [vmem:[#allocation8 + $0x60] sm:$0xff]
    %v457 = vld [vmem:[#allocation8 + $0x68] sm:$0xff]
    %v458 = vld [vmem:[#allocation8 + $0x70] sm:$0xff]
    %v459 = vld [vmem:[#allocation8 + $0x78] sm:$0xff]
    %v461 = vsel %vm202, %v427, 0
    %463 = vmatprep.subr.mxu0 0.0
    %464 = vmatpush1.msra.mxu0 0.0
    %465 = vmatprep.subr.mxu0 0.0
    %466 = vmatpush1.msra.mxu0 0.0
    %467 = vmatprep.subr.mxu0 0.0
    %468 = vmatpush1.msra.mxu0 0.0
    %469 = vmatprep.subr.mxu0 0.0
    %470 = vmatpush1.msra.mxu0 0.0
    %471 = vmatprep.subr.mxu0 0.0
    %472 = vmatpush1.msra.mxu0 0.0
    %473 = vmatprep.subr.mxu0 0.0
    %474 = vmatpush1.msra.mxu0 0.0
    %475 = vmatprep.subr.mxu0 0.0
    %476 = vmatpush1.msra.mxu0 0.0
    %477 = vmatprep.subr.mxu0 0.0
    %478 = vmatpush1.msra.mxu0 0.0
    %479 = vmatprep.subr.mxu0 0.0
    %480 = vmatpush1.msra.mxu0 0.0
    %481 = vmatprep.subr.mxu0 0.0
    %482 = vmatpush1.msra.mxu0 0.0
    %483 = vmatprep.subr.mxu0 0.0
    %484 = vmatpush1.msra.mxu0 0.0
    %485 = vmatprep.subr.mxu0 0.0
    %486 = vmatpush1.msra.mxu0 0.0
    %487 = vmatprep.subr.mxu0 %v457
    %488 = vmatpush1.msra.mxu0 %v456
    %489 = vmatprep.subr.mxu0 %v453
    %490 = vmatpush1.msra.mxu0 %v452
    %491 = vmatprep.subr.mxu0 %v449
    %492 = vmatpush1.msra.mxu0 %v448
    %493 = vmatprep.subr.mxu0 %v445
    %494 = vmatpush1.msra.mxu0 %v444
    %495 = vmatprep.subr.mxu0 0.0
    %496 = vmatpush2.msra.mxu0 0.0
    %497 = vmatprep.subr.mxu0 0.0
    %498 = vmatpush2.msra.mxu0 0.0
    %499 = vmatprep.subr.mxu0 0.0
    %500 = vmatpush2.msra.mxu0 0.0
    %501 = vmatprep.subr.mxu0 0.0
    %502 = vmatpush2.msra.mxu0 0.0
    %503 = vmatprep.subr.mxu0 0.0
    %504 = vmatpush2.msra.mxu0 0.0
    %505 = vmatprep.subr.mxu0 0.0
    %506 = vmatpush2.msra.mxu0 0.0
    %507 = vmatprep.subr.mxu0 0.0
    %508 = vmatpush2.msra.mxu0 0.0
    %509 = vmatprep.subr.mxu0 0.0
    %510 = vmatpush2.msra.mxu0 0.0
    %511 = vmatprep.subr.mxu0 0.0
    %512 = vmatpush2.msra.mxu0 0.0
    %513 = vmatprep.subr.mxu0 0.0
    %514 = vmatpush2.msra.mxu0 0.0
    %515 = vmatprep.subr.mxu0 0.0
    %516 = vmatpush2.msra.mxu0 0.0
    %517 = vmatprep.subr.mxu0 0.0
    %518 = vmatpush2.msra.mxu0 0.0
    %519 = vmatprep.subr.mxu0 0.0
    %520 = vmatpush2.msra.mxu0 0.0
    %521 = vmatprep.subr.mxu0 0.0
    %522 = vmatpush2.msra.mxu0 0.0
    %523 = vmatprep.subr.mxu0 0.0
    %524 = vmatpush2.msra.mxu0 0.0
    %525 = vmatprep.subr.mxu0 0.0
    %526 = vmatpush2.msra.mxu0 0.0
    %527 = vmatprep.mubr.f32.mxu0 0.0
    %528 = vmatmul.mubr.f32.gmra.mxu0 %v461
    %v529 = vpop.f32.mrf.mxu0
    %v530 = vadd.f32 0.0, %v529
    %v531 = vpop.f32.mrf.mxu0
    %v532 = vadd.f32 0.0, %v531
    %533 = vdwg.mxu0
    %534 = vmatprep.subr.mxu0 0.0
    %535 = vmatpush1.msra.mxu0 0.0
    %536 = vmatprep.subr.mxu0 0.0
    %537 = vmatpush1.msra.mxu0 0.0
    %538 = vmatprep.subr.mxu0 0.0
    %539 = vmatpush1.msra.mxu0 0.0
    %540 = vmatprep.subr.mxu0 0.0
    %541 = vmatpush1.msra.mxu0 0.0
    %542 = vmatprep.subr.mxu0 0.0
    %543 = vmatpush1.msra.mxu0 0.0
    %544 = vmatprep.subr.mxu0 0.0
    %545 = vmatpush1.msra.mxu0 0.0
    %546 = vmatprep.subr.mxu0 0.0
    %547 = vmatpush1.msra.mxu0 0.0
    %548 = vmatprep.subr.mxu0 0.0
    %549 = vmatpush1.msra.mxu0 0.0
    %550 = vmatprep.subr.mxu0 0.0
    %551 = vmatpush1.msra.mxu0 0.0
    %552 = vmatprep.subr.mxu0 0.0
    %553 = vmatpush1.msra.mxu0 0.0
    %554 = vmatprep.subr.mxu0 0.0
    %555 = vmatpush1.msra.mxu0 0.0
    %556 = vmatprep.subr.mxu0 0.0
    %557 = vmatpush1.msra.mxu0 0.0
    %558 = vmatprep.subr.mxu0 %v459
    %559 = vmatpush1.msra.mxu0 %v458
    %560 = vmatprep.subr.mxu0 %v455
    %561 = vmatpush1.msra.mxu0 %v454
    %562 = vmatprep.subr.mxu0 %v451
    %563 = vmatpush1.msra.mxu0 %v450
    %564 = vmatprep.subr.mxu0 %v447
    %565 = vmatpush1.msra.mxu0 %v446
    %566 = vmatprep.subr.mxu0 0.0
    %567 = vmatpush2.msra.mxu0 0.0
    %568 = vmatprep.subr.mxu0 0.0
    %569 = vmatpush2.msra.mxu0 0.0
    %570 = vmatprep.subr.mxu0 0.0
    %571 = vmatpush2.msra.mxu0 0.0
    %572 = vmatprep.subr.mxu0 0.0
    %573 = vmatpush2.msra.mxu0 0.0
    %574 = vmatprep.subr.mxu0 0.0
    %575 = vmatpush2.msra.mxu0 0.0
    %576 = vmatprep.subr.mxu0 0.0
    %577 = vmatpush2.msra.mxu0 0.0
    %578 = vmatprep.subr.mxu0 0.0
    %579 = vmatpush2.msra.mxu0 0.0
    %580 = vmatprep.subr.mxu0 0.0
    %581 = vmatpush2.msra.mxu0 0.0
    %582 = vmatprep.subr.mxu0 0.0
    %583 = vmatpush2.msra.mxu0 0.0
    %584 = vmatprep.subr.mxu0 0.0
    %585 = vmatpush2.msra.mxu0 0.0
    %586 = vmatprep.subr.mxu0 0.0
    %587 = vmatpush2.msra.mxu0 0.0
    %588 = vmatprep.subr.mxu0 0.0
    %589 = vmatpush2.msra.mxu0 0.0
    %590 = vmatprep.subr.mxu0 0.0
    %591 = vmatpush2.msra.mxu0 0.0
    %592 = vmatprep.subr.mxu0 0.0
    %593 = vmatpush2.msra.mxu0 0.0
    %594 = vmatprep.subr.mxu0 0.0
    %595 = vmatpush2.msra.mxu0 0.0
    %596 = vmatprep.subr.mxu0 0.0
    %597 = vmatpush2.msra.mxu0 0.0
    %598 = vmatprep.mubr.f32.mxu0 0.0
    %599 = vmatmul.mubr.f32.gmra.mxu0 %v461
    %v600 = vpop.f32.mrf.mxu0
    %v601 = vadd.f32 0.0, %v600
    %v602 = vpop.f32.mrf.mxu0
    %v603 = vadd.f32 0.0, %v602
    %604 = vdwg.mxu0
    %v606 = vsel %vm202, %v349, 0
    %608 = vmatprep.subr.mxu0 0.0
    %609 = vmatpush1.msra.mxu0 0.0
    %610 = vmatprep.subr.mxu0 0.0
    %611 = vmatpush1.msra.mxu0 0.0
    %612 = vmatprep.subr.mxu0 0.0
    %613 = vmatpush1.msra.mxu0 0.0
    %614 = vmatprep.subr.mxu0 0.0
    %615 = vmatpush1.msra.mxu0 0.0
    %616 = vmatprep.subr.mxu0 0.0
    %617 = vmatpush1.msra.mxu0 0.0
    %618 = vmatprep.subr.mxu0 0.0
    %619 = vmatpush1.msra.mxu0 0.0
    %620 = vmatprep.subr.mxu0 0.0
    %621 = vmatpush1.msra.mxu0 0.0
    %622 = vmatprep.subr.mxu0 0.0
    %623 = vmatpush1.msra.mxu0 0.0
    %624 = vmatprep.subr.mxu0 0.0
    %625 = vmatpush1.msra.mxu0 0.0
    %626 = vmatprep.subr.mxu0 0.0
    %627 = vmatpush1.msra.mxu0 0.0
    %628 = vmatprep.subr.mxu0 0.0
    %629 = vmatpush1.msra.mxu0 0.0
    %630 = vmatprep.subr.mxu0 0.0
    %631 = vmatpush1.msra.mxu0 0.0
    %632 = vmatprep.subr.mxu0 %v441
    %633 = vmatpush1.msra.mxu0 %v440
    %634 = vmatprep.subr.mxu0 %v437
    %635 = vmatpush1.msra.mxu0 %v436
    %636 = vmatprep.subr.mxu0 %v433
    %637 = vmatpush1.msra.mxu0 %v432
    %638 = vmatprep.subr.mxu0 %v429
    %639 = vmatpush1.msra.mxu0 %v428
    %640 = vmatprep.subr.mxu0 0.0
    %641 = vmatpush2.msra.mxu0 0.0
    %642 = vmatprep.subr.mxu0 0.0
    %643 = vmatpush2.msra.mxu0 0.0
    %644 = vmatprep.subr.mxu0 0.0
    %645 = vmatpush2.msra.mxu0 0.0
    %646 = vmatprep.subr.mxu0 0.0
    %647 = vmatpush2.msra.mxu0 0.0
    %648 = vmatprep.subr.mxu0 0.0
    %649 = vmatpush2.msra.mxu0 0.0
    %650 = vmatprep.subr.mxu0 0.0
    %651 = vmatpush2.msra.mxu0 0.0
    %652 = vmatprep.subr.mxu0 0.0
    %653 = vmatpush2.msra.mxu0 0.0
    %654 = vmatprep.subr.mxu0 0.0
    %655 = vmatpush2.msra.mxu0 0.0
    %656 = vmatprep.subr.mxu0 0.0
    %657 = vmatpush2.msra.mxu0 0.0
    %658 = vmatprep.subr.mxu0 0.0
    %659 = vmatpush2.msra.mxu0 0.0
    %660 = vmatprep.subr.mxu0 0.0
    %661 = vmatpush2.msra.mxu0 0.0
    %662 = vmatprep.subr.mxu0 0.0
    %663 = vmatpush2.msra.mxu0 0.0
    %664 = vmatprep.subr.mxu0 0.0
    %665 = vmatpush2.msra.mxu0 0.0
    %666 = vmatprep.subr.mxu0 0.0
    %667 = vmatpush2.msra.mxu0 0.0
    %668 = vmatprep.subr.mxu0 0.0
    %669 = vmatpush2.msra.mxu0 0.0
    %670 = vmatprep.subr.mxu0 0.0
    %671 = vmatpush2.msra.mxu0 0.0
    %672 = vmatprep.mubr.f32.mxu0 0.0
    %673 = vmatmul.mubr.f32.gmra.mxu0 %v606
    %v674 = vpop.f32.mrf.mxu0
    %v675 = vadd.f32 %v530, %v674
    %v676 = vpop.f32.mrf.mxu0
    %v677 = vadd.f32 %v532, %v676
    %678 = vdwg.mxu0
    %679 = vmatprep.subr.mxu0 0.0
    %680 = vmatpush1.msra.mxu0 0.0
    %681 = vmatprep.subr.mxu0 0.0
    %682 = vmatpush1.msra.mxu0 0.0
    %683 = vmatprep.subr.mxu0 0.0
    %684 = vmatpush1.msra.mxu0 0.0
    %685 = vmatprep.subr.mxu0 0.0
    %686 = vmatpush1.msra.mxu0 0.0
    %687 = vmatprep.subr.mxu0 0.0
    %688 = vmatpush1.msra.mxu0 0.0
    %689 = vmatprep.subr.mxu0 0.0
    %690 = vmatpush1.msra.mxu0 0.0
    %691 = vmatprep.subr.mxu0 0.0
    %692 = vmatpush1.msra.mxu0 0.0
    %693 = vmatprep.subr.mxu0 0.0
    %694 = vmatpush1.msra.mxu0 0.0
    %695 = vmatprep.subr.mxu0 0.0
    %696 = vmatpush1.msra.mxu0 0.0
    %697 = vmatprep.subr.mxu0 0.0
    %698 = vmatpush1.msra.mxu0 0.0
    %699 = vmatprep.subr.mxu0 0.0
    %700 = vmatpush1.msra.mxu0 0.0
    %701 = vmatprep.subr.mxu0 0.0
    %702 = vmatpush1.msra.mxu0 0.0
    %703 = vmatprep.subr.mxu0 %v443
    %704 = vmatpush1.msra.mxu0 %v442
    %705 = vmatprep.subr.mxu0 %v439
    %706 = vmatpush1.msra.mxu0 %v438
    %707 = vmatprep.subr.mxu0 %v435
    %708 = vmatpush1.msra.mxu0 %v434
    %709 = vmatprep.subr.mxu0 %v431
    %710 = vmatpush1.msra.mxu0 %v430
    %711 = vmatprep.subr.mxu0 0.0
    %712 = vmatpush2.msra.mxu0 0.0
    %713 = vmatprep.subr.mxu0 0.0
    %714 = vmatpush2.msra.mxu0 0.0
    %715 = vmatprep.subr.mxu0 0.0
    %716 = vmatpush2.msra.mxu0 0.0
    %717 = vmatprep.subr.mxu0 0.0
    %718 = vmatpush2.msra.mxu0 0.0
    %719 = vmatprep.subr.mxu0 0.0
    %720 = vmatpush2.msra.mxu0 0.0
    %721 = vmatprep.subr.mxu0 0.0
    %722 = vmatpush2.msra.mxu0 0.0
    %723 = vmatprep.subr.mxu0 0.0
    %724 = vmatpush2.msra.mxu0 0.0
    %725 = vmatprep.subr.mxu0 0.0
    %726 = vmatpush2.msra.mxu0 0.0
    %727 = vmatprep.subr.mxu0 0.0
    %728 = vmatpush2.msra.mxu0 0.0
    %729 = vmatprep.subr.mxu0 0.0
    %730 = vmatpush2.msra.mxu0 0.0
    %731 = vmatprep.subr.mxu0 0.0
    %732 = vmatpush2.msra.mxu0 0.0
    %733 = vmatprep.subr.mxu0 0.0
    %734 = vmatpush2.msra.mxu0 0.0
    %735 = vmatprep.subr.mxu0 0.0
    %736 = vmatpush2.msra.mxu0 0.0
    %737 = vmatprep.subr.mxu0 0.0
    %738 = vmatpush2.msra.mxu0 0.0
    %739 = vmatprep.subr.mxu0 0.0
    %740 = vmatpush2.msra.mxu0 0.0
    %741 = vmatprep.subr.mxu0 0.0
    %742 = vmatpush2.msra.mxu0 0.0
    %743 = vmatprep.mubr.f32.mxu0 0.0
    %744 = vmatmul.mubr.f32.gmra.mxu0 %v606
    %v745 = vpop.f32.mrf.mxu0
    %v746 = vadd.f32 %v601, %v745
    %v747 = vpop.f32.mrf.mxu0
    %v748 = vadd.f32 %v603, %v747
    %749 = vdwg.mxu0
    %v750 = vld [vmem:[#allocation10] sm:$0xff]
    %v751 = vld [vmem:[#allocation10 + $0x8] sm:$0xff]
    %v752 = vld [vmem:[#allocation10 + $0x10] sm:$0xff]
    %v753 = vld [vmem:[#allocation10 + $0x18] sm:$0xff]
    %v754 = vld [vmem:[#allocation10 + $0x20] sm:$0xff]
    %v755 = vld [vmem:[#allocation10 + $0x28] sm:$0xff]
    %v756 = vld [vmem:[#allocation10 + $0x30] sm:$0xff]
    %v757 = vld [vmem:[#allocation10 + $0x38] sm:$0xff]
    %v758 = vld [vmem:[#allocation10 + $0x40] sm:$0xff]
    %v759 = vld [vmem:[#allocation10 + $0x48] sm:$0xff]
    %v760 = vld [vmem:[#allocation10 + $0x50] sm:$0xff]
    %v761 = vld [vmem:[#allocation10 + $0x58] sm:$0xff]
    %v762 = vld [vmem:[#allocation10 + $0x60] sm:$0xff]
    %v763 = vld [vmem:[#allocation10 + $0x68] sm:$0xff]
    %v764 = vld [vmem:[#allocation10 + $0x70] sm:$0xff]
    %v765 = vld [vmem:[#allocation10 + $0x78] sm:$0xff]
    %v766 = vld [vmem:[#allocation10 + $0x80] sm:$0xff]
    %v767 = vld [vmem:[#allocation10 + $0x88] sm:$0xff]
    %v768 = vld [vmem:[#allocation10 + $0x90] sm:$0xff]
    %v769 = vld [vmem:[#allocation10 + $0x98] sm:$0xff]
    %v770 = vld [vmem:[#allocation10 + $0xa0] sm:$0xff]
    %v771 = vld [vmem:[#allocation10 + $0xa8] sm:$0xff]
    %v772 = vld [vmem:[#allocation10 + $0xb0] sm:$0xff]
    %v773 = vld [vmem:[#allocation10 + $0xb8] sm:$0xff]
    %v774 = vld [vmem:[#allocation10 + $0xc0] sm:$0xff]
    %v775 = vld [vmem:[#allocation10 + $0xc8] sm:$0xff]
    %v776 = vld [vmem:[#allocation10 + $0xd0] sm:$0xff]
    %v777 = vld [vmem:[#allocation10 + $0xd8] sm:$0xff]
    %v778 = vld [vmem:[#allocation10 + $0xe0] sm:$0xff]
    %v779 = vld [vmem:[#allocation10 + $0xe8] sm:$0xff]
    %v780 = vld [vmem:[#allocation10 + $0xf0] sm:$0xff]
    %v781 = vld [vmem:[#allocation10 + $0xf8] sm:$0xff]
    %v782 = vld [vmem:[#allocation10 + $0x100] sm:$0xff]
    %v783 = vld [vmem:[#allocation10 + $0x108] sm:$0xff]
    %v784 = vld [vmem:[#allocation10 + $0x110] sm:$0xff]
    %v785 = vld [vmem:[#allocation10 + $0x118] sm:$0xff]
    %v786 = vld [vmem:[#allocation10 + $0x120] sm:$0xff]
    %v787 = vld [vmem:[#allocation10 + $0x128] sm:$0xff]
    %v788 = vld [vmem:[#allocation10 + $0x130] sm:$0xff]
    %v789 = vld [vmem:[#allocation10 + $0x138] sm:$0xff]
    %v790 = vld [vmem:[#allocation10 + $0x140] sm:$0xff]
    %v791 = vld [vmem:[#allocation10 + $0x148] sm:$0xff]
    %v792 = vld [vmem:[#allocation10 + $0x150] sm:$0xff]
    %v793 = vld [vmem:[#allocation10 + $0x158] sm:$0xff]
    %v794 = vld [vmem:[#allocation10 + $0x160] sm:$0xff]
    %v795 = vld [vmem:[#allocation10 + $0x168] sm:$0xff]
    %v796 = vld [vmem:[#allocation10 + $0x170] sm:$0xff]
    %v797 = vld [vmem:[#allocation10 + $0x178] sm:$0xff]
    %v798 = vld [vmem:[#allocation10 + $0x180] sm:$0xff]
    %v799 = vld [vmem:[#allocation10 + $0x188] sm:$0xff]
    %v800 = vld [vmem:[#allocation10 + $0x190] sm:$0xff]
    %v801 = vld [vmem:[#allocation10 + $0x198] sm:$0xff]
    %v802 = vld [vmem:[#allocation10 + $0x1a0] sm:$0xff]
    %v803 = vld [vmem:[#allocation10 + $0x1a8] sm:$0xff]
    %v804 = vld [vmem:[#allocation10 + $0x1b0] sm:$0xff]
    %v805 = vld [vmem:[#allocation10 + $0x1b8] sm:$0xff]
    %v806 = vld [vmem:[#allocation10 + $0x1c0] sm:$0xff]
    %v807 = vld [vmem:[#allocation10 + $0x1c8] sm:$0xff]
    %v808 = vld [vmem:[#allocation10 + $0x1d0] sm:$0xff]
    %v809 = vld [vmem:[#allocation10 + $0x1d8] sm:$0xff]
    %v810 = vld [vmem:[#allocation10 + $0x1e0] sm:$0xff]
    %v811 = vld [vmem:[#allocation10 + $0x1e8] sm:$0xff]
    %v812 = vld [vmem:[#allocation10 + $0x1f0] sm:$0xff]
    %v813 = vld [vmem:[#allocation10 + $0x1f8] sm:$0xff]
    %814 = vmatprep.subr.mxu0 %v811
    %815 = vmatpush1.msra.mxu0 %v810
    %816 = vmatprep.subr.mxu0 %v807
    %817 = vmatpush1.msra.mxu0 %v806
    %818 = vmatprep.subr.mxu0 %v803
    %819 = vmatpush1.msra.mxu0 %v802
    %820 = vmatprep.subr.mxu0 %v799
    %821 = vmatpush1.msra.mxu0 %v798
    %822 = vmatprep.subr.mxu0 %v795
    %823 = vmatpush1.msra.mxu0 %v794
    %824 = vmatprep.subr.mxu0 %v791
    %825 = vmatpush1.msra.mxu0 %v790
    %826 = vmatprep.subr.mxu0 %v787
    %827 = vmatpush1.msra.mxu0 %v786
    %828 = vmatprep.subr.mxu0 %v783
    %829 = vmatpush1.msra.mxu0 %v782
    %830 = vmatprep.subr.mxu0 %v779
    %831 = vmatpush1.msra.mxu0 %v778
    %832 = vmatprep.subr.mxu0 %v775
    %833 = vmatpush1.msra.mxu0 %v774
    %834 = vmatprep.subr.mxu0 %v771
    %835 = vmatpush1.msra.mxu0 %v770
    %836 = vmatprep.subr.mxu0 %v767
    %837 = vmatpush1.msra.mxu0 %v766
    %838 = vmatprep.subr.mxu0 %v763
    %839 = vmatpush1.msra.mxu0 %v762
    %840 = vmatprep.subr.mxu0 %v759
    %841 = vmatpush1.msra.mxu0 %v758
    %842 = vmatprep.subr.mxu0 %v755
    %843 = vmatpush1.msra.mxu0 %v754
    %844 = vmatprep.subr.mxu0 %v751
    %845 = vmatpush1.msra.mxu0 %v750
    %846 = vmatprep.subr.mxu0 0.0
    %847 = vmatpush2.msra.mxu0 0.0
    %848 = vmatprep.subr.mxu0 0.0
    %849 = vmatpush2.msra.mxu0 0.0
    %850 = vmatprep.subr.mxu0 0.0
    %851 = vmatpush2.msra.mxu0 0.0
    %852 = vmatprep.subr.mxu0 0.0
    %853 = vmatpush2.msra.mxu0 0.0
    %854 = vmatprep.subr.mxu0 0.0
    %855 = vmatpush2.msra.mxu0 0.0
    %856 = vmatprep.subr.mxu0 0.0
    %857 = vmatpush2.msra.mxu0 0.0
    %858 = vmatprep.subr.mxu0 0.0
    %859 = vmatpush2.msra.mxu0 0.0
    %860 = vmatprep.subr.mxu0 0.0
    %861 = vmatpush2.msra.mxu0 0.0
    %862 = vmatprep.subr.mxu0 0.0
    %863 = vmatpush2.msra.mxu0 0.0
    %864 = vmatprep.subr.mxu0 0.0
    %865 = vmatpush2.msra.mxu0 0.0
    %866 = vmatprep.subr.mxu0 0.0
    %867 = vmatpush2.msra.mxu0 0.0
    %868 = vmatprep.subr.mxu0 0.0
    %869 = vmatpush2.msra.mxu0 0.0
    %870 = vmatprep.subr.mxu0 0.0
    %871 = vmatpush2.msra.mxu0 0.0
    %872 = vmatprep.subr.mxu0 0.0
    %873 = vmatpush2.msra.mxu0 0.0
    %874 = vmatprep.subr.mxu0 0.0
    %875 = vmatpush2.msra.mxu0 0.0
    %876 = vmatprep.subr.mxu0 0.0
    %877 = vmatpush2.msra.mxu0 0.0
    %878 = vmatprep.mubr.f32.mxu0 0.0
    %879 = vmatmul.mubr.f32.gmra.mxu0 0.0
    %v880 = vpop.f32.mrf.mxu0
    %v881 = vadd.f32 0.0, %v880
    %v882 = vpop.f32.mrf.mxu0
    %v883 = vadd.f32 0.0, %v882
    %884 = vdwg.mxu0
    %885 = vmatprep.subr.mxu0 %v813
    %886 = vmatpush1.msra.mxu0 %v812
    %887 = vmatprep.subr.mxu0 %v809
    %888 = vmatpush1.msra.mxu0 %v808
    %889 = vmatprep.subr.mxu0 %v805
    %890 = vmatpush1.msra.mxu0 %v804
    %891 = vmatprep.subr.mxu0 %v801
    %892 = vmatpush1.msra.mxu0 %v800
    %893 = vmatprep.subr.mxu0 %v797
    %894 = vmatpush1.msra.mxu0 %v796
    %895 = vmatprep.subr.mxu0 %v793
    %896 = vmatpush1.msra.mxu0 %v792
    %897 = vmatprep.subr.mxu0 %v789
    %898 = vmatpush1.msra.mxu0 %v788
    %899 = vmatprep.subr.mxu0 %v785
    %900 = vmatpush1.msra.mxu0 %v784
    %901 = vmatprep.subr.mxu0 %v781
    %902 = vmatpush1.msra.mxu0 %v780
    %903 = vmatprep.subr.mxu0 %v777
    %904 = vmatpush1.msra.mxu0 %v776
    %905 = vmatprep.subr.mxu0 %v773
    %906 = vmatpush1.msra.mxu0 %v772
    %907 = vmatprep.subr.mxu0 %v769
    %908 = vmatpush1.msra.mxu0 %v768
    %909 = vmatprep.subr.mxu0 %v765
    %910 = vmatpush1.msra.mxu0 %v764
    %911 = vmatprep.subr.mxu0 %v761
    %912 = vmatpush1.msra.mxu0 %v760
    %913 = vmatprep.subr.mxu0 %v757
    %914 = vmatpush1.msra.mxu0 %v756
    %915 = vmatprep.subr.mxu0 %v753
    %916 = vmatpush1.msra.mxu0 %v752
    %917 = vmatprep.subr.mxu0 0.0
    %918 = vmatpush2.msra.mxu0 0.0
    %919 = vmatprep.subr.mxu0 0.0
    %920 = vmatpush2.msra.mxu0 0.0
    %921 = vmatprep.subr.mxu0 0.0
    %922 = vmatpush2.msra.mxu0 0.0
    %923 = vmatprep.subr.mxu0 0.0
    %924 = vmatpush2.msra.mxu0 0.0
    %925 = vmatprep.subr.mxu0 0.0
    %926 = vmatpush2.msra.mxu0 0.0
    %927 = vmatprep.subr.mxu0 0.0
    %928 = vmatpush2.msra.mxu0 0.0
    %929 = vmatprep.subr.mxu0 0.0
    %930 = vmatpush2.msra.mxu0 0.0
    %931 = vmatprep.subr.mxu0 0.0
    %932 = vmatpush2.msra.mxu0 0.0
    %933 = vmatprep.subr.mxu0 0.0
    %934 = vmatpush2.msra.mxu0 0.0
    %935 = vmatprep.subr.mxu0 0.0
    %936 = vmatpush2.msra.mxu0 0.0
    %937 = vmatprep.subr.mxu0 0.0
    %938 = vmatpush2.msra.mxu0 0.0
    %939 = vmatprep.subr.mxu0 0.0
    %940 = vmatpush2.msra.mxu0 0.0
    %941 = vmatprep.subr.mxu0 0.0
    %942 = vmatpush2.msra.mxu0 0.0
    %943 = vmatprep.subr.mxu0 0.0
    %944 = vmatpush2.msra.mxu0 0.0
    %945 = vmatprep.subr.mxu0 0.0
    %946 = vmatpush2.msra.mxu0 0.0
    %947 = vmatprep.subr.mxu0 0.0
    %948 = vmatpush2.msra.mxu0 0.0
    %949 = vmatprep.mubr.f32.mxu0 0.0
    %950 = vmatmul.mubr.f32.gmra.mxu0 0.0
    %v951 = vpop.f32.mrf.mxu0
    %v952 = vadd.f32 0.0, %v951
    %v953 = vpop.f32.mrf.mxu0
    %v954 = vadd.f32 0.0, %v953
    %955 = vdwg.mxu0
    %v956 = vadd.f32 %v675, %v881
    %v957 = vadd.f32 %v677, %v883
    %v958 = vadd.f32 %v746, %v952
    %v959 = vadd.f32 %v748, %v954
    %v960 = vld [vmem:[%s8] sm:$0xf]
    %v962 = vlaneseq
    %v963 = vshrl.u32 %v962, 7
    %v964 = vsub.s32 0, %v963
    %v965 = vrot.slane %v960, %v964
    %v966 = vlaneseq
    %v967 = vshrl.u32 %v966, 7
    %v968 = vsub.s32 1, %v967
    %v969 = vrot.slane %v960, %v968
    %v970 = vlaneseq
    %v971 = vshrl.u32 %v970, 7
    %v972 = vsub.s32 2, %v971
    %v973 = vrot.slane %v960, %v972
    %v974 = vlaneseq
    %v975 = vshrl.u32 %v974, 7
    %v976 = vsub.s32 3, %v975
    %v977 = vrot.slane %v960, %v976
    %v982 = vadd.f32 %v956, %v965
    %v983 = vadd.f32 %v957, %v969
    %v984 = vadd.f32 %v958, %v973
    %v985 = vadd.f32 %v959, %v977
    %v986 = vxor.u32 %v982, 2147483648
    %v987 = vmul.f32 %v986, 1.442695
    %v988 = vpow.pop %v987
    %v989 = vadd.f32 %v988, 1.0
    %v990 = vrcp.pop %v989
    %v991 = vmul.f32 1.0, %v990
    %v992 = vxor.u32 %v983, 2147483648
    %v993 = vmul.f32 %v992, 1.442695
    %v994 = vpow.pop %v993
    %v995 = vadd.f32 %v994, 1.0
    %v996 = vrcp.pop %v995
    %v997 = vmul.f32 1.0, %v996
    %v998 = vtanh.pop %v984
    %v999 = vxor.u32 %v985, 2147483648
    %v1000 = vmul.f32 %v999, 1.442695
    %v1001 = vpow.pop %v1000
    %v1002 = vadd.f32 %v1001, 1.0
    %v1003 = vrcp.pop %v1002
    %v1004 = vmul.f32 1.0, %v1003
    %v1005 = vmul.f32 %v997, 0.0
    %v1006 = vmul.f32 %v991, %v998
    %v1007 = vadd.f32 %v1005, %v1006
    %v1008 = vtanh.pop %v1007
    %v1009 = vmul.f32 %v1004, %v1008
    %v1010 = vld [vmem:[#allocation11] sm:$0xff]
    %v1011 = vld [vmem:[#allocation11 + $0x8] sm:$0xff]
    %v1012 = vld [vmem:[#allocation11 + $0x10] sm:$0xff]
    %v1013 = vld [vmem:[#allocation11 + $0x18] sm:$0xff]
    %v1014 = vld [vmem:[#allocation11 + $0x20] sm:$0xff]
    %v1015 = vld [vmem:[#allocation11 + $0x28] sm:$0xff]
    %v1016 = vld [vmem:[#allocation11 + $0x30] sm:$0xff]
    %v1017 = vld [vmem:[#allocation11 + $0x38] sm:$0xff]
    %v1018 = vld [vmem:[#allocation11 + $0x40] sm:$0xff]
    %v1019 = vld [vmem:[#allocation11 + $0x48] sm:$0xff]
    %v1020 = vld [vmem:[#allocation11 + $0x50] sm:$0xff]
    %v1021 = vld [vmem:[#allocation11 + $0x58] sm:$0xff]
    %v1022 = vld [vmem:[#allocation11 + $0x60] sm:$0xff]
    %v1023 = vld [vmem:[#allocation11 + $0x68] sm:$0xff]
    %v1024 = vld [vmem:[#allocation11 + $0x70] sm:$0xff]
    %v1025 = vld [vmem:[#allocation11 + $0x78] sm:$0xff]
    %v1026 = vld [vmem:[#allocation11 + $0x80] sm:$0xff]
    %v1027 = vld [vmem:[#allocation11 + $0x88] sm:$0xff]
    %v1028 = vld [vmem:[#allocation11 + $0x90] sm:$0xff]
    %v1029 = vld [vmem:[#allocation11 + $0x98] sm:$0xff]
    %v1030 = vld [vmem:[#allocation11 + $0xa0] sm:$0xff]
    %v1031 = vld [vmem:[#allocation11 + $0xa8] sm:$0xff]
    %v1032 = vld [vmem:[#allocation11 + $0xb0] sm:$0xff]
    %v1033 = vld [vmem:[#allocation11 + $0xb8] sm:$0xff]
    %v1034 = vld [vmem:[#allocation11 + $0xc0] sm:$0xff]
    %v1035 = vld [vmem:[#allocation11 + $0xc8] sm:$0xff]
    %v1036 = vld [vmem:[#allocation11 + $0xd0] sm:$0xff]
    %v1037 = vld [vmem:[#allocation11 + $0xd8] sm:$0xff]
    %v1038 = vld [vmem:[#allocation11 + $0xe0] sm:$0xff]
    %v1039 = vld [vmem:[#allocation11 + $0xe8] sm:$0xff]
    %v1040 = vld [vmem:[#allocation11 + $0xf0] sm:$0xff]
    %v1041 = vld [vmem:[#allocation11 + $0xf8] sm:$0xff]
    %v1042 = vld [vmem:[#allocation11 + $0x100] sm:$0xff]
    %v1043 = vld [vmem:[#allocation11 + $0x108] sm:$0xff]
    %v1044 = vld [vmem:[#allocation11 + $0x110] sm:$0xff]
    %v1045 = vld [vmem:[#allocation11 + $0x118] sm:$0xff]
    %v1046 = vld [vmem:[#allocation11 + $0x120] sm:$0xff]
    %v1047 = vld [vmem:[#allocation11 + $0x128] sm:$0xff]
    %v1048 = vld [vmem:[#allocation11 + $0x130] sm:$0xff]
    %v1049 = vld [vmem:[#allocation11 + $0x138] sm:$0xff]
    %v1050 = vld [vmem:[#allocation11 + $0x140] sm:$0xff]
    %v1051 = vld [vmem:[#allocation11 + $0x148] sm:$0xff]
    %v1052 = vld [vmem:[#allocation11 + $0x150] sm:$0xff]
    %v1053 = vld [vmem:[#allocation11 + $0x158] sm:$0xff]
    %v1054 = vld [vmem:[#allocation11 + $0x160] sm:$0xff]
    %v1055 = vld [vmem:[#allocation11 + $0x168] sm:$0xff]
    %v1056 = vld [vmem:[#allocation11 + $0x170] sm:$0xff]
    %v1057 = vld [vmem:[#allocation11 + $0x178] sm:$0xff]
    %v1058 = vld [vmem:[#allocation11 + $0x180] sm:$0xff]
    %v1059 = vld [vmem:[#allocation11 + $0x188] sm:$0xff]
    %v1060 = vld [vmem:[#allocation11 + $0x190] sm:$0xff]
    %v1061 = vld [vmem:[#allocation11 + $0x198] sm:$0xff]
    %v1062 = vld [vmem:[#allocation11 + $0x1a0] sm:$0xff]
    %v1063 = vld [vmem:[#allocation11 + $0x1a8] sm:$0xff]
    %v1064 = vld [vmem:[#allocation11 + $0x1b0] sm:$0xff]
    %v1065 = vld [vmem:[#allocation11 + $0x1b8] sm:$0xff]
    %v1066 = vld [vmem:[#allocation11 + $0x1c0] sm:$0xff]
    %v1067 = vld [vmem:[#allocation11 + $0x1c8] sm:$0xff]
    %v1068 = vld [vmem:[#allocation11 + $0x1d0] sm:$0xff]
    %v1069 = vld [vmem:[#allocation11 + $0x1d8] sm:$0xff]
    %v1070 = vld [vmem:[#allocation11 + $0x1e0] sm:$0xff]
    %v1071 = vld [vmem:[#allocation11 + $0x1e8] sm:$0xff]
    %v1072 = vld [vmem:[#allocation11 + $0x1f0] sm:$0xff]
    %v1073 = vld [vmem:[#allocation11 + $0x1f8] sm:$0xff]
    %v1074 = vld [vmem:[#allocation13] sm:$0xff]
    %v1075 = vld [vmem:[#allocation13 + $0x8] sm:$0xff]
    %v1076 = vld [vmem:[#allocation13 + $0x10] sm:$0xff]
    %v1077 = vld [vmem:[#allocation13 + $0x18] sm:$0xff]
    %v1078 = vld [vmem:[#allocation13 + $0x20] sm:$0xff]
    %v1079 = vld [vmem:[#allocation13 + $0x28] sm:$0xff]
    %v1080 = vld [vmem:[#allocation13 + $0x30] sm:$0xff]
    %v1081 = vld [vmem:[#allocation13 + $0x38] sm:$0xff]
    %v1082 = vld [vmem:[#allocation13 + $0x40] sm:$0xff]
    %v1083 = vld [vmem:[#allocation13 + $0x48] sm:$0xff]
    %v1084 = vld [vmem:[#allocation13 + $0x50] sm:$0xff]
    %v1085 = vld [vmem:[#allocation13 + $0x58] sm:$0xff]
    %v1086 = vld [vmem:[#allocation13 + $0x60] sm:$0xff]
    %v1087 = vld [vmem:[#allocation13 + $0x68] sm:$0xff]
    %v1088 = vld [vmem:[#allocation13 + $0x70] sm:$0xff]
    %v1089 = vld [vmem:[#allocation13 + $0x78] sm:$0xff]
    %v1090 = vld [vmem:[#allocation13 + $0x80] sm:$0xff]
    %v1091 = vld [vmem:[#allocation13 + $0x88] sm:$0xff]
    %v1092 = vld [vmem:[#allocation13 + $0x90] sm:$0xff]
    %v1093 = vld [vmem:[#allocation13 + $0x98] sm:$0xff]
    %v1094 = vld [vmem:[#allocation13 + $0xa0] sm:$0xff]
    %v1095 = vld [vmem:[#allocation13 + $0xa8] sm:$0xff]
    %v1096 = vld [vmem:[#allocation13 + $0xb0] sm:$0xff]
    %v1097 = vld [vmem:[#allocation13 + $0xb8] sm:$0xff]
    %v1098 = vld [vmem:[#allocation13 + $0xc0] sm:$0xff]
    %v1099 = vld [vmem:[#allocation13 + $0xc8] sm:$0xff]
    %v1100 = vld [vmem:[#allocation13 + $0xd0] sm:$0xff]
    %v1101 = vld [vmem:[#allocation13 + $0xd8] sm:$0xff]
    %v1102 = vld [vmem:[#allocation13 + $0xe0] sm:$0xff]
    %v1103 = vld [vmem:[#allocation13 + $0xe8] sm:$0xff]
    %v1104 = vld [vmem:[#allocation13 + $0xf0] sm:$0xff]
    %v1105 = vld [vmem:[#allocation13 + $0xf8] sm:$0xff]
    %v1106 = vld [vmem:[#allocation13 + $0x100] sm:$0xff]
    %v1107 = vld [vmem:[#allocation13 + $0x108] sm:$0xff]
    %v1108 = vld [vmem:[#allocation13 + $0x110] sm:$0xff]
    %v1109 = vld [vmem:[#allocation13 + $0x118] sm:$0xff]
    %v1110 = vld [vmem:[#allocation13 + $0x120] sm:$0xff]
    %v1111 = vld [vmem:[#allocation13 + $0x128] sm:$0xff]
    %v1112 = vld [vmem:[#allocation13 + $0x130] sm:$0xff]
    %v1113 = vld [vmem:[#allocation13 + $0x138] sm:$0xff]
    %v1114 = vld [vmem:[#allocation13 + $0x140] sm:$0xff]
    %v1115 = vld [vmem:[#allocation13 + $0x148] sm:$0xff]
    %v1116 = vld [vmem:[#allocation13 + $0x150] sm:$0xff]
    %v1117 = vld [vmem:[#allocation13 + $0x158] sm:$0xff]
    %v1118 = vld [vmem:[#allocation13 + $0x160] sm:$0xff]
    %v1119 = vld [vmem:[#allocation13 + $0x168] sm:$0xff]
    %v1120 = vld [vmem:[#allocation13 + $0x170] sm:$0xff]
    %v1121 = vld [vmem:[#allocation13 + $0x178] sm:$0xff]
    %v1122 = vld [vmem:[#allocation13 + $0x180] sm:$0xff]
    %v1123 = vld [vmem:[#allocation13 + $0x188] sm:$0xff]
    %v1124 = vld [vmem:[#allocation13 + $0x190] sm:$0xff]
    %v1125 = vld [vmem:[#allocation13 + $0x198] sm:$0xff]
    %v1126 = vld [vmem:[#allocation13 + $0x1a0] sm:$0xff]
    %v1127 = vld [vmem:[#allocation13 + $0x1a8] sm:$0xff]
    %v1128 = vld [vmem:[#allocation13 + $0x1b0] sm:$0xff]
    %v1129 = vld [vmem:[#allocation13 + $0x1b8] sm:$0xff]
    %v1130 = vld [vmem:[#allocation13 + $0x1c0] sm:$0xff]
    %v1131 = vld [vmem:[#allocation13 + $0x1c8] sm:$0xff]
    %v1132 = vld [vmem:[#allocation13 + $0x1d0] sm:$0xff]
    %v1133 = vld [vmem:[#allocation13 + $0x1d8] sm:$0xff]
    %v1134 = vld [vmem:[#allocation13 + $0x1e0] sm:$0xff]
    %v1135 = vld [vmem:[#allocation13 + $0x1e8] sm:$0xff]
    %v1136 = vld [vmem:[#allocation13 + $0x1f0] sm:$0xff]
    %v1137 = vld [vmem:[#allocation13 + $0x1f8] sm:$0xff]
    %1138 = vmatprep.subr.mxu0 %v1135
    %1139 = vmatpush1.msra.mxu0 %v1134
    %1140 = vmatprep.subr.mxu0 %v1131
    %1141 = vmatpush1.msra.mxu0 %v1130
    %1142 = vmatprep.subr.mxu0 %v1127
    %1143 = vmatpush1.msra.mxu0 %v1126
    %1144 = vmatprep.subr.mxu0 %v1123
    %1145 = vmatpush1.msra.mxu0 %v1122
    %1146 = vmatprep.subr.mxu0 %v1119
    %1147 = vmatpush1.msra.mxu0 %v1118
    %1148 = vmatprep.subr.mxu0 %v1115
    %1149 = vmatpush1.msra.mxu0 %v1114
    %1150 = vmatprep.subr.mxu0 %v1111
    %1151 = vmatpush1.msra.mxu0 %v1110
    %1152 = vmatprep.subr.mxu0 %v1107
    %1153 = vmatpush1.msra.mxu0 %v1106
    %1154 = vmatprep.subr.mxu0 %v1103
    %1155 = vmatpush1.msra.mxu0 %v1102
    %1156 = vmatprep.subr.mxu0 %v1099
    %1157 = vmatpush1.msra.mxu0 %v1098
    %1158 = vmatprep.subr.mxu0 %v1095
    %1159 = vmatpush1.msra.mxu0 %v1094
    %1160 = vmatprep.subr.mxu0 %v1091
    %1161 = vmatpush1.msra.mxu0 %v1090
    %1162 = vmatprep.subr.mxu0 %v1087
    %1163 = vmatpush1.msra.mxu0 %v1086
    %1164 = vmatprep.subr.mxu0 %v1083
    %1165 = vmatpush1.msra.mxu0 %v1082
    %1166 = vmatprep.subr.mxu0 %v1079
    %1167 = vmatpush1.msra.mxu0 %v1078
    %1168 = vmatprep.subr.mxu0 %v1075
    %1169 = vmatpush1.msra.mxu0 %v1074
    %1170 = vmatprep.subr.mxu0 0.0
    %1171 = vmatpush2.msra.mxu0 0.0
    %1172 = vmatprep.subr.mxu0 0.0
    %1173 = vmatpush2.msra.mxu0 0.0
    %1174 = vmatprep.subr.mxu0 0.0
    %1175 = vmatpush2.msra.mxu0 0.0
    %1176 = vmatprep.subr.mxu0 0.0
    %1177 = vmatpush2.msra.mxu0 0.0
    %1178 = vmatprep.subr.mxu0 0.0
    %1179 = vmatpush2.msra.mxu0 0.0
    %1180 = vmatprep.subr.mxu0 0.0
    %1181 = vmatpush2.msra.mxu0 0.0
    %1182 = vmatprep.subr.mxu0 0.0
    %1183 = vmatpush2.msra.mxu0 0.0
    %1184 = vmatprep.subr.mxu0 0.0
    %1185 = vmatpush2.msra.mxu0 0.0
    %1186 = vmatprep.subr.mxu0 0.0
    %1187 = vmatpush2.msra.mxu0 0.0
    %1188 = vmatprep.subr.mxu0 0.0
    %1189 = vmatpush2.msra.mxu0 0.0
    %1190 = vmatprep.subr.mxu0 0.0
    %1191 = vmatpush2.msra.mxu0 0.0
    %1192 = vmatprep.subr.mxu0 0.0
    %1193 = vmatpush2.msra.mxu0 0.0
    %1194 = vmatprep.subr.mxu0 0.0
    %1195 = vmatpush2.msra.mxu0 0.0
    %1196 = vmatprep.subr.mxu0 0.0
    %1197 = vmatpush2.msra.mxu0 0.0
    %1198 = vmatprep.subr.mxu0 0.0
    %1199 = vmatpush2.msra.mxu0 0.0
    %1200 = vmatprep.subr.mxu0 0.0
    %1201 = vmatpush2.msra.mxu0 0.0
    %1202 = vmatprep.mubr.f32.mxu0 0.0
    %1203 = vmatmul.mubr.f32.gmra.mxu0 0.0
    %v1204 = vpop.f32.mrf.mxu0
    %v1205 = vadd.f32 0.0, %v1204
    %v1206 = vpop.f32.mrf.mxu0
    %v1207 = vadd.f32 0.0, %v1206
    %1208 = vdwg.mxu0
    %1209 = vmatprep.subr.mxu0 %v1137
    %1210 = vmatpush1.msra.mxu0 %v1136
    %1211 = vmatprep.subr.mxu0 %v1133
    %1212 = vmatpush1.msra.mxu0 %v1132
    %1213 = vmatprep.subr.mxu0 %v1129
    %1214 = vmatpush1.msra.mxu0 %v1128
    %1215 = vmatprep.subr.mxu0 %v1125
    %1216 = vmatpush1.msra.mxu0 %v1124
    %1217 = vmatprep.subr.mxu0 %v1121
    %1218 = vmatpush1.msra.mxu0 %v1120
    %1219 = vmatprep.subr.mxu0 %v1117
    %1220 = vmatpush1.msra.mxu0 %v1116
    %1221 = vmatprep.subr.mxu0 %v1113
    %1222 = vmatpush1.msra.mxu0 %v1112
    %1223 = vmatprep.subr.mxu0 %v1109
    %1224 = vmatpush1.msra.mxu0 %v1108
    %1225 = vmatprep.subr.mxu0 %v1105
    %1226 = vmatpush1.msra.mxu0 %v1104
    %1227 = vmatprep.subr.mxu0 %v1101
    %1228 = vmatpush1.msra.mxu0 %v1100
    %1229 = vmatprep.subr.mxu0 %v1097
    %1230 = vmatpush1.msra.mxu0 %v1096
    %1231 = vmatprep.subr.mxu0 %v1093
    %1232 = vmatpush1.msra.mxu0 %v1092
    %1233 = vmatprep.subr.mxu0 %v1089
    %1234 = vmatpush1.msra.mxu0 %v1088
    %1235 = vmatprep.subr.mxu0 %v1085
    %1236 = vmatpush1.msra.mxu0 %v1084
    %1237 = vmatprep.subr.mxu0 %v1081
    %1238 = vmatpush1.msra.mxu0 %v1080
    %1239 = vmatprep.subr.mxu0 %v1077
    %1240 = vmatpush1.msra.mxu0 %v1076
    %1241 = vmatprep.subr.mxu0 0.0
    %1242 = vmatpush2.msra.mxu0 0.0
    %1243 = vmatprep.subr.mxu0 0.0
    %1244 = vmatpush2.msra.mxu0 0.0
    %1245 = vmatprep.subr.mxu0 0.0
    %1246 = vmatpush2.msra.mxu0 0.0
    %1247 = vmatprep.subr.mxu0 0.0
    %1248 = vmatpush2.msra.mxu0 0.0
    %1249 = vmatprep.subr.mxu0 0.0
    %1250 = vmatpush2.msra.mxu0 0.0
    %1251 = vmatprep.subr.mxu0 0.0
    %1252 = vmatpush2.msra.mxu0 0.0
    %1253 = vmatprep.subr.mxu0 0.0
    %1254 = vmatpush2.msra.mxu0 0.0
    %1255 = vmatprep.subr.mxu0 0.0
    %1256 = vmatpush2.msra.mxu0 0.0
    %1257 = vmatprep.subr.mxu0 0.0
    %1258 = vmatpush2.msra.mxu0 0.0
    %1259 = vmatprep.subr.mxu0 0.0
    %1260 = vmatpush2.msra.mxu0 0.0
    %1261 = vmatprep.subr.mxu0 0.0
    %1262 = vmatpush2.msra.mxu0 0.0
    %1263 = vmatprep.subr.mxu0 0.0
    %1264 = vmatpush2.msra.mxu0 0.0
    %1265 = vmatprep.subr.mxu0 0.0
    %1266 = vmatpush2.msra.mxu0 0.0
    %1267 = vmatprep.subr.mxu0 0.0
    %1268 = vmatpush2.msra.mxu0 0.0
    %1269 = vmatprep.subr.mxu0 0.0
    %1270 = vmatpush2.msra.mxu0 0.0
    %1271 = vmatprep.subr.mxu0 0.0
    %1272 = vmatpush2.msra.mxu0 0.0
    %1273 = vmatprep.mubr.f32.mxu0 0.0
    %1274 = vmatmul.mubr.f32.gmra.mxu0 0.0
    %v1275 = vpop.f32.mrf.mxu0
    %v1276 = vadd.f32 0.0, %v1275
    %v1277 = vpop.f32.mrf.mxu0
    %v1278 = vadd.f32 0.0, %v1277
    %1279 = vdwg.mxu0
    %1280 = vmatprep.subr.mxu0 %v1071
    %1281 = vmatpush1.msra.mxu0 %v1070
    %1282 = vmatprep.subr.mxu0 %v1067
    %1283 = vmatpush1.msra.mxu0 %v1066
    %1284 = vmatprep.subr.mxu0 %v1063
    %1285 = vmatpush1.msra.mxu0 %v1062
    %1286 = vmatprep.subr.mxu0 %v1059
    %1287 = vmatpush1.msra.mxu0 %v1058
    %1288 = vmatprep.subr.mxu0 %v1055
    %1289 = vmatpush1.msra.mxu0 %v1054
    %1290 = vmatprep.subr.mxu0 %v1051
    %1291 = vmatpush1.msra.mxu0 %v1050
    %1292 = vmatprep.subr.mxu0 %v1047
    %1293 = vmatpush1.msra.mxu0 %v1046
    %1294 = vmatprep.subr.mxu0 %v1043
    %1295 = vmatpush1.msra.mxu0 %v1042
    %1296 = vmatprep.subr.mxu0 %v1039
    %1297 = vmatpush1.msra.mxu0 %v1038
    %1298 = vmatprep.subr.mxu0 %v1035
    %1299 = vmatpush1.msra.mxu0 %v1034
    %1300 = vmatprep.subr.mxu0 %v1031
    %1301 = vmatpush1.msra.mxu0 %v1030
    %1302 = vmatprep.subr.mxu0 %v1027
    %1303 = vmatpush1.msra.mxu0 %v1026
    %1304 = vmatprep.subr.mxu0 %v1023
    %1305 = vmatpush1.msra.mxu0 %v1022
    %1306 = vmatprep.subr.mxu0 %v1019
    %1307 = vmatpush1.msra.mxu0 %v1018
    %1308 = vmatprep.subr.mxu0 %v1015
    %1309 = vmatpush1.msra.mxu0 %v1014
    %1310 = vmatprep.subr.mxu0 %v1011
    %1311 = vmatpush1.msra.mxu0 %v1010
    %1312 = vmatprep.subr.mxu0 0.0
    %1313 = vmatpush2.msra.mxu0 0.0
    %1314 = vmatprep.subr.mxu0 0.0
    %1315 = vmatpush2.msra.mxu0 0.0
    %1316 = vmatprep.subr.mxu0 0.0
    %1317 = vmatpush2.msra.mxu0 0.0
    %1318 = vmatprep.subr.mxu0 0.0
    %1319 = vmatpush2.msra.mxu0 0.0
    %1320 = vmatprep.subr.mxu0 0.0
    %1321 = vmatpush2.msra.mxu0 0.0
    %1322 = vmatprep.subr.mxu0 0.0
    %1323 = vmatpush2.msra.mxu0 0.0
    %1324 = vmatprep.subr.mxu0 0.0
    %1325 = vmatpush2.msra.mxu0 0.0
    %1326 = vmatprep.subr.mxu0 0.0
    %1327 = vmatpush2.msra.mxu0 0.0
    %1328 = vmatprep.subr.mxu0 0.0
    %1329 = vmatpush2.msra.mxu0 0.0
    %1330 = vmatprep.subr.mxu0 0.0
    %1331 = vmatpush2.msra.mxu0 0.0
    %1332 = vmatprep.subr.mxu0 0.0
    %1333 = vmatpush2.msra.mxu0 0.0
    %1334 = vmatprep.subr.mxu0 0.0
    %1335 = vmatpush2.msra.mxu0 0.0
    %1336 = vmatprep.subr.mxu0 0.0
    %1337 = vmatpush2.msra.mxu0 0.0
    %1338 = vmatprep.subr.mxu0 0.0
    %1339 = vmatpush2.msra.mxu0 0.0
    %1340 = vmatprep.subr.mxu0 0.0
    %1341 = vmatpush2.msra.mxu0 0.0
    %1342 = vmatprep.subr.mxu0 0.0
    %1343 = vmatpush2.msra.mxu0 0.0
    %1344 = vmatprep.mubr.f32.mxu0 0.0
    %1345 = vmatmul.mubr.f32.gmra.mxu0 %v1009
    %v1346 = vpop.f32.mrf.mxu0
    %v1347 = vadd.f32 %v1205, %v1346
    %v1348 = vpop.f32.mrf.mxu0
    %v1349 = vadd.f32 %v1207, %v1348
    %1350 = vdwg.mxu0
    %1351 = vmatprep.subr.mxu0 %v1073
    %1352 = vmatpush1.msra.mxu0 %v1072
    %1353 = vmatprep.subr.mxu0 %v1069
    %1354 = vmatpush1.msra.mxu0 %v1068
    %1355 = vmatprep.subr.mxu0 %v1065
    %1356 = vmatpush1.msra.mxu0 %v1064
    %1357 = vmatprep.subr.mxu0 %v1061
    %1358 = vmatpush1.msra.mxu0 %v1060
    %1359 = vmatprep.subr.mxu0 %v1057
    %1360 = vmatpush1.msra.mxu0 %v1056
    %1361 = vmatprep.subr.mxu0 %v1053
    %1362 = vmatpush1.msra.mxu0 %v1052
    %1363 = vmatprep.subr.mxu0 %v1049
    %1364 = vmatpush1.msra.mxu0 %v1048
    %1365 = vmatprep.subr.mxu0 %v1045
    %1366 = vmatpush1.msra.mxu0 %v1044
    %1367 = vmatprep.subr.mxu0 %v1041
    %1368 = vmatpush1.msra.mxu0 %v1040
    %1369 = vmatprep.subr.mxu0 %v1037
    %1370 = vmatpush1.msra.mxu0 %v1036
    %1371 = vmatprep.subr.mxu0 %v1033
    %1372 = vmatpush1.msra.mxu0 %v1032
    %1373 = vmatprep.subr.mxu0 %v1029
    %1374 = vmatpush1.msra.mxu0 %v1028
    %1375 = vmatprep.subr.mxu0 %v1025
    %1376 = vmatpush1.msra.mxu0 %v1024
    %1377 = vmatprep.subr.mxu0 %v1021
    %1378 = vmatpush1.msra.mxu0 %v1020
    %1379 = vmatprep.subr.mxu0 %v1017
    %1380 = vmatpush1.msra.mxu0 %v1016
    %1381 = vmatprep.subr.mxu0 %v1013
    %1382 = vmatpush1.msra.mxu0 %v1012
    %1383 = vmatprep.subr.mxu0 0.0
    %1384 = vmatpush2.msra.mxu0 0.0
    %1385 = vmatprep.subr.mxu0 0.0
    %1386 = vmatpush2.msra.mxu0 0.0
    %1387 = vmatprep.subr.mxu0 0.0
    %1388 = vmatpush2.msra.mxu0 0.0
    %1389 = vmatprep.subr.mxu0 0.0
    %1390 = vmatpush2.msra.mxu0 0.0
    %1391 = vmatprep.subr.mxu0 0.0
    %1392 = vmatpush2.msra.mxu0 0.0
    %1393 = vmatprep.subr.mxu0 0.0
    %1394 = vmatpush2.msra.mxu0 0.0
    %1395 = vmatprep.subr.mxu0 0.0
    %1396 = vmatpush2.msra.mxu0 0.0
    %1397 = vmatprep.subr.mxu0 0.0
    %1398 = vmatpush2.msra.mxu0 0.0
    %1399 = vmatprep.subr.mxu0 0.0
    %1400 = vmatpush2.msra.mxu0 0.0
    %1401 = vmatprep.subr.mxu0 0.0
    %1402 = vmatpush2.msra.mxu0 0.0
    %1403 = vmatprep.subr.mxu0 0.0
    %1404 = vmatpush2.msra.mxu0 0.0
    %1405 = vmatprep.subr.mxu0 0.0
    %1406 = vmatpush2.msra.mxu0 0.0
    %1407 = vmatprep.subr.mxu0 0.0
    %1408 = vmatpush2.msra.mxu0 0.0
    %1409 = vmatprep.subr.mxu0 0.0
    %1410 = vmatpush2.msra.mxu0 0.0
    %1411 = vmatprep.subr.mxu0 0.0
    %1412 = vmatpush2.msra.mxu0 0.0
    %1413 = vmatprep.subr.mxu0 0.0
    %1414 = vmatpush2.msra.mxu0 0.0
    %1415 = vmatprep.mubr.f32.mxu0 0.0
    %1416 = vmatmul.mubr.f32.gmra.mxu0 %v1009
    %v1417 = vpop.f32.mrf.mxu0
    %v1418 = vadd.f32 %v1276, %v1417
    %v1419 = vpop.f32.mrf.mxu0
    %v1420 = vadd.f32 %v1278, %v1419
    %1421 = vdwg.mxu0
    %v1422 = vld [vmem:[%s11] sm:$0xf]
    %v1424 = vlaneseq
    %v1425 = vshrl.u32 %v1424, 7
    %v1426 = vsub.s32 0, %v1425
    %v1427 = vrot.slane %v1422, %v1426
    %v1428 = vlaneseq
    %v1429 = vshrl.u32 %v1428, 7
    %v1430 = vsub.s32 1, %v1429
    %v1431 = vrot.slane %v1422, %v1430
    %v1432 = vlaneseq
    %v1433 = vshrl.u32 %v1432, 7
    %v1434 = vsub.s32 2, %v1433
    %v1435 = vrot.slane %v1422, %v1434
    %v1436 = vlaneseq
    %v1437 = vshrl.u32 %v1436, 7
    %v1438 = vsub.s32 3, %v1437
    %v1439 = vrot.slane %v1422, %v1438
    %v1444 = vadd.f32 %v1347, %v1427
    %v1445 = vadd.f32 %v1349, %v1431
    %v1446 = vadd.f32 %v1418, %v1435
    %v1447 = vadd.f32 %v1420, %v1439
    %v1448 = vxor.u32 %v1444, 2147483648
    %v1449 = vmul.f32 %v1448, 1.442695
    %v1450 = vpow.pop %v1449
    %v1451 = vadd.f32 %v1450, 1.0
    %v1452 = vrcp.pop %v1451
    %v1453 = vmul.f32 1.0, %v1452
    %v1454 = vxor.u32 %v1445, 2147483648
    %v1455 = vmul.f32 %v1454, 1.442695
    %v1456 = vpow.pop %v1455
    %v1457 = vadd.f32 %v1456, 1.0
    %v1458 = vrcp.pop %v1457
    %v1459 = vmul.f32 1.0, %v1458
    %v1460 = vtanh.pop %v1446
    %v1461 = vxor.u32 %v1447, 2147483648
    %v1462 = vmul.f32 %v1461, 1.442695
    %v1463 = vpow.pop %v1462
    %v1464 = vadd.f32 %v1463, 1.0
    %v1465 = vrcp.pop %v1464
    %v1466 = vmul.f32 1.0, %v1465
    %v1467 = vmul.f32 %v1459, 0.0
    %v1468 = vmul.f32 %v1453, %v1460
    %v1469 = vadd.f32 %v1467, %v1468
    %v1470 = vtanh.pop %v1469
    %v1471 = vmul.f32 %v1466, %v1470
    %v1472 = vld [vmem:[#allocation14] sm:$0xff]
    %v1473 = vld [vmem:[#allocation14 + $0x8] sm:$0xff]
    %v1474 = vld [vmem:[#allocation14 + $0x10] sm:$0xff]
    %v1475 = vld [vmem:[#allocation14 + $0x18] sm:$0xff]
    %v1476 = vld [vmem:[#allocation14 + $0x20] sm:$0xff]
    %v1477 = vld [vmem:[#allocation14 + $0x28] sm:$0xff]
    %v1478 = vld [vmem:[#allocation14 + $0x30] sm:$0xff]
    %v1479 = vld [vmem:[#allocation14 + $0x38] sm:$0xff]
    %v1480 = vld [vmem:[#allocation14 + $0x40] sm:$0xff]
    %v1481 = vld [vmem:[#allocation14 + $0x48] sm:$0xff]
    %v1482 = vld [vmem:[#allocation14 + $0x50] sm:$0xff]
    %v1483 = vld [vmem:[#allocation14 + $0x58] sm:$0xff]
    %v1484 = vld [vmem:[#allocation14 + $0x60] sm:$0xff]
    %v1485 = vld [vmem:[#allocation14 + $0x68] sm:$0xff]
    %v1486 = vld [vmem:[#allocation14 + $0x70] sm:$0xff]
    %v1487 = vld [vmem:[#allocation14 + $0x78] sm:$0xff]
    %v1488 = vld [vmem:[#allocation14 + $0x80] sm:$0xff]
    %v1489 = vld [vmem:[#allocation14 + $0x88] sm:$0xff]
    %v1490 = vld [vmem:[#allocation14 + $0x90] sm:$0xff]
    %v1491 = vld [vmem:[#allocation14 + $0x98] sm:$0xff]
    %v1492 = vld [vmem:[#allocation14 + $0xa0] sm:$0xff]
    %v1493 = vld [vmem:[#allocation14 + $0xa8] sm:$0xff]
    %v1494 = vld [vmem:[#allocation14 + $0xb0] sm:$0xff]
    %v1495 = vld [vmem:[#allocation14 + $0xb8] sm:$0xff]
    %v1496 = vld [vmem:[#allocation14 + $0xc0] sm:$0xff]
    %v1497 = vld [vmem:[#allocation14 + $0xc8] sm:$0xff]
    %v1498 = vld [vmem:[#allocation14 + $0xd0] sm:$0xff]
    %v1499 = vld [vmem:[#allocation14 + $0xd8] sm:$0xff]
    %v1500 = vld [vmem:[#allocation14 + $0xe0] sm:$0xff]
    %v1501 = vld [vmem:[#allocation14 + $0xe8] sm:$0xff]
    %v1502 = vld [vmem:[#allocation14 + $0xf0] sm:$0xff]
    %v1503 = vld [vmem:[#allocation14 + $0xf8] sm:$0xff]
    %v1504 = vld [vmem:[#allocation14 + $0x100] sm:$0xff]
    %v1505 = vld [vmem:[#allocation14 + $0x108] sm:$0xff]
    %v1506 = vld [vmem:[#allocation14 + $0x110] sm:$0xff]
    %v1507 = vld [vmem:[#allocation14 + $0x118] sm:$0xff]
    %v1508 = vld [vmem:[#allocation14 + $0x120] sm:$0xff]
    %v1509 = vld [vmem:[#allocation14 + $0x128] sm:$0xff]
    %v1510 = vld [vmem:[#allocation14 + $0x130] sm:$0xff]
    %v1511 = vld [vmem:[#allocation14 + $0x138] sm:$0xff]
    %v1512 = vld [vmem:[#allocation14 + $0x140] sm:$0xff]
    %v1513 = vld [vmem:[#allocation14 + $0x148] sm:$0xff]
    %v1514 = vld [vmem:[#allocation14 + $0x150] sm:$0xff]
    %v1515 = vld [vmem:[#allocation14 + $0x158] sm:$0xff]
    %v1516 = vld [vmem:[#allocation14 + $0x160] sm:$0xff]
    %v1517 = vld [vmem:[#allocation14 + $0x168] sm:$0xff]
    %v1518 = vld [vmem:[#allocation14 + $0x170] sm:$0xff]
    %v1519 = vld [vmem:[#allocation14 + $0x178] sm:$0xff]
    %v1520 = vld [vmem:[#allocation14 + $0x180] sm:$0xff]
    %v1521 = vld [vmem:[#allocation14 + $0x188] sm:$0xff]
    %v1522 = vld [vmem:[#allocation14 + $0x190] sm:$0xff]
    %v1523 = vld [vmem:[#allocation14 + $0x198] sm:$0xff]
    %v1524 = vld [vmem:[#allocation14 + $0x1a0] sm:$0xff]
    %v1525 = vld [vmem:[#allocation14 + $0x1a8] sm:$0xff]
    %v1526 = vld [vmem:[#allocation14 + $0x1b0] sm:$0xff]
    %v1527 = vld [vmem:[#allocation14 + $0x1b8] sm:$0xff]
    %v1528 = vld [vmem:[#allocation14 + $0x1c0] sm:$0xff]
    %v1529 = vld [vmem:[#allocation14 + $0x1c8] sm:$0xff]
    %v1530 = vld [vmem:[#allocation14 + $0x1d0] sm:$0xff]
    %v1531 = vld [vmem:[#allocation14 + $0x1d8] sm:$0xff]
    %v1532 = vld [vmem:[#allocation14 + $0x1e0] sm:$0xff]
    %v1533 = vld [vmem:[#allocation14 + $0x1e8] sm:$0xff]
    %v1534 = vld [vmem:[#allocation14 + $0x1f0] sm:$0xff]
    %v1535 = vld [vmem:[#allocation14 + $0x1f8] sm:$0xff]
    %v1536 = vld [vmem:[#allocation16] sm:$0xff]
    %v1537 = vld [vmem:[#allocation16 + $0x8] sm:$0xff]
    %v1538 = vld [vmem:[#allocation16 + $0x10] sm:$0xff]
    %v1539 = vld [vmem:[#allocation16 + $0x18] sm:$0xff]
    %v1540 = vld [vmem:[#allocation16 + $0x20] sm:$0xff]
    %v1541 = vld [vmem:[#allocation16 + $0x28] sm:$0xff]
    %v1542 = vld [vmem:[#allocation16 + $0x30] sm:$0xff]
    %v1543 = vld [vmem:[#allocation16 + $0x38] sm:$0xff]
    %v1544 = vld [vmem:[#allocation16 + $0x40] sm:$0xff]
    %v1545 = vld [vmem:[#allocation16 + $0x48] sm:$0xff]
    %v1546 = vld [vmem:[#allocation16 + $0x50] sm:$0xff]
    %v1547 = vld [vmem:[#allocation16 + $0x58] sm:$0xff]
    %v1548 = vld [vmem:[#allocation16 + $0x60] sm:$0xff]
    %v1549 = vld [vmem:[#allocation16 + $0x68] sm:$0xff]
    %v1550 = vld [vmem:[#allocation16 + $0x70] sm:$0xff]
    %v1551 = vld [vmem:[#allocation16 + $0x78] sm:$0xff]
    %v1552 = vld [vmem:[#allocation16 + $0x80] sm:$0xff]
    %v1553 = vld [vmem:[#allocation16 + $0x88] sm:$0xff]
    %v1554 = vld [vmem:[#allocation16 + $0x90] sm:$0xff]
    %v1555 = vld [vmem:[#allocation16 + $0x98] sm:$0xff]
    %v1556 = vld [vmem:[#allocation16 + $0xa0] sm:$0xff]
    %v1557 = vld [vmem:[#allocation16 + $0xa8] sm:$0xff]
    %v1558 = vld [vmem:[#allocation16 + $0xb0] sm:$0xff]
    %v1559 = vld [vmem:[#allocation16 + $0xb8] sm:$0xff]
    %v1560 = vld [vmem:[#allocation16 + $0xc0] sm:$0xff]
    %v1561 = vld [vmem:[#allocation16 + $0xc8] sm:$0xff]
    %v1562 = vld [vmem:[#allocation16 + $0xd0] sm:$0xff]
    %v1563 = vld [vmem:[#allocation16 + $0xd8] sm:$0xff]
    %v1564 = vld [vmem:[#allocation16 + $0xe0] sm:$0xff]
    %v1565 = vld [vmem:[#allocation16 + $0xe8] sm:$0xff]
    %v1566 = vld [vmem:[#allocation16 + $0xf0] sm:$0xff]
    %v1567 = vld [vmem:[#allocation16 + $0xf8] sm:$0xff]
    %v1568 = vld [vmem:[#allocation16 + $0x100] sm:$0xff]
    %v1569 = vld [vmem:[#allocation16 + $0x108] sm:$0xff]
    %v1570 = vld [vmem:[#allocation16 + $0x110] sm:$0xff]
    %v1571 = vld [vmem:[#allocation16 + $0x118] sm:$0xff]
    %v1572 = vld [vmem:[#allocation16 + $0x120] sm:$0xff]
    %v1573 = vld [vmem:[#allocation16 + $0x128] sm:$0xff]
    %v1574 = vld [vmem:[#allocation16 + $0x130] sm:$0xff]
    %v1575 = vld [vmem:[#allocation16 + $0x138] sm:$0xff]
    %v1576 = vld [vmem:[#allocation16 + $0x140] sm:$0xff]
    %v1577 = vld [vmem:[#allocation16 + $0x148] sm:$0xff]
    %v1578 = vld [vmem:[#allocation16 + $0x150] sm:$0xff]
    %v1579 = vld [vmem:[#allocation16 + $0x158] sm:$0xff]
    %v1580 = vld [vmem:[#allocation16 + $0x160] sm:$0xff]
    %v1581 = vld [vmem:[#allocation16 + $0x168] sm:$0xff]
    %v1582 = vld [vmem:[#allocation16 + $0x170] sm:$0xff]
    %v1583 = vld [vmem:[#allocation16 + $0x178] sm:$0xff]
    %v1584 = vld [vmem:[#allocation16 + $0x180] sm:$0xff]
    %v1585 = vld [vmem:[#allocation16 + $0x188] sm:$0xff]
    %v1586 = vld [vmem:[#allocation16 + $0x190] sm:$0xff]
    %v1587 = vld [vmem:[#allocation16 + $0x198] sm:$0xff]
    %v1588 = vld [vmem:[#allocation16 + $0x1a0] sm:$0xff]
    %v1589 = vld [vmem:[#allocation16 + $0x1a8] sm:$0xff]
    %v1590 = vld [vmem:[#allocation16 + $0x1b0] sm:$0xff]
    %v1591 = vld [vmem:[#allocation16 + $0x1b8] sm:$0xff]
    %v1592 = vld [vmem:[#allocation16 + $0x1c0] sm:$0xff]
    %v1593 = vld [vmem:[#allocation16 + $0x1c8] sm:$0xff]
    %v1594 = vld [vmem:[#allocation16 + $0x1d0] sm:$0xff]
    %v1595 = vld [vmem:[#allocation16 + $0x1d8] sm:$0xff]
    %v1596 = vld [vmem:[#allocation16 + $0x1e0] sm:$0xff]
    %v1597 = vld [vmem:[#allocation16 + $0x1e8] sm:$0xff]
    %v1598 = vld [vmem:[#allocation16 + $0x1f0] sm:$0xff]
    %v1599 = vld [vmem:[#allocation16 + $0x1f8] sm:$0xff]
    %1600 = vmatprep.subr.mxu0 %v1597
    %1601 = vmatpush1.msra.mxu0 %v1596
    %1602 = vmatprep.subr.mxu0 %v1593
    %1603 = vmatpush1.msra.mxu0 %v1592
    %1604 = vmatprep.subr.mxu0 %v1589
    %1605 = vmatpush1.msra.mxu0 %v1588
    %1606 = vmatprep.subr.mxu0 %v1585
    %1607 = vmatpush1.msra.mxu0 %v1584
    %1608 = vmatprep.subr.mxu0 %v1581
    %1609 = vmatpush1.msra.mxu0 %v1580
    %1610 = vmatprep.subr.mxu0 %v1577
    %1611 = vmatpush1.msra.mxu0 %v1576
    %1612 = vmatprep.subr.mxu0 %v1573
    %1613 = vmatpush1.msra.mxu0 %v1572
    %1614 = vmatprep.subr.mxu0 %v1569
    %1615 = vmatpush1.msra.mxu0 %v1568
    %1616 = vmatprep.subr.mxu0 %v1565
    %1617 = vmatpush1.msra.mxu0 %v1564
    %1618 = vmatprep.subr.mxu0 %v1561
    %1619 = vmatpush1.msra.mxu0 %v1560
    %1620 = vmatprep.subr.mxu0 %v1557
    %1621 = vmatpush1.msra.mxu0 %v1556
    %1622 = vmatprep.subr.mxu0 %v1553
    %1623 = vmatpush1.msra.mxu0 %v1552
    %1624 = vmatprep.subr.mxu0 %v1549
    %1625 = vmatpush1.msra.mxu0 %v1548
    %1626 = vmatprep.subr.mxu0 %v1545
    %1627 = vmatpush1.msra.mxu0 %v1544
    %1628 = vmatprep.subr.mxu0 %v1541
    %1629 = vmatpush1.msra.mxu0 %v1540
    %1630 = vmatprep.subr.mxu0 %v1537
    %1631 = vmatpush1.msra.mxu0 %v1536
    %1632 = vmatprep.subr.mxu0 0.0
    %1633 = vmatpush2.msra.mxu0 0.0
    %1634 = vmatprep.subr.mxu0 0.0
    %1635 = vmatpush2.msra.mxu0 0.0
    %1636 = vmatprep.subr.mxu0 0.0
    %1637 = vmatpush2.msra.mxu0 0.0
    %1638 = vmatprep.subr.mxu0 0.0
    %1639 = vmatpush2.msra.mxu0 0.0
    %1640 = vmatprep.subr.mxu0 0.0
    %1641 = vmatpush2.msra.mxu0 0.0
    %1642 = vmatprep.subr.mxu0 0.0
    %1643 = vmatpush2.msra.mxu0 0.0
    %1644 = vmatprep.subr.mxu0 0.0
    %1645 = vmatpush2.msra.mxu0 0.0
    %1646 = vmatprep.subr.mxu0 0.0
    %1647 = vmatpush2.msra.mxu0 0.0
    %1648 = vmatprep.subr.mxu0 0.0
    %1649 = vmatpush2.msra.mxu0 0.0
    %1650 = vmatprep.subr.mxu0 0.0
    %1651 = vmatpush2.msra.mxu0 0.0
    %1652 = vmatprep.subr.mxu0 0.0
    %1653 = vmatpush2.msra.mxu0 0.0
    %1654 = vmatprep.subr.mxu0 0.0
    %1655 = vmatpush2.msra.mxu0 0.0
    %1656 = vmatprep.subr.mxu0 0.0
    %1657 = vmatpush2.msra.mxu0 0.0
    %1658 = vmatprep.subr.mxu0 0.0
    %1659 = vmatpush2.msra.mxu0 0.0
    %1660 = vmatprep.subr.mxu0 0.0
    %1661 = vmatpush2.msra.mxu0 0.0
    %1662 = vmatprep.subr.mxu0 0.0
    %1663 = vmatpush2.msra.mxu0 0.0
    %1664 = vmatprep.mubr.f32.mxu0 0.0
    %1665 = vmatmul.mubr.f32.gmra.mxu0 0.0
    %v1666 = vpop.f32.mrf.mxu0
    %v1667 = vadd.f32 0.0, %v1666
    %v1668 = vpop.f32.mrf.mxu0
    %v1669 = vadd.f32 0.0, %v1668
    %1670 = vdwg.mxu0
    %1671 = vmatprep.subr.mxu0 %v1599
    %1672 = vmatpush1.msra.mxu0 %v1598
    %1673 = vmatprep.subr.mxu0 %v1595
    %1674 = vmatpush1.msra.mxu0 %v1594
    %1675 = vmatprep.subr.mxu0 %v1591
    %1676 = vmatpush1.msra.mxu0 %v1590
    %1677 = vmatprep.subr.mxu0 %v1587
    %1678 = vmatpush1.msra.mxu0 %v1586
    %1679 = vmatprep.subr.mxu0 %v1583
    %1680 = vmatpush1.msra.mxu0 %v1582
    %1681 = vmatprep.subr.mxu0 %v1579
    %1682 = vmatpush1.msra.mxu0 %v1578
    %1683 = vmatprep.subr.mxu0 %v1575
    %1684 = vmatpush1.msra.mxu0 %v1574
    %1685 = vmatprep.subr.mxu0 %v1571
    %1686 = vmatpush1.msra.mxu0 %v1570
    %1687 = vmatprep.subr.mxu0 %v1567
    %1688 = vmatpush1.msra.mxu0 %v1566
    %1689 = vmatprep.subr.mxu0 %v1563
    %1690 = vmatpush1.msra.mxu0 %v1562
    %1691 = vmatprep.subr.mxu0 %v1559
    %1692 = vmatpush1.msra.mxu0 %v1558
    %1693 = vmatprep.subr.mxu0 %v1555
    %1694 = vmatpush1.msra.mxu0 %v1554
    %1695 = vmatprep.subr.mxu0 %v1551
    %1696 = vmatpush1.msra.mxu0 %v1550
    %1697 = vmatprep.subr.mxu0 %v1547
    %1698 = vmatpush1.msra.mxu0 %v1546
    %1699 = vmatprep.subr.mxu0 %v1543
    %1700 = vmatpush1.msra.mxu0 %v1542
    %1701 = vmatprep.subr.mxu0 %v1539
    %1702 = vmatpush1.msra.mxu0 %v1538
    %1703 = vmatprep.subr.mxu0 0.0
    %1704 = vmatpush2.msra.mxu0 0.0
    %1705 = vmatprep.subr.mxu0 0.0
    %1706 = vmatpush2.msra.mxu0 0.0
    %1707 = vmatprep.subr.mxu0 0.0
    %1708 = vmatpush2.msra.mxu0 0.0
    %1709 = vmatprep.subr.mxu0 0.0
    %1710 = vmatpush2.msra.mxu0 0.0
    %1711 = vmatprep.subr.mxu0 0.0
    %1712 = vmatpush2.msra.mxu0 0.0
    %1713 = vmatprep.subr.mxu0 0.0
    %1714 = vmatpush2.msra.mxu0 0.0
    %1715 = vmatprep.subr.mxu0 0.0
    %1716 = vmatpush2.msra.mxu0 0.0
    %1717 = vmatprep.subr.mxu0 0.0
    %1718 = vmatpush2.msra.mxu0 0.0
    %1719 = vmatprep.subr.mxu0 0.0
    %1720 = vmatpush2.msra.mxu0 0.0
    %1721 = vmatprep.subr.mxu0 0.0
    %1722 = vmatpush2.msra.mxu0 0.0
    %1723 = vmatprep.subr.mxu0 0.0
    %1724 = vmatpush2.msra.mxu0 0.0
    %1725 = vmatprep.subr.mxu0 0.0
    %1726 = vmatpush2.msra.mxu0 0.0
    %1727 = vmatprep.subr.mxu0 0.0
    %1728 = vmatpush2.msra.mxu0 0.0
    %1729 = vmatprep.subr.mxu0 0.0
    %1730 = vmatpush2.msra.mxu0 0.0
    %1731 = vmatprep.subr.mxu0 0.0
    %1732 = vmatpush2.msra.mxu0 0.0
    %1733 = vmatprep.subr.mxu0 0.0
    %1734 = vmatpush2.msra.mxu0 0.0
    %1735 = vmatprep.mubr.f32.mxu0 0.0
    %1736 = vmatmul.mubr.f32.gmra.mxu0 0.0
    %v1737 = vpop.f32.mrf.mxu0
    %v1738 = vadd.f32 0.0, %v1737
    %v1739 = vpop.f32.mrf.mxu0
    %v1740 = vadd.f32 0.0, %v1739
    %1741 = vdwg.mxu0
    %1742 = vmatprep.subr.mxu0 %v1533
    %1743 = vmatpush1.msra.mxu0 %v1532
    %1744 = vmatprep.subr.mxu0 %v1529
    %1745 = vmatpush1.msra.mxu0 %v1528
    %1746 = vmatprep.subr.mxu0 %v1525
    %1747 = vmatpush1.msra.mxu0 %v1524
    %1748 = vmatprep.subr.mxu0 %v1521
    %1749 = vmatpush1.msra.mxu0 %v1520
    %1750 = vmatprep.subr.mxu0 %v1517
    %1751 = vmatpush1.msra.mxu0 %v1516
    %1752 = vmatprep.subr.mxu0 %v1513
    %1753 = vmatpush1.msra.mxu0 %v1512
    %1754 = vmatprep.subr.mxu0 %v1509
    %1755 = vmatpush1.msra.mxu0 %v1508
    %1756 = vmatprep.subr.mxu0 %v1505
    %1757 = vmatpush1.msra.mxu0 %v1504
    %1758 = vmatprep.subr.mxu0 %v1501
    %1759 = vmatpush1.msra.mxu0 %v1500
    %1760 = vmatprep.subr.mxu0 %v1497
    %1761 = vmatpush1.msra.mxu0 %v1496
    %1762 = vmatprep.subr.mxu0 %v1493
    %1763 = vmatpush1.msra.mxu0 %v1492
    %1764 = vmatprep.subr.mxu0 %v1489
    %1765 = vmatpush1.msra.mxu0 %v1488
    %1766 = vmatprep.subr.mxu0 %v1485
    %1767 = vmatpush1.msra.mxu0 %v1484
    %1768 = vmatprep.subr.mxu0 %v1481
    %1769 = vmatpush1.msra.mxu0 %v1480
    %1770 = vmatprep.subr.mxu0 %v1477
    %1771 = vmatpush1.msra.mxu0 %v1476
    %1772 = vmatprep.subr.mxu0 %v1473
    %1773 = vmatpush1.msra.mxu0 %v1472
    %1774 = vmatprep.subr.mxu0 0.0
    %1775 = vmatpush2.msra.mxu0 0.0
    %1776 = vmatprep.subr.mxu0 0.0
    %1777 = vmatpush2.msra.mxu0 0.0
    %1778 = vmatprep.subr.mxu0 0.0
    %1779 = vmatpush2.msra.mxu0 0.0
    %1780 = vmatprep.subr.mxu0 0.0
    %1781 = vmatpush2.msra.mxu0 0.0
    %1782 = vmatprep.subr.mxu0 0.0
    %1783 = vmatpush2.msra.mxu0 0.0
    %1784 = vmatprep.subr.mxu0 0.0
    %1785 = vmatpush2.msra.mxu0 0.0
    %1786 = vmatprep.subr.mxu0 0.0
    %1787 = vmatpush2.msra.mxu0 0.0
    %1788 = vmatprep.subr.mxu0 0.0
    %1789 = vmatpush2.msra.mxu0 0.0
    %1790 = vmatprep.subr.mxu0 0.0
    %1791 = vmatpush2.msra.mxu0 0.0
    %1792 = vmatprep.subr.mxu0 0.0
    %1793 = vmatpush2.msra.mxu0 0.0
    %1794 = vmatprep.subr.mxu0 0.0
    %1795 = vmatpush2.msra.mxu0 0.0
    %1796 = vmatprep.subr.mxu0 0.0
    %1797 = vmatpush2.msra.mxu0 0.0
    %1798 = vmatprep.subr.mxu0 0.0
    %1799 = vmatpush2.msra.mxu0 0.0
    %1800 = vmatprep.subr.mxu0 0.0
    %1801 = vmatpush2.msra.mxu0 0.0
    %1802 = vmatprep.subr.mxu0 0.0
    %1803 = vmatpush2.msra.mxu0 0.0
    %1804 = vmatprep.subr.mxu0 0.0
    %1805 = vmatpush2.msra.mxu0 0.0
    %1806 = vmatprep.mubr.f32.mxu0 0.0
    %1807 = vmatmul.mubr.f32.gmra.mxu0 %v1471
    %v1808 = vpop.f32.mrf.mxu0
    %v1809 = vadd.f32 %v1667, %v1808
    %v1810 = vpop.f32.mrf.mxu0
    %v1811 = vadd.f32 %v1669, %v1810
    %1812 = vdwg.mxu0
    %1813 = vmatprep.subr.mxu0 %v1535
    %1814 = vmatpush1.msra.mxu0 %v1534
    %1815 = vmatprep.subr.mxu0 %v1531
    %1816 = vmatpush1.msra.mxu0 %v1530
    %1817 = vmatprep.subr.mxu0 %v1527
    %1818 = vmatpush1.msra.mxu0 %v1526
    %1819 = vmatprep.subr.mxu0 %v1523
    %1820 = vmatpush1.msra.mxu0 %v1522
    %1821 = vmatprep.subr.mxu0 %v1519
    %1822 = vmatpush1.msra.mxu0 %v1518
    %1823 = vmatprep.subr.mxu0 %v1515
    %1824 = vmatpush1.msra.mxu0 %v1514
    %1825 = vmatprep.subr.mxu0 %v1511
    %1826 = vmatpush1.msra.mxu0 %v1510
    %1827 = vmatprep.subr.mxu0 %v1507
    %1828 = vmatpush1.msra.mxu0 %v1506
    %1829 = vmatprep.subr.mxu0 %v1503
    %1830 = vmatpush1.msra.mxu0 %v1502
    %1831 = vmatprep.subr.mxu0 %v1499
    %1832 = vmatpush1.msra.mxu0 %v1498
    %1833 = vmatprep.subr.mxu0 %v1495
    %1834 = vmatpush1.msra.mxu0 %v1494
    %1835 = vmatprep.subr.mxu0 %v1491
    %1836 = vmatpush1.msra.mxu0 %v1490
    %1837 = vmatprep.subr.mxu0 %v1487
    %1838 = vmatpush1.msra.mxu0 %v1486
    %1839 = vmatprep.subr.mxu0 %v1483
    %1840 = vmatpush1.msra.mxu0 %v1482
    %1841 = vmatprep.subr.mxu0 %v1479
    %1842 = vmatpush1.msra.mxu0 %v1478
    %1843 = vmatprep.subr.mxu0 %v1475
    %1844 = vmatpush1.msra.mxu0 %v1474
    %1845 = vmatprep.subr.mxu0 0.0
    %1846 = vmatpush2.msra.mxu0 0.0
    %1847 = vmatprep.subr.mxu0 0.0
    %1848 = vmatpush2.msra.mxu0 0.0
    %1849 = vmatprep.subr.mxu0 0.0
    %1850 = vmatpush2.msra.mxu0 0.0
    %1851 = vmatprep.subr.mxu0 0.0
    %1852 = vmatpush2.msra.mxu0 0.0
    %1853 = vmatprep.subr.mxu0 0.0
    %1854 = vmatpush2.msra.mxu0 0.0
    %1855 = vmatprep.subr.mxu0 0.0
    %1856 = vmatpush2.msra.mxu0 0.0
    %1857 = vmatprep.subr.mxu0 0.0
    %1858 = vmatpush2.msra.mxu0 0.0
    %1859 = vmatprep.subr.mxu0 0.0
    %1860 = vmatpush2.msra.mxu0 0.0
    %1861 = vmatprep.subr.mxu0 0.0
    %1862 = vmatpush2.msra.mxu0 0.0
    %1863 = vmatprep.subr.mxu0 0.0
    %1864 = vmatpush2.msra.mxu0 0.0
    %1865 = vmatprep.subr.mxu0 0.0
    %1866 = vmatpush2.msra.mxu0 0.0
    %1867 = vmatprep.subr.mxu0 0.0
    %1868 = vmatpush2.msra.mxu0 0.0
    %1869 = vmatprep.subr.mxu0 0.0
    %1870 = vmatpush2.msra.mxu0 0.0
    %1871 = vmatprep.subr.mxu0 0.0
    %1872 = vmatpush2.msra.mxu0 0.0
    %1873 = vmatprep.subr.mxu0 0.0
    %1874 = vmatpush2.msra.mxu0 0.0
    %1875 = vmatprep.subr.mxu0 0.0
    %1876 = vmatpush2.msra.mxu0 0.0
    %1877 = vmatprep.mubr.f32.mxu0 0.0
    %1878 = vmatmul.mubr.f32.gmra.mxu0 %v1471
    %v1879 = vpop.f32.mrf.mxu0
    %v1880 = vadd.f32 %v1738, %v1879
    %v1881 = vpop.f32.mrf.mxu0
    %v1882 = vadd.f32 %v1740, %v1881
    %1883 = vdwg.mxu0
    %v1884 = vld [vmem:[%s14] sm:$0xf]
    %v1886 = vlaneseq
    %v1887 = vshrl.u32 %v1886, 7
    %v1888 = vsub.s32 0, %v1887
    %v1889 = vrot.slane %v1884, %v1888
    %v1890 = vlaneseq
    %v1891 = vshrl.u32 %v1890, 7
    %v1892 = vsub.s32 1, %v1891
    %v1893 = vrot.slane %v1884, %v1892
    %v1894 = vlaneseq
    %v1895 = vshrl.u32 %v1894, 7
    %v1896 = vsub.s32 2, %v1895
    %v1897 = vrot.slane %v1884, %v1896
    %v1898 = vlaneseq
    %v1899 = vshrl.u32 %v1898, 7
    %v1900 = vsub.s32 3, %v1899
    %v1901 = vrot.slane %v1884, %v1900
    %v1906 = vadd.f32 %v1809, %v1889
    %v1907 = vadd.f32 %v1811, %v1893
    %v1908 = vadd.f32 %v1880, %v1897
    %v1909 = vadd.f32 %v1882, %v1901
    %v1910 = vxor.u32 %v1906, 2147483648
    %v1911 = vmul.f32 %v1910, 1.442695
    %v1912 = vpow.pop %v1911
    %v1913 = vadd.f32 %v1912, 1.0
    %v1914 = vrcp.pop %v1913
    %v1915 = vmul.f32 1.0, %v1914
    %v1916 = vxor.u32 %v1907, 2147483648
    %v1917 = vmul.f32 %v1916, 1.442695
    %v1918 = vpow.pop %v1917
    %v1919 = vadd.f32 %v1918, 1.0
    %v1920 = vrcp.pop %v1919
    %v1921 = vmul.f32 1.0, %v1920
    %v1922 = vtanh.pop %v1908
    %v1923 = vxor.u32 %v1909, 2147483648
    %v1924 = vmul.f32 %v1923, 1.442695
    %v1925 = vpow.pop %v1924
    %v1926 = vadd.f32 %v1925, 1.0
    %v1927 = vrcp.pop %v1926
    %v1928 = vmul.f32 1.0, %v1927
    %v1929 = vmul.f32 %v1921, 0.0
    %v1930 = vmul.f32 %v1915, %v1922
    %v1931 = vadd.f32 %v1929, %v1930
    %v1932 = vtanh.pop %v1931
    %v1933 = vmul.f32 %v1928, %v1932
    %v1934 = vld [vmem:[#allocation17] sm:$0xff]
    %v1935 = vld [vmem:[#allocation17 + $0x8] sm:$0xff]
    %v1936 = vld [vmem:[#allocation17 + $0x10] sm:$0xff]
    %v1937 = vld [vmem:[#allocation17 + $0x18] sm:$0xff]
    %v1938 = vld [vmem:[#allocation17 + $0x20] sm:$0xff]
    %v1939 = vld [vmem:[#allocation17 + $0x28] sm:$0xff]
    %v1940 = vld [vmem:[#allocation17 + $0x30] sm:$0xff]
    %v1941 = vld [vmem:[#allocation17 + $0x38] sm:$0xff]
    %v1942 = vld [vmem:[#allocation17 + $0x40] sm:$0xff]
    %v1943 = vld [vmem:[#allocation17 + $0x48] sm:$0xff]
    %v1944 = vld [vmem:[#allocation17 + $0x50] sm:$0xff]
    %v1945 = vld [vmem:[#allocation17 + $0x58] sm:$0xff]
    %v1946 = vld [vmem:[#allocation17 + $0x60] sm:$0xff]
    %v1947 = vld [vmem:[#allocation17 + $0x68] sm:$0xff]
    %v1948 = vld [vmem:[#allocation17 + $0x70] sm:$0xff]
    %v1949 = vld [vmem:[#allocation17 + $0x78] sm:$0xff]
    %v1950 = vld [vmem:[#allocation17 + $0x80] sm:$0xff]
    %v1951 = vld [vmem:[#allocation17 + $0x88] sm:$0xff]
    %v1952 = vld [vmem:[#allocation17 + $0x90] sm:$0xff]
    %v1953 = vld [vmem:[#allocation17 + $0x98] sm:$0xff]
    %v1954 = vld [vmem:[#allocation17 + $0xa0] sm:$0xff]
    %v1955 = vld [vmem:[#allocation17 + $0xa8] sm:$0xff]
    %v1956 = vld [vmem:[#allocation17 + $0xb0] sm:$0xff]
    %v1957 = vld [vmem:[#allocation17 + $0xb8] sm:$0xff]
    %v1958 = vld [vmem:[#allocation17 + $0xc0] sm:$0xff]
    %v1959 = vld [vmem:[#allocation17 + $0xc8] sm:$0xff]
    %v1960 = vld [vmem:[#allocation17 + $0xd0] sm:$0xff]
    %v1961 = vld [vmem:[#allocation17 + $0xd8] sm:$0xff]
    %v1962 = vld [vmem:[#allocation17 + $0xe0] sm:$0xff]
    %v1963 = vld [vmem:[#allocation17 + $0xe8] sm:$0xff]
    %v1964 = vld [vmem:[#allocation17 + $0xf0] sm:$0xff]
    %v1965 = vld [vmem:[#allocation17 + $0xf8] sm:$0xff]
    %1966 = vmatprep.subr.mxu0 %v1965
    %1967 = vmatpush1.msra.mxu0 %v1964
    %1968 = vmatprep.subr.mxu0 %v1963
    %1969 = vmatpush1.msra.mxu0 %v1962
    %1970 = vmatprep.subr.mxu0 %v1961
    %1971 = vmatpush1.msra.mxu0 %v1960
    %1972 = vmatprep.subr.mxu0 %v1959
    %1973 = vmatpush1.msra.mxu0 %v1958
    %1974 = vmatprep.subr.mxu0 %v1957
    %1975 = vmatpush1.msra.mxu0 %v1956
    %1976 = vmatprep.subr.mxu0 %v1955
    %1977 = vmatpush1.msra.mxu0 %v1954
    %1978 = vmatprep.subr.mxu0 %v1953
    %1979 = vmatpush1.msra.mxu0 %v1952
    %1980 = vmatprep.subr.mxu0 %v1951
    %1981 = vmatpush1.msra.mxu0 %v1950
    %1982 = vmatprep.subr.mxu0 %v1949
    %1983 = vmatpush1.msra.mxu0 %v1948
    %1984 = vmatprep.subr.mxu0 %v1947
    %1985 = vmatpush1.msra.mxu0 %v1946
    %1986 = vmatprep.subr.mxu0 %v1945
    %1987 = vmatpush1.msra.mxu0 %v1944
    %1988 = vmatprep.subr.mxu0 %v1943
    %1989 = vmatpush1.msra.mxu0 %v1942
    %1990 = vmatprep.subr.mxu0 %v1941
    %1991 = vmatpush1.msra.mxu0 %v1940
    %1992 = vmatprep.subr.mxu0 %v1939
    %1993 = vmatpush1.msra.mxu0 %v1938
    %1994 = vmatprep.subr.mxu0 %v1937
    %1995 = vmatpush1.msra.mxu0 %v1936
    %1996 = vmatprep.subr.mxu0 %v1935
    %1997 = vmatpush1.msra.mxu0 %v1934
    %1998 = vmatprep.subr.mxu0 0.0
    %1999 = vmatpush2.msra.mxu0 0.0
    %2000 = vmatprep.subr.mxu0 0.0
    %2001 = vmatpush2.msra.mxu0 0.0
    %2002 = vmatprep.subr.mxu0 0.0
    %2003 = vmatpush2.msra.mxu0 0.0
    %2004 = vmatprep.subr.mxu0 0.0
    %2005 = vmatpush2.msra.mxu0 0.0
    %2006 = vmatprep.subr.mxu0 0.0
    %2007 = vmatpush2.msra.mxu0 0.0
    %2008 = vmatprep.subr.mxu0 0.0
    %2009 = vmatpush2.msra.mxu0 0.0
    %2010 = vmatprep.subr.mxu0 0.0
    %2011 = vmatpush2.msra.mxu0 0.0
    %2012 = vmatprep.subr.mxu0 0.0
    %2013 = vmatpush2.msra.mxu0 0.0
    %2014 = vmatprep.subr.mxu0 0.0
    %2015 = vmatpush2.msra.mxu0 0.0
    %2016 = vmatprep.subr.mxu0 0.0
    %2017 = vmatpush2.msra.mxu0 0.0
    %2018 = vmatprep.subr.mxu0 0.0
    %2019 = vmatpush2.msra.mxu0 0.0
    %2020 = vmatprep.subr.mxu0 0.0
    %2021 = vmatpush2.msra.mxu0 0.0
    %2022 = vmatprep.subr.mxu0 0.0
    %2023 = vmatpush2.msra.mxu0 0.0
    %2024 = vmatprep.subr.mxu0 0.0
    %2025 = vmatpush2.msra.mxu0 0.0
    %2026 = vmatprep.subr.mxu0 0.0
    %2027 = vmatpush2.msra.mxu0 0.0
    %2028 = vmatprep.subr.mxu0 0.0
    %2029 = vmatpush2.msra.mxu0 0.0
    %2030 = vmatprep.mubr.f32.mxu0 0.0
    %2031 = vmatmul.mubr.f32.gmra.mxu0 %v1933
    %v2032 = vpop.f32.mrf.mxu0
    %v2033 = vadd.f32 0.0, %v2032
    %v2034 = vpop.f32.mrf.mxu0
    %v2035 = vadd.f32 0.0, %v2034
    %2036 = vdwg.mxu0
    %v2038 = vlaneseq
    %v2039 = vshrl.u32 %v2038, 7
    %v2040 = vsub.s32 0, %v2039
    %v2041 = vrot.slane %v194, %v2040
    %v2043 = vadd.f32 %v2033, %v2041
    %v2044 = vadd.f32 %v2035, %v356
    %vm2045 = vcmask 1041408
    %v2046 = vsel %vm2045, %v2043, -inf
    %2047 = vmax.xlane.f32.xlu0 %v2046
    %v2048 = vpop.xlane.xlu0 %2047
    %v2049 = vsub.f32 %v2043, %v2048
    %v2050 = vmul.f32 %v2049, 1.442695
    %v2051 = vpow.pop %v2050
    %v2052 = vsel %vm2045, %v2051, 0.0
    %2053 = vadd.xlane.f32.xlu0 %v2052
    %v2054 = vpop.xlane.xlu0 %2053
    %v2055 = vlog2.pop %v2054
    %v2056 = vmul.f32 %v2055, 0.6931472
    %v2057 = vsub.f32 %v2049, %v2056
    %vm2058 = vcmp.eq.f32.partialorder %v2043, %v2048
    %v2059 = vsel %vm2058, %v351, 128
    %v2060 = vsel %vm2045, %v2059, 2147483647
    %v2061 = vand.u32 %v2060, 65535
    %v2062 = vshra.s32 %v2060, 16
    %v2063 = vcvt.s32.f32 %v2061
    %v2064 = vcvt.s32.f32 %v2062
    %2065 = vmin.xlane.f32.xlu0 %v2064
    %v2066 = vpop.xlane.xlu0 %2065
    %vm2067 = vcmp.eq.f32.partialorder %v2064, %v2066
    %v2068 = vsel %vm2067, %v2063, inf
    %2069 = vmin.xlane.f32.xlu0 %v2068
    %v2070 = vpop.xlane.xlu0 %2069
    %v2071 = vcvt.f32.s32 %v2070
    %v2072 = vcvt.f32.s32 %v2066
    %v2073 = vshll.u32 %v2072, 16
    %v2074 = vadd.s32 %v2073, %v2071
    %vm2075 = vcmp.eq.s32.totalorder %v351, %v2074
    %v2076 = vsel %vm2075, 1, 0
    %v2077 = vcvt.s32.f32 %v2076
    %v2078 = vld [vmem:[%s17] sm:$0xff]
    %v2079 = vld [vmem:[%s17 + $0x8] sm:$0xff]
    %v2080 = vld [vmem:[%s17 + $0x10] sm:$0xff]
    %v2081 = vld [vmem:[%s17 + $0x18] sm:$0xff]
    %v2082 = vld [vmem:[%s17 + $0x20] sm:$0xff]
    %v2083 = vld [vmem:[%s17 + $0x28] sm:$0xff]
    %v2084 = vld [vmem:[%s17 + $0x30] sm:$0xff]
    %v2085 = vld [vmem:[%s17 + $0x38] sm:$0xff]
    %v2086 = vld [vmem:[%s17 + $0x40] sm:$0xff]
    %v2087 = vld [vmem:[%s17 + $0x48] sm:$0xff]
    %v2088 = vld [vmem:[%s17 + $0x50] sm:$0xff]
    %v2089 = vld [vmem:[%s17 + $0x58] sm:$0xff]
    %v2090 = vld [vmem:[%s17 + $0x60] sm:$0xff]
    %v2091 = vld [vmem:[%s17 + $0x68] sm:$0xff]
    %v2092 = vld [vmem:[%s17 + $0x70] sm:$0xff]
    %v2093 = vld [vmem:[%s17 + $0x78] sm:$0xff]
    %2094 = vmatprep.subr.mxu0 0.0
    %2095 = vmatpush1.msra.mxu0 %v2093
    %2096 = vmatprep.subr.mxu0 0.0
    %2097 = vmatpush1.msra.mxu0 %v2092
    %2098 = vmatprep.subr.mxu0 0.0
    %2099 = vmatpush1.msra.mxu0 %v2091
    %2100 = vmatprep.subr.mxu0 0.0
    %2101 = vmatpush1.msra.mxu0 %v2090
    %2102 = vmatprep.subr.mxu0 0.0
    %2103 = vmatpush1.msra.mxu0 %v2089
    %2104 = vmatprep.subr.mxu0 0.0
    %2105 = vmatpush1.msra.mxu0 %v2088
    %2106 = vmatprep.subr.mxu0 0.0
    %2107 = vmatpush1.msra.mxu0 %v2087
    %2108 = vmatprep.subr.mxu0 0.0
    %2109 = vmatpush1.msra.mxu0 %v2086
    %2110 = vmatprep.subr.mxu0 0.0
    %2111 = vmatpush1.msra.mxu0 %v2085
    %2112 = vmatprep.subr.mxu0 0.0
    %2113 = vmatpush1.msra.mxu0 %v2084
    %2114 = vmatprep.subr.mxu0 0.0
    %2115 = vmatpush1.msra.mxu0 %v2083
    %2116 = vmatprep.subr.mxu0 0.0
    %2117 = vmatpush1.msra.mxu0 %v2082
    %2118 = vmatprep.subr.mxu0 0.0
    %2119 = vmatpush1.msra.mxu0 %v2081
    %2120 = vmatprep.subr.mxu0 0.0
    %2121 = vmatpush1.msra.mxu0 %v2080
    %2122 = vmatprep.subr.mxu0 0.0
    %2123 = vmatpush1.msra.mxu0 %v2079
    %2124 = vmatprep.subr.mxu0 0.0
    %2125 = vmatpush1.msra.mxu0 %v2078
    %2126 = vmatprep.subr.mxu0 0.0
    %2127 = vmatpush2.msra.mxu0 0.0
    %2128 = vmatprep.subr.mxu0 0.0
    %2129 = vmatpush2.msra.mxu0 0.0
    %2130 = vmatprep.subr.mxu0 0.0
    %2131 = vmatpush2.msra.mxu0 0.0
    %2132 = vmatprep.subr.mxu0 0.0
    %2133 = vmatpush2.msra.mxu0 0.0
    %2134 = vmatprep.subr.mxu0 0.0
    %2135 = vmatpush2.msra.mxu0 0.0
    %2136 = vmatprep.subr.mxu0 0.0
    %2137 = vmatpush2.msra.mxu0 0.0
    %2138 = vmatprep.subr.mxu0 0.0
    %2139 = vmatpush2.msra.mxu0 0.0
    %2140 = vmatprep.subr.mxu0 0.0
    %2141 = vmatpush2.msra.mxu0 0.0
    %2142 = vmatprep.subr.mxu0 0.0
    %2143 = vmatpush2.msra.mxu0 0.0
    %2144 = vmatprep.subr.mxu0 0.0
    %2145 = vmatpush2.msra.mxu0 0.0
    %2146 = vmatprep.subr.mxu0 0.0
    %2147 = vmatpush2.msra.mxu0 0.0
    %2148 = vmatprep.subr.mxu0 0.0
    %2149 = vmatpush2.msra.mxu0 0.0
    %2150 = vmatprep.subr.mxu0 0.0
    %2151 = vmatpush2.msra.mxu0 0.0
    %2152 = vmatprep.subr.mxu0 0.0
    %2153 = vmatpush2.msra.mxu0 0.0
    %2154 = vmatprep.subr.mxu0 0.0
    %2155 = vmatpush2.msra.mxu0 0.0
    %2156 = vmatprep.subr.mxu0 0.0
    %2157 = vmatpush2.msra.mxu0 0.0
    %2158 = vmatprep.mubr.f32.mxu0 0.0
    %2159 = vmatmul.mubr.f32.gmra.mxu0 %v2077
    %v2160 = vpop.f32.mrf.mxu0
    %v2161 = vadd.f32 0.0, %v2160
    %v2162 = vpop.f32.mrf.mxu0
    %2163 = vdwg.mxu0
    %v2164 = vlaneseq
    %v2165 = vshrl.u32 %v2164, 7
    %v2166 = vsub.s32 0, %v2165
    %v2167 = vrot.slane %v2044, %v2166
    %v2168 = vadd.f32 %v273, %v2167
    %v2169 = vmax.f32 %v2168, 0.0
    %v2170 = vmul.f32 %v2169, %v364
    %2171 = vadd.xlane.f32.xlu0 %v2170
    %v2172 = vpop.xlane.xlu0 %2171
    %v2173 = vrot.slane %v2172, 4
    %v2174 = vmax.f32 %v2172, %v2173
    %v2175 = vrot.slane %v2174, 2
    %v2176 = vmax.f32 %v2174, %v2175
    %v2177 = vrot.slane %v2176, 1
    %v2178 = vmax.f32 %v2176, %v2177
    %v2179 = vsub.f32 %v2172, %v2178
    %v2180 = vmul.f32 %v2179, 1.442695
    %v2181 = vpow.pop %v2180
    %v2182 = vrot.slane %v2181, 4
    %v2183 = vadd.f32 %v2181, %v2182
    %v2184 = vrot.slane %v2183, 2
    %v2185 = vadd.f32 %v2183, %v2184
    %v2186 = vrot.slane %v2185, 1
    %v2187 = vadd.f32 %v2185, %v2186
    %v2188 = vlog2.pop %v2187
    %v2189 = vmul.f32 %v2188, 0.6931472
    %v2190 = vsub.f32 %v2179, %v2189
    %v2191 = vmul.f32 %v2190, %v195
    %v2192 = vsel %vm202, %v2191, 0.0
    %v2193 = vrot.slane %v2192, 4
    %v2194 = vadd.f32 %v2192, %v2193
    %v2195 = vrot.slane %v2194, 2
    %v2196 = vadd.f32 %v2194, %v2195
    %v2197 = vrot.slane %v2196, 1
    %v2198 = vadd.f32 %v2196, %v2197
    %v2199 = vlaneseq
    %v2200 = vshrl.u32 %v2199, 7
    %v2201 = vsub.s32 1, %v2200
    %v2202 = vrot.slane %v2044, %v2201
    %v2203 = vadd.f32 %v346, %v2202
    %v2204 = vmax.f32 %v2203, 0.0
    %v2205 = vmul.f32 %v2204, %v364
    %2206 = vadd.xlane.f32.xlu0 %v2205
    %v2207 = vpop.xlane.xlu0 %2206
    %v2208 = vrot.slane %v2207, 4
    %v2209 = vmax.f32 %v2207, %v2208
    %v2210 = vrot.slane %v2209, 2
    %v2211 = vmax.f32 %v2209, %v2210
    %v2212 = vrot.slane %v2211, 1
    %v2213 = vmax.f32 %v2211, %v2212
    %v2214 = vsub.f32 %v2207, %v2213
    %v2215 = vmul.f32 %v2214, 1.442695
    %v2216 = vpow.pop %v2215
    %v2217 = vrot.slane %v2216, 4
    %v2218 = vadd.f32 %v2216, %v2217
    %v2219 = vrot.slane %v2218, 2
    %v2220 = vadd.f32 %v2218, %v2219
    %v2221 = vrot.slane %v2220, 1
    %v2222 = vadd.f32 %v2220, %v2221
    %v2223 = vlog2.pop %v2222
    %v2224 = vmul.f32 %v2223, 0.6931472
    %v2225 = vsub.f32 %v2214, %v2224
    %v2226 = vmul.f32 %v2225, %v197
    %v2227 = vsel %vm202, %v2226, 0.0
    %v2228 = vrot.slane %v2227, 4
    %v2229 = vadd.f32 %v2227, %v2228
    %v2230 = vrot.slane %v2229, 2
    %v2231 = vadd.f32 %v2229, %v2230
    %v2232 = vrot.slane %v2231, 1
    %v2233 = vadd.f32 %v2231, %v2232
    %v2234 = vsel %vm426, %v2198, %v2233
    %v2236 = vsel %vm202, %v2234, 0
    %2238 = vmatprep.subr.mxu0 0.0
    %2239 = vmatpush1.msra.mxu0 0.0
    %2240 = vmatprep.subr.mxu0 0.0
    %2241 = vmatpush1.msra.mxu0 0.0
    %2242 = vmatprep.subr.mxu0 0.0
    %2243 = vmatpush1.msra.mxu0 0.0
    %2244 = vmatprep.subr.mxu0 0.0
    %2245 = vmatpush1.msra.mxu0 0.0
    %2246 = vmatprep.subr.mxu0 0.0
    %2247 = vmatpush1.msra.mxu0 0.0
    %2248 = vmatprep.subr.mxu0 0.0
    %2249 = vmatpush1.msra.mxu0 0.0
    %2250 = vmatprep.subr.mxu0 0.0
    %2251 = vmatpush1.msra.mxu0 0.0
    %2252 = vmatprep.subr.mxu0 0.0
    %2253 = vmatpush1.msra.mxu0 0.0
    %2254 = vmatprep.subr.mxu0 0.0
    %2255 = vmatpush1.msra.mxu0 0.0
    %2256 = vmatprep.subr.mxu0 0.0
    %2257 = vmatpush1.msra.mxu0 0.0
    %2258 = vmatprep.subr.mxu0 0.0
    %2259 = vmatpush1.msra.mxu0 0.0
    %2260 = vmatprep.subr.mxu0 0.0
    %2261 = vmatpush1.msra.mxu0 0.0
    %2262 = vmatprep.subr.mxu0 %v457
    %2263 = vmatpush1.msra.mxu0 %v456
    %2264 = vmatprep.subr.mxu0 %v453
    %2265 = vmatpush1.msra.mxu0 %v452
    %2266 = vmatprep.subr.mxu0 %v449
    %2267 = vmatpush1.msra.mxu0 %v448
    %2268 = vmatprep.subr.mxu0 %v445
    %2269 = vmatpush1.msra.mxu0 %v444
    %2270 = vmatprep.subr.mxu0 0.0
    %2271 = vmatpush2.msra.mxu0 0.0
    %2272 = vmatprep.subr.mxu0 0.0
    %2273 = vmatpush2.msra.mxu0 0.0
    %2274 = vmatprep.subr.mxu0 0.0
    %2275 = vmatpush2.msra.mxu0 0.0
    %2276 = vmatprep.subr.mxu0 0.0
    %2277 = vmatpush2.msra.mxu0 0.0
    %2278 = vmatprep.subr.mxu0 0.0
    %2279 = vmatpush2.msra.mxu0 0.0
    %2280 = vmatprep.subr.mxu0 0.0
    %2281 = vmatpush2.msra.mxu0 0.0
    %2282 = vmatprep.subr.mxu0 0.0
    %2283 = vmatpush2.msra.mxu0 0.0
    %2284 = vmatprep.subr.mxu0 0.0
    %2285 = vmatpush2.msra.mxu0 0.0
    %2286 = vmatprep.subr.mxu0 0.0
    %2287 = vmatpush2.msra.mxu0 0.0
    %2288 = vmatprep.subr.mxu0 0.0
    %2289 = vmatpush2.msra.mxu0 0.0
    %2290 = vmatprep.subr.mxu0 0.0
    %2291 = vmatpush2.msra.mxu0 0.0
    %2292 = vmatprep.subr.mxu0 0.0
    %2293 = vmatpush2.msra.mxu0 0.0
    %2294 = vmatprep.subr.mxu0 0.0
    %2295 = vmatpush2.msra.mxu0 0.0
    %2296 = vmatprep.subr.mxu0 0.0
    %2297 = vmatpush2.msra.mxu0 0.0
    %2298 = vmatprep.subr.mxu0 0.0
    %2299 = vmatpush2.msra.mxu0 0.0
    %2300 = vmatprep.subr.mxu0 0.0
    %2301 = vmatpush2.msra.mxu0 0.0
    %2302 = vmatprep.mubr.f32.mxu0 0.0
    %2303 = vmatmul.mubr.f32.gmra.mxu0 %v2236
    %v2304 = vpop.f32.mrf.mxu0
    %v2305 = vadd.f32 0.0, %v2304
    %v2306 = vpop.f32.mrf.mxu0
    %v2307 = vadd.f32 0.0, %v2306
    %2308 = vdwg.mxu0
    %2309 = vmatprep.subr.mxu0 0.0
    %2310 = vmatpush1.msra.mxu0 0.0
    %2311 = vmatprep.subr.mxu0 0.0
    %2312 = vmatpush1.msra.mxu0 0.0
    %2313 = vmatprep.subr.mxu0 0.0
    %2314 = vmatpush1.msra.mxu0 0.0
    %2315 = vmatprep.subr.mxu0 0.0
    %2316 = vmatpush1.msra.mxu0 0.0
    %2317 = vmatprep.subr.mxu0 0.0
    %2318 = vmatpush1.msra.mxu0 0.0
    %2319 = vmatprep.subr.mxu0 0.0
    %2320 = vmatpush1.msra.mxu0 0.0
    %2321 = vmatprep.subr.mxu0 0.0
    %2322 = vmatpush1.msra.mxu0 0.0
    %2323 = vmatprep.subr.mxu0 0.0
    %2324 = vmatpush1.msra.mxu0 0.0
    %2325 = vmatprep.subr.mxu0 0.0
    %2326 = vmatpush1.msra.mxu0 0.0
    %2327 = vmatprep.subr.mxu0 0.0
    %2328 = vmatpush1.msra.mxu0 0.0
    %2329 = vmatprep.subr.mxu0 0.0
    %2330 = vmatpush1.msra.mxu0 0.0
    %2331 = vmatprep.subr.mxu0 0.0
    %2332 = vmatpush1.msra.mxu0 0.0
    %2333 = vmatprep.subr.mxu0 %v459
    %2334 = vmatpush1.msra.mxu0 %v458
    %2335 = vmatprep.subr.mxu0 %v455
    %2336 = vmatpush1.msra.mxu0 %v454
    %2337 = vmatprep.subr.mxu0 %v451
    %2338 = vmatpush1.msra.mxu0 %v450
    %2339 = vmatprep.subr.mxu0 %v447
    %2340 = vmatpush1.msra.mxu0 %v446
    %2341 = vmatprep.subr.mxu0 0.0
    %2342 = vmatpush2.msra.mxu0 0.0
    %2343 = vmatprep.subr.mxu0 0.0
    %2344 = vmatpush2.msra.mxu0 0.0
    %2345 = vmatprep.subr.mxu0 0.0
    %2346 = vmatpush2.msra.mxu0 0.0
    %2347 = vmatprep.subr.mxu0 0.0
    %2348 = vmatpush2.msra.mxu0 0.0
    %2349 = vmatprep.subr.mxu0 0.0
    %2350 = vmatpush2.msra.mxu0 0.0
    %2351 = vmatprep.subr.mxu0 0.0
    %2352 = vmatpush2.msra.mxu0 0.0
    %2353 = vmatprep.subr.mxu0 0.0
    %2354 = vmatpush2.msra.mxu0 0.0
    %2355 = vmatprep.subr.mxu0 0.0
    %2356 = vmatpush2.msra.mxu0 0.0
    %2357 = vmatprep.subr.mxu0 0.0
    %2358 = vmatpush2.msra.mxu0 0.0
    %2359 = vmatprep.subr.mxu0 0.0
    %2360 = vmatpush2.msra.mxu0 0.0
    %2361 = vmatprep.subr.mxu0 0.0
    %2362 = vmatpush2.msra.mxu0 0.0
    %2363 = vmatprep.subr.mxu0 0.0
    %2364 = vmatpush2.msra.mxu0 0.0
    %2365 = vmatprep.subr.mxu0 0.0
    %2366 = vmatpush2.msra.mxu0 0.0
    %2367 = vmatprep.subr.mxu0 0.0
    %2368 = vmatpush2.msra.mxu0 0.0
    %2369 = vmatprep.subr.mxu0 0.0
    %2370 = vmatpush2.msra.mxu0 0.0
    %2371 = vmatprep.subr.mxu0 0.0
    %2372 = vmatpush2.msra.mxu0 0.0
    %2373 = vmatprep.mubr.f32.mxu0 0.0
    %2374 = vmatmul.mubr.f32.gmra.mxu0 %v2236
    %v2375 = vpop.f32.mrf.mxu0
    %v2376 = vadd.f32 0.0, %v2375
    %v2377 = vpop.f32.mrf.mxu0
    %v2378 = vadd.f32 0.0, %v2377
    %2379 = vdwg.mxu0
    %v2381 = vsel %vm202, %v2161, 0
    %2383 = vmatprep.subr.mxu0 0.0
    %2384 = vmatpush1.msra.mxu0 0.0
    %2385 = vmatprep.subr.mxu0 0.0
    %2386 = vmatpush1.msra.mxu0 0.0
    %2387 = vmatprep.subr.mxu0 0.0
    %2388 = vmatpush1.msra.mxu0 0.0
    %2389 = vmatprep.subr.mxu0 0.0
    %2390 = vmatpush1.msra.mxu0 0.0
    %2391 = vmatprep.subr.mxu0 0.0
    %2392 = vmatpush1.msra.mxu0 0.0
    %2393 = vmatprep.subr.mxu0 0.0
    %2394 = vmatpush1.msra.mxu0 0.0
    %2395 = vmatprep.subr.mxu0 0.0
    %2396 = vmatpush1.msra.mxu0 0.0
    %2397 = vmatprep.subr.mxu0 0.0
    %2398 = vmatpush1.msra.mxu0 0.0
    %2399 = vmatprep.subr.mxu0 0.0
    %2400 = vmatpush1.msra.mxu0 0.0
    %2401 = vmatprep.subr.mxu0 0.0
    %2402 = vmatpush1.msra.mxu0 0.0
    %2403 = vmatprep.subr.mxu0 0.0
    %2404 = vmatpush1.msra.mxu0 0.0
    %2405 = vmatprep.subr.mxu0 0.0
    %2406 = vmatpush1.msra.mxu0 0.0
    %2407 = vmatprep.subr.mxu0 %v441
    %2408 = vmatpush1.msra.mxu0 %v440
    %2409 = vmatprep.subr.mxu0 %v437
    %2410 = vmatpush1.msra.mxu0 %v436
    %2411 = vmatprep.subr.mxu0 %v433
    %2412 = vmatpush1.msra.mxu0 %v432
    %2413 = vmatprep.subr.mxu0 %v429
    %2414 = vmatpush1.msra.mxu0 %v428
    %2415 = vmatprep.subr.mxu0 0.0
    %2416 = vmatpush2.msra.mxu0 0.0
    %2417 = vmatprep.subr.mxu0 0.0
    %2418 = vmatpush2.msra.mxu0 0.0
    %2419 = vmatprep.subr.mxu0 0.0
    %2420 = vmatpush2.msra.mxu0 0.0
    %2421 = vmatprep.subr.mxu0 0.0
    %2422 = vmatpush2.msra.mxu0 0.0
    %2423 = vmatprep.subr.mxu0 0.0
    %2424 = vmatpush2.msra.mxu0 0.0
    %2425 = vmatprep.subr.mxu0 0.0
    %2426 = vmatpush2.msra.mxu0 0.0
    %2427 = vmatprep.subr.mxu0 0.0
    %2428 = vmatpush2.msra.mxu0 0.0
    %2429 = vmatprep.subr.mxu0 0.0
    %2430 = vmatpush2.msra.mxu0 0.0
    %2431 = vmatprep.subr.mxu0 0.0
    %2432 = vmatpush2.msra.mxu0 0.0
    %2433 = vmatprep.subr.mxu0 0.0
    %2434 = vmatpush2.msra.mxu0 0.0
    %2435 = vmatprep.subr.mxu0 0.0
    %2436 = vmatpush2.msra.mxu0 0.0
    %2437 = vmatprep.subr.mxu0 0.0
    %2438 = vmatpush2.msra.mxu0 0.0
    %2439 = vmatprep.subr.mxu0 0.0
    %2440 = vmatpush2.msra.mxu0 0.0
    %2441 = vmatprep.subr.mxu0 0.0
    %2442 = vmatpush2.msra.mxu0 0.0
    %2443 = vmatprep.subr.mxu0 0.0
    %2444 = vmatpush2.msra.mxu0 0.0
    %2445 = vmatprep.subr.mxu0 0.0
    %2446 = vmatpush2.msra.mxu0 0.0
    %2447 = vmatprep.mubr.f32.mxu0 0.0
    %2448 = vmatmul.mubr.f32.gmra.mxu0 %v2381
    %v2449 = vpop.f32.mrf.mxu0
    %v2450 = vadd.f32 %v2305, %v2449
    %v2451 = vpop.f32.mrf.mxu0
    %v2452 = vadd.f32 %v2307, %v2451
    %2453 = vdwg.mxu0
    %2454 = vmatprep.subr.mxu0 0.0
    %2455 = vmatpush1.msra.mxu0 0.0
    %2456 = vmatprep.subr.mxu0 0.0
    %2457 = vmatpush1.msra.mxu0 0.0
    %2458 = vmatprep.subr.mxu0 0.0
    %2459 = vmatpush1.msra.mxu0 0.0
    %2460 = vmatprep.subr.mxu0 0.0
    %2461 = vmatpush1.msra.mxu0 0.0
    %2462 = vmatprep.subr.mxu0 0.0
    %2463 = vmatpush1.msra.mxu0 0.0
    %2464 = vmatprep.subr.mxu0 0.0
    %2465 = vmatpush1.msra.mxu0 0.0
    %2466 = vmatprep.subr.mxu0 0.0
    %2467 = vmatpush1.msra.mxu0 0.0
    %2468 = vmatprep.subr.mxu0 0.0
    %2469 = vmatpush1.msra.mxu0 0.0
    %2470 = vmatprep.subr.mxu0 0.0
    %2471 = vmatpush1.msra.mxu0 0.0
    %2472 = vmatprep.subr.mxu0 0.0
    %2473 = vmatpush1.msra.mxu0 0.0
    %2474 = vmatprep.subr.mxu0 0.0
    %2475 = vmatpush1.msra.mxu0 0.0
    %2476 = vmatprep.subr.mxu0 0.0
    %2477 = vmatpush1.msra.mxu0 0.0
    %2478 = vmatprep.subr.mxu0 %v443
    %2479 = vmatpush1.msra.mxu0 %v442
    %2480 = vmatprep.subr.mxu0 %v439
    %2481 = vmatpush1.msra.mxu0 %v438
    %2482 = vmatprep.subr.mxu0 %v435
    %2483 = vmatpush1.msra.mxu0 %v434
    %2484 = vmatprep.subr.mxu0 %v431
    %2485 = vmatpush1.msra.mxu0 %v430
    %2486 = vmatprep.subr.mxu0 0.0
    %2487 = vmatpush2.msra.mxu0 0.0
    %2488 = vmatprep.subr.mxu0 0.0
    %2489 = vmatpush2.msra.mxu0 0.0
    %2490 = vmatprep.subr.mxu0 0.0
    %2491 = vmatpush2.msra.mxu0 0.0
    %2492 = vmatprep.subr.mxu0 0.0
    %2493 = vmatpush2.msra.mxu0 0.0
    %2494 = vmatprep.subr.mxu0 0.0
    %2495 = vmatpush2.msra.mxu0 0.0
    %2496 = vmatprep.subr.mxu0 0.0
    %2497 = vmatpush2.msra.mxu0 0.0
    %2498 = vmatprep.subr.mxu0 0.0
    %2499 = vmatpush2.msra.mxu0 0.0
    %2500 = vmatprep.subr.mxu0 0.0
    %2501 = vmatpush2.msra.mxu0 0.0
    %2502 = vmatprep.subr.mxu0 0.0
    %2503 = vmatpush2.msra.mxu0 0.0
    %2504 = vmatprep.subr.mxu0 0.0
    %2505 = vmatpush2.msra.mxu0 0.0
    %2506 = vmatprep.subr.mxu0 0.0
    %2507 = vmatpush2.msra.mxu0 0.0
    %2508 = vmatprep.subr.mxu0 0.0
    %2509 = vmatpush2.msra.mxu0 0.0
    %2510 = vmatprep.subr.mxu0 0.0
    %2511 = vmatpush2.msra.mxu0 0.0
    %2512 = vmatprep.subr.mxu0 0.0
    %2513 = vmatpush2.msra.mxu0 0.0
    %2514 = vmatprep.subr.mxu0 0.0
    %2515 = vmatpush2.msra.mxu0 0.0
    %2516 = vmatprep.subr.mxu0 0.0
    %2517 = vmatpush2.msra.mxu0 0.0
    %2518 = vmatprep.mubr.f32.mxu0 0.0
    %2519 = vmatmul.mubr.f32.gmra.mxu0 %v2381
    %v2520 = vpop.f32.mrf.mxu0
    %v2521 = vadd.f32 %v2376, %v2520
    %v2522 = vpop.f32.mrf.mxu0
    %v2523 = vadd.f32 %v2378, %v2522
    %2524 = vdwg.mxu0
    %2525 = vmatprep.subr.mxu0 %v811
    %2526 = vmatpush1.msra.mxu0 %v810
    %2527 = vmatprep.subr.mxu0 %v807
    %2528 = vmatpush1.msra.mxu0 %v806
    %2529 = vmatprep.subr.mxu0 %v803
    %2530 = vmatpush1.msra.mxu0 %v802
    %2531 = vmatprep.subr.mxu0 %v799
    %2532 = vmatpush1.msra.mxu0 %v798
    %2533 = vmatprep.subr.mxu0 %v795
    %2534 = vmatpush1.msra.mxu0 %v794
    %2535 = vmatprep.subr.mxu0 %v791
    %2536 = vmatpush1.msra.mxu0 %v790
    %2537 = vmatprep.subr.mxu0 %v787
    %2538 = vmatpush1.msra.mxu0 %v786
    %2539 = vmatprep.subr.mxu0 %v783
    %2540 = vmatpush1.msra.mxu0 %v782
    %2541 = vmatprep.subr.mxu0 %v779
    %2542 = vmatpush1.msra.mxu0 %v778
    %2543 = vmatprep.subr.mxu0 %v775
    %2544 = vmatpush1.msra.mxu0 %v774
    %2545 = vmatprep.subr.mxu0 %v771
    %2546 = vmatpush1.msra.mxu0 %v770
    %2547 = vmatprep.subr.mxu0 %v767
    %2548 = vmatpush1.msra.mxu0 %v766
    %2549 = vmatprep.subr.mxu0 %v763
    %2550 = vmatpush1.msra.mxu0 %v762
    %2551 = vmatprep.subr.mxu0 %v759
    %2552 = vmatpush1.msra.mxu0 %v758
    %2553 = vmatprep.subr.mxu0 %v755
    %2554 = vmatpush1.msra.mxu0 %v754
    %2555 = vmatprep.subr.mxu0 %v751
    %2556 = vmatpush1.msra.mxu0 %v750
    %2557 = vmatprep.subr.mxu0 0.0
    %2558 = vmatpush2.msra.mxu0 0.0
    %2559 = vmatprep.subr.mxu0 0.0
    %2560 = vmatpush2.msra.mxu0 0.0
    %2561 = vmatprep.subr.mxu0 0.0
    %2562 = vmatpush2.msra.mxu0 0.0
    %2563 = vmatprep.subr.mxu0 0.0
    %2564 = vmatpush2.msra.mxu0 0.0
    %2565 = vmatprep.subr.mxu0 0.0
    %2566 = vmatpush2.msra.mxu0 0.0
    %2567 = vmatprep.subr.mxu0 0.0
    %2568 = vmatpush2.msra.mxu0 0.0
    %2569 = vmatprep.subr.mxu0 0.0
    %2570 = vmatpush2.msra.mxu0 0.0
    %2571 = vmatprep.subr.mxu0 0.0
    %2572 = vmatpush2.msra.mxu0 0.0
    %2573 = vmatprep.subr.mxu0 0.0
    %2574 = vmatpush2.msra.mxu0 0.0
    %2575 = vmatprep.subr.mxu0 0.0
    %2576 = vmatpush2.msra.mxu0 0.0
    %2577 = vmatprep.subr.mxu0 0.0
    %2578 = vmatpush2.msra.mxu0 0.0
    %2579 = vmatprep.subr.mxu0 0.0
    %2580 = vmatpush2.msra.mxu0 0.0
    %2581 = vmatprep.subr.mxu0 0.0
    %2582 = vmatpush2.msra.mxu0 0.0
    %2583 = vmatprep.subr.mxu0 0.0
    %2584 = vmatpush2.msra.mxu0 0.0
    %2585 = vmatprep.subr.mxu0 0.0
    %2586 = vmatpush2.msra.mxu0 0.0
    %2587 = vmatprep.subr.mxu0 0.0
    %2588 = vmatpush2.msra.mxu0 0.0
    %2589 = vmatprep.mubr.f32.mxu0 0.0
    %2590 = vmatmul.mubr.f32.gmra.mxu0 %v1009
    %v2591 = vpop.f32.mrf.mxu0
    %v2592 = vadd.f32 0.0, %v2591
    %v2593 = vpop.f32.mrf.mxu0
    %v2594 = vadd.f32 0.0, %v2593
    %2595 = vdwg.mxu0
    %2596 = vmatprep.subr.mxu0 %v813
    %2597 = vmatpush1.msra.mxu0 %v812
    %2598 = vmatprep.subr.mxu0 %v809
    %2599 = vmatpush1.msra.mxu0 %v808
    %2600 = vmatprep.subr.mxu0 %v805
    %2601 = vmatpush1.msra.mxu0 %v804
    %2602 = vmatprep.subr.mxu0 %v801
    %2603 = vmatpush1.msra.mxu0 %v800
    %2604 = vmatprep.subr.mxu0 %v797
    %2605 = vmatpush1.msra.mxu0 %v796
    %2606 = vmatprep.subr.mxu0 %v793
    %2607 = vmatpush1.msra.mxu0 %v792
    %2608 = vmatprep.subr.mxu0 %v789
    %2609 = vmatpush1.msra.mxu0 %v788
    %2610 = vmatprep.subr.mxu0 %v785
    %2611 = vmatpush1.msra.mxu0 %v784
    %2612 = vmatprep.subr.mxu0 %v781
    %2613 = vmatpush1.msra.mxu0 %v780
    %2614 = vmatprep.subr.mxu0 %v777
    %2615 = vmatpush1.msra.mxu0 %v776
    %2616 = vmatprep.subr.mxu0 %v773
    %2617 = vmatpush1.msra.mxu0 %v772
    %2618 = vmatprep.subr.mxu0 %v769
    %2619 = vmatpush1.msra.mxu0 %v768
    %2620 = vmatprep.subr.mxu0 %v765
    %2621 = vmatpush1.msra.mxu0 %v764
    %2622 = vmatprep.subr.mxu0 %v761
    %2623 = vmatpush1.msra.mxu0 %v760
    %2624 = vmatprep.subr.mxu0 %v757
    %2625 = vmatpush1.msra.mxu0 %v756
    %2626 = vmatprep.subr.mxu0 %v753
    %2627 = vmatpush1.msra.mxu0 %v752
    %2628 = vmatprep.subr.mxu0 0.0
    %2629 = vmatpush2.msra.mxu0 0.0
    %2630 = vmatprep.subr.mxu0 0.0
    %2631 = vmatpush2.msra.mxu0 0.0
    %2632 = vmatprep.subr.mxu0 0.0
    %2633 = vmatpush2.msra.mxu0 0.0
    %2634 = vmatprep.subr.mxu0 0.0
    %2635 = vmatpush2.msra.mxu0 0.0
    %2636 = vmatprep.subr.mxu0 0.0
    %2637 = vmatpush2.msra.mxu0 0.0
    %2638 = vmatprep.subr.mxu0 0.0
    %2639 = vmatpush2.msra.mxu0 0.0
    %2640 = vmatprep.subr.mxu0 0.0
    %2641 = vmatpush2.msra.mxu0 0.0
    %2642 = vmatprep.subr.mxu0 0.0
    %2643 = vmatpush2.msra.mxu0 0.0
    %2644 = vmatprep.subr.mxu0 0.0
    %2645 = vmatpush2.msra.mxu0 0.0
    %2646 = vmatprep.subr.mxu0 0.0
    %2647 = vmatpush2.msra.mxu0 0.0
    %2648 = vmatprep.subr.mxu0 0.0
    %2649 = vmatpush2.msra.mxu0 0.0
    %2650 = vmatprep.subr.mxu0 0.0
    %2651 = vmatpush2.msra.mxu0 0.0
    %2652 = vmatprep.subr.mxu0 0.0
    %2653 = vmatpush2.msra.mxu0 0.0
    %2654 = vmatprep.subr.mxu0 0.0
    %2655 = vmatpush2.msra.mxu0 0.0
    %2656 = vmatprep.subr.mxu0 0.0
    %2657 = vmatpush2.msra.mxu0 0.0
    %2658 = vmatprep.subr.mxu0 0.0
    %2659 = vmatpush2.msra.mxu0 0.0
    %2660 = vmatprep.mubr.f32.mxu0 0.0
    %2661 = vmatmul.mubr.f32.gmra.mxu0 %v1009
    %v2662 = vpop.f32.mrf.mxu0
    %v2663 = vadd.f32 0.0, %v2662
    %v2664 = vpop.f32.mrf.mxu0
    %v2665 = vadd.f32 0.0, %v2664
    %2666 = vdwg.mxu0
    %v2667 = vadd.f32 %v2450, %v2592
    %v2668 = vadd.f32 %v2452, %v2594
    %v2669 = vadd.f32 %v2521, %v2663
    %v2670 = vadd.f32 %v2523, %v2665
    %v2671 = vadd.f32 %v2667, %v965
    %v2672 = vadd.f32 %v2668, %v969
    %v2673 = vadd.f32 %v2669, %v973
    %v2674 = vadd.f32 %v2670, %v977
    %v2675 = vxor.u32 %v2671, 2147483648
    %v2676 = vmul.f32 %v2675, 1.442695
    %v2677 = vpow.pop %v2676
    %v2678 = vadd.f32 %v2677, 1.0
    %v2679 = vrcp.pop %v2678
    %v2680 = vmul.f32 1.0, %v2679
    %v2681 = vxor.u32 %v2672, 2147483648
    %v2682 = vmul.f32 %v2681, 1.442695
    %v2683 = vpow.pop %v2682
    %v2684 = vadd.f32 %v2683, 1.0
    %v2685 = vrcp.pop %v2684
    %v2686 = vmul.f32 1.0, %v2685
    %v2687 = vtanh.pop %v2673
    %v2688 = vxor.u32 %v2674, 2147483648
    %v2689 = vmul.f32 %v2688, 1.442695
    %v2690 = vpow.pop %v2689
    %v2691 = vadd.f32 %v2690, 1.0
    %v2692 = vrcp.pop %v2691
    %v2693 = vmul.f32 1.0, %v2692
    %v2694 = vmul.f32 %v2686, %v1007
    %v2695 = vmul.f32 %v2680, %v2687
    %v2696 = vadd.f32 %v2694, %v2695
    %v2697 = vtanh.pop %v2696
    %v2698 = vmul.f32 %v2693, %v2697
    %2699 = vmatprep.subr.mxu0 %v1135
    %2700 = vmatpush1.msra.mxu0 %v1134
    %2701 = vmatprep.subr.mxu0 %v1131
    %2702 = vmatpush1.msra.mxu0 %v1130
    %2703 = vmatprep.subr.mxu0 %v1127
    %2704 = vmatpush1.msra.mxu0 %v1126
    %2705 = vmatprep.subr.mxu0 %v1123
    %2706 = vmatpush1.msra.mxu0 %v1122
    %2707 = vmatprep.subr.mxu0 %v1119
    %2708 = vmatpush1.msra.mxu0 %v1118
    %2709 = vmatprep.subr.mxu0 %v1115
    %2710 = vmatpush1.msra.mxu0 %v1114
    %2711 = vmatprep.subr.mxu0 %v1111
    %2712 = vmatpush1.msra.mxu0 %v1110
    %2713 = vmatprep.subr.mxu0 %v1107
    %2714 = vmatpush1.msra.mxu0 %v1106
    %2715 = vmatprep.subr.mxu0 %v1103
    %2716 = vmatpush1.msra.mxu0 %v1102
    %2717 = vmatprep.subr.mxu0 %v1099
    %2718 = vmatpush1.msra.mxu0 %v1098
    %2719 = vmatprep.subr.mxu0 %v1095
    %2720 = vmatpush1.msra.mxu0 %v1094
    %2721 = vmatprep.subr.mxu0 %v1091
    %2722 = vmatpush1.msra.mxu0 %v1090
    %2723 = vmatprep.subr.mxu0 %v1087
    %2724 = vmatpush1.msra.mxu0 %v1086
    %2725 = vmatprep.subr.mxu0 %v1083
    %2726 = vmatpush1.msra.mxu0 %v1082
    %2727 = vmatprep.subr.mxu0 %v1079
    %2728 = vmatpush1.msra.mxu0 %v1078
    %2729 = vmatprep.subr.mxu0 %v1075
    %2730 = vmatpush1.msra.mxu0 %v1074
    %2731 = vmatprep.subr.mxu0 0.0
    %2732 = vmatpush2.msra.mxu0 0.0
    %2733 = vmatprep.subr.mxu0 0.0
    %2734 = vmatpush2.msra.mxu0 0.0
    %2735 = vmatprep.subr.mxu0 0.0
    %2736 = vmatpush2.msra.mxu0 0.0
    %2737 = vmatprep.subr.mxu0 0.0
    %2738 = vmatpush2.msra.mxu0 0.0
    %2739 = vmatprep.subr.mxu0 0.0
    %2740 = vmatpush2.msra.mxu0 0.0
    %2741 = vmatprep.subr.mxu0 0.0
    %2742 = vmatpush2.msra.mxu0 0.0
    %2743 = vmatprep.subr.mxu0 0.0
    %2744 = vmatpush2.msra.mxu0 0.0
    %2745 = vmatprep.subr.mxu0 0.0
    %2746 = vmatpush2.msra.mxu0 0.0
    %2747 = vmatprep.subr.mxu0 0.0
    %2748 = vmatpush2.msra.mxu0 0.0
    %2749 = vmatprep.subr.mxu0 0.0
    %2750 = vmatpush2.msra.mxu0 0.0
    %2751 = vmatprep.subr.mxu0 0.0
    %2752 = vmatpush2.msra.mxu0 0.0
    %2753 = vmatprep.subr.mxu0 0.0
    %2754 = vmatpush2.msra.mxu0 0.0
    %2755 = vmatprep.subr.mxu0 0.0
    %2756 = vmatpush2.msra.mxu0 0.0
    %2757 = vmatprep.subr.mxu0 0.0
    %2758 = vmatpush2.msra.mxu0 0.0
    %2759 = vmatprep.subr.mxu0 0.0
    %2760 = vmatpush2.msra.mxu0 0.0
    %2761 = vmatprep.subr.mxu0 0.0
    %2762 = vmatpush2.msra.mxu0 0.0
    %2763 = vmatprep.mubr.f32.mxu0 0.0
    %2764 = vmatmul.mubr.f32.gmra.mxu0 %v1471
    %v2765 = vpop.f32.mrf.mxu0
    %v2766 = vadd.f32 0.0, %v2765
    %v2767 = vpop.f32.mrf.mxu0
    %v2768 = vadd.f32 0.0, %v2767
    %2769 = vdwg.mxu0
    %2770 = vmatprep.subr.mxu0 %v1137
    %2771 = vmatpush1.msra.mxu0 %v1136
    %2772 = vmatprep.subr.mxu0 %v1133
    %2773 = vmatpush1.msra.mxu0 %v1132
    %2774 = vmatprep.subr.mxu0 %v1129
    %2775 = vmatpush1.msra.mxu0 %v1128
    %2776 = vmatprep.subr.mxu0 %v1125
    %2777 = vmatpush1.msra.mxu0 %v1124
    %2778 = vmatprep.subr.mxu0 %v1121
    %2779 = vmatpush1.msra.mxu0 %v1120
    %2780 = vmatprep.subr.mxu0 %v1117
    %2781 = vmatpush1.msra.mxu0 %v1116
    %2782 = vmatprep.subr.mxu0 %v1113
    %2783 = vmatpush1.msra.mxu0 %v1112
    %2784 = vmatprep.subr.mxu0 %v1109
    %2785 = vmatpush1.msra.mxu0 %v1108
    %2786 = vmatprep.subr.mxu0 %v1105
    %2787 = vmatpush1.msra.mxu0 %v1104
    %2788 = vmatprep.subr.mxu0 %v1101
    %2789 = vmatpush1.msra.mxu0 %v1100
    %2790 = vmatprep.subr.mxu0 %v1097
    %2791 = vmatpush1.msra.mxu0 %v1096
    %2792 = vmatprep.subr.mxu0 %v1093
    %2793 = vmatpush1.msra.mxu0 %v1092
    %2794 = vmatprep.subr.mxu0 %v1089
    %2795 = vmatpush1.msra.mxu0 %v1088
    %2796 = vmatprep.subr.mxu0 %v1085
    %2797 = vmatpush1.msra.mxu0 %v1084
    %2798 = vmatprep.subr.mxu0 %v1081
    %2799 = vmatpush1.msra.mxu0 %v1080
    %2800 = vmatprep.subr.mxu0 %v1077
    %2801 = vmatpush1.msra.mxu0 %v1076
    %2802 = vmatprep.subr.mxu0 0.0
    %2803 = vmatpush2.msra.mxu0 0.0
    %2804 = vmatprep.subr.mxu0 0.0
    %2805 = vmatpush2.msra.mxu0 0.0
    %2806 = vmatprep.subr.mxu0 0.0
    %2807 = vmatpush2.msra.mxu0 0.0
    %2808 = vmatprep.subr.mxu0 0.0
    %2809 = vmatpush2.msra.mxu0 0.0
    %2810 = vmatprep.subr.mxu0 0.0
    %2811 = vmatpush2.msra.mxu0 0.0
    %2812 = vmatprep.subr.mxu0 0.0
    %2813 = vmatpush2.msra.mxu0 0.0
    %2814 = vmatprep.subr.mxu0 0.0
    %2815 = vmatpush2.msra.mxu0 0.0
    %2816 = vmatprep.subr.mxu0 0.0
    %2817 = vmatpush2.msra.mxu0 0.0
    %2818 = vmatprep.subr.mxu0 0.0
    %2819 = vmatpush2.msra.mxu0 0.0
    %2820 = vmatprep.subr.mxu0 0.0
    %2821 = vmatpush2.msra.mxu0 0.0
    %2822 = vmatprep.subr.mxu0 0.0
    %2823 = vmatpush2.msra.mxu0 0.0
    %2824 = vmatprep.subr.mxu0 0.0
    %2825 = vmatpush2.msra.mxu0 0.0
    %2826 = vmatprep.subr.mxu0 0.0
    %2827 = vmatpush2.msra.mxu0 0.0
    %2828 = vmatprep.subr.mxu0 0.0
    %2829 = vmatpush2.msra.mxu0 0.0
    %2830 = vmatprep.subr.mxu0 0.0
    %2831 = vmatpush2.msra.mxu0 0.0
    %2832 = vmatprep.subr.mxu0 0.0
    %2833 = vmatpush2.msra.mxu0 0.0
    %2834 = vmatprep.mubr.f32.mxu0 0.0
    %2835 = vmatmul.mubr.f32.gmra.mxu0 %v1471
    %v2836 = vpop.f32.mrf.mxu0
    %v2837 = vadd.f32 0.0, %v2836
    %v2838 = vpop.f32.mrf.mxu0
    %v2839 = vadd.f32 0.0, %v2838
    %2840 = vdwg.mxu0
    %2841 = vmatprep.subr.mxu0 %v1071
    %2842 = vmatpush1.msra.mxu0 %v1070
    %2843 = vmatprep.subr.mxu0 %v1067
    %2844 = vmatpush1.msra.mxu0 %v1066
    %2845 = vmatprep.subr.mxu0 %v1063
    %2846 = vmatpush1.msra.mxu0 %v1062
    %2847 = vmatprep.subr.mxu0 %v1059
    %2848 = vmatpush1.msra.mxu0 %v1058
    %2849 = vmatprep.subr.mxu0 %v1055
    %2850 = vmatpush1.msra.mxu0 %v1054
    %2851 = vmatprep.subr.mxu0 %v1051
    %2852 = vmatpush1.msra.mxu0 %v1050
    %2853 = vmatprep.subr.mxu0 %v1047
    %2854 = vmatpush1.msra.mxu0 %v1046
    %2855 = vmatprep.subr.mxu0 %v1043
    %2856 = vmatpush1.msra.mxu0 %v1042
    %2857 = vmatprep.subr.mxu0 %v1039
    %2858 = vmatpush1.msra.mxu0 %v1038
    %2859 = vmatprep.subr.mxu0 %v1035
    %2860 = vmatpush1.msra.mxu0 %v1034
    %2861 = vmatprep.subr.mxu0 %v1031
    %2862 = vmatpush1.msra.mxu0 %v1030
    %2863 = vmatprep.subr.mxu0 %v1027
    %2864 = vmatpush1.msra.mxu0 %v1026
    %2865 = vmatprep.subr.mxu0 %v1023
    %2866 = vmatpush1.msra.mxu0 %v1022
    %2867 = vmatprep.subr.mxu0 %v1019
    %2868 = vmatpush1.msra.mxu0 %v1018
    %2869 = vmatprep.subr.mxu0 %v1015
    %2870 = vmatpush1.msra.mxu0 %v1014
    %2871 = vmatprep.subr.mxu0 %v1011
    %2872 = vmatpush1.msra.mxu0 %v1010
    %2873 = vmatprep.subr.mxu0 0.0
    %2874 = vmatpush2.msra.mxu0 0.0
    %2875 = vmatprep.subr.mxu0 0.0
    %2876 = vmatpush2.msra.mxu0 0.0
    %2877 = vmatprep.subr.mxu0 0.0
    %2878 = vmatpush2.msra.mxu0 0.0
    %2879 = vmatprep.subr.mxu0 0.0
    %2880 = vmatpush2.msra.mxu0 0.0
    %2881 = vmatprep.subr.mxu0 0.0
    %2882 = vmatpush2.msra.mxu0 0.0
    %2883 = vmatprep.subr.mxu0 0.0
    %2884 = vmatpush2.msra.mxu0 0.0
    %2885 = vmatprep.subr.mxu0 0.0
    %2886 = vmatpush2.msra.mxu0 0.0
    %2887 = vmatprep.subr.mxu0 0.0
    %2888 = vmatpush2.msra.mxu0 0.0
    %2889 = vmatprep.subr.mxu0 0.0
    %2890 = vmatpush2.msra.mxu0 0.0
    %2891 = vmatprep.subr.mxu0 0.0
    %2892 = vmatpush2.msra.mxu0 0.0
    %2893 = vmatprep.subr.mxu0 0.0
    %2894 = vmatpush2.msra.mxu0 0.0
    %2895 = vmatprep.subr.mxu0 0.0
    %2896 = vmatpush2.msra.mxu0 0.0
    %2897 = vmatprep.subr.mxu0 0.0
    %2898 = vmatpush2.msra.mxu0 0.0
    %2899 = vmatprep.subr.mxu0 0.0
    %2900 = vmatpush2.msra.mxu0 0.0
    %2901 = vmatprep.subr.mxu0 0.0
    %2902 = vmatpush2.msra.mxu0 0.0
    %2903 = vmatprep.subr.mxu0 0.0
    %2904 = vmatpush2.msra.mxu0 0.0
    %2905 = vmatprep.mubr.f32.mxu0 0.0
    %2906 = vmatmul.mubr.f32.gmra.mxu0 %v2698
    %v2907 = vpop.f32.mrf.mxu0
    %v2908 = vadd.f32 %v2766, %v2907
    %v2909 = vpop.f32.mrf.mxu0
    %v2910 = vadd.f32 %v2768, %v2909
    %2911 = vdwg.mxu0
    %2912 = vmatprep.subr.mxu0 %v1073
    %2913 = vmatpush1.msra.mxu0 %v1072
    %2914 = vmatprep.subr.mxu0 %v1069
    %2915 = vmatpush1.msra.mxu0 %v1068
    %2916 = vmatprep.subr.mxu0 %v1065
    %2917 = vmatpush1.msra.mxu0 %v1064
    %2918 = vmatprep.subr.mxu0 %v1061
    %2919 = vmatpush1.msra.mxu0 %v1060
    %2920 = vmatprep.subr.mxu0 %v1057
    %2921 = vmatpush1.msra.mxu0 %v1056
    %2922 = vmatprep.subr.mxu0 %v1053
    %2923 = vmatpush1.msra.mxu0 %v1052
    %2924 = vmatprep.subr.mxu0 %v1049
    %2925 = vmatpush1.msra.mxu0 %v1048
    %2926 = vmatprep.subr.mxu0 %v1045
    %2927 = vmatpush1.msra.mxu0 %v1044
    %2928 = vmatprep.subr.mxu0 %v1041
    %2929 = vmatpush1.msra.mxu0 %v1040
    %2930 = vmatprep.subr.mxu0 %v1037
    %2931 = vmatpush1.msra.mxu0 %v1036
    %2932 = vmatprep.subr.mxu0 %v1033
    %2933 = vmatpush1.msra.mxu0 %v1032
    %2934 = vmatprep.subr.mxu0 %v1029
    %2935 = vmatpush1.msra.mxu0 %v1028
    %2936 = vmatprep.subr.mxu0 %v1025
    %2937 = vmatpush1.msra.mxu0 %v1024
    %2938 = vmatprep.subr.mxu0 %v1021
    %2939 = vmatpush1.msra.mxu0 %v1020
    %2940 = vmatprep.subr.mxu0 %v1017
    %2941 = vmatpush1.msra.mxu0 %v1016
    %2942 = vmatprep.subr.mxu0 %v1013
    %2943 = vmatpush1.msra.mxu0 %v1012
    %2944 = vmatprep.subr.mxu0 0.0
    %2945 = vmatpush2.msra.mxu0 0.0
    %2946 = vmatprep.subr.mxu0 0.0
    %2947 = vmatpush2.msra.mxu0 0.0
    %2948 = vmatprep.subr.mxu0 0.0
    %2949 = vmatpush2.msra.mxu0 0.0
    %2950 = vmatprep.subr.mxu0 0.0
    %2951 = vmatpush2.msra.mxu0 0.0
    %2952 = vmatprep.subr.mxu0 0.0
    %2953 = vmatpush2.msra.mxu0 0.0
    %2954 = vmatprep.subr.mxu0 0.0
    %2955 = vmatpush2.msra.mxu0 0.0
    %2956 = vmatprep.subr.mxu0 0.0
    %2957 = vmatpush2.msra.mxu0 0.0
    %2958 = vmatprep.subr.mxu0 0.0
    %2959 = vmatpush2.msra.mxu0 0.0
    %2960 = vmatprep.subr.mxu0 0.0
    %2961 = vmatpush2.msra.mxu0 0.0
    %2962 = vmatprep.subr.mxu0 0.0
    %2963 = vmatpush2.msra.mxu0 0.0
    %2964 = vmatprep.subr.mxu0 0.0
    %2965 = vmatpush2.msra.mxu0 0.0
    %2966 = vmatprep.subr.mxu0 0.0
    %2967 = vmatpush2.msra.mxu0 0.0
    %2968 = vmatprep.subr.mxu0 0.0
    %2969 = vmatpush2.msra.mxu0 0.0
    %2970 = vmatprep.subr.mxu0 0.0
    %2971 = vmatpush2.msra.mxu0 0.0
    %2972 = vmatprep.subr.mxu0 0.0
    %2973 = vmatpush2.msra.mxu0 0.0
    %2974 = vmatprep.subr.mxu0 0.0
    %2975 = vmatpush2.msra.mxu0 0.0
    %2976 = vmatprep.mubr.f32.mxu0 0.0
    %2977 = vmatmul.mubr.f32.gmra.mxu0 %v2698
    %v2978 = vpop.f32.mrf.mxu0
    %v2979 = vadd.f32 %v2837, %v2978
    %v2980 = vpop.f32.mrf.mxu0
    %v2981 = vadd.f32 %v2839, %v2980
    %2982 = vdwg.mxu0
    %v2983 = vadd.f32 %v2908, %v1427
    %v2984 = vadd.f32 %v2910, %v1431
    %v2985 = vadd.f32 %v2979, %v1435
    %v2986 = vadd.f32 %v2981, %v1439
    %v2987 = vxor.u32 %v2983, 2147483648
    %v2988 = vmul.f32 %v2987, 1.442695
    %v2989 = vpow.pop %v2988
    %v2990 = vadd.f32 %v2989, 1.0
    %v2991 = vrcp.pop %v2990
    %v2992 = vmul.f32 1.0, %v2991
    %v2993 = vxor.u32 %v2984, 2147483648
    %v2994 = vmul.f32 %v2993, 1.442695
    %v2995 = vpow.pop %v2994
    %v2996 = vadd.f32 %v2995, 1.0
    %v2997 = vrcp.pop %v2996
    %v2998 = vmul.f32 1.0, %v2997
    %v2999 = vtanh.pop %v2985
    %v3000 = vxor.u32 %v2986, 2147483648
    %v3001 = vmul.f32 %v3000, 1.442695
    %v3002 = vpow.pop %v3001
    %v3003 = vadd.f32 %v3002, 1.0
    %v3004 = vrcp.pop %v3003
    %v3005 = vmul.f32 1.0, %v3004
    %v3006 = vmul.f32 %v2998, %v1469
    %v3007 = vmul.f32 %v2992, %v2999
    %v3008 = vadd.f32 %v3006, %v3007
    %v3009 = vtanh.pop %v3008
    %v3010 = vmul.f32 %v3005, %v3009
    %3011 = vmatprep.subr.mxu0 %v1597
    %3012 = vmatpush1.msra.mxu0 %v1596
    %3013 = vmatprep.subr.mxu0 %v1593
    %3014 = vmatpush1.msra.mxu0 %v1592
    %3015 = vmatprep.subr.mxu0 %v1589
    %3016 = vmatpush1.msra.mxu0 %v1588
    %3017 = vmatprep.subr.mxu0 %v1585
    %3018 = vmatpush1.msra.mxu0 %v1584
    %3019 = vmatprep.subr.mxu0 %v1581
    %3020 = vmatpush1.msra.mxu0 %v1580
    %3021 = vmatprep.subr.mxu0 %v1577
    %3022 = vmatpush1.msra.mxu0 %v1576
    %3023 = vmatprep.subr.mxu0 %v1573
    %3024 = vmatpush1.msra.mxu0 %v1572
    %3025 = vmatprep.subr.mxu0 %v1569
    %3026 = vmatpush1.msra.mxu0 %v1568
    %3027 = vmatprep.subr.mxu0 %v1565
    %3028 = vmatpush1.msra.mxu0 %v1564
    %3029 = vmatprep.subr.mxu0 %v1561
    %3030 = vmatpush1.msra.mxu0 %v1560
    %3031 = vmatprep.subr.mxu0 %v1557
    %3032 = vmatpush1.msra.mxu0 %v1556
    %3033 = vmatprep.subr.mxu0 %v1553
    %3034 = vmatpush1.msra.mxu0 %v1552
    %3035 = vmatprep.subr.mxu0 %v1549
    %3036 = vmatpush1.msra.mxu0 %v1548
    %3037 = vmatprep.subr.mxu0 %v1545
    %3038 = vmatpush1.msra.mxu0 %v1544
    %3039 = vmatprep.subr.mxu0 %v1541
    %3040 = vmatpush1.msra.mxu0 %v1540
    %3041 = vmatprep.subr.mxu0 %v1537
    %3042 = vmatpush1.msra.mxu0 %v1536
    %3043 = vmatprep.subr.mxu0 0.0
    %3044 = vmatpush2.msra.mxu0 0.0
    %3045 = vmatprep.subr.mxu0 0.0
    %3046 = vmatpush2.msra.mxu0 0.0
    %3047 = vmatprep.subr.mxu0 0.0
    %3048 = vmatpush2.msra.mxu0 0.0
    %3049 = vmatprep.subr.mxu0 0.0
    %3050 = vmatpush2.msra.mxu0 0.0
    %3051 = vmatprep.subr.mxu0 0.0
    %3052 = vmatpush2.msra.mxu0 0.0
    %3053 = vmatprep.subr.mxu0 0.0
    %3054 = vmatpush2.msra.mxu0 0.0
    %3055 = vmatprep.subr.mxu0 0.0
    %3056 = vmatpush2.msra.mxu0 0.0
    %3057 = vmatprep.subr.mxu0 0.0
    %3058 = vmatpush2.msra.mxu0 0.0
    %3059 = vmatprep.subr.mxu0 0.0
    %3060 = vmatpush2.msra.mxu0 0.0
    %3061 = vmatprep.subr.mxu0 0.0
    %3062 = vmatpush2.msra.mxu0 0.0
    %3063 = vmatprep.subr.mxu0 0.0
    %3064 = vmatpush2.msra.mxu0 0.0
    %3065 = vmatprep.subr.mxu0 0.0
    %3066 = vmatpush2.msra.mxu0 0.0
    %3067 = vmatprep.subr.mxu0 0.0
    %3068 = vmatpush2.msra.mxu0 0.0
    %3069 = vmatprep.subr.mxu0 0.0
    %3070 = vmatpush2.msra.mxu0 0.0
    %3071 = vmatprep.subr.mxu0 0.0
    %3072 = vmatpush2.msra.mxu0 0.0
    %3073 = vmatprep.subr.mxu0 0.0
    %3074 = vmatpush2.msra.mxu0 0.0
    %3075 = vmatprep.mubr.f32.mxu0 0.0
    %3076 = vmatmul.mubr.f32.gmra.mxu0 %v1933
    %v3077 = vpop.f32.mrf.mxu0
    %v3078 = vadd.f32 0.0, %v3077
    %v3079 = vpop.f32.mrf.mxu0
    %v3080 = vadd.f32 0.0, %v3079
    %3081 = vdwg.mxu0
    %3082 = vmatprep.subr.mxu0 %v1599
    %3083 = vmatpush1.msra.mxu0 %v1598
    %3084 = vmatprep.subr.mxu0 %v1595
    %3085 = vmatpush1.msra.mxu0 %v1594
    %3086 = vmatprep.subr.mxu0 %v1591
    %3087 = vmatpush1.msra.mxu0 %v1590
    %3088 = vmatprep.subr.mxu0 %v1587
    %3089 = vmatpush1.msra.mxu0 %v1586
    %3090 = vmatprep.subr.mxu0 %v1583
    %3091 = vmatpush1.msra.mxu0 %v1582
    %3092 = vmatprep.subr.mxu0 %v1579
    %3093 = vmatpush1.msra.mxu0 %v1578
    %3094 = vmatprep.subr.mxu0 %v1575
    %3095 = vmatpush1.msra.mxu0 %v1574
    %3096 = vmatprep.subr.mxu0 %v1571
    %3097 = vmatpush1.msra.mxu0 %v1570
    %3098 = vmatprep.subr.mxu0 %v1567
    %3099 = vmatpush1.msra.mxu0 %v1566
    %3100 = vmatprep.subr.mxu0 %v1563
    %3101 = vmatpush1.msra.mxu0 %v1562
    %3102 = vmatprep.subr.mxu0 %v1559
    %3103 = vmatpush1.msra.mxu0 %v1558
    %3104 = vmatprep.subr.mxu0 %v1555
    %3105 = vmatpush1.msra.mxu0 %v1554
    %3106 = vmatprep.subr.mxu0 %v1551
    %3107 = vmatpush1.msra.mxu0 %v1550
    %3108 = vmatprep.subr.mxu0 %v1547
    %3109 = vmatpush1.msra.mxu0 %v1546
    %3110 = vmatprep.subr.mxu0 %v1543
    %3111 = vmatpush1.msra.mxu0 %v1542
    %3112 = vmatprep.subr.mxu0 %v1539
    %3113 = vmatpush1.msra.mxu0 %v1538
    %3114 = vmatprep.subr.mxu0 0.0
    %3115 = vmatpush2.msra.mxu0 0.0
    %3116 = vmatprep.subr.mxu0 0.0
    %3117 = vmatpush2.msra.mxu0 0.0
    %3118 = vmatprep.subr.mxu0 0.0
    %3119 = vmatpush2.msra.mxu0 0.0
    %3120 = vmatprep.subr.mxu0 0.0
    %3121 = vmatpush2.msra.mxu0 0.0
    %3122 = vmatprep.subr.mxu0 0.0
    %3123 = vmatpush2.msra.mxu0 0.0
    %3124 = vmatprep.subr.mxu0 0.0
    %3125 = vmatpush2.msra.mxu0 0.0
    %3126 = vmatprep.subr.mxu0 0.0
    %3127 = vmatpush2.msra.mxu0 0.0
    %3128 = vmatprep.subr.mxu0 0.0
    %3129 = vmatpush2.msra.mxu0 0.0
    %3130 = vmatprep.subr.mxu0 0.0
    %3131 = vmatpush2.msra.mxu0 0.0
    %3132 = vmatprep.subr.mxu0 0.0
    %3133 = vmatpush2.msra.mxu0 0.0
    %3134 = vmatprep.subr.mxu0 0.0
    %3135 = vmatpush2.msra.mxu0 0.0
    %3136 = vmatprep.subr.mxu0 0.0
    %3137 = vmatpush2.msra.mxu0 0.0
    %3138 = vmatprep.subr.mxu0 0.0
    %3139 = vmatpush2.msra.mxu0 0.0
    %3140 = vmatprep.subr.mxu0 0.0
    %3141 = vmatpush2.msra.mxu0 0.0
    %3142 = vmatprep.subr.mxu0 0.0
    %3143 = vmatpush2.msra.mxu0 0.0
    %3144 = vmatprep.subr.mxu0 0.0
    %3145 = vmatpush2.msra.mxu0 0.0
    %3146 = vmatprep.mubr.f32.mxu0 0.0
    %3147 = vmatmul.mubr.f32.gmra.mxu0 %v1933
    %v3148 = vpop.f32.mrf.mxu0
    %v3149 = vadd.f32 0.0, %v3148
    %v3150 = vpop.f32.mrf.mxu0
    %v3151 = vadd.f32 0.0, %v3150
    %3152 = vdwg.mxu0
    %3153 = vmatprep.subr.mxu0 %v1533
    %3154 = vmatpush1.msra.mxu0 %v1532
    %3155 = vmatprep.subr.mxu0 %v1529
    %3156 = vmatpush1.msra.mxu0 %v1528
    %3157 = vmatprep.subr.mxu0 %v1525
    %3158 = vmatpush1.msra.mxu0 %v1524
    %3159 = vmatprep.subr.mxu0 %v1521
    %3160 = vmatpush1.msra.mxu0 %v1520
    %3161 = vmatprep.subr.mxu0 %v1517
    %3162 = vmatpush1.msra.mxu0 %v1516
    %3163 = vmatprep.subr.mxu0 %v1513
    %3164 = vmatpush1.msra.mxu0 %v1512
    %3165 = vmatprep.subr.mxu0 %v1509
    %3166 = vmatpush1.msra.mxu0 %v1508
    %3167 = vmatprep.subr.mxu0 %v1505
    %3168 = vmatpush1.msra.mxu0 %v1504
    %3169 = vmatprep.subr.mxu0 %v1501
    %3170 = vmatpush1.msra.mxu0 %v1500
    %3171 = vmatprep.subr.mxu0 %v1497
    %3172 = vmatpush1.msra.mxu0 %v1496
    %3173 = vmatprep.subr.mxu0 %v1493
    %3174 = vmatpush1.msra.mxu0 %v1492
    %3175 = vmatprep.subr.mxu0 %v1489
    %3176 = vmatpush1.msra.mxu0 %v1488
    %3177 = vmatprep.subr.mxu0 %v1485
    %3178 = vmatpush1.msra.mxu0 %v1484
    %3179 = vmatprep.subr.mxu0 %v1481
    %3180 = vmatpush1.msra.mxu0 %v1480
    %3181 = vmatprep.subr.mxu0 %v1477
    %3182 = vmatpush1.msra.mxu0 %v1476
    %3183 = vmatprep.subr.mxu0 %v1473
    %3184 = vmatpush1.msra.mxu0 %v1472
    %3185 = vmatprep.subr.mxu0 0.0
    %3186 = vmatpush2.msra.mxu0 0.0
    %3187 = vmatprep.subr.mxu0 0.0
    %3188 = vmatpush2.msra.mxu0 0.0
    %3189 = vmatprep.subr.mxu0 0.0
    %3190 = vmatpush2.msra.mxu0 0.0
    %3191 = vmatprep.subr.mxu0 0.0
    %3192 = vmatpush2.msra.mxu0 0.0
    %3193 = vmatprep.subr.mxu0 0.0
    %3194 = vmatpush2.msra.mxu0 0.0
    %3195 = vmatprep.subr.mxu0 0.0
    %3196 = vmatpush2.msra.mxu0 0.0
    %3197 = vmatprep.subr.mxu0 0.0
    %3198 = vmatpush2.msra.mxu0 0.0
    %3199 = vmatprep.subr.mxu0 0.0
    %3200 = vmatpush2.msra.mxu0 0.0
    %3201 = vmatprep.subr.mxu0 0.0
    %3202 = vmatpush2.msra.mxu0 0.0
    %3203 = vmatprep.subr.mxu0 0.0
    %3204 = vmatpush2.msra.mxu0 0.0
    %3205 = vmatprep.subr.mxu0 0.0
    %3206 = vmatpush2.msra.mxu0 0.0
    %3207 = vmatprep.subr.mxu0 0.0
    %3208 = vmatpush2.msra.mxu0 0.0
    %3209 = vmatprep.subr.mxu0 0.0
    %3210 = vmatpush2.msra.mxu0 0.0
    %3211 = vmatprep.subr.mxu0 0.0
    %3212 = vmatpush2.msra.mxu0 0.0
    %3213 = vmatprep.subr.mxu0 0.0
    %3214 = vmatpush2.msra.mxu0 0.0
    %3215 = vmatprep.subr.mxu0 0.0
    %3216 = vmatpush2.msra.mxu0 0.0
    %3217 = vmatprep.mubr.f32.mxu0 0.0
    %3218 = vmatmul.mubr.f32.gmra.mxu0 %v3010
    %v3219 = vpop.f32.mrf.mxu0
    %v3220 = vadd.f32 %v3078, %v3219
    %v3221 = vpop.f32.mrf.mxu0
    %v3222 = vadd.f32 %v3080, %v3221
    %3223 = vdwg.mxu0
    %3224 = vmatprep.subr.mxu0 %v1535
    %3225 = vmatpush1.msra.mxu0 %v1534
    %3226 = vmatprep.subr.mxu0 %v1531
    %3227 = vmatpush1.msra.mxu0 %v1530
    %3228 = vmatprep.subr.mxu0 %v1527
    %3229 = vmatpush1.msra.mxu0 %v1526
    %3230 = vmatprep.subr.mxu0 %v1523
    %3231 = vmatpush1.msra.mxu0 %v1522
    %3232 = vmatprep.subr.mxu0 %v1519
    %3233 = vmatpush1.msra.mxu0 %v1518
    %3234 = vmatprep.subr.mxu0 %v1515
    %3235 = vmatpush1.msra.mxu0 %v1514
    %3236 = vmatprep.subr.mxu0 %v1511
    %3237 = vmatpush1.msra.mxu0 %v1510
    %3238 = vmatprep.subr.mxu0 %v1507
    %3239 = vmatpush1.msra.mxu0 %v1506
    %3240 = vmatprep.subr.mxu0 %v1503
    %3241 = vmatpush1.msra.mxu0 %v1502
    %3242 = vmatprep.subr.mxu0 %v1499
    %3243 = vmatpush1.msra.mxu0 %v1498
    %3244 = vmatprep.subr.mxu0 %v1495
    %3245 = vmatpush1.msra.mxu0 %v1494
    %3246 = vmatprep.subr.mxu0 %v1491
    %3247 = vmatpush1.msra.mxu0 %v1490
    %3248 = vmatprep.subr.mxu0 %v1487
    %3249 = vmatpush1.msra.mxu0 %v1486
    %3250 = vmatprep.subr.mxu0 %v1483
    %3251 = vmatpush1.msra.mxu0 %v1482
    %3252 = vmatprep.subr.mxu0 %v1479
    %3253 = vmatpush1.msra.mxu0 %v1478
    %3254 = vmatprep.subr.mxu0 %v1475
    %3255 = vmatpush1.msra.mxu0 %v1474
    %3256 = vmatprep.subr.mxu0 0.0
    %3257 = vmatpush2.msra.mxu0 0.0
    %3258 = vmatprep.subr.mxu0 0.0
    %3259 = vmatpush2.msra.mxu0 0.0
    %3260 = vmatprep.subr.mxu0 0.0
    %3261 = vmatpush2.msra.mxu0 0.0
    %3262 = vmatprep.subr.mxu0 0.0
    %3263 = vmatpush2.msra.mxu0 0.0
    %3264 = vmatprep.subr.mxu0 0.0
    %3265 = vmatpush2.msra.mxu0 0.0
    %3266 = vmatprep.subr.mxu0 0.0
    %3267 = vmatpush2.msra.mxu0 0.0
    %3268 = vmatprep.subr.mxu0 0.0
    %3269 = vmatpush2.msra.mxu0 0.0
    %3270 = vmatprep.subr.mxu0 0.0
    %3271 = vmatpush2.msra.mxu0 0.0
    %3272 = vmatprep.subr.mxu0 0.0
    %3273 = vmatpush2.msra.mxu0 0.0
    %3274 = vmatprep.subr.mxu0 0.0
    %3275 = vmatpush2.msra.mxu0 0.0
    %3276 = vmatprep.subr.mxu0 0.0
    %3277 = vmatpush2.msra.mxu0 0.0
    %3278 = vmatprep.subr.mxu0 0.0
    %3279 = vmatpush2.msra.mxu0 0.0
    %3280 = vmatprep.subr.mxu0 0.0
    %3281 = vmatpush2.msra.mxu0 0.0
    %3282 = vmatprep.subr.mxu0 0.0
    %3283 = vmatpush2.msra.mxu0 0.0
    %3284 = vmatprep.subr.mxu0 0.0
    %3285 = vmatpush2.msra.mxu0 0.0
    %3286 = vmatprep.subr.mxu0 0.0
    %3287 = vmatpush2.msra.mxu0 0.0
    %3288 = vmatprep.mubr.f32.mxu0 0.0
    %3289 = vmatmul.mubr.f32.gmra.mxu0 %v3010
    %v3290 = vpop.f32.mrf.mxu0
    %v3291 = vadd.f32 %v3149, %v3290
    %v3292 = vpop.f32.mrf.mxu0
    %v3293 = vadd.f32 %v3151, %v3292
    %3294 = vdwg.mxu0
    %v3295 = vadd.f32 %v3220, %v1889
    %v3296 = vadd.f32 %v3222, %v1893
    %v3297 = vadd.f32 %v3291, %v1897
    %v3298 = vadd.f32 %v3293, %v1901
    %v3299 = vxor.u32 %v3295, 2147483648
    %v3300 = vmul.f32 %v3299, 1.442695
    %v3301 = vpow.pop %v3300
    %v3302 = vadd.f32 %v3301, 1.0
    %v3303 = vrcp.pop %v3302
    %v3304 = vmul.f32 1.0, %v3303
    %v3305 = vxor.u32 %v3296, 2147483648
    %v3306 = vmul.f32 %v3305, 1.442695
    %v3307 = vpow.pop %v3306
    %v3308 = vadd.f32 %v3307, 1.0
    %v3309 = vrcp.pop %v3308
    %v3310 = vmul.f32 1.0, %v3309
    %v3311 = vtanh.pop %v3297
    %v3312 = vxor.u32 %v3298, 2147483648
    %v3313 = vmul.f32 %v3312, 1.442695
    %v3314 = vpow.pop %v3313
    %v3315 = vadd.f32 %v3314, 1.0
    %v3316 = vrcp.pop %v3315
    %v3317 = vmul.f32 1.0, %v3316
    %v3318 = vmul.f32 %v3310, %v1931
    %v3319 = vmul.f32 %v3304, %v3311
    %v3320 = vadd.f32 %v3318, %v3319
    %v3321 = vtanh.pop %v3320
    %v3322 = vmul.f32 %v3317, %v3321
    %3323 = vmatprep.subr.mxu0 %v1965
    %3324 = vmatpush1.msra.mxu0 %v1964
    %3325 = vmatprep.subr.mxu0 %v1963
    %3326 = vmatpush1.msra.mxu0 %v1962
    %3327 = vmatprep.subr.mxu0 %v1961
    %3328 = vmatpush1.msra.mxu0 %v1960
    %3329 = vmatprep.subr.mxu0 %v1959
    %3330 = vmatpush1.msra.mxu0 %v1958
    %3331 = vmatprep.subr.mxu0 %v1957
    %3332 = vmatpush1.msra.mxu0 %v1956
    %3333 = vmatprep.subr.mxu0 %v1955
    %3334 = vmatpush1.msra.mxu0 %v1954
    %3335 = vmatprep.subr.mxu0 %v1953
    %3336 = vmatpush1.msra.mxu0 %v1952
    %3337 = vmatprep.subr.mxu0 %v1951
    %3338 = vmatpush1.msra.mxu0 %v1950
    %3339 = vmatprep.subr.mxu0 %v1949
    %3340 = vmatpush1.msra.mxu0 %v1948
    %3341 = vmatprep.subr.mxu0 %v1947
    %3342 = vmatpush1.msra.mxu0 %v1946
    %3343 = vmatprep.subr.mxu0 %v1945
    %3344 = vmatpush1.msra.mxu0 %v1944
    %3345 = vmatprep.subr.mxu0 %v1943
    %3346 = vmatpush1.msra.mxu0 %v1942
    %3347 = vmatprep.subr.mxu0 %v1941
    %3348 = vmatpush1.msra.mxu0 %v1940
    %3349 = vmatprep.subr.mxu0 %v1939
    %3350 = vmatpush1.msra.mxu0 %v1938
    %3351 = vmatprep.subr.mxu0 %v1937
    %3352 = vmatpush1.msra.mxu0 %v1936
    %3353 = vmatprep.subr.mxu0 %v1935
    %3354 = vmatpush1.msra.mxu0 %v1934
    %3355 = vmatprep.subr.mxu0 0.0
    %3356 = vmatpush2.msra.mxu0 0.0
    %3357 = vmatprep.subr.mxu0 0.0
    %3358 = vmatpush2.msra.mxu0 0.0
    %3359 = vmatprep.subr.mxu0 0.0
    %3360 = vmatpush2.msra.mxu0 0.0
    %3361 = vmatprep.subr.mxu0 0.0
    %3362 = vmatpush2.msra.mxu0 0.0
    %3363 = vmatprep.subr.mxu0 0.0
    %3364 = vmatpush2.msra.mxu0 0.0
    %3365 = vmatprep.subr.mxu0 0.0
    %3366 = vmatpush2.msra.mxu0 0.0
    %3367 = vmatprep.subr.mxu0 0.0
    %3368 = vmatpush2.msra.mxu0 0.0
    %3369 = vmatprep.subr.mxu0 0.0
    %3370 = vmatpush2.msra.mxu0 0.0
    %3371 = vmatprep.subr.mxu0 0.0
    %3372 = vmatpush2.msra.mxu0 0.0
    %3373 = vmatprep.subr.mxu0 0.0
    %3374 = vmatpush2.msra.mxu0 0.0
    %3375 = vmatprep.subr.mxu0 0.0
    %3376 = vmatpush2.msra.mxu0 0.0
    %3377 = vmatprep.subr.mxu0 0.0
    %3378 = vmatpush2.msra.mxu0 0.0
    %3379 = vmatprep.subr.mxu0 0.0
    %3380 = vmatpush2.msra.mxu0 0.0
    %3381 = vmatprep.subr.mxu0 0.0
    %3382 = vmatpush2.msra.mxu0 0.0
    %3383 = vmatprep.subr.mxu0 0.0
    %3384 = vmatpush2.msra.mxu0 0.0
    %3385 = vmatprep.subr.mxu0 0.0
    %3386 = vmatpush2.msra.mxu0 0.0
    %3387 = vmatprep.mubr.f32.mxu0 0.0
    %3388 = vmatmul.mubr.f32.gmra.mxu0 %v3322
    %v3389 = vpop.f32.mrf.mxu0
    %v3390 = vadd.f32 0.0, %v3389
    %v3391 = vpop.f32.mrf.mxu0
    %v3392 = vadd.f32 0.0, %v3391
    %3393 = vdwg.mxu0
    %v3394 = vadd.f32 %v3390, %v2041
    %v3395 = vadd.f32 %v3392, %v356
    %v3396 = vsel %vm2045, %v3394, -inf
    %3397 = vmax.xlane.f32.xlu0 %v3396
    %v3398 = vpop.xlane.xlu0 %3397
    %v3399 = vsub.f32 %v3394, %v3398
    %v3400 = vmul.f32 %v3399, 1.442695
    %v3401 = vpow.pop %v3400
    %v3402 = vsel %vm2045, %v3401, 0.0
    %3403 = vadd.xlane.f32.xlu0 %v3402
    %v3404 = vpop.xlane.xlu0 %3403
    %v3405 = vlog2.pop %v3404
    %v3406 = vmul.f32 %v3405, 0.6931472
    %v3407 = vsub.f32 %v3399, %v3406
    %vm3408 = vcmp.eq.f32.partialorder %v3394, %v3398
    %v3409 = vsel %vm3408, %v351, 128
    %v3410 = vsel %vm2045, %v3409, 2147483647
    %v3411 = vand.u32 %v3410, 65535
    %v3412 = vshra.s32 %v3410, 16
    %v3413 = vcvt.s32.f32 %v3411
    %v3414 = vcvt.s32.f32 %v3412
    %3415 = vmin.xlane.f32.xlu0 %v3414
    %v3416 = vpop.xlane.xlu0 %3415
    %vm3417 = vcmp.eq.f32.partialorder %v3414, %v3416
    %v3418 = vsel %vm3417, %v3413, inf
    %3419 = vmin.xlane.f32.xlu0 %v3418
    %v3420 = vpop.xlane.xlu0 %3419
    %v3421 = vcvt.f32.s32 %v3420
    %v3422 = vcvt.f32.s32 %v3416
    %v3423 = vshll.u32 %v3422, 16
    %v3424 = vadd.s32 %v3423, %v3421
    %vm3425 = vcmp.eq.s32.totalorder %v351, %v3424
    %v3426 = vsel %vm3425, 1, 0
    %v3427 = vcvt.s32.f32 %v3426
    %3428 = vmatprep.subr.mxu0 0.0
    %3429 = vmatpush1.msra.mxu0 %v2093
    %3430 = vmatprep.subr.mxu0 0.0
    %3431 = vmatpush1.msra.mxu0 %v2092
    %3432 = vmatprep.subr.mxu0 0.0
    %3433 = vmatpush1.msra.mxu0 %v2091
    %3434 = vmatprep.subr.mxu0 0.0
    %3435 = vmatpush1.msra.mxu0 %v2090
    %3436 = vmatprep.subr.mxu0 0.0
    %3437 = vmatpush1.msra.mxu0 %v2089
    %3438 = vmatprep.subr.mxu0 0.0
    %3439 = vmatpush1.msra.mxu0 %v2088
    %3440 = vmatprep.subr.mxu0 0.0
    %3441 = vmatpush1.msra.mxu0 %v2087
    %3442 = vmatprep.subr.mxu0 0.0
    %3443 = vmatpush1.msra.mxu0 %v2086
    %3444 = vmatprep.subr.mxu0 0.0
    %3445 = vmatpush1.msra.mxu0 %v2085
    %3446 = vmatprep.subr.mxu0 0.0
    %3447 = vmatpush1.msra.mxu0 %v2084
    %3448 = vmatprep.subr.mxu0 0.0
    %3449 = vmatpush1.msra.mxu0 %v2083
    %3450 = vmatprep.subr.mxu0 0.0
    %3451 = vmatpush1.msra.mxu0 %v2082
    %3452 = vmatprep.subr.mxu0 0.0
    %3453 = vmatpush1.msra.mxu0 %v2081
    %3454 = vmatprep.subr.mxu0 0.0
    %3455 = vmatpush1.msra.mxu0 %v2080
    %3456 = vmatprep.subr.mxu0 0.0
    %3457 = vmatpush1.msra.mxu0 %v2079
    %3458 = vmatprep.subr.mxu0 0.0
    %3459 = vmatpush1.msra.mxu0 %v2078
    %3460 = vmatprep.subr.mxu0 0.0
    %3461 = vmatpush2.msra.mxu0 0.0
    %3462 = vmatprep.subr.mxu0 0.0
    %3463 = vmatpush2.msra.mxu0 0.0
    %3464 = vmatprep.subr.mxu0 0.0
    %3465 = vmatpush2.msra.mxu0 0.0
    %3466 = vmatprep.subr.mxu0 0.0
    %3467 = vmatpush2.msra.mxu0 0.0
    %3468 = vmatprep.subr.mxu0 0.0
    %3469 = vmatpush2.msra.mxu0 0.0
    %3470 = vmatprep.subr.mxu0 0.0
    %3471 = vmatpush2.msra.mxu0 0.0
    %3472 = vmatprep.subr.mxu0 0.0
    %3473 = vmatpush2.msra.mxu0 0.0
    %3474 = vmatprep.subr.mxu0 0.0
    %3475 = vmatpush2.msra.mxu0 0.0
    %3476 = vmatprep.subr.mxu0 0.0
    %3477 = vmatpush2.msra.mxu0 0.0
    %3478 = vmatprep.subr.mxu0 0.0
    %3479 = vmatpush2.msra.mxu0 0.0
    %3480 = vmatprep.subr.mxu0 0.0
    %3481 = vmatpush2.msra.mxu0 0.0
    %3482 = vmatprep.subr.mxu0 0.0
    %3483 = vmatpush2.msra.mxu0 0.0
    %3484 = vmatprep.subr.mxu0 0.0
    %3485 = vmatpush2.msra.mxu0 0.0
    %3486 = vmatprep.subr.mxu0 0.0
    %3487 = vmatpush2.msra.mxu0 0.0
    %3488 = vmatprep.subr.mxu0 0.0
    %3489 = vmatpush2.msra.mxu0 0.0
    %3490 = vmatprep.subr.mxu0 0.0
    %3491 = vmatpush2.msra.mxu0 0.0
    %3492 = vmatprep.mubr.f32.mxu0 0.0
    %3493 = vmatmul.mubr.f32.gmra.mxu0 %v3427
    %v3494 = vpop.f32.mrf.mxu0
    %v3495 = vadd.f32 0.0, %v3494
    %v3496 = vpop.f32.mrf.mxu0
    %3497 = vdwg.mxu0
    %v3498 = vlaneseq
    %v3499 = vshrl.u32 %v3498, 7
    %v3500 = vsub.s32 0, %v3499
    %v3501 = vrot.slane %v3395, %v3500
    %v3502 = vadd.f32 %v273, %v3501
    %v3503 = vmax.f32 %v3502, 0.0
    %v3504 = vmul.f32 %v3503, %v364
    %3505 = vadd.xlane.f32.xlu0 %v3504
    %v3506 = vpop.xlane.xlu0 %3505
    %v3507 = vrot.slane %v3506, 4
    %v3508 = vmax.f32 %v3506, %v3507
    %v3509 = vrot.slane %v3508, 2
    %v3510 = vmax.f32 %v3508, %v3509
    %v3511 = vrot.slane %v3510, 1
    %v3512 = vmax.f32 %v3510, %v3511
    %v3513 = vsub.f32 %v3506, %v3512
    %v3514 = vmul.f32 %v3513, 1.442695
    %v3515 = vpow.pop %v3514
    %v3516 = vrot.slane %v3515, 4
    %v3517 = vadd.f32 %v3515, %v3516
    %v3518 = vrot.slane %v3517, 2
    %v3519 = vadd.f32 %v3517, %v3518
    %v3520 = vrot.slane %v3519, 1
    %v3521 = vadd.f32 %v3519, %v3520
    %v3522 = vlog2.pop %v3521
    %v3523 = vmul.f32 %v3522, 0.6931472
    %v3524 = vsub.f32 %v3513, %v3523
    %v3525 = vmul.f32 %v3524, %v195
    %v3526 = vsel %vm202, %v3525, 0.0
    %v3527 = vrot.slane %v3526, 4
    %v3528 = vadd.f32 %v3526, %v3527
    %v3529 = vrot.slane %v3528, 2
    %v3530 = vadd.f32 %v3528, %v3529
    %v3531 = vrot.slane %v3530, 1
    %v3532 = vadd.f32 %v3530, %v3531
    %v3533 = vlaneseq
    %v3534 = vshrl.u32 %v3533, 7
    %v3535 = vsub.s32 1, %v3534
    %v3536 = vrot.slane %v3395, %v3535
    %v3537 = vadd.f32 %v346, %v3536
    %v3538 = vmax.f32 %v3537, 0.0
    %v3539 = vmul.f32 %v3538, %v364
    %3540 = vadd.xlane.f32.xlu0 %v3539
    %v3541 = vpop.xlane.xlu0 %3540
    %v3542 = vrot.slane %v3541, 4
    %v3543 = vmax.f32 %v3541, %v3542
    %v3544 = vrot.slane %v3543, 2
    %v3545 = vmax.f32 %v3543, %v3544
    %v3546 = vrot.slane %v3545, 1
    %v3547 = vmax.f32 %v3545, %v3546
    %v3548 = vsub.f32 %v3541, %v3547
    %v3549 = vmul.f32 %v3548, 1.442695
    %v3550 = vpow.pop %v3549
    %v3551 = vrot.slane %v3550, 4
    %v3552 = vadd.f32 %v3550, %v3551
    %v3553 = vrot.slane %v3552, 2
    %v3554 = vadd.f32 %v3552, %v3553
    %v3555 = vrot.slane %v3554, 1
    %v3556 = vadd.f32 %v3554, %v3555
    %v3557 = vlog2.pop %v3556
    %v3558 = vmul.f32 %v3557, 0.6931472
    %v3559 = vsub.f32 %v3548, %v3558
    %v3560 = vmul.f32 %v3559, %v197
    %v3561 = vsel %vm202, %v3560, 0.0
    %v3562 = vrot.slane %v3561, 4
    %v3563 = vadd.f32 %v3561, %v3562
    %v3564 = vrot.slane %v3563, 2
    %v3565 = vadd.f32 %v3563, %v3564
    %v3566 = vrot.slane %v3565, 1
    %v3567 = vadd.f32 %v3565, %v3566
    %v3568 = vsel %vm426, %v3532, %v3567
    %v3570 = vsel %vm202, %v3568, 0
    %3572 = vmatprep.subr.mxu0 0.0
    %3573 = vmatpush1.msra.mxu0 0.0
    %3574 = vmatprep.subr.mxu0 0.0
    %3575 = vmatpush1.msra.mxu0 0.0
    %3576 = vmatprep.subr.mxu0 0.0
    %3577 = vmatpush1.msra.mxu0 0.0
    %3578 = vmatprep.subr.mxu0 0.0
    %3579 = vmatpush1.msra.mxu0 0.0
    %3580 = vmatprep.subr.mxu0 0.0
    %3581 = vmatpush1.msra.mxu0 0.0
    %3582 = vmatprep.subr.mxu0 0.0
    %3583 = vmatpush1.msra.mxu0 0.0
    %3584 = vmatprep.subr.mxu0 0.0
    %3585 = vmatpush1.msra.mxu0 0.0
    %3586 = vmatprep.subr.mxu0 0.0
    %3587 = vmatpush1.msra.mxu0 0.0
    %3588 = vmatprep.subr.mxu0 0.0
    %3589 = vmatpush1.msra.mxu0 0.0
    %3590 = vmatprep.subr.mxu0 0.0
    %3591 = vmatpush1.msra.mxu0 0.0
    %3592 = vmatprep.subr.mxu0 0.0
    %3593 = vmatpush1.msra.mxu0 0.0
    %3594 = vmatprep.subr.mxu0 0.0
    %3595 = vmatpush1.msra.mxu0 0.0
    %3596 = vmatprep.subr.mxu0 %v457
    %3597 = vmatpush1.msra.mxu0 %v456
    %3598 = vmatprep.subr.mxu0 %v453
    %3599 = vmatpush1.msra.mxu0 %v452
    %3600 = vmatprep.subr.mxu0 %v449
    %3601 = vmatpush1.msra.mxu0 %v448
    %3602 = vmatprep.subr.mxu0 %v445
    %3603 = vmatpush1.msra.mxu0 %v444
    %3604 = vmatprep.subr.mxu0 0.0
    %3605 = vmatpush2.msra.mxu0 0.0
    %3606 = vmatprep.subr.mxu0 0.0
    %3607 = vmatpush2.msra.mxu0 0.0
    %3608 = vmatprep.subr.mxu0 0.0
    %3609 = vmatpush2.msra.mxu0 0.0
    %3610 = vmatprep.subr.mxu0 0.0
    %3611 = vmatpush2.msra.mxu0 0.0
    %3612 = vmatprep.subr.mxu0 0.0
    %3613 = vmatpush2.msra.mxu0 0.0
    %3614 = vmatprep.subr.mxu0 0.0
    %3615 = vmatpush2.msra.mxu0 0.0
    %3616 = vmatprep.subr.mxu0 0.0
    %3617 = vmatpush2.msra.mxu0 0.0
    %3618 = vmatprep.subr.mxu0 0.0
    %3619 = vmatpush2.msra.mxu0 0.0
    %3620 = vmatprep.subr.mxu0 0.0
    %3621 = vmatpush2.msra.mxu0 0.0
    %3622 = vmatprep.subr.mxu0 0.0
    %3623 = vmatpush2.msra.mxu0 0.0
    %3624 = vmatprep.subr.mxu0 0.0
    %3625 = vmatpush2.msra.mxu0 0.0
    %3626 = vmatprep.subr.mxu0 0.0
    %3627 = vmatpush2.msra.mxu0 0.0
    %3628 = vmatprep.subr.mxu0 0.0
    %3629 = vmatpush2.msra.mxu0 0.0
    %3630 = vmatprep.subr.mxu0 0.0
    %3631 = vmatpush2.msra.mxu0 0.0
    %3632 = vmatprep.subr.mxu0 0.0
    %3633 = vmatpush2.msra.mxu0 0.0
    %3634 = vmatprep.subr.mxu0 0.0
    %3635 = vmatpush2.msra.mxu0 0.0
    %3636 = vmatprep.mubr.f32.mxu0 0.0
    %3637 = vmatmul.mubr.f32.gmra.mxu0 %v3570
    %v3638 = vpop.f32.mrf.mxu0
    %v3639 = vadd.f32 0.0, %v3638
    %v3640 = vpop.f32.mrf.mxu0
    %v3641 = vadd.f32 0.0, %v3640
    %3642 = vdwg.mxu0
    %3643 = vmatprep.subr.mxu0 0.0
    %3644 = vmatpush1.msra.mxu0 0.0
    %3645 = vmatprep.subr.mxu0 0.0
    %3646 = vmatpush1.msra.mxu0 0.0
    %3647 = vmatprep.subr.mxu0 0.0
    %3648 = vmatpush1.msra.mxu0 0.0
    %3649 = vmatprep.subr.mxu0 0.0
    %3650 = vmatpush1.msra.mxu0 0.0
    %3651 = vmatprep.subr.mxu0 0.0
    %3652 = vmatpush1.msra.mxu0 0.0
    %3653 = vmatprep.subr.mxu0 0.0
    %3654 = vmatpush1.msra.mxu0 0.0
    %3655 = vmatprep.subr.mxu0 0.0
    %3656 = vmatpush1.msra.mxu0 0.0
    %3657 = vmatprep.subr.mxu0 0.0
    %3658 = vmatpush1.msra.mxu0 0.0
    %3659 = vmatprep.subr.mxu0 0.0
    %3660 = vmatpush1.msra.mxu0 0.0
    %3661 = vmatprep.subr.mxu0 0.0
    %3662 = vmatpush1.msra.mxu0 0.0
    %3663 = vmatprep.subr.mxu0 0.0
    %3664 = vmatpush1.msra.mxu0 0.0
    %3665 = vmatprep.subr.mxu0 0.0
    %3666 = vmatpush1.msra.mxu0 0.0
    %3667 = vmatprep.subr.mxu0 %v459
    %3668 = vmatpush1.msra.mxu0 %v458
    %3669 = vmatprep.subr.mxu0 %v455
    %3670 = vmatpush1.msra.mxu0 %v454
    %3671 = vmatprep.subr.mxu0 %v451
    %3672 = vmatpush1.msra.mxu0 %v450
    %3673 = vmatprep.subr.mxu0 %v447
    %3674 = vmatpush1.msra.mxu0 %v446
    %3675 = vmatprep.subr.mxu0 0.0
    %3676 = vmatpush2.msra.mxu0 0.0
    %3677 = vmatprep.subr.mxu0 0.0
    %3678 = vmatpush2.msra.mxu0 0.0
    %3679 = vmatprep.subr.mxu0 0.0
    %3680 = vmatpush2.msra.mxu0 0.0
    %3681 = vmatprep.subr.mxu0 0.0
    %3682 = vmatpush2.msra.mxu0 0.0
    %3683 = vmatprep.subr.mxu0 0.0
    %3684 = vmatpush2.msra.mxu0 0.0
    %3685 = vmatprep.subr.mxu0 0.0
    %3686 = vmatpush2.msra.mxu0 0.0
    %3687 = vmatprep.subr.mxu0 0.0
    %3688 = vmatpush2.msra.mxu0 0.0
    %3689 = vmatprep.subr.mxu0 0.0
    %3690 = vmatpush2.msra.mxu0 0.0
    %3691 = vmatprep.subr.mxu0 0.0
    %3692 = vmatpush2.msra.mxu0 0.0
    %3693 = vmatprep.subr.mxu0 0.0
    %3694 = vmatpush2.msra.mxu0 0.0
    %3695 = vmatprep.subr.mxu0 0.0
    %3696 = vmatpush2.msra.mxu0 0.0
    %3697 = vmatprep.subr.mxu0 0.0
    %3698 = vmatpush2.msra.mxu0 0.0
    %3699 = vmatprep.subr.mxu0 0.0
    %3700 = vmatpush2.msra.mxu0 0.0
    %3701 = vmatprep.subr.mxu0 0.0
    %3702 = vmatpush2.msra.mxu0 0.0
    %3703 = vmatprep.subr.mxu0 0.0
    %3704 = vmatpush2.msra.mxu0 0.0
    %3705 = vmatprep.subr.mxu0 0.0
    %3706 = vmatpush2.msra.mxu0 0.0
    %3707 = vmatprep.mubr.f32.mxu0 0.0
    %3708 = vmatmul.mubr.f32.gmra.mxu0 %v3570
    %v3709 = vpop.f32.mrf.mxu0
    %v3710 = vadd.f32 0.0, %v3709
    %v3711 = vpop.f32.mrf.mxu0
    %v3712 = vadd.f32 0.0, %v3711
    %3713 = vdwg.mxu0
    %v3715 = vsel %vm202, %v3495, 0
    %3717 = vmatprep.subr.mxu0 0.0
    %3718 = vmatpush1.msra.mxu0 0.0
    %3719 = vmatprep.subr.mxu0 0.0
    %3720 = vmatpush1.msra.mxu0 0.0
    %3721 = vmatprep.subr.mxu0 0.0
    %3722 = vmatpush1.msra.mxu0 0.0
    %3723 = vmatprep.subr.mxu0 0.0
    %3724 = vmatpush1.msra.mxu0 0.0
    %3725 = vmatprep.subr.mxu0 0.0
    %3726 = vmatpush1.msra.mxu0 0.0
    %3727 = vmatprep.subr.mxu0 0.0
    %3728 = vmatpush1.msra.mxu0 0.0
    %3729 = vmatprep.subr.mxu0 0.0
    %3730 = vmatpush1.msra.mxu0 0.0
    %3731 = vmatprep.subr.mxu0 0.0
    %3732 = vmatpush1.msra.mxu0 0.0
    %3733 = vmatprep.subr.mxu0 0.0
    %3734 = vmatpush1.msra.mxu0 0.0
    %3735 = vmatprep.subr.mxu0 0.0
    %3736 = vmatpush1.msra.mxu0 0.0
    %3737 = vmatprep.subr.mxu0 0.0
    %3738 = vmatpush1.msra.mxu0 0.0
    %3739 = vmatprep.subr.mxu0 0.0
    %3740 = vmatpush1.msra.mxu0 0.0
    %3741 = vmatprep.subr.mxu0 %v441
    %3742 = vmatpush1.msra.mxu0 %v440
    %3743 = vmatprep.subr.mxu0 %v437
    %3744 = vmatpush1.msra.mxu0 %v436
    %3745 = vmatprep.subr.mxu0 %v433
    %3746 = vmatpush1.msra.mxu0 %v432
    %3747 = vmatprep.subr.mxu0 %v429
    %3748 = vmatpush1.msra.mxu0 %v428
    %3749 = vmatprep.subr.mxu0 0.0
    %3750 = vmatpush2.msra.mxu0 0.0
    %3751 = vmatprep.subr.mxu0 0.0
    %3752 = vmatpush2.msra.mxu0 0.0
    %3753 = vmatprep.subr.mxu0 0.0
    %3754 = vmatpush2.msra.mxu0 0.0
    %3755 = vmatprep.subr.mxu0 0.0
    %3756 = vmatpush2.msra.mxu0 0.0
    %3757 = vmatprep.subr.mxu0 0.0
    %3758 = vmatpush2.msra.mxu0 0.0
    %3759 = vmatprep.subr.mxu0 0.0
    %3760 = vmatpush2.msra.mxu0 0.0
    %3761 = vmatprep.subr.mxu0 0.0
    %3762 = vmatpush2.msra.mxu0 0.0
    %3763 = vmatprep.subr.mxu0 0.0
    %3764 = vmatpush2.msra.mxu0 0.0
    %3765 = vmatprep.subr.mxu0 0.0
    %3766 = vmatpush2.msra.mxu0 0.0
    %3767 = vmatprep.subr.mxu0 0.0
    %3768 = vmatpush2.msra.mxu0 0.0
    %3769 = vmatprep.subr.mxu0 0.0
    %3770 = vmatpush2.msra.mxu0 0.0
    %3771 = vmatprep.subr.mxu0 0.0
    %3772 = vmatpush2.msra.mxu0 0.0
    %3773 = vmatprep.subr.mxu0 0.0
    %3774 = vmatpush2.msra.mxu0 0.0
    %3775 = vmatprep.subr.mxu0 0.0
    %3776 = vmatpush2.msra.mxu0 0.0
    %3777 = vmatprep.subr.mxu0 0.0
    %3778 = vmatpush2.msra.mxu0 0.0
    %3779 = vmatprep.subr.mxu0 0.0
    %3780 = vmatpush2.msra.mxu0 0.0
    %3781 = vmatprep.mubr.f32.mxu0 0.0
    %3782 = vmatmul.mubr.f32.gmra.mxu0 %v3715
    %v3783 = vpop.f32.mrf.mxu0
    %v3784 = vadd.f32 %v3639, %v3783
    %v3785 = vpop.f32.mrf.mxu0
    %v3786 = vadd.f32 %v3641, %v3785
    %3787 = vdwg.mxu0
    %3788 = vmatprep.subr.mxu0 0.0
    %3789 = vmatpush1.msra.mxu0 0.0
    %3790 = vmatprep.subr.mxu0 0.0
    %3791 = vmatpush1.msra.mxu0 0.0
    %3792 = vmatprep.subr.mxu0 0.0
    %3793 = vmatpush1.msra.mxu0 0.0
    %3794 = vmatprep.subr.mxu0 0.0
    %3795 = vmatpush1.msra.mxu0 0.0
    %3796 = vmatprep.subr.mxu0 0.0
    %3797 = vmatpush1.msra.mxu0 0.0
    %3798 = vmatprep.subr.mxu0 0.0
    %3799 = vmatpush1.msra.mxu0 0.0
    %3800 = vmatprep.subr.mxu0 0.0
    %3801 = vmatpush1.msra.mxu0 0.0
    %3802 = vmatprep.subr.mxu0 0.0
    %3803 = vmatpush1.msra.mxu0 0.0
    %3804 = vmatprep.subr.mxu0 0.0
    %3805 = vmatpush1.msra.mxu0 0.0
    %3806 = vmatprep.subr.mxu0 0.0
    %3807 = vmatpush1.msra.mxu0 0.0
    %3808 = vmatprep.subr.mxu0 0.0
    %3809 = vmatpush1.msra.mxu0 0.0
    %3810 = vmatprep.subr.mxu0 0.0
    %3811 = vmatpush1.msra.mxu0 0.0
    %3812 = vmatprep.subr.mxu0 %v443
    %3813 = vmatpush1.msra.mxu0 %v442
    %3814 = vmatprep.subr.mxu0 %v439
    %3815 = vmatpush1.msra.mxu0 %v438
    %3816 = vmatprep.subr.mxu0 %v435
    %3817 = vmatpush1.msra.mxu0 %v434
    %3818 = vmatprep.subr.mxu0 %v431
    %3819 = vmatpush1.msra.mxu0 %v430
    %3820 = vmatprep.subr.mxu0 0.0
    %3821 = vmatpush2.msra.mxu0 0.0
    %3822 = vmatprep.subr.mxu0 0.0
    %3823 = vmatpush2.msra.mxu0 0.0
    %3824 = vmatprep.subr.mxu0 0.0
    %3825 = vmatpush2.msra.mxu0 0.0
    %3826 = vmatprep.subr.mxu0 0.0
    %3827 = vmatpush2.msra.mxu0 0.0
    %3828 = vmatprep.subr.mxu0 0.0
    %3829 = vmatpush2.msra.mxu0 0.0
    %3830 = vmatprep.subr.mxu0 0.0
    %3831 = vmatpush2.msra.mxu0 0.0
    %3832 = vmatprep.subr.mxu0 0.0
    %3833 = vmatpush2.msra.mxu0 0.0
    %3834 = vmatprep.subr.mxu0 0.0
    %3835 = vmatpush2.msra.mxu0 0.0
    %3836 = vmatprep.subr.mxu0 0.0
    %3837 = vmatpush2.msra.mxu0 0.0
    %3838 = vmatprep.subr.mxu0 0.0
    %3839 = vmatpush2.msra.mxu0 0.0
    %3840 = vmatprep.subr.mxu0 0.0
    %3841 = vmatpush2.msra.mxu0 0.0
    %3842 = vmatprep.subr.mxu0 0.0
    %3843 = vmatpush2.msra.mxu0 0.0
    %3844 = vmatprep.subr.mxu0 0.0
    %3845 = vmatpush2.msra.mxu0 0.0
    %3846 = vmatprep.subr.mxu0 0.0
    %3847 = vmatpush2.msra.mxu0 0.0
    %3848 = vmatprep.subr.mxu0 0.0
    %3849 = vmatpush2.msra.mxu0 0.0
    %3850 = vmatprep.subr.mxu0 0.0
    %3851 = vmatpush2.msra.mxu0 0.0
    %3852 = vmatprep.mubr.f32.mxu0 0.0
    %3853 = vmatmul.mubr.f32.gmra.mxu0 %v3715
    %v3854 = vpop.f32.mrf.mxu0
    %v3855 = vadd.f32 %v3710, %v3854
    %v3856 = vpop.f32.mrf.mxu0
    %v3857 = vadd.f32 %v3712, %v3856
    %3858 = vdwg.mxu0
    %3859 = vmatprep.subr.mxu0 %v811
    %3860 = vmatpush1.msra.mxu0 %v810
    %3861 = vmatprep.subr.mxu0 %v807
    %3862 = vmatpush1.msra.mxu0 %v806
    %3863 = vmatprep.subr.mxu0 %v803
    %3864 = vmatpush1.msra.mxu0 %v802
    %3865 = vmatprep.subr.mxu0 %v799
    %3866 = vmatpush1.msra.mxu0 %v798
    %3867 = vmatprep.subr.mxu0 %v795
    %3868 = vmatpush1.msra.mxu0 %v794
    %3869 = vmatprep.subr.mxu0 %v791
    %3870 = vmatpush1.msra.mxu0 %v790
    %3871 = vmatprep.subr.mxu0 %v787
    %3872 = vmatpush1.msra.mxu0 %v786
    %3873 = vmatprep.subr.mxu0 %v783
    %3874 = vmatpush1.msra.mxu0 %v782
    %3875 = vmatprep.subr.mxu0 %v779
    %3876 = vmatpush1.msra.mxu0 %v778
    %3877 = vmatprep.subr.mxu0 %v775
    %3878 = vmatpush1.msra.mxu0 %v774
    %3879 = vmatprep.subr.mxu0 %v771
    %3880 = vmatpush1.msra.mxu0 %v770
    %3881 = vmatprep.subr.mxu0 %v767
    %3882 = vmatpush1.msra.mxu0 %v766
    %3883 = vmatprep.subr.mxu0 %v763
    %3884 = vmatpush1.msra.mxu0 %v762
    %3885 = vmatprep.subr.mxu0 %v759
    %3886 = vmatpush1.msra.mxu0 %v758
    %3887 = vmatprep.subr.mxu0 %v755
    %3888 = vmatpush1.msra.mxu0 %v754
    %3889 = vmatprep.subr.mxu0 %v751
    %3890 = vmatpush1.msra.mxu0 %v750
    %3891 = vmatprep.subr.mxu0 0.0
    %3892 = vmatpush2.msra.mxu0 0.0
    %3893 = vmatprep.subr.mxu0 0.0
    %3894 = vmatpush2.msra.mxu0 0.0
    %3895 = vmatprep.subr.mxu0 0.0
    %3896 = vmatpush2.msra.mxu0 0.0
    %3897 = vmatprep.subr.mxu0 0.0
    %3898 = vmatpush2.msra.mxu0 0.0
    %3899 = vmatprep.subr.mxu0 0.0
    %3900 = vmatpush2.msra.mxu0 0.0
    %3901 = vmatprep.subr.mxu0 0.0
    %3902 = vmatpush2.msra.mxu0 0.0
    %3903 = vmatprep.subr.mxu0 0.0
    %3904 = vmatpush2.msra.mxu0 0.0
    %3905 = vmatprep.subr.mxu0 0.0
    %3906 = vmatpush2.msra.mxu0 0.0
    %3907 = vmatprep.subr.mxu0 0.0
    %3908 = vmatpush2.msra.mxu0 0.0
    %3909 = vmatprep.subr.mxu0 0.0
    %3910 = vmatpush2.msra.mxu0 0.0
    %3911 = vmatprep.subr.mxu0 0.0
    %3912 = vmatpush2.msra.mxu0 0.0
    %3913 = vmatprep.subr.mxu0 0.0
    %3914 = vmatpush2.msra.mxu0 0.0
    %3915 = vmatprep.subr.mxu0 0.0
    %3916 = vmatpush2.msra.mxu0 0.0
    %3917 = vmatprep.subr.mxu0 0.0
    %3918 = vmatpush2.msra.mxu0 0.0
    %3919 = vmatprep.subr.mxu0 0.0
    %3920 = vmatpush2.msra.mxu0 0.0
    %3921 = vmatprep.subr.mxu0 0.0
    %3922 = vmatpush2.msra.mxu0 0.0
    %3923 = vmatprep.mubr.f32.mxu0 0.0
    %3924 = vmatmul.mubr.f32.gmra.mxu0 %v2698
    %v3925 = vpop.f32.mrf.mxu0
    %v3926 = vadd.f32 0.0, %v3925
    %v3927 = vpop.f32.mrf.mxu0
    %v3928 = vadd.f32 0.0, %v3927
    %3929 = vdwg.mxu0
    %3930 = vmatprep.subr.mxu0 %v813
    %3931 = vmatpush1.msra.mxu0 %v812
    %3932 = vmatprep.subr.mxu0 %v809
    %3933 = vmatpush1.msra.mxu0 %v808
    %3934 = vmatprep.subr.mxu0 %v805
    %3935 = vmatpush1.msra.mxu0 %v804
    %3936 = vmatprep.subr.mxu0 %v801
    %3937 = vmatpush1.msra.mxu0 %v800
    %3938 = vmatprep.subr.mxu0 %v797
    %3939 = vmatpush1.msra.mxu0 %v796
    %3940 = vmatprep.subr.mxu0 %v793
    %3941 = vmatpush1.msra.mxu0 %v792
    %3942 = vmatprep.subr.mxu0 %v789
    %3943 = vmatpush1.msra.mxu0 %v788
    %3944 = vmatprep.subr.mxu0 %v785
    %3945 = vmatpush1.msra.mxu0 %v784
    %3946 = vmatprep.subr.mxu0 %v781
    %3947 = vmatpush1.msra.mxu0 %v780
    %3948 = vmatprep.subr.mxu0 %v777
    %3949 = vmatpush1.msra.mxu0 %v776
    %3950 = vmatprep.subr.mxu0 %v773
    %3951 = vmatpush1.msra.mxu0 %v772
    %3952 = vmatprep.subr.mxu0 %v769
    %3953 = vmatpush1.msra.mxu0 %v768
    %3954 = vmatprep.subr.mxu0 %v765
    %3955 = vmatpush1.msra.mxu0 %v764
    %3956 = vmatprep.subr.mxu0 %v761
    %3957 = vmatpush1.msra.mxu0 %v760
    %3958 = vmatprep.subr.mxu0 %v757
    %3959 = vmatpush1.msra.mxu0 %v756
    %3960 = vmatprep.subr.mxu0 %v753
    %3961 = vmatpush1.msra.mxu0 %v752
    %3962 = vmatprep.subr.mxu0 0.0
    %3963 = vmatpush2.msra.mxu0 0.0
    %3964 = vmatprep.subr.mxu0 0.0
    %3965 = vmatpush2.msra.mxu0 0.0
    %3966 = vmatprep.subr.mxu0 0.0
    %3967 = vmatpush2.msra.mxu0 0.0
    %3968 = vmatprep.subr.mxu0 0.0
    %3969 = vmatpush2.msra.mxu0 0.0
    %3970 = vmatprep.subr.mxu0 0.0
    %3971 = vmatpush2.msra.mxu0 0.0
    %3972 = vmatprep.subr.mxu0 0.0
    %3973 = vmatpush2.msra.mxu0 0.0
    %3974 = vmatprep.subr.mxu0 0.0
    %3975 = vmatpush2.msra.mxu0 0.0
    %3976 = vmatprep.subr.mxu0 0.0
    %3977 = vmatpush2.msra.mxu0 0.0
    %3978 = vmatprep.subr.mxu0 0.0
    %3979 = vmatpush2.msra.mxu0 0.0
    %3980 = vmatprep.subr.mxu0 0.0
    %3981 = vmatpush2.msra.mxu0 0.0
    %3982 = vmatprep.subr.mxu0 0.0
    %3983 = vmatpush2.msra.mxu0 0.0
    %3984 = vmatprep.subr.mxu0 0.0
    %3985 = vmatpush2.msra.mxu0 0.0
    %3986 = vmatprep.subr.mxu0 0.0
    %3987 = vmatpush2.msra.mxu0 0.0
    %3988 = vmatprep.subr.mxu0 0.0
    %3989 = vmatpush2.msra.mxu0 0.0
    %3990 = vmatprep.subr.mxu0 0.0
    %3991 = vmatpush2.msra.mxu0 0.0
    %3992 = vmatprep.subr.mxu0 0.0
    %3993 = vmatpush2.msra.mxu0 0.0
    %3994 = vmatprep.mubr.f32.mxu0 0.0
    %3995 = vmatmul.mubr.f32.gmra.mxu0 %v2698
    %v3996 = vpop.f32.mrf.mxu0
    %v3997 = vadd.f32 0.0, %v3996
    %v3998 = vpop.f32.mrf.mxu0
    %v3999 = vadd.f32 0.0, %v3998
    %4000 = vdwg.mxu0
    %v4001 = vadd.f32 %v3784, %v3926
    %v4002 = vadd.f32 %v3786, %v3928
    %v4003 = vadd.f32 %v3855, %v3997
    %v4004 = vadd.f32 %v3857, %v3999
    %v4005 = vadd.f32 %v4001, %v965
    %v4006 = vadd.f32 %v4002, %v969
    %v4007 = vadd.f32 %v4003, %v973
    %v4008 = vadd.f32 %v4004, %v977
    %v4009 = vxor.u32 %v4005, 2147483648
    %v4010 = vmul.f32 %v4009, 1.442695
    %v4011 = vpow.pop %v4010
    %v4012 = vadd.f32 %v4011, 1.0
    %v4013 = vrcp.pop %v4012
    %v4014 = vmul.f32 1.0, %v4013
    %v4015 = vxor.u32 %v4006, 2147483648
    %v4016 = vmul.f32 %v4015, 1.442695
    %v4017 = vpow.pop %v4016
    %v4018 = vadd.f32 %v4017, 1.0
    %v4019 = vrcp.pop %v4018
    %v4020 = vmul.f32 1.0, %v4019
    %v4021 = vtanh.pop %v4007
    %v4022 = vxor.u32 %v4008, 2147483648
    %v4023 = vmul.f32 %v4022, 1.442695
    %v4024 = vpow.pop %v4023
    %v4025 = vadd.f32 %v4024, 1.0
    %v4026 = vrcp.pop %v4025
    %v4027 = vmul.f32 1.0, %v4026
    %v4028 = vmul.f32 %v4020, %v2696
    %v4029 = vmul.f32 %v4014, %v4021
    %v4030 = vadd.f32 %v4028, %v4029
    %v4031 = vtanh.pop %v4030
    %v4032 = vmul.f32 %v4027, %v4031
    %4033 = vmatprep.subr.mxu0 %v1135
    %4034 = vmatpush1.msra.mxu0 %v1134
    %4035 = vmatprep.subr.mxu0 %v1131
    %4036 = vmatpush1.msra.mxu0 %v1130
    %4037 = vmatprep.subr.mxu0 %v1127
    %4038 = vmatpush1.msra.mxu0 %v1126
    %4039 = vmatprep.subr.mxu0 %v1123
    %4040 = vmatpush1.msra.mxu0 %v1122
    %4041 = vmatprep.subr.mxu0 %v1119
    %4042 = vmatpush1.msra.mxu0 %v1118
    %4043 = vmatprep.subr.mxu0 %v1115
    %4044 = vmatpush1.msra.mxu0 %v1114
    %4045 = vmatprep.subr.mxu0 %v1111
    %4046 = vmatpush1.msra.mxu0 %v1110
    %4047 = vmatprep.subr.mxu0 %v1107
    %4048 = vmatpush1.msra.mxu0 %v1106
    %4049 = vmatprep.subr.mxu0 %v1103
    %4050 = vmatpush1.msra.mxu0 %v1102
    %4051 = vmatprep.subr.mxu0 %v1099
    %4052 = vmatpush1.msra.mxu0 %v1098
    %4053 = vmatprep.subr.mxu0 %v1095
    %4054 = vmatpush1.msra.mxu0 %v1094
    %4055 = vmatprep.subr.mxu0 %v1091
    %4056 = vmatpush1.msra.mxu0 %v1090
    %4057 = vmatprep.subr.mxu0 %v1087
    %4058 = vmatpush1.msra.mxu0 %v1086
    %4059 = vmatprep.subr.mxu0 %v1083
    %4060 = vmatpush1.msra.mxu0 %v1082
    %4061 = vmatprep.subr.mxu0 %v1079
    %4062 = vmatpush1.msra.mxu0 %v1078
    %4063 = vmatprep.subr.mxu0 %v1075
    %4064 = vmatpush1.msra.mxu0 %v1074
    %4065 = vmatprep.subr.mxu0 0.0
    %4066 = vmatpush2.msra.mxu0 0.0
    %4067 = vmatprep.subr.mxu0 0.0
    %4068 = vmatpush2.msra.mxu0 0.0
    %4069 = vmatprep.subr.mxu0 0.0
    %4070 = vmatpush2.msra.mxu0 0.0
    %4071 = vmatprep.subr.mxu0 0.0
    %4072 = vmatpush2.msra.mxu0 0.0
    %4073 = vmatprep.subr.mxu0 0.0
    %4074 = vmatpush2.msra.mxu0 0.0
    %4075 = vmatprep.subr.mxu0 0.0
    %4076 = vmatpush2.msra.mxu0 0.0
    %4077 = vmatprep.subr.mxu0 0.0
    %4078 = vmatpush2.msra.mxu0 0.0
    %4079 = vmatprep.subr.mxu0 0.0
    %4080 = vmatpush2.msra.mxu0 0.0
    %4081 = vmatprep.subr.mxu0 0.0
    %4082 = vmatpush2.msra.mxu0 0.0
    %4083 = vmatprep.subr.mxu0 0.0
    %4084 = vmatpush2.msra.mxu0 0.0
    %4085 = vmatprep.subr.mxu0 0.0
    %4086 = vmatpush2.msra.mxu0 0.0
    %4087 = vmatprep.subr.mxu0 0.0
    %4088 = vmatpush2.msra.mxu0 0.0
    %4089 = vmatprep.subr.mxu0 0.0
    %4090 = vmatpush2.msra.mxu0 0.0
    %4091 = vmatprep.subr.mxu0 0.0
    %4092 = vmatpush2.msra.mxu0 0.0
    %4093 = vmatprep.subr.mxu0 0.0
    %4094 = vmatpush2.msra.mxu0 0.0
    %4095 = vmatprep.subr.mxu0 0.0
    %4096 = vmatpush2.msra.mxu0 0.0
    %4097 = vmatprep.mubr.f32.mxu0 0.0
    %4098 = vmatmul.mubr.f32.gmra.mxu0 %v3010
    %v4099 = vpop.f32.mrf.mxu0
    %v4100 = vadd.f32 0.0, %v4099
    %v4101 = vpop.f32.mrf.mxu0
    %v4102 = vadd.f32 0.0, %v4101
    %4103 = vdwg.mxu0
    %4104 = vmatprep.subr.mxu0 %v1137
    %4105 = vmatpush1.msra.mxu0 %v1136
    %4106 = vmatprep.subr.mxu0 %v1133
    %4107 = vmatpush1.msra.mxu0 %v1132
    %4108 = vmatprep.subr.mxu0 %v1129
    %4109 = vmatpush1.msra.mxu0 %v1128
    %4110 = vmatprep.subr.mxu0 %v1125
    %4111 = vmatpush1.msra.mxu0 %v1124
    %4112 = vmatprep.subr.mxu0 %v1121
    %4113 = vmatpush1.msra.mxu0 %v1120
    %4114 = vmatprep.subr.mxu0 %v1117
    %4115 = vmatpush1.msra.mxu0 %v1116
    %4116 = vmatprep.subr.mxu0 %v1113
    %4117 = vmatpush1.msra.mxu0 %v1112
    %4118 = vmatprep.subr.mxu0 %v1109
    %4119 = vmatpush1.msra.mxu0 %v1108
    %4120 = vmatprep.subr.mxu0 %v1105
    %4121 = vmatpush1.msra.mxu0 %v1104
    %4122 = vmatprep.subr.mxu0 %v1101
    %4123 = vmatpush1.msra.mxu0 %v1100
    %4124 = vmatprep.subr.mxu0 %v1097
    %4125 = vmatpush1.msra.mxu0 %v1096
    %4126 = vmatprep.subr.mxu0 %v1093
    %4127 = vmatpush1.msra.mxu0 %v1092
    %4128 = vmatprep.subr.mxu0 %v1089
    %4129 = vmatpush1.msra.mxu0 %v1088
    %4130 = vmatprep.subr.mxu0 %v1085
    %4131 = vmatpush1.msra.mxu0 %v1084
    %4132 = vmatprep.subr.mxu0 %v1081
    %4133 = vmatpush1.msra.mxu0 %v1080
    %4134 = vmatprep.subr.mxu0 %v1077
    %4135 = vmatpush1.msra.mxu0 %v1076
    %4136 = vmatprep.subr.mxu0 0.0
    %4137 = vmatpush2.msra.mxu0 0.0
    %4138 = vmatprep.subr.mxu0 0.0
    %4139 = vmatpush2.msra.mxu0 0.0
    %4140 = vmatprep.subr.mxu0 0.0
    %4141 = vmatpush2.msra.mxu0 0.0
    %4142 = vmatprep.subr.mxu0 0.0
    %4143 = vmatpush2.msra.mxu0 0.0
    %4144 = vmatprep.subr.mxu0 0.0
    %4145 = vmatpush2.msra.mxu0 0.0
    %4146 = vmatprep.subr.mxu0 0.0
    %4147 = vmatpush2.msra.mxu0 0.0
    %4148 = vmatprep.subr.mxu0 0.0
    %4149 = vmatpush2.msra.mxu0 0.0
    %4150 = vmatprep.subr.mxu0 0.0
    %4151 = vmatpush2.msra.mxu0 0.0
    %4152 = vmatprep.subr.mxu0 0.0
    %4153 = vmatpush2.msra.mxu0 0.0
    %4154 = vmatprep.subr.mxu0 0.0
    %4155 = vmatpush2.msra.mxu0 0.0
    %4156 = vmatprep.subr.mxu0 0.0
    %4157 = vmatpush2.msra.mxu0 0.0
    %4158 = vmatprep.subr.mxu0 0.0
    %4159 = vmatpush2.msra.mxu0 0.0
    %4160 = vmatprep.subr.mxu0 0.0
    %4161 = vmatpush2.msra.mxu0 0.0
    %4162 = vmatprep.subr.mxu0 0.0
    %4163 = vmatpush2.msra.mxu0 0.0
    %4164 = vmatprep.subr.mxu0 0.0
    %4165 = vmatpush2.msra.mxu0 0.0
    %4166 = vmatprep.subr.mxu0 0.0
    %4167 = vmatpush2.msra.mxu0 0.0
    %4168 = vmatprep.mubr.f32.mxu0 0.0
    %4169 = vmatmul.mubr.f32.gmra.mxu0 %v3010
    %v4170 = vpop.f32.mrf.mxu0
    %v4171 = vadd.f32 0.0, %v4170
    %v4172 = vpop.f32.mrf.mxu0
    %v4173 = vadd.f32 0.0, %v4172
    %4174 = vdwg.mxu0
    %4175 = vmatprep.subr.mxu0 %v1071
    %4176 = vmatpush1.msra.mxu0 %v1070
    %4177 = vmatprep.subr.mxu0 %v1067
    %4178 = vmatpush1.msra.mxu0 %v1066
    %4179 = vmatprep.subr.mxu0 %v1063
    %4180 = vmatpush1.msra.mxu0 %v1062
    %4181 = vmatprep.subr.mxu0 %v1059
    %4182 = vmatpush1.msra.mxu0 %v1058
    %4183 = vmatprep.subr.mxu0 %v1055
    %4184 = vmatpush1.msra.mxu0 %v1054
    %4185 = vmatprep.subr.mxu0 %v1051
    %4186 = vmatpush1.msra.mxu0 %v1050
    %4187 = vmatprep.subr.mxu0 %v1047
    %4188 = vmatpush1.msra.mxu0 %v1046
    %4189 = vmatprep.subr.mxu0 %v1043
    %4190 = vmatpush1.msra.mxu0 %v1042
    %4191 = vmatprep.subr.mxu0 %v1039
    %4192 = vmatpush1.msra.mxu0 %v1038
    %4193 = vmatprep.subr.mxu0 %v1035
    %4194 = vmatpush1.msra.mxu0 %v1034
    %4195 = vmatprep.subr.mxu0 %v1031
    %4196 = vmatpush1.msra.mxu0 %v1030
    %4197 = vmatprep.subr.mxu0 %v1027
    %4198 = vmatpush1.msra.mxu0 %v1026
    %4199 = vmatprep.subr.mxu0 %v1023
    %4200 = vmatpush1.msra.mxu0 %v1022
    %4201 = vmatprep.subr.mxu0 %v1019
    %4202 = vmatpush1.msra.mxu0 %v1018
    %4203 = vmatprep.subr.mxu0 %v1015
    %4204 = vmatpush1.msra.mxu0 %v1014
    %4205 = vmatprep.subr.mxu0 %v1011
    %4206 = vmatpush1.msra.mxu0 %v1010
    %4207 = vmatprep.subr.mxu0 0.0
    %4208 = vmatpush2.msra.mxu0 0.0
    %4209 = vmatprep.subr.mxu0 0.0
    %4210 = vmatpush2.msra.mxu0 0.0
    %4211 = vmatprep.subr.mxu0 0.0
    %4212 = vmatpush2.msra.mxu0 0.0
    %4213 = vmatprep.subr.mxu0 0.0
    %4214 = vmatpush2.msra.mxu0 0.0
    %4215 = vmatprep.subr.mxu0 0.0
    %4216 = vmatpush2.msra.mxu0 0.0
    %4217 = vmatprep.subr.mxu0 0.0
    %4218 = vmatpush2.msra.mxu0 0.0
    %4219 = vmatprep.subr.mxu0 0.0
    %4220 = vmatpush2.msra.mxu0 0.0
    %4221 = vmatprep.subr.mxu0 0.0
    %4222 = vmatpush2.msra.mxu0 0.0
    %4223 = vmatprep.subr.mxu0 0.0
    %4224 = vmatpush2.msra.mxu0 0.0
    %4225 = vmatprep.subr.mxu0 0.0
    %4226 = vmatpush2.msra.mxu0 0.0
    %4227 = vmatprep.subr.mxu0 0.0
    %4228 = vmatpush2.msra.mxu0 0.0
    %4229 = vmatprep.subr.mxu0 0.0
    %4230 = vmatpush2.msra.mxu0 0.0
    %4231 = vmatprep.subr.mxu0 0.0
    %4232 = vmatpush2.msra.mxu0 0.0
    %4233 = vmatprep.subr.mxu0 0.0
    %4234 = vmatpush2.msra.mxu0 0.0
    %4235 = vmatprep.subr.mxu0 0.0
    %4236 = vmatpush2.msra.mxu0 0.0
    %4237 = vmatprep.subr.mxu0 0.0
    %4238 = vmatpush2.msra.mxu0 0.0
    %4239 = vmatprep.mubr.f32.mxu0 0.0
    %4240 = vmatmul.mubr.f32.gmra.mxu0 %v4032
    %v4241 = vpop.f32.mrf.mxu0
    %v4242 = vadd.f32 %v4100, %v4241
    %v4243 = vpop.f32.mrf.mxu0
    %v4244 = vadd.f32 %v4102, %v4243
    %4245 = vdwg.mxu0
    %4246 = vmatprep.subr.mxu0 %v1073
    %4247 = vmatpush1.msra.mxu0 %v1072
    %4248 = vmatprep.subr.mxu0 %v1069
    %4249 = vmatpush1.msra.mxu0 %v1068
    %4250 = vmatprep.subr.mxu0 %v1065
    %4251 = vmatpush1.msra.mxu0 %v1064
    %4252 = vmatprep.subr.mxu0 %v1061
    %4253 = vmatpush1.msra.mxu0 %v1060
    %4254 = vmatprep.subr.mxu0 %v1057
    %4255 = vmatpush1.msra.mxu0 %v1056
    %4256 = vmatprep.subr.mxu0 %v1053
    %4257 = vmatpush1.msra.mxu0 %v1052
    %4258 = vmatprep.subr.mxu0 %v1049
    %4259 = vmatpush1.msra.mxu0 %v1048
    %4260 = vmatprep.subr.mxu0 %v1045
    %4261 = vmatpush1.msra.mxu0 %v1044
    %4262 = vmatprep.subr.mxu0 %v1041
    %4263 = vmatpush1.msra.mxu0 %v1040
    %4264 = vmatprep.subr.mxu0 %v1037
    %4265 = vmatpush1.msra.mxu0 %v1036
    %4266 = vmatprep.subr.mxu0 %v1033
    %4267 = vmatpush1.msra.mxu0 %v1032
    %4268 = vmatprep.subr.mxu0 %v1029
    %4269 = vmatpush1.msra.mxu0 %v1028
    %4270 = vmatprep.subr.mxu0 %v1025
    %4271 = vmatpush1.msra.mxu0 %v1024
    %4272 = vmatprep.subr.mxu0 %v1021
    %4273 = vmatpush1.msra.mxu0 %v1020
    %4274 = vmatprep.subr.mxu0 %v1017
    %4275 = vmatpush1.msra.mxu0 %v1016
    %4276 = vmatprep.subr.mxu0 %v1013
    %4277 = vmatpush1.msra.mxu0 %v1012
    %4278 = vmatprep.subr.mxu0 0.0
    %4279 = vmatpush2.msra.mxu0 0.0
    %4280 = vmatprep.subr.mxu0 0.0
    %4281 = vmatpush2.msra.mxu0 0.0
    %4282 = vmatprep.subr.mxu0 0.0
    %4283 = vmatpush2.msra.mxu0 0.0
    %4284 = vmatprep.subr.mxu0 0.0
    %4285 = vmatpush2.msra.mxu0 0.0
    %4286 = vmatprep.subr.mxu0 0.0
    %4287 = vmatpush2.msra.mxu0 0.0
    %4288 = vmatprep.subr.mxu0 0.0
    %4289 = vmatpush2.msra.mxu0 0.0
    %4290 = vmatprep.subr.mxu0 0.0
    %4291 = vmatpush2.msra.mxu0 0.0
    %4292 = vmatprep.subr.mxu0 0.0
    %4293 = vmatpush2.msra.mxu0 0.0
    %4294 = vmatprep.subr.mxu0 0.0
    %4295 = vmatpush2.msra.mxu0 0.0
    %4296 = vmatprep.subr.mxu0 0.0
    %4297 = vmatpush2.msra.mxu0 0.0
    %4298 = vmatprep.subr.mxu0 0.0
    %4299 = vmatpush2.msra.mxu0 0.0
    %4300 = vmatprep.subr.mxu0 0.0
    %4301 = vmatpush2.msra.mxu0 0.0
    %4302 = vmatprep.subr.mxu0 0.0
    %4303 = vmatpush2.msra.mxu0 0.0
    %4304 = vmatprep.subr.mxu0 0.0
    %4305 = vmatpush2.msra.mxu0 0.0
    %4306 = vmatprep.subr.mxu0 0.0
    %4307 = vmatpush2.msra.mxu0 0.0
    %4308 = vmatprep.subr.mxu0 0.0
    %4309 = vmatpush2.msra.mxu0 0.0
    %4310 = vmatprep.mubr.f32.mxu0 0.0
    %4311 = vmatmul.mubr.f32.gmra.mxu0 %v4032
    %v4312 = vpop.f32.mrf.mxu0
    %v4313 = vadd.f32 %v4171, %v4312
    %v4314 = vpop.f32.mrf.mxu0
    %v4315 = vadd.f32 %v4173, %v4314
    %4316 = vdwg.mxu0
    %v4317 = vadd.f32 %v4242, %v1427
    %v4318 = vadd.f32 %v4244, %v1431
    %v4319 = vadd.f32 %v4313, %v1435
    %v4320 = vadd.f32 %v4315, %v1439
    %v4321 = vxor.u32 %v4317, 2147483648
    %v4322 = vmul.f32 %v4321, 1.442695
    %v4323 = vpow.pop %v4322
    %v4324 = vadd.f32 %v4323, 1.0
    %v4325 = vrcp.pop %v4324
    %v4326 = vmul.f32 1.0, %v4325
    %v4327 = vxor.u32 %v4318, 2147483648
    %v4328 = vmul.f32 %v4327, 1.442695
    %v4329 = vpow.pop %v4328
    %v4330 = vadd.f32 %v4329, 1.0
    %v4331 = vrcp.pop %v4330
    %v4332 = vmul.f32 1.0, %v4331
    %v4333 = vtanh.pop %v4319
    %v4334 = vxor.u32 %v4320, 2147483648
    %v4335 = vmul.f32 %v4334, 1.442695
    %v4336 = vpow.pop %v4335
    %v4337 = vadd.f32 %v4336, 1.0
    %v4338 = vrcp.pop %v4337
    %v4339 = vmul.f32 1.0, %v4338
    %v4340 = vmul.f32 %v4332, %v3008
    %v4341 = vmul.f32 %v4326, %v4333
    %v4342 = vadd.f32 %v4340, %v4341
    %v4343 = vtanh.pop %v4342
    %v4344 = vmul.f32 %v4339, %v4343
    %4345 = vmatprep.subr.mxu0 %v1597
    %4346 = vmatpush1.msra.mxu0 %v1596
    %4347 = vmatprep.subr.mxu0 %v1593
    %4348 = vmatpush1.msra.mxu0 %v1592
    %4349 = vmatprep.subr.mxu0 %v1589
    %4350 = vmatpush1.msra.mxu0 %v1588
    %4351 = vmatprep.subr.mxu0 %v1585
    %4352 = vmatpush1.msra.mxu0 %v1584
    %4353 = vmatprep.subr.mxu0 %v1581
    %4354 = vmatpush1.msra.mxu0 %v1580
    %4355 = vmatprep.subr.mxu0 %v1577
    %4356 = vmatpush1.msra.mxu0 %v1576
    %4357 = vmatprep.subr.mxu0 %v1573
    %4358 = vmatpush1.msra.mxu0 %v1572
    %4359 = vmatprep.subr.mxu0 %v1569
    %4360 = vmatpush1.msra.mxu0 %v1568
    %4361 = vmatprep.subr.mxu0 %v1565
    %4362 = vmatpush1.msra.mxu0 %v1564
    %4363 = vmatprep.subr.mxu0 %v1561
    %4364 = vmatpush1.msra.mxu0 %v1560
    %4365 = vmatprep.subr.mxu0 %v1557
    %4366 = vmatpush1.msra.mxu0 %v1556
    %4367 = vmatprep.subr.mxu0 %v1553
    %4368 = vmatpush1.msra.mxu0 %v1552
    %4369 = vmatprep.subr.mxu0 %v1549
    %4370 = vmatpush1.msra.mxu0 %v1548
    %4371 = vmatprep.subr.mxu0 %v1545
    %4372 = vmatpush1.msra.mxu0 %v1544
    %4373 = vmatprep.subr.mxu0 %v1541
    %4374 = vmatpush1.msra.mxu0 %v1540
    %4375 = vmatprep.subr.mxu0 %v1537
    %4376 = vmatpush1.msra.mxu0 %v1536
    %4377 = vmatprep.subr.mxu0 0.0
    %4378 = vmatpush2.msra.mxu0 0.0
    %4379 = vmatprep.subr.mxu0 0.0
    %4380 = vmatpush2.msra.mxu0 0.0
    %4381 = vmatprep.subr.mxu0 0.0
    %4382 = vmatpush2.msra.mxu0 0.0
    %4383 = vmatprep.subr.mxu0 0.0
    %4384 = vmatpush2.msra.mxu0 0.0
    %4385 = vmatprep.subr.mxu0 0.0
    %4386 = vmatpush2.msra.mxu0 0.0
    %4387 = vmatprep.subr.mxu0 0.0
    %4388 = vmatpush2.msra.mxu0 0.0
    %4389 = vmatprep.subr.mxu0 0.0
    %4390 = vmatpush2.msra.mxu0 0.0
    %4391 = vmatprep.subr.mxu0 0.0
    %4392 = vmatpush2.msra.mxu0 0.0
    %4393 = vmatprep.subr.mxu0 0.0
    %4394 = vmatpush2.msra.mxu0 0.0
    %4395 = vmatprep.subr.mxu0 0.0
    %4396 = vmatpush2.msra.mxu0 0.0
    %4397 = vmatprep.subr.mxu0 0.0
    %4398 = vmatpush2.msra.mxu0 0.0
    %4399 = vmatprep.subr.mxu0 0.0
    %4400 = vmatpush2.msra.mxu0 0.0
    %4401 = vmatprep.subr.mxu0 0.0
    %4402 = vmatpush2.msra.mxu0 0.0
    %4403 = vmatprep.subr.mxu0 0.0
    %4404 = vmatpush2.msra.mxu0 0.0
    %4405 = vmatprep.subr.mxu0 0.0
    %4406 = vmatpush2.msra.mxu0 0.0
    %4407 = vmatprep.subr.mxu0 0.0
    %4408 = vmatpush2.msra.mxu0 0.0
    %4409 = vmatprep.mubr.f32.mxu0 0.0
    %4410 = vmatmul.mubr.f32.gmra.mxu0 %v3322
    %v4411 = vpop.f32.mrf.mxu0
    %v4412 = vadd.f32 0.0, %v4411
    %v4413 = vpop.f32.mrf.mxu0
    %v4414 = vadd.f32 0.0, %v4413
    %4415 = vdwg.mxu0
    %4416 = vmatprep.subr.mxu0 %v1599
    %4417 = vmatpush1.msra.mxu0 %v1598
    %4418 = vmatprep.subr.mxu0 %v1595
    %4419 = vmatpush1.msra.mxu0 %v1594
    %4420 = vmatprep.subr.mxu0 %v1591
    %4421 = vmatpush1.msra.mxu0 %v1590
    %4422 = vmatprep.subr.mxu0 %v1587
    %4423 = vmatpush1.msra.mxu0 %v1586
    %4424 = vmatprep.subr.mxu0 %v1583
    %4425 = vmatpush1.msra.mxu0 %v1582
    %4426 = vmatprep.subr.mxu0 %v1579
    %4427 = vmatpush1.msra.mxu0 %v1578
    %4428 = vmatprep.subr.mxu0 %v1575
    %4429 = vmatpush1.msra.mxu0 %v1574
    %4430 = vmatprep.subr.mxu0 %v1571
    %4431 = vmatpush1.msra.mxu0 %v1570
    %4432 = vmatprep.subr.mxu0 %v1567
    %4433 = vmatpush1.msra.mxu0 %v1566
    %4434 = vmatprep.subr.mxu0 %v1563
    %4435 = vmatpush1.msra.mxu0 %v1562
    %4436 = vmatprep.subr.mxu0 %v1559
    %4437 = vmatpush1.msra.mxu0 %v1558
    %4438 = vmatprep.subr.mxu0 %v1555
    %4439 = vmatpush1.msra.mxu0 %v1554
    %4440 = vmatprep.subr.mxu0 %v1551
    %4441 = vmatpush1.msra.mxu0 %v1550
    %4442 = vmatprep.subr.mxu0 %v1547
    %4443 = vmatpush1.msra.mxu0 %v1546
    %4444 = vmatprep.subr.mxu0 %v1543
    %4445 = vmatpush1.msra.mxu0 %v1542
    %4446 = vmatprep.subr.mxu0 %v1539
    %4447 = vmatpush1.msra.mxu0 %v1538
    %4448 = vmatprep.subr.mxu0 0.0
    %4449 = vmatpush2.msra.mxu0 0.0
    %4450 = vmatprep.subr.mxu0 0.0
    %4451 = vmatpush2.msra.mxu0 0.0
    %4452 = vmatprep.subr.mxu0 0.0
    %4453 = vmatpush2.msra.mxu0 0.0
    %4454 = vmatprep.subr.mxu0 0.0
    %4455 = vmatpush2.msra.mxu0 0.0
    %4456 = vmatprep.subr.mxu0 0.0
    %4457 = vmatpush2.msra.mxu0 0.0
    %4458 = vmatprep.subr.mxu0 0.0
    %4459 = vmatpush2.msra.mxu0 0.0
    %4460 = vmatprep.subr.mxu0 0.0
    %4461 = vmatpush2.msra.mxu0 0.0
    %4462 = vmatprep.subr.mxu0 0.0
    %4463 = vmatpush2.msra.mxu0 0.0
    %4464 = vmatprep.subr.mxu0 0.0
    %4465 = vmatpush2.msra.mxu0 0.0
    %4466 = vmatprep.subr.mxu0 0.0
    %4467 = vmatpush2.msra.mxu0 0.0
    %4468 = vmatprep.subr.mxu0 0.0
    %4469 = vmatpush2.msra.mxu0 0.0
    %4470 = vmatprep.subr.mxu0 0.0
    %4471 = vmatpush2.msra.mxu0 0.0
    %4472 = vmatprep.subr.mxu0 0.0
    %4473 = vmatpush2.msra.mxu0 0.0
    %4474 = vmatprep.subr.mxu0 0.0
    %4475 = vmatpush2.msra.mxu0 0.0
    %4476 = vmatprep.subr.mxu0 0.0
    %4477 = vmatpush2.msra.mxu0 0.0
    %4478 = vmatprep.subr.mxu0 0.0
    %4479 = vmatpush2.msra.mxu0 0.0
    %4480 = vmatprep.mubr.f32.mxu0 0.0
    %4481 = vmatmul.mubr.f32.gmra.mxu0 %v3322
    %v4482 = vpop.f32.mrf.mxu0
    %v4483 = vadd.f32 0.0, %v4482
    %v4484 = vpop.f32.mrf.mxu0
    %v4485 = vadd.f32 0.0, %v4484
    %4486 = vdwg.mxu0
    %4487 = vmatprep.subr.mxu0 %v1533
    %4488 = vmatpush1.msra.mxu0 %v1532
    %4489 = vmatprep.subr.mxu0 %v1529
    %4490 = vmatpush1.msra.mxu0 %v1528
    %4491 = vmatprep.subr.mxu0 %v1525
    %4492 = vmatpush1.msra.mxu0 %v1524
    %4493 = vmatprep.subr.mxu0 %v1521
    %4494 = vmatpush1.msra.mxu0 %v1520
    %4495 = vmatprep.subr.mxu0 %v1517
    %4496 = vmatpush1.msra.mxu0 %v1516
    %4497 = vmatprep.subr.mxu0 %v1513
    %4498 = vmatpush1.msra.mxu0 %v1512
    %4499 = vmatprep.subr.mxu0 %v1509
    %4500 = vmatpush1.msra.mxu0 %v1508
    %4501 = vmatprep.subr.mxu0 %v1505
    %4502 = vmatpush1.msra.mxu0 %v1504
    %4503 = vmatprep.subr.mxu0 %v1501
    %4504 = vmatpush1.msra.mxu0 %v1500
    %4505 = vmatprep.subr.mxu0 %v1497
    %4506 = vmatpush1.msra.mxu0 %v1496
    %4507 = vmatprep.subr.mxu0 %v1493
    %4508 = vmatpush1.msra.mxu0 %v1492
    %4509 = vmatprep.subr.mxu0 %v1489
    %4510 = vmatpush1.msra.mxu0 %v1488
    %4511 = vmatprep.subr.mxu0 %v1485
    %4512 = vmatpush1.msra.mxu0 %v1484
    %4513 = vmatprep.subr.mxu0 %v1481
    %4514 = vmatpush1.msra.mxu0 %v1480
    %4515 = vmatprep.subr.mxu0 %v1477
    %4516 = vmatpush1.msra.mxu0 %v1476
    %4517 = vmatprep.subr.mxu0 %v1473
    %4518 = vmatpush1.msra.mxu0 %v1472
    %4519 = vmatprep.subr.mxu0 0.0
    %4520 = vmatpush2.msra.mxu0 0.0
    %4521 = vmatprep.subr.mxu0 0.0
    %4522 = vmatpush2.msra.mxu0 0.0
    %4523 = vmatprep.subr.mxu0 0.0
    %4524 = vmatpush2.msra.mxu0 0.0
    %4525 = vmatprep.subr.mxu0 0.0
    %4526 = vmatpush2.msra.mxu0 0.0
    %4527 = vmatprep.subr.mxu0 0.0
    %4528 = vmatpush2.msra.mxu0 0.0
    %4529 = vmatprep.subr.mxu0 0.0
    %4530 = vmatpush2.msra.mxu0 0.0
    %4531 = vmatprep.subr.mxu0 0.0
    %4532 = vmatpush2.msra.mxu0 0.0
    %4533 = vmatprep.subr.mxu0 0.0
    %4534 = vmatpush2.msra.mxu0 0.0
    %4535 = vmatprep.subr.mxu0 0.0
    %4536 = vmatpush2.msra.mxu0 0.0
    %4537 = vmatprep.subr.mxu0 0.0
    %4538 = vmatpush2.msra.mxu0 0.0
    %4539 = vmatprep.subr.mxu0 0.0
    %4540 = vmatpush2.msra.mxu0 0.0
    %4541 = vmatprep.subr.mxu0 0.0
    %4542 = vmatpush2.msra.mxu0 0.0
    %4543 = vmatprep.subr.mxu0 0.0
    %4544 = vmatpush2.msra.mxu0 0.0
    %4545 = vmatprep.subr.mxu0 0.0
    %4546 = vmatpush2.msra.mxu0 0.0
    %4547 = vmatprep.subr.mxu0 0.0
    %4548 = vmatpush2.msra.mxu0 0.0
    %4549 = vmatprep.subr.mxu0 0.0
    %4550 = vmatpush2.msra.mxu0 0.0
    %4551 = vmatprep.mubr.f32.mxu0 0.0
    %4552 = vmatmul.mubr.f32.gmra.mxu0 %v4344
    %v4553 = vpop.f32.mrf.mxu0
    %v4554 = vadd.f32 %v4412, %v4553
    %v4555 = vpop.f32.mrf.mxu0
    %v4556 = vadd.f32 %v4414, %v4555
    %4557 = vdwg.mxu0
    %4558 = vmatprep.subr.mxu0 %v1535
    %4559 = vmatpush1.msra.mxu0 %v1534
    %4560 = vmatprep.subr.mxu0 %v1531
    %4561 = vmatpush1.msra.mxu0 %v1530
    %4562 = vmatprep.subr.mxu0 %v1527
    %4563 = vmatpush1.msra.mxu0 %v1526
    %4564 = vmatprep.subr.mxu0 %v1523
    %4565 = vmatpush1.msra.mxu0 %v1522
    %4566 = vmatprep.subr.mxu0 %v1519
    %4567 = vmatpush1.msra.mxu0 %v1518
    %4568 = vmatprep.subr.mxu0 %v1515
    %4569 = vmatpush1.msra.mxu0 %v1514
    %4570 = vmatprep.subr.mxu0 %v1511
    %4571 = vmatpush1.msra.mxu0 %v1510
    %4572 = vmatprep.subr.mxu0 %v1507
    %4573 = vmatpush1.msra.mxu0 %v1506
    %4574 = vmatprep.subr.mxu0 %v1503
    %4575 = vmatpush1.msra.mxu0 %v1502
    %4576 = vmatprep.subr.mxu0 %v1499
    %4577 = vmatpush1.msra.mxu0 %v1498
    %4578 = vmatprep.subr.mxu0 %v1495
    %4579 = vmatpush1.msra.mxu0 %v1494
    %4580 = vmatprep.subr.mxu0 %v1491
    %4581 = vmatpush1.msra.mxu0 %v1490
    %4582 = vmatprep.subr.mxu0 %v1487
    %4583 = vmatpush1.msra.mxu0 %v1486
    %4584 = vmatprep.subr.mxu0 %v1483
    %4585 = vmatpush1.msra.mxu0 %v1482
    %4586 = vmatprep.subr.mxu0 %v1479
    %4587 = vmatpush1.msra.mxu0 %v1478
    %4588 = vmatprep.subr.mxu0 %v1475
    %4589 = vmatpush1.msra.mxu0 %v1474
    %4590 = vmatprep.subr.mxu0 0.0
    %4591 = vmatpush2.msra.mxu0 0.0
    %4592 = vmatprep.subr.mxu0 0.0
    %4593 = vmatpush2.msra.mxu0 0.0
    %4594 = vmatprep.subr.mxu0 0.0
    %4595 = vmatpush2.msra.mxu0 0.0
    %4596 = vmatprep.subr.mxu0 0.0
    %4597 = vmatpush2.msra.mxu0 0.0
    %4598 = vmatprep.subr.mxu0 0.0
    %4599 = vmatpush2.msra.mxu0 0.0
    %4600 = vmatprep.subr.mxu0 0.0
    %4601 = vmatpush2.msra.mxu0 0.0
    %4602 = vmatprep.subr.mxu0 0.0
    %4603 = vmatpush2.msra.mxu0 0.0
    %4604 = vmatprep.subr.mxu0 0.0
    %4605 = vmatpush2.msra.mxu0 0.0
    %4606 = vmatprep.subr.mxu0 0.0
    %4607 = vmatpush2.msra.mxu0 0.0
    %4608 = vmatprep.subr.mxu0 0.0
    %4609 = vmatpush2.msra.mxu0 0.0
    %4610 = vmatprep.subr.mxu0 0.0
    %4611 = vmatpush2.msra.mxu0 0.0
    %4612 = vmatprep.subr.mxu0 0.0
    %4613 = vmatpush2.msra.mxu0 0.0
    %4614 = vmatprep.subr.mxu0 0.0
    %4615 = vmatpush2.msra.mxu0 0.0
    %4616 = vmatprep.subr.mxu0 0.0
    %4617 = vmatpush2.msra.mxu0 0.0
    %4618 = vmatprep.subr.mxu0 0.0
    %4619 = vmatpush2.msra.mxu0 0.0
    %4620 = vmatprep.subr.mxu0 0.0
    %4621 = vmatpush2.msra.mxu0 0.0
    %4622 = vmatprep.mubr.f32.mxu0 0.0
    %4623 = vmatmul.mubr.f32.gmra.mxu0 %v4344
    %v4624 = vpop.f32.mrf.mxu0
    %v4625 = vadd.f32 %v4483, %v4624
    %v4626 = vpop.f32.mrf.mxu0
    %v4627 = vadd.f32 %v4485, %v4626
    %4628 = vdwg.mxu0
    %v4629 = vadd.f32 %v4554, %v1889
    %v4630 = vadd.f32 %v4556, %v1893
    %v4631 = vadd.f32 %v4625, %v1897
    %v4632 = vadd.f32 %v4627, %v1901
    %v4633 = vxor.u32 %v4629, 2147483648
    %v4634 = vmul.f32 %v4633, 1.442695
    %v4635 = vpow.pop %v4634
    %v4636 = vadd.f32 %v4635, 1.0
    %v4637 = vrcp.pop %v4636
    %v4638 = vmul.f32 1.0, %v4637
    %v4639 = vxor.u32 %v4630, 2147483648
    %v4640 = vmul.f32 %v4639, 1.442695
    %v4641 = vpow.pop %v4640
    %v4642 = vadd.f32 %v4641, 1.0
    %v4643 = vrcp.pop %v4642
    %v4644 = vmul.f32 1.0, %v4643
    %v4645 = vtanh.pop %v4631
    %v4646 = vxor.u32 %v4632, 2147483648
    %v4647 = vmul.f32 %v4646, 1.442695
    %v4648 = vpow.pop %v4647
    %v4649 = vadd.f32 %v4648, 1.0
    %v4650 = vrcp.pop %v4649
    %v4651 = vmul.f32 1.0, %v4650
    %v4652 = vmul.f32 %v4644, %v3320
    %v4653 = vmul.f32 %v4638, %v4645
    %v4654 = vadd.f32 %v4652, %v4653
    %v4655 = vtanh.pop %v4654
    %v4656 = vmul.f32 %v4651, %v4655
    %4657 = vmatprep.subr.mxu0 %v1965
    %4658 = vmatpush1.msra.mxu0 %v1964
    %4659 = vmatprep.subr.mxu0 %v1963
    %4660 = vmatpush1.msra.mxu0 %v1962
    %4661 = vmatprep.subr.mxu0 %v1961
    %4662 = vmatpush1.msra.mxu0 %v1960
    %4663 = vmatprep.subr.mxu0 %v1959
    %4664 = vmatpush1.msra.mxu0 %v1958
    %4665 = vmatprep.subr.mxu0 %v1957
    %4666 = vmatpush1.msra.mxu0 %v1956
    %4667 = vmatprep.subr.mxu0 %v1955
    %4668 = vmatpush1.msra.mxu0 %v1954
    %4669 = vmatprep.subr.mxu0 %v1953
    %4670 = vmatpush1.msra.mxu0 %v1952
    %4671 = vmatprep.subr.mxu0 %v1951
    %4672 = vmatpush1.msra.mxu0 %v1950
    %4673 = vmatprep.subr.mxu0 %v1949
    %4674 = vmatpush1.msra.mxu0 %v1948
    %4675 = vmatprep.subr.mxu0 %v1947
    %4676 = vmatpush1.msra.mxu0 %v1946
    %4677 = vmatprep.subr.mxu0 %v1945
    %4678 = vmatpush1.msra.mxu0 %v1944
    %4679 = vmatprep.subr.mxu0 %v1943
    %4680 = vmatpush1.msra.mxu0 %v1942
    %4681 = vmatprep.subr.mxu0 %v1941
    %4682 = vmatpush1.msra.mxu0 %v1940
    %4683 = vmatprep.subr.mxu0 %v1939
    %4684 = vmatpush1.msra.mxu0 %v1938
    %4685 = vmatprep.subr.mxu0 %v1937
    %4686 = vmatpush1.msra.mxu0 %v1936
    %4687 = vmatprep.subr.mxu0 %v1935
    %4688 = vmatpush1.msra.mxu0 %v1934
    %4689 = vmatprep.subr.mxu0 0.0
    %4690 = vmatpush2.msra.mxu0 0.0
    %4691 = vmatprep.subr.mxu0 0.0
    %4692 = vmatpush2.msra.mxu0 0.0
    %4693 = vmatprep.subr.mxu0 0.0
    %4694 = vmatpush2.msra.mxu0 0.0
    %4695 = vmatprep.subr.mxu0 0.0
    %4696 = vmatpush2.msra.mxu0 0.0
    %4697 = vmatprep.subr.mxu0 0.0
    %4698 = vmatpush2.msra.mxu0 0.0
    %4699 = vmatprep.subr.mxu0 0.0
    %4700 = vmatpush2.msra.mxu0 0.0
    %4701 = vmatprep.subr.mxu0 0.0
    %4702 = vmatpush2.msra.mxu0 0.0
    %4703 = vmatprep.subr.mxu0 0.0
    %4704 = vmatpush2.msra.mxu0 0.0
    %4705 = vmatprep.subr.mxu0 0.0
    %4706 = vmatpush2.msra.mxu0 0.0
    %4707 = vmatprep.subr.mxu0 0.0
    %4708 = vmatpush2.msra.mxu0 0.0
    %4709 = vmatprep.subr.mxu0 0.0
    %4710 = vmatpush2.msra.mxu0 0.0
    %4711 = vmatprep.subr.mxu0 0.0
    %4712 = vmatpush2.msra.mxu0 0.0
    %4713 = vmatprep.subr.mxu0 0.0
    %4714 = vmatpush2.msra.mxu0 0.0
    %4715 = vmatprep.subr.mxu0 0.0
    %4716 = vmatpush2.msra.mxu0 0.0
    %4717 = vmatprep.subr.mxu0 0.0
    %4718 = vmatpush2.msra.mxu0 0.0
    %4719 = vmatprep.subr.mxu0 0.0
    %4720 = vmatpush2.msra.mxu0 0.0
    %4721 = vmatprep.mubr.f32.mxu0 0.0
    %4722 = vmatmul.mubr.f32.gmra.mxu0 %v4656
    %v4723 = vpop.f32.mrf.mxu0
    %v4724 = vadd.f32 0.0, %v4723
    %v4725 = vpop.f32.mrf.mxu0
    %v4726 = vadd.f32 0.0, %v4725
    %4727 = vdwg.mxu0
    %v4728 = vadd.f32 %v4724, %v2041
    %v4729 = vadd.f32 %v4726, %v356
    %v4730 = vsel %vm2045, %v4728, -inf
    %4731 = vmax.xlane.f32.xlu0 %v4730
    %v4732 = vpop.xlane.xlu0 %4731
    %v4733 = vsub.f32 %v4728, %v4732
    %v4734 = vmul.f32 %v4733, 1.442695
    %v4735 = vpow.pop %v4734
    %v4736 = vsel %vm2045, %v4735, 0.0
    %4737 = vadd.xlane.f32.xlu0 %v4736
    %v4738 = vpop.xlane.xlu0 %4737
    %v4739 = vlog2.pop %v4738
    %v4740 = vmul.f32 %v4739, 0.6931472
    %v4741 = vsub.f32 %v4733, %v4740
    %vm4742 = vcmp.eq.f32.partialorder %v4728, %v4732
    %v4743 = vsel %vm4742, %v351, 128
    %v4744 = vsel %vm2045, %v4743, 2147483647
    %v4745 = vand.u32 %v4744, 65535
    %v4746 = vshra.s32 %v4744, 16
    %v4747 = vcvt.s32.f32 %v4745
    %v4748 = vcvt.s32.f32 %v4746
    %4749 = vmin.xlane.f32.xlu0 %v4748
    %v4750 = vpop.xlane.xlu0 %4749
    %vm4751 = vcmp.eq.f32.partialorder %v4748, %v4750
    %v4752 = vsel %vm4751, %v4747, inf
    %4753 = vmin.xlane.f32.xlu0 %v4752
    %v4754 = vpop.xlane.xlu0 %4753
    %v4755 = vcvt.f32.s32 %v4754
    %v4756 = vcvt.f32.s32 %v4750
    %v4757 = vshll.u32 %v4756, 16
    %v4758 = vadd.s32 %v4757, %v4755
    %vm4759 = vcmp.eq.s32.totalorder %v351, %v4758
    %v4760 = vsel %vm4759, 1, 0
    %v4761 = vcvt.s32.f32 %v4760
    %4762 = vmatprep.subr.mxu0 0.0
    %4763 = vmatpush1.msra.mxu0 %v2093
    %4764 = vmatprep.subr.mxu0 0.0
    %4765 = vmatpush1.msra.mxu0 %v2092
    %4766 = vmatprep.subr.mxu0 0.0
    %4767 = vmatpush1.msra.mxu0 %v2091
    %4768 = vmatprep.subr.mxu0 0.0
    %4769 = vmatpush1.msra.mxu0 %v2090
    %4770 = vmatprep.subr.mxu0 0.0
    %4771 = vmatpush1.msra.mxu0 %v2089
    %4772 = vmatprep.subr.mxu0 0.0
    %4773 = vmatpush1.msra.mxu0 %v2088
    %4774 = vmatprep.subr.mxu0 0.0
    %4775 = vmatpush1.msra.mxu0 %v2087
    %4776 = vmatprep.subr.mxu0 0.0
    %4777 = vmatpush1.msra.mxu0 %v2086
    %4778 = vmatprep.subr.mxu0 0.0
    %4779 = vmatpush1.msra.mxu0 %v2085
    %4780 = vmatprep.subr.mxu0 0.0
    %4781 = vmatpush1.msra.mxu0 %v2084
    %4782 = vmatprep.subr.mxu0 0.0
    %4783 = vmatpush1.msra.mxu0 %v2083
    %4784 = vmatprep.subr.mxu0 0.0
    %4785 = vmatpush1.msra.mxu0 %v2082
    %4786 = vmatprep.subr.mxu0 0.0
    %4787 = vmatpush1.msra.mxu0 %v2081
    %4788 = vmatprep.subr.mxu0 0.0
    %4789 = vmatpush1.msra.mxu0 %v2080
    %4790 = vmatprep.subr.mxu0 0.0
    %4791 = vmatpush1.msra.mxu0 %v2079
    %4792 = vmatprep.subr.mxu0 0.0
    %4793 = vmatpush1.msra.mxu0 %v2078
    %4794 = vmatprep.subr.mxu0 0.0
    %4795 = vmatpush2.msra.mxu0 0.0
    %4796 = vmatprep.subr.mxu0 0.0
    %4797 = vmatpush2.msra.mxu0 0.0
    %4798 = vmatprep.subr.mxu0 0.0
    %4799 = vmatpush2.msra.mxu0 0.0
    %4800 = vmatprep.subr.mxu0 0.0
    %4801 = vmatpush2.msra.mxu0 0.0
    %4802 = vmatprep.subr.mxu0 0.0
    %4803 = vmatpush2.msra.mxu0 0.0
    %4804 = vmatprep.subr.mxu0 0.0
    %4805 = vmatpush2.msra.mxu0 0.0
    %4806 = vmatprep.subr.mxu0 0.0
    %4807 = vmatpush2.msra.mxu0 0.0
    %4808 = vmatprep.subr.mxu0 0.0
    %4809 = vmatpush2.msra.mxu0 0.0
    %4810 = vmatprep.subr.mxu0 0.0
    %4811 = vmatpush2.msra.mxu0 0.0
    %4812 = vmatprep.subr.mxu0 0.0
    %4813 = vmatpush2.msra.mxu0 0.0
    %4814 = vmatprep.subr.mxu0 0.0
    %4815 = vmatpush2.msra.mxu0 0.0
    %4816 = vmatprep.subr.mxu0 0.0
    %4817 = vmatpush2.msra.mxu0 0.0
    %4818 = vmatprep.subr.mxu0 0.0
    %4819 = vmatpush2.msra.mxu0 0.0
    %4820 = vmatprep.subr.mxu0 0.0
    %4821 = vmatpush2.msra.mxu0 0.0
    %4822 = vmatprep.subr.mxu0 0.0
    %4823 = vmatpush2.msra.mxu0 0.0
    %4824 = vmatprep.subr.mxu0 0.0
    %4825 = vmatpush2.msra.mxu0 0.0
    %4826 = vmatprep.mubr.f32.mxu0 0.0
    %4827 = vmatmul.mubr.f32.gmra.mxu0 %v4761
    %v4828 = vpop.f32.mrf.mxu0
    %v4829 = vadd.f32 0.0, %v4828
    %v4830 = vpop.f32.mrf.mxu0
    %4831 = vdwg.mxu0
    %v4832 = vlaneseq
    %v4833 = vshrl.u32 %v4832, 7
    %v4834 = vsub.s32 0, %v4833
    %v4835 = vrot.slane %v4729, %v4834
    %v4836 = vadd.f32 %v273, %v4835
    %v4837 = vmax.f32 %v4836, 0.0
    %v4838 = vmul.f32 %v4837, %v364
    %4839 = vadd.xlane.f32.xlu0 %v4838
    %v4840 = vpop.xlane.xlu0 %4839
    %v4841 = vrot.slane %v4840, 4
    %v4842 = vmax.f32 %v4840, %v4841
    %v4843 = vrot.slane %v4842, 2
    %v4844 = vmax.f32 %v4842, %v4843
    %v4845 = vrot.slane %v4844, 1
    %v4846 = vmax.f32 %v4844, %v4845
    %v4847 = vsub.f32 %v4840, %v4846
    %v4848 = vmul.f32 %v4847, 1.442695
    %v4849 = vpow.pop %v4848
    %v4850 = vrot.slane %v4849, 4
    %v4851 = vadd.f32 %v4849, %v4850
    %v4852 = vrot.slane %v4851, 2
    %v4853 = vadd.f32 %v4851, %v4852
    %v4854 = vrot.slane %v4853, 1
    %v4855 = vadd.f32 %v4853, %v4854
    %v4856 = vlog2.pop %v4855
    %v4857 = vmul.f32 %v4856, 0.6931472
    %v4858 = vsub.f32 %v4847, %v4857
    %v4859 = vmul.f32 %v4858, %v195
    %v4860 = vsel %vm202, %v4859, 0.0
    %v4861 = vrot.slane %v4860, 4
    %v4862 = vadd.f32 %v4860, %v4861
    %v4863 = vrot.slane %v4862, 2
    %v4864 = vadd.f32 %v4862, %v4863
    %v4865 = vrot.slane %v4864, 1
    %v4866 = vadd.f32 %v4864, %v4865
    %v4867 = vlaneseq
    %v4868 = vshrl.u32 %v4867, 7
    %v4869 = vsub.s32 1, %v4868
    %v4870 = vrot.slane %v4729, %v4869
    %v4871 = vadd.f32 %v346, %v4870
    %v4872 = vmax.f32 %v4871, 0.0
    %v4873 = vmul.f32 %v4872, %v364
    %4874 = vadd.xlane.f32.xlu0 %v4873
    %v4875 = vpop.xlane.xlu0 %4874
    %v4876 = vrot.slane %v4875, 4
    %v4877 = vmax.f32 %v4875, %v4876
    %v4878 = vrot.slane %v4877, 2
    %v4879 = vmax.f32 %v4877, %v4878
    %v4880 = vrot.slane %v4879, 1
    %v4881 = vmax.f32 %v4879, %v4880
    %v4882 = vsub.f32 %v4875, %v4881
    %v4883 = vmul.f32 %v4882, 1.442695
    %v4884 = vpow.pop %v4883
    %v4885 = vrot.slane %v4884, 4
    %v4886 = vadd.f32 %v4884, %v4885
    %v4887 = vrot.slane %v4886, 2
    %v4888 = vadd.f32 %v4886, %v4887
    %v4889 = vrot.slane %v4888, 1
    %v4890 = vadd.f32 %v4888, %v4889
    %v4891 = vlog2.pop %v4890
    %v4892 = vmul.f32 %v4891, 0.6931472
    %v4893 = vsub.f32 %v4882, %v4892
    %v4894 = vmul.f32 %v4893, %v197
    %v4895 = vsel %vm202, %v4894, 0.0
    %v4896 = vrot.slane %v4895, 4
    %v4897 = vadd.f32 %v4895, %v4896
    %v4898 = vrot.slane %v4897, 2
    %v4899 = vadd.f32 %v4897, %v4898
    %v4900 = vrot.slane %v4899, 1
    %v4901 = vadd.f32 %v4899, %v4900
    %v4902 = vsel %vm426, %v4866, %v4901
    %v4904 = vsel %vm202, %v4902, 0
    %4906 = vmatprep.subr.mxu0 0.0
    %4907 = vmatpush1.msra.mxu0 0.0
    %4908 = vmatprep.subr.mxu0 0.0
    %4909 = vmatpush1.msra.mxu0 0.0
    %4910 = vmatprep.subr.mxu0 0.0
    %4911 = vmatpush1.msra.mxu0 0.0
    %4912 = vmatprep.subr.mxu0 0.0
    %4913 = vmatpush1.msra.mxu0 0.0
    %4914 = vmatprep.subr.mxu0 0.0
    %4915 = vmatpush1.msra.mxu0 0.0
    %4916 = vmatprep.subr.mxu0 0.0
    %4917 = vmatpush1.msra.mxu0 0.0
    %4918 = vmatprep.subr.mxu0 0.0
    %4919 = vmatpush1.msra.mxu0 0.0
    %4920 = vmatprep.subr.mxu0 0.0
    %4921 = vmatpush1.msra.mxu0 0.0
    %4922 = vmatprep.subr.mxu0 0.0
    %4923 = vmatpush1.msra.mxu0 0.0
    %4924 = vmatprep.subr.mxu0 0.0
    %4925 = vmatpush1.msra.mxu0 0.0
    %4926 = vmatprep.subr.mxu0 0.0
    %4927 = vmatpush1.msra.mxu0 0.0
    %4928 = vmatprep.subr.mxu0 0.0
    %4929 = vmatpush1.msra.mxu0 0.0
    %4930 = vmatprep.subr.mxu0 %v457
    %4931 = vmatpush1.msra.mxu0 %v456
    %4932 = vmatprep.subr.mxu0 %v453
    %4933 = vmatpush1.msra.mxu0 %v452
    %4934 = vmatprep.subr.mxu0 %v449
    %4935 = vmatpush1.msra.mxu0 %v448
    %4936 = vmatprep.subr.mxu0 %v445
    %4937 = vmatpush1.msra.mxu0 %v444
    %4938 = vmatprep.subr.mxu0 0.0
    %4939 = vmatpush2.msra.mxu0 0.0
    %4940 = vmatprep.subr.mxu0 0.0
    %4941 = vmatpush2.msra.mxu0 0.0
    %4942 = vmatprep.subr.mxu0 0.0
    %4943 = vmatpush2.msra.mxu0 0.0
    %4944 = vmatprep.subr.mxu0 0.0
    %4945 = vmatpush2.msra.mxu0 0.0
    %4946 = vmatprep.subr.mxu0 0.0
    %4947 = vmatpush2.msra.mxu0 0.0
    %4948 = vmatprep.subr.mxu0 0.0
    %4949 = vmatpush2.msra.mxu0 0.0
    %4950 = vmatprep.subr.mxu0 0.0
    %4951 = vmatpush2.msra.mxu0 0.0
    %4952 = vmatprep.subr.mxu0 0.0
    %4953 = vmatpush2.msra.mxu0 0.0
    %4954 = vmatprep.subr.mxu0 0.0
    %4955 = vmatpush2.msra.mxu0 0.0
    %4956 = vmatprep.subr.mxu0 0.0
    %4957 = vmatpush2.msra.mxu0 0.0
    %4958 = vmatprep.subr.mxu0 0.0
    %4959 = vmatpush2.msra.mxu0 0.0
    %4960 = vmatprep.subr.mxu0 0.0
    %4961 = vmatpush2.msra.mxu0 0.0
    %4962 = vmatprep.subr.mxu0 0.0
    %4963 = vmatpush2.msra.mxu0 0.0
    %4964 = vmatprep.subr.mxu0 0.0
    %4965 = vmatpush2.msra.mxu0 0.0
    %4966 = vmatprep.subr.mxu0 0.0
    %4967 = vmatpush2.msra.mxu0 0.0
    %4968 = vmatprep.subr.mxu0 0.0
    %4969 = vmatpush2.msra.mxu0 0.0
    %4970 = vmatprep.mubr.f32.mxu0 0.0
    %4971 = vmatmul.mubr.f32.gmra.mxu0 %v4904
    %v4972 = vpop.f32.mrf.mxu0
    %v4973 = vadd.f32 0.0, %v4972
    %v4974 = vpop.f32.mrf.mxu0
    %v4975 = vadd.f32 0.0, %v4974
    %4976 = vdwg.mxu0
    %4977 = vmatprep.subr.mxu0 0.0
    %4978 = vmatpush1.msra.mxu0 0.0
    %4979 = vmatprep.subr.mxu0 0.0
    %4980 = vmatpush1.msra.mxu0 0.0
    %4981 = vmatprep.subr.mxu0 0.0
    %4982 = vmatpush1.msra.mxu0 0.0
    %4983 = vmatprep.subr.mxu0 0.0
    %4984 = vmatpush1.msra.mxu0 0.0
    %4985 = vmatprep.subr.mxu0 0.0
    %4986 = vmatpush1.msra.mxu0 0.0
    %4987 = vmatprep.subr.mxu0 0.0
    %4988 = vmatpush1.msra.mxu0 0.0
    %4989 = vmatprep.subr.mxu0 0.0
    %4990 = vmatpush1.msra.mxu0 0.0
    %4991 = vmatprep.subr.mxu0 0.0
    %4992 = vmatpush1.msra.mxu0 0.0
    %4993 = vmatprep.subr.mxu0 0.0
    %4994 = vmatpush1.msra.mxu0 0.0
    %4995 = vmatprep.subr.mxu0 0.0
    %4996 = vmatpush1.msra.mxu0 0.0
    %4997 = vmatprep.subr.mxu0 0.0
    %4998 = vmatpush1.msra.mxu0 0.0
    %4999 = vmatprep.subr.mxu0 0.0
    %5000 = vmatpush1.msra.mxu0 0.0
    %5001 = vmatprep.subr.mxu0 %v459
    %5002 = vmatpush1.msra.mxu0 %v458
    %5003 = vmatprep.subr.mxu0 %v455
    %5004 = vmatpush1.msra.mxu0 %v454
    %5005 = vmatprep.subr.mxu0 %v451
    %5006 = vmatpush1.msra.mxu0 %v450
    %5007 = vmatprep.subr.mxu0 %v447
    %5008 = vmatpush1.msra.mxu0 %v446
    %5009 = vmatprep.subr.mxu0 0.0
    %5010 = vmatpush2.msra.mxu0 0.0
    %5011 = vmatprep.subr.mxu0 0.0
    %5012 = vmatpush2.msra.mxu0 0.0
    %5013 = vmatprep.subr.mxu0 0.0
    %5014 = vmatpush2.msra.mxu0 0.0
    %5015 = vmatprep.subr.mxu0 0.0
    %5016 = vmatpush2.msra.mxu0 0.0
    %5017 = vmatprep.subr.mxu0 0.0
    %5018 = vmatpush2.msra.mxu0 0.0
    %5019 = vmatprep.subr.mxu0 0.0
    %5020 = vmatpush2.msra.mxu0 0.0
    %5021 = vmatprep.subr.mxu0 0.0
    %5022 = vmatpush2.msra.mxu0 0.0
    %5023 = vmatprep.subr.mxu0 0.0
    %5024 = vmatpush2.msra.mxu0 0.0
    %5025 = vmatprep.subr.mxu0 0.0
    %5026 = vmatpush2.msra.mxu0 0.0
    %5027 = vmatprep.subr.mxu0 0.0
    %5028 = vmatpush2.msra.mxu0 0.0
    %5029 = vmatprep.subr.mxu0 0.0
    %5030 = vmatpush2.msra.mxu0 0.0
    %5031 = vmatprep.subr.mxu0 0.0
    %5032 = vmatpush2.msra.mxu0 0.0
    %5033 = vmatprep.subr.mxu0 0.0
    %5034 = vmatpush2.msra.mxu0 0.0
    %5035 = vmatprep.subr.mxu0 0.0
    %5036 = vmatpush2.msra.mxu0 0.0
    %5037 = vmatprep.subr.mxu0 0.0
    %5038 = vmatpush2.msra.mxu0 0.0
    %5039 = vmatprep.subr.mxu0 0.0
    %5040 = vmatpush2.msra.mxu0 0.0
    %5041 = vmatprep.mubr.f32.mxu0 0.0
    %5042 = vmatmul.mubr.f32.gmra.mxu0 %v4904
    %v5043 = vpop.f32.mrf.mxu0
    %v5044 = vadd.f32 0.0, %v5043
    %v5045 = vpop.f32.mrf.mxu0
    %v5046 = vadd.f32 0.0, %v5045
    %5047 = vdwg.mxu0
    %v5049 = vsel %vm202, %v4829, 0
    %5051 = vmatprep.subr.mxu0 0.0
    %5052 = vmatpush1.msra.mxu0 0.0
    %5053 = vmatprep.subr.mxu0 0.0
    %5054 = vmatpush1.msra.mxu0 0.0
    %5055 = vmatprep.subr.mxu0 0.0
    %5056 = vmatpush1.msra.mxu0 0.0
    %5057 = vmatprep.subr.mxu0 0.0
    %5058 = vmatpush1.msra.mxu0 0.0
    %5059 = vmatprep.subr.mxu0 0.0
    %5060 = vmatpush1.msra.mxu0 0.0
    %5061 = vmatprep.subr.mxu0 0.0
    %5062 = vmatpush1.msra.mxu0 0.0
    %5063 = vmatprep.subr.mxu0 0.0
    %5064 = vmatpush1.msra.mxu0 0.0
    %5065 = vmatprep.subr.mxu0 0.0
    %5066 = vmatpush1.msra.mxu0 0.0
    %5067 = vmatprep.subr.mxu0 0.0
    %5068 = vmatpush1.msra.mxu0 0.0
    %5069 = vmatprep.subr.mxu0 0.0
    %5070 = vmatpush1.msra.mxu0 0.0
    %5071 = vmatprep.subr.mxu0 0.0
    %5072 = vmatpush1.msra.mxu0 0.0
    %5073 = vmatprep.subr.mxu0 0.0
    %5074 = vmatpush1.msra.mxu0 0.0
    %5075 = vmatprep.subr.mxu0 %v441
    %5076 = vmatpush1.msra.mxu0 %v440
    %5077 = vmatprep.subr.mxu0 %v437
    %5078 = vmatpush1.msra.mxu0 %v436
    %5079 = vmatprep.subr.mxu0 %v433
    %5080 = vmatpush1.msra.mxu0 %v432
    %5081 = vmatprep.subr.mxu0 %v429
    %5082 = vmatpush1.msra.mxu0 %v428
    %5083 = vmatprep.subr.mxu0 0.0
    %5084 = vmatpush2.msra.mxu0 0.0
    %5085 = vmatprep.subr.mxu0 0.0
    %5086 = vmatpush2.msra.mxu0 0.0
    %5087 = vmatprep.subr.mxu0 0.0
    %5088 = vmatpush2.msra.mxu0 0.0
    %5089 = vmatprep.subr.mxu0 0.0
    %5090 = vmatpush2.msra.mxu0 0.0
    %5091 = vmatprep.subr.mxu0 0.0
    %5092 = vmatpush2.msra.mxu0 0.0
    %5093 = vmatprep.subr.mxu0 0.0
    %5094 = vmatpush2.msra.mxu0 0.0
    %5095 = vmatprep.subr.mxu0 0.0
    %5096 = vmatpush2.msra.mxu0 0.0
    %5097 = vmatprep.subr.mxu0 0.0
    %5098 = vmatpush2.msra.mxu0 0.0
    %5099 = vmatprep.subr.mxu0 0.0
    %5100 = vmatpush2.msra.mxu0 0.0
    %5101 = vmatprep.subr.mxu0 0.0
    %5102 = vmatpush2.msra.mxu0 0.0
    %5103 = vmatprep.subr.mxu0 0.0
    %5104 = vmatpush2.msra.mxu0 0.0
    %5105 = vmatprep.subr.mxu0 0.0
    %5106 = vmatpush2.msra.mxu0 0.0
    %5107 = vmatprep.subr.mxu0 0.0
    %5108 = vmatpush2.msra.mxu0 0.0
    %5109 = vmatprep.subr.mxu0 0.0
    %5110 = vmatpush2.msra.mxu0 0.0
    %5111 = vmatprep.subr.mxu0 0.0
    %5112 = vmatpush2.msra.mxu0 0.0
    %5113 = vmatprep.subr.mxu0 0.0
    %5114 = vmatpush2.msra.mxu0 0.0
    %5115 = vmatprep.mubr.f32.mxu0 0.0
    %5116 = vmatmul.mubr.f32.gmra.mxu0 %v5049
    %v5117 = vpop.f32.mrf.mxu0
    %v5118 = vadd.f32 %v4973, %v5117
    %v5119 = vpop.f32.mrf.mxu0
    %v5120 = vadd.f32 %v4975, %v5119
    %5121 = vdwg.mxu0
    %5122 = vmatprep.subr.mxu0 0.0
    %5123 = vmatpush1.msra.mxu0 0.0
    %5124 = vmatprep.subr.mxu0 0.0
    %5125 = vmatpush1.msra.mxu0 0.0
    %5126 = vmatprep.subr.mxu0 0.0
    %5127 = vmatpush1.msra.mxu0 0.0
    %5128 = vmatprep.subr.mxu0 0.0
    %5129 = vmatpush1.msra.mxu0 0.0
    %5130 = vmatprep.subr.mxu0 0.0
    %5131 = vmatpush1.msra.mxu0 0.0
    %5132 = vmatprep.subr.mxu0 0.0
    %5133 = vmatpush1.msra.mxu0 0.0
    %5134 = vmatprep.subr.mxu0 0.0
    %5135 = vmatpush1.msra.mxu0 0.0
    %5136 = vmatprep.subr.mxu0 0.0
    %5137 = vmatpush1.msra.mxu0 0.0
    %5138 = vmatprep.subr.mxu0 0.0
    %5139 = vmatpush1.msra.mxu0 0.0
    %5140 = vmatprep.subr.mxu0 0.0
    %5141 = vmatpush1.msra.mxu0 0.0
    %5142 = vmatprep.subr.mxu0 0.0
    %5143 = vmatpush1.msra.mxu0 0.0
    %5144 = vmatprep.subr.mxu0 0.0
    %5145 = vmatpush1.msra.mxu0 0.0
    %5146 = vmatprep.subr.mxu0 %v443
    %5147 = vmatpush1.msra.mxu0 %v442
    %5148 = vmatprep.subr.mxu0 %v439
    %5149 = vmatpush1.msra.mxu0 %v438
    %5150 = vmatprep.subr.mxu0 %v435
    %5151 = vmatpush1.msra.mxu0 %v434
    %5152 = vmatprep.subr.mxu0 %v431
    %5153 = vmatpush1.msra.mxu0 %v430
    %5154 = vmatprep.subr.mxu0 0.0
    %5155 = vmatpush2.msra.mxu0 0.0
    %5156 = vmatprep.subr.mxu0 0.0
    %5157 = vmatpush2.msra.mxu0 0.0
    %5158 = vmatprep.subr.mxu0 0.0
    %5159 = vmatpush2.msra.mxu0 0.0
    %5160 = vmatprep.subr.mxu0 0.0
    %5161 = vmatpush2.msra.mxu0 0.0
    %5162 = vmatprep.subr.mxu0 0.0
    %5163 = vmatpush2.msra.mxu0 0.0
    %5164 = vmatprep.subr.mxu0 0.0
    %5165 = vmatpush2.msra.mxu0 0.0
    %5166 = vmatprep.subr.mxu0 0.0
    %5167 = vmatpush2.msra.mxu0 0.0
    %5168 = vmatprep.subr.mxu0 0.0
    %5169 = vmatpush2.msra.mxu0 0.0
    %5170 = vmatprep.subr.mxu0 0.0
    %5171 = vmatpush2.msra.mxu0 0.0
    %5172 = vmatprep.subr.mxu0 0.0
    %5173 = vmatpush2.msra.mxu0 0.0
    %5174 = vmatprep.subr.mxu0 0.0
    %5175 = vmatpush2.msra.mxu0 0.0
    %5176 = vmatprep.subr.mxu0 0.0
    %5177 = vmatpush2.msra.mxu0 0.0
    %5178 = vmatprep.subr.mxu0 0.0
    %5179 = vmatpush2.msra.mxu0 0.0
    %5180 = vmatprep.subr.mxu0 0.0
    %5181 = vmatpush2.msra.mxu0 0.0
    %5182 = vmatprep.subr.mxu0 0.0
    %5183 = vmatpush2.msra.mxu0 0.0
    %5184 = vmatprep.subr.mxu0 0.0
    %5185 = vmatpush2.msra.mxu0 0.0
    %5186 = vmatprep.mubr.f32.mxu0 0.0
    %5187 = vmatmul.mubr.f32.gmra.mxu0 %v5049
    %v5188 = vpop.f32.mrf.mxu0
    %v5189 = vadd.f32 %v5044, %v5188
    %v5190 = vpop.f32.mrf.mxu0
    %v5191 = vadd.f32 %v5046, %v5190
    %5192 = vdwg.mxu0
    %5193 = vmatprep.subr.mxu0 %v811
    %5194 = vmatpush1.msra.mxu0 %v810
    %5195 = vmatprep.subr.mxu0 %v807
    %5196 = vmatpush1.msra.mxu0 %v806
    %5197 = vmatprep.subr.mxu0 %v803
    %5198 = vmatpush1.msra.mxu0 %v802
    %5199 = vmatprep.subr.mxu0 %v799
    %5200 = vmatpush1.msra.mxu0 %v798
    %5201 = vmatprep.subr.mxu0 %v795
    %5202 = vmatpush1.msra.mxu0 %v794
    %5203 = vmatprep.subr.mxu0 %v791
    %5204 = vmatpush1.msra.mxu0 %v790
    %5205 = vmatprep.subr.mxu0 %v787
    %5206 = vmatpush1.msra.mxu0 %v786
    %5207 = vmatprep.subr.mxu0 %v783
    %5208 = vmatpush1.msra.mxu0 %v782
    %5209 = vmatprep.subr.mxu0 %v779
    %5210 = vmatpush1.msra.mxu0 %v778
    %5211 = vmatprep.subr.mxu0 %v775
    %5212 = vmatpush1.msra.mxu0 %v774
    %5213 = vmatprep.subr.mxu0 %v771
    %5214 = vmatpush1.msra.mxu0 %v770
    %5215 = vmatprep.subr.mxu0 %v767
    %5216 = vmatpush1.msra.mxu0 %v766
    %5217 = vmatprep.subr.mxu0 %v763
    %5218 = vmatpush1.msra.mxu0 %v762
    %5219 = vmatprep.subr.mxu0 %v759
    %5220 = vmatpush1.msra.mxu0 %v758
    %5221 = vmatprep.subr.mxu0 %v755
    %5222 = vmatpush1.msra.mxu0 %v754
    %5223 = vmatprep.subr.mxu0 %v751
    %5224 = vmatpush1.msra.mxu0 %v750
    %5225 = vmatprep.subr.mxu0 0.0
    %5226 = vmatpush2.msra.mxu0 0.0
    %5227 = vmatprep.subr.mxu0 0.0
    %5228 = vmatpush2.msra.mxu0 0.0
    %5229 = vmatprep.subr.mxu0 0.0
    %5230 = vmatpush2.msra.mxu0 0.0
    %5231 = vmatprep.subr.mxu0 0.0
    %5232 = vmatpush2.msra.mxu0 0.0
    %5233 = vmatprep.subr.mxu0 0.0
    %5234 = vmatpush2.msra.mxu0 0.0
    %5235 = vmatprep.subr.mxu0 0.0
    %5236 = vmatpush2.msra.mxu0 0.0
    %5237 = vmatprep.subr.mxu0 0.0
    %5238 = vmatpush2.msra.mxu0 0.0
    %5239 = vmatprep.subr.mxu0 0.0
    %5240 = vmatpush2.msra.mxu0 0.0
    %5241 = vmatprep.subr.mxu0 0.0
    %5242 = vmatpush2.msra.mxu0 0.0
    %5243 = vmatprep.subr.mxu0 0.0
    %5244 = vmatpush2.msra.mxu0 0.0
    %5245 = vmatprep.subr.mxu0 0.0
    %5246 = vmatpush2.msra.mxu0 0.0
    %5247 = vmatprep.subr.mxu0 0.0
    %5248 = vmatpush2.msra.mxu0 0.0
    %5249 = vmatprep.subr.mxu0 0.0
    %5250 = vmatpush2.msra.mxu0 0.0
    %5251 = vmatprep.subr.mxu0 0.0
    %5252 = vmatpush2.msra.mxu0 0.0
    %5253 = vmatprep.subr.mxu0 0.0
    %5254 = vmatpush2.msra.mxu0 0.0
    %5255 = vmatprep.subr.mxu0 0.0
    %5256 = vmatpush2.msra.mxu0 0.0
    %5257 = vmatprep.mubr.f32.mxu0 0.0
    %5258 = vmatmul.mubr.f32.gmra.mxu0 %v4032
    %v5259 = vpop.f32.mrf.mxu0
    %v5260 = vadd.f32 0.0, %v5259
    %v5261 = vpop.f32.mrf.mxu0
    %v5262 = vadd.f32 0.0, %v5261
    %5263 = vdwg.mxu0
    %5264 = vmatprep.subr.mxu0 %v813
    %5265 = vmatpush1.msra.mxu0 %v812
    %5266 = vmatprep.subr.mxu0 %v809
    %5267 = vmatpush1.msra.mxu0 %v808
    %5268 = vmatprep.subr.mxu0 %v805
    %5269 = vmatpush1.msra.mxu0 %v804
    %5270 = vmatprep.subr.mxu0 %v801
    %5271 = vmatpush1.msra.mxu0 %v800
    %5272 = vmatprep.subr.mxu0 %v797
    %5273 = vmatpush1.msra.mxu0 %v796
    %5274 = vmatprep.subr.mxu0 %v793
    %5275 = vmatpush1.msra.mxu0 %v792
    %5276 = vmatprep.subr.mxu0 %v789
    %5277 = vmatpush1.msra.mxu0 %v788
    %5278 = vmatprep.subr.mxu0 %v785
    %5279 = vmatpush1.msra.mxu0 %v784
    %5280 = vmatprep.subr.mxu0 %v781
    %5281 = vmatpush1.msra.mxu0 %v780
    %5282 = vmatprep.subr.mxu0 %v777
    %5283 = vmatpush1.msra.mxu0 %v776
    %5284 = vmatprep.subr.mxu0 %v773
    %5285 = vmatpush1.msra.mxu0 %v772
    %5286 = vmatprep.subr.mxu0 %v769
    %5287 = vmatpush1.msra.mxu0 %v768
    %5288 = vmatprep.subr.mxu0 %v765
    %5289 = vmatpush1.msra.mxu0 %v764
    %5290 = vmatprep.subr.mxu0 %v761
    %5291 = vmatpush1.msra.mxu0 %v760
    %5292 = vmatprep.subr.mxu0 %v757
    %5293 = vmatpush1.msra.mxu0 %v756
    %5294 = vmatprep.subr.mxu0 %v753
    %5295 = vmatpush1.msra.mxu0 %v752
    %5296 = vmatprep.subr.mxu0 0.0
    %5297 = vmatpush2.msra.mxu0 0.0
    %5298 = vmatprep.subr.mxu0 0.0
    %5299 = vmatpush2.msra.mxu0 0.0
    %5300 = vmatprep.subr.mxu0 0.0
    %5301 = vmatpush2.msra.mxu0 0.0
    %5302 = vmatprep.subr.mxu0 0.0
    %5303 = vmatpush2.msra.mxu0 0.0
    %5304 = vmatprep.subr.mxu0 0.0
    %5305 = vmatpush2.msra.mxu0 0.0
    %5306 = vmatprep.subr.mxu0 0.0
    %5307 = vmatpush2.msra.mxu0 0.0
    %5308 = vmatprep.subr.mxu0 0.0
    %5309 = vmatpush2.msra.mxu0 0.0
    %5310 = vmatprep.subr.mxu0 0.0
    %5311 = vmatpush2.msra.mxu0 0.0
    %5312 = vmatprep.subr.mxu0 0.0
    %5313 = vmatpush2.msra.mxu0 0.0
    %5314 = vmatprep.subr.mxu0 0.0
    %5315 = vmatpush2.msra.mxu0 0.0
    %5316 = vmatprep.subr.mxu0 0.0
    %5317 = vmatpush2.msra.mxu0 0.0
    %5318 = vmatprep.subr.mxu0 0.0
    %5319 = vmatpush2.msra.mxu0 0.0
    %5320 = vmatprep.subr.mxu0 0.0
    %5321 = vmatpush2.msra.mxu0 0.0
    %5322 = vmatprep.subr.mxu0 0.0
    %5323 = vmatpush2.msra.mxu0 0.0
    %5324 = vmatprep.subr.mxu0 0.0
    %5325 = vmatpush2.msra.mxu0 0.0
    %5326 = vmatprep.subr.mxu0 0.0
    %5327 = vmatpush2.msra.mxu0 0.0
    %5328 = vmatprep.mubr.f32.mxu0 0.0
    %5329 = vmatmul.mubr.f32.gmra.mxu0 %v4032
    %v5330 = vpop.f32.mrf.mxu0
    %v5331 = vadd.f32 0.0, %v5330
    %v5332 = vpop.f32.mrf.mxu0
    %v5333 = vadd.f32 0.0, %v5332
    %5334 = vdwg.mxu0
    %v5335 = vadd.f32 %v5118, %v5260
    %v5336 = vadd.f32 %v5120, %v5262
    %v5337 = vadd.f32 %v5189, %v5331
    %v5338 = vadd.f32 %v5191, %v5333
    %v5339 = vadd.f32 %v5335, %v965
    %v5340 = vadd.f32 %v5336, %v969
    %v5341 = vadd.f32 %v5337, %v973
    %v5342 = vadd.f32 %v5338, %v977
    %v5343 = vxor.u32 %v5339, 2147483648
    %v5344 = vmul.f32 %v5343, 1.442695
    %v5345 = vpow.pop %v5344
    %v5346 = vadd.f32 %v5345, 1.0
    %v5347 = vrcp.pop %v5346
    %v5348 = vmul.f32 1.0, %v5347
    %v5349 = vxor.u32 %v5340, 2147483648
    %v5350 = vmul.f32 %v5349, 1.442695
    %v5351 = vpow.pop %v5350
    %v5352 = vadd.f32 %v5351, 1.0
    %v5353 = vrcp.pop %v5352
    %v5354 = vmul.f32 1.0, %v5353
    %v5355 = vtanh.pop %v5341
    %v5356 = vxor.u32 %v5342, 2147483648
    %v5357 = vmul.f32 %v5356, 1.442695
    %v5358 = vpow.pop %v5357
    %v5359 = vadd.f32 %v5358, 1.0
    %v5360 = vrcp.pop %v5359
    %v5361 = vmul.f32 1.0, %v5360
    %v5362 = vmul.f32 %v5354, %v4030
    %v5363 = vmul.f32 %v5348, %v5355
    %v5364 = vadd.f32 %v5362, %v5363
    %v5365 = vtanh.pop %v5364
    %v5366 = vmul.f32 %v5361, %v5365
    %5367 = vmatprep.subr.mxu0 %v1135
    %5368 = vmatpush1.msra.mxu0 %v1134
    %5369 = vmatprep.subr.mxu0 %v1131
    %5370 = vmatpush1.msra.mxu0 %v1130
    %5371 = vmatprep.subr.mxu0 %v1127
    %5372 = vmatpush1.msra.mxu0 %v1126
    %5373 = vmatprep.subr.mxu0 %v1123
    %5374 = vmatpush1.msra.mxu0 %v1122
    %5375 = vmatprep.subr.mxu0 %v1119
    %5376 = vmatpush1.msra.mxu0 %v1118
    %5377 = vmatprep.subr.mxu0 %v1115
    %5378 = vmatpush1.msra.mxu0 %v1114
    %5379 = vmatprep.subr.mxu0 %v1111
    %5380 = vmatpush1.msra.mxu0 %v1110
    %5381 = vmatprep.subr.mxu0 %v1107
    %5382 = vmatpush1.msra.mxu0 %v1106
    %5383 = vmatprep.subr.mxu0 %v1103
    %5384 = vmatpush1.msra.mxu0 %v1102
    %5385 = vmatprep.subr.mxu0 %v1099
    %5386 = vmatpush1.msra.mxu0 %v1098
    %5387 = vmatprep.subr.mxu0 %v1095
    %5388 = vmatpush1.msra.mxu0 %v1094
    %5389 = vmatprep.subr.mxu0 %v1091
    %5390 = vmatpush1.msra.mxu0 %v1090
    %5391 = vmatprep.subr.mxu0 %v1087
    %5392 = vmatpush1.msra.mxu0 %v1086
    %5393 = vmatprep.subr.mxu0 %v1083
    %5394 = vmatpush1.msra.mxu0 %v1082
    %5395 = vmatprep.subr.mxu0 %v1079
    %5396 = vmatpush1.msra.mxu0 %v1078
    %5397 = vmatprep.subr.mxu0 %v1075
    %5398 = vmatpush1.msra.mxu0 %v1074
    %5399 = vmatprep.subr.mxu0 0.0
    %5400 = vmatpush2.msra.mxu0 0.0
    %5401 = vmatprep.subr.mxu0 0.0
    %5402 = vmatpush2.msra.mxu0 0.0
    %5403 = vmatprep.subr.mxu0 0.0
    %5404 = vmatpush2.msra.mxu0 0.0
    %5405 = vmatprep.subr.mxu0 0.0
    %5406 = vmatpush2.msra.mxu0 0.0
    %5407 = vmatprep.subr.mxu0 0.0
    %5408 = vmatpush2.msra.mxu0 0.0
    %5409 = vmatprep.subr.mxu0 0.0
    %5410 = vmatpush2.msra.mxu0 0.0
    %5411 = vmatprep.subr.mxu0 0.0
    %5412 = vmatpush2.msra.mxu0 0.0
    %5413 = vmatprep.subr.mxu0 0.0
    %5414 = vmatpush2.msra.mxu0 0.0
    %5415 = vmatprep.subr.mxu0 0.0
    %5416 = vmatpush2.msra.mxu0 0.0
    %5417 = vmatprep.subr.mxu0 0.0
    %5418 = vmatpush2.msra.mxu0 0.0
    %5419 = vmatprep.subr.mxu0 0.0
    %5420 = vmatpush2.msra.mxu0 0.0
    %5421 = vmatprep.subr.mxu0 0.0
    %5422 = vmatpush2.msra.mxu0 0.0
    %5423 = vmatprep.subr.mxu0 0.0
    %5424 = vmatpush2.msra.mxu0 0.0
    %5425 = vmatprep.subr.mxu0 0.0
    %5426 = vmatpush2.msra.mxu0 0.0
    %5427 = vmatprep.subr.mxu0 0.0
    %5428 = vmatpush2.msra.mxu0 0.0
    %5429 = vmatprep.subr.mxu0 0.0
    %5430 = vmatpush2.msra.mxu0 0.0
    %5431 = vmatprep.mubr.f32.mxu0 0.0
    %5432 = vmatmul.mubr.f32.gmra.mxu0 %v4344
    %v5433 = vpop.f32.mrf.mxu0
    %v5434 = vadd.f32 0.0, %v5433
    %v5435 = vpop.f32.mrf.mxu0
    %v5436 = vadd.f32 0.0, %v5435
    %5437 = vdwg.mxu0
    %5438 = vmatprep.subr.mxu0 %v1137
    %5439 = vmatpush1.msra.mxu0 %v1136
    %5440 = vmatprep.subr.mxu0 %v1133
    %5441 = vmatpush1.msra.mxu0 %v1132
    %5442 = vmatprep.subr.mxu0 %v1129
    %5443 = vmatpush1.msra.mxu0 %v1128
    %5444 = vmatprep.subr.mxu0 %v1125
    %5445 = vmatpush1.msra.mxu0 %v1124
    %5446 = vmatprep.subr.mxu0 %v1121
    %5447 = vmatpush1.msra.mxu0 %v1120
    %5448 = vmatprep.subr.mxu0 %v1117
    %5449 = vmatpush1.msra.mxu0 %v1116
    %5450 = vmatprep.subr.mxu0 %v1113
    %5451 = vmatpush1.msra.mxu0 %v1112
    %5452 = vmatprep.subr.mxu0 %v1109
    %5453 = vmatpush1.msra.mxu0 %v1108
    %5454 = vmatprep.subr.mxu0 %v1105
    %5455 = vmatpush1.msra.mxu0 %v1104
    %5456 = vmatprep.subr.mxu0 %v1101
    %5457 = vmatpush1.msra.mxu0 %v1100
    %5458 = vmatprep.subr.mxu0 %v1097
    %5459 = vmatpush1.msra.mxu0 %v1096
    %5460 = vmatprep.subr.mxu0 %v1093
    %5461 = vmatpush1.msra.mxu0 %v1092
    %5462 = vmatprep.subr.mxu0 %v1089
    %5463 = vmatpush1.msra.mxu0 %v1088
    %5464 = vmatprep.subr.mxu0 %v1085
    %5465 = vmatpush1.msra.mxu0 %v1084
    %5466 = vmatprep.subr.mxu0 %v1081
    %5467 = vmatpush1.msra.mxu0 %v1080
    %5468 = vmatprep.subr.mxu0 %v1077
    %5469 = vmatpush1.msra.mxu0 %v1076
    %5470 = vmatprep.subr.mxu0 0.0
    %5471 = vmatpush2.msra.mxu0 0.0
    %5472 = vmatprep.subr.mxu0 0.0
    %5473 = vmatpush2.msra.mxu0 0.0
    %5474 = vmatprep.subr.mxu0 0.0
    %5475 = vmatpush2.msra.mxu0 0.0
    %5476 = vmatprep.subr.mxu0 0.0
    %5477 = vmatpush2.msra.mxu0 0.0
    %5478 = vmatprep.subr.mxu0 0.0
    %5479 = vmatpush2.msra.mxu0 0.0
    %5480 = vmatprep.subr.mxu0 0.0
    %5481 = vmatpush2.msra.mxu0 0.0
    %5482 = vmatprep.subr.mxu0 0.0
    %5483 = vmatpush2.msra.mxu0 0.0
    %5484 = vmatprep.subr.mxu0 0.0
    %5485 = vmatpush2.msra.mxu0 0.0
    %5486 = vmatprep.subr.mxu0 0.0
    %5487 = vmatpush2.msra.mxu0 0.0
    %5488 = vmatprep.subr.mxu0 0.0
    %5489 = vmatpush2.msra.mxu0 0.0
    %5490 = vmatprep.subr.mxu0 0.0
    %5491 = vmatpush2.msra.mxu0 0.0
    %5492 = vmatprep.subr.mxu0 0.0
    %5493 = vmatpush2.msra.mxu0 0.0
    %5494 = vmatprep.subr.mxu0 0.0
    %5495 = vmatpush2.msra.mxu0 0.0
    %5496 = vmatprep.subr.mxu0 0.0
    %5497 = vmatpush2.msra.mxu0 0.0
    %5498 = vmatprep.subr.mxu0 0.0
    %5499 = vmatpush2.msra.mxu0 0.0
    %5500 = vmatprep.subr.mxu0 0.0
    %5501 = vmatpush2.msra.mxu0 0.0
    %5502 = vmatprep.mubr.f32.mxu0 0.0
    %5503 = vmatmul.mubr.f32.gmra.mxu0 %v4344
    %v5504 = vpop.f32.mrf.mxu0
    %v5505 = vadd.f32 0.0, %v5504
    %v5506 = vpop.f32.mrf.mxu0
    %v5507 = vadd.f32 0.0, %v5506
    %5508 = vdwg.mxu0
    %5509 = vmatprep.subr.mxu0 %v1071
    %5510 = vmatpush1.msra.mxu0 %v1070
    %5511 = vmatprep.subr.mxu0 %v1067
    %5512 = vmatpush1.msra.mxu0 %v1066
    %5513 = vmatprep.subr.mxu0 %v1063
    %5514 = vmatpush1.msra.mxu0 %v1062
    %5515 = vmatprep.subr.mxu0 %v1059
    %5516 = vmatpush1.msra.mxu0 %v1058
    %5517 = vmatprep.subr.mxu0 %v1055
    %5518 = vmatpush1.msra.mxu0 %v1054
    %5519 = vmatprep.subr.mxu0 %v1051
    %5520 = vmatpush1.msra.mxu0 %v1050
    %5521 = vmatprep.subr.mxu0 %v1047
    %5522 = vmatpush1.msra.mxu0 %v1046
    %5523 = vmatprep.subr.mxu0 %v1043
    %5524 = vmatpush1.msra.mxu0 %v1042
    %5525 = vmatprep.subr.mxu0 %v1039
    %5526 = vmatpush1.msra.mxu0 %v1038
    %5527 = vmatprep.subr.mxu0 %v1035
    %5528 = vmatpush1.msra.mxu0 %v1034
    %5529 = vmatprep.subr.mxu0 %v1031
    %5530 = vmatpush1.msra.mxu0 %v1030
    %5531 = vmatprep.subr.mxu0 %v1027
    %5532 = vmatpush1.msra.mxu0 %v1026
    %5533 = vmatprep.subr.mxu0 %v1023
    %5534 = vmatpush1.msra.mxu0 %v1022
    %5535 = vmatprep.subr.mxu0 %v1019
    %5536 = vmatpush1.msra.mxu0 %v1018
    %5537 = vmatprep.subr.mxu0 %v1015
    %5538 = vmatpush1.msra.mxu0 %v1014
    %5539 = vmatprep.subr.mxu0 %v1011
    %5540 = vmatpush1.msra.mxu0 %v1010
    %5541 = vmatprep.subr.mxu0 0.0
    %5542 = vmatpush2.msra.mxu0 0.0
    %5543 = vmatprep.subr.mxu0 0.0
    %5544 = vmatpush2.msra.mxu0 0.0
    %5545 = vmatprep.subr.mxu0 0.0
    %5546 = vmatpush2.msra.mxu0 0.0
    %5547 = vmatprep.subr.mxu0 0.0
    %5548 = vmatpush2.msra.mxu0 0.0
    %5549 = vmatprep.subr.mxu0 0.0
    %5550 = vmatpush2.msra.mxu0 0.0
    %5551 = vmatprep.subr.mxu0 0.0
    %5552 = vmatpush2.msra.mxu0 0.0
    %5553 = vmatprep.subr.mxu0 0.0
    %5554 = vmatpush2.msra.mxu0 0.0
    %5555 = vmatprep.subr.mxu0 0.0
    %5556 = vmatpush2.msra.mxu0 0.0
    %5557 = vmatprep.subr.mxu0 0.0
    %5558 = vmatpush2.msra.mxu0 0.0
    %5559 = vmatprep.subr.mxu0 0.0
    %5560 = vmatpush2.msra.mxu0 0.0
    %5561 = vmatprep.subr.mxu0 0.0
    %5562 = vmatpush2.msra.mxu0 0.0
    %5563 = vmatprep.subr.mxu0 0.0
    %5564 = vmatpush2.msra.mxu0 0.0
    %5565 = vmatprep.subr.mxu0 0.0
    %5566 = vmatpush2.msra.mxu0 0.0
    %5567 = vmatprep.subr.mxu0 0.0
    %5568 = vmatpush2.msra.mxu0 0.0
    %5569 = vmatprep.subr.mxu0 0.0
    %5570 = vmatpush2.msra.mxu0 0.0
    %5571 = vmatprep.subr.mxu0 0.0
    %5572 = vmatpush2.msra.mxu0 0.0
    %5573 = vmatprep.mubr.f32.mxu0 0.0
    %5574 = vmatmul.mubr.f32.gmra.mxu0 %v5366
    %v5575 = vpop.f32.mrf.mxu0
    %v5576 = vadd.f32 %v5434, %v5575
    %v5577 = vpop.f32.mrf.mxu0
    %v5578 = vadd.f32 %v5436, %v5577
    %5579 = vdwg.mxu0
    %5580 = vmatprep.subr.mxu0 %v1073
    %5581 = vmatpush1.msra.mxu0 %v1072
    %5582 = vmatprep.subr.mxu0 %v1069
    %5583 = vmatpush1.msra.mxu0 %v1068
    %5584 = vmatprep.subr.mxu0 %v1065
    %5585 = vmatpush1.msra.mxu0 %v1064
    %5586 = vmatprep.subr.mxu0 %v1061
    %5587 = vmatpush1.msra.mxu0 %v1060
    %5588 = vmatprep.subr.mxu0 %v1057
    %5589 = vmatpush1.msra.mxu0 %v1056
    %5590 = vmatprep.subr.mxu0 %v1053
    %5591 = vmatpush1.msra.mxu0 %v1052
    %5592 = vmatprep.subr.mxu0 %v1049
    %5593 = vmatpush1.msra.mxu0 %v1048
    %5594 = vmatprep.subr.mxu0 %v1045
    %5595 = vmatpush1.msra.mxu0 %v1044
    %5596 = vmatprep.subr.mxu0 %v1041
    %5597 = vmatpush1.msra.mxu0 %v1040
    %5598 = vmatprep.subr.mxu0 %v1037
    %5599 = vmatpush1.msra.mxu0 %v1036
    %5600 = vmatprep.subr.mxu0 %v1033
    %5601 = vmatpush1.msra.mxu0 %v1032
    %5602 = vmatprep.subr.mxu0 %v1029
    %5603 = vmatpush1.msra.mxu0 %v1028
    %5604 = vmatprep.subr.mxu0 %v1025
    %5605 = vmatpush1.msra.mxu0 %v1024
    %5606 = vmatprep.subr.mxu0 %v1021
    %5607 = vmatpush1.msra.mxu0 %v1020
    %5608 = vmatprep.subr.mxu0 %v1017
    %5609 = vmatpush1.msra.mxu0 %v1016
    %5610 = vmatprep.subr.mxu0 %v1013
    %5611 = vmatpush1.msra.mxu0 %v1012
    %5612 = vmatprep.subr.mxu0 0.0
    %5613 = vmatpush2.msra.mxu0 0.0
    %5614 = vmatprep.subr.mxu0 0.0
    %5615 = vmatpush2.msra.mxu0 0.0
    %5616 = vmatprep.subr.mxu0 0.0
    %5617 = vmatpush2.msra.mxu0 0.0
    %5618 = vmatprep.subr.mxu0 0.0
    %5619 = vmatpush2.msra.mxu0 0.0
    %5620 = vmatprep.subr.mxu0 0.0
    %5621 = vmatpush2.msra.mxu0 0.0
    %5622 = vmatprep.subr.mxu0 0.0
    %5623 = vmatpush2.msra.mxu0 0.0
    %5624 = vmatprep.subr.mxu0 0.0
    %5625 = vmatpush2.msra.mxu0 0.0
    %5626 = vmatprep.subr.mxu0 0.0
    %5627 = vmatpush2.msra.mxu0 0.0
    %5628 = vmatprep.subr.mxu0 0.0
    %5629 = vmatpush2.msra.mxu0 0.0
    %5630 = vmatprep.subr.mxu0 0.0
    %5631 = vmatpush2.msra.mxu0 0.0
    %5632 = vmatprep.subr.mxu0 0.0
    %5633 = vmatpush2.msra.mxu0 0.0
    %5634 = vmatprep.subr.mxu0 0.0
    %5635 = vmatpush2.msra.mxu0 0.0
    %5636 = vmatprep.subr.mxu0 0.0
    %5637 = vmatpush2.msra.mxu0 0.0
    %5638 = vmatprep.subr.mxu0 0.0
    %5639 = vmatpush2.msra.mxu0 0.0
    %5640 = vmatprep.subr.mxu0 0.0
    %5641 = vmatpush2.msra.mxu0 0.0
    %5642 = vmatprep.subr.mxu0 0.0
    %5643 = vmatpush2.msra.mxu0 0.0
    %5644 = vmatprep.mubr.f32.mxu0 0.0
    %5645 = vmatmul.mubr.f32.gmra.mxu0 %v5366
    %v5646 = vpop.f32.mrf.mxu0
    %v5647 = vadd.f32 %v5505, %v5646
    %v5648 = vpop.f32.mrf.mxu0
    %v5649 = vadd.f32 %v5507, %v5648
    %5650 = vdwg.mxu0
    %v5651 = vadd.f32 %v5576, %v1427
    %v5652 = vadd.f32 %v5578, %v1431
    %v5653 = vadd.f32 %v5647, %v1435
    %v5654 = vadd.f32 %v5649, %v1439
    %v5655 = vxor.u32 %v5651, 2147483648
    %v5656 = vmul.f32 %v5655, 1.442695
    %v5657 = vpow.pop %v5656
    %v5658 = vadd.f32 %v5657, 1.0
    %v5659 = vrcp.pop %v5658
    %v5660 = vmul.f32 1.0, %v5659
    %v5661 = vxor.u32 %v5652, 2147483648
    %v5662 = vmul.f32 %v5661, 1.442695
    %v5663 = vpow.pop %v5662
    %v5664 = vadd.f32 %v5663, 1.0
    %v5665 = vrcp.pop %v5664
    %v5666 = vmul.f32 1.0, %v5665
    %v5667 = vtanh.pop %v5653
    %v5668 = vxor.u32 %v5654, 2147483648
    %v5669 = vmul.f32 %v5668, 1.442695
    %v5670 = vpow.pop %v5669
    %v5671 = vadd.f32 %v5670, 1.0
    %v5672 = vrcp.pop %v5671
    %v5673 = vmul.f32 1.0, %v5672
    %v5674 = vmul.f32 %v5666, %v4342
    %v5675 = vmul.f32 %v5660, %v5667
    %v5676 = vadd.f32 %v5674, %v5675
    %v5677 = vtanh.pop %v5676
    %v5678 = vmul.f32 %v5673, %v5677
    %5679 = vmatprep.subr.mxu0 %v1597
    %5680 = vmatpush1.msra.mxu0 %v1596
    %5681 = vmatprep.subr.mxu0 %v1593
    %5682 = vmatpush1.msra.mxu0 %v1592
    %5683 = vmatprep.subr.mxu0 %v1589
    %5684 = vmatpush1.msra.mxu0 %v1588
    %5685 = vmatprep.subr.mxu0 %v1585
    %5686 = vmatpush1.msra.mxu0 %v1584
    %5687 = vmatprep.subr.mxu0 %v1581
    %5688 = vmatpush1.msra.mxu0 %v1580
    %5689 = vmatprep.subr.mxu0 %v1577
    %5690 = vmatpush1.msra.mxu0 %v1576
    %5691 = vmatprep.subr.mxu0 %v1573
    %5692 = vmatpush1.msra.mxu0 %v1572
    %5693 = vmatprep.subr.mxu0 %v1569
    %5694 = vmatpush1.msra.mxu0 %v1568
    %5695 = vmatprep.subr.mxu0 %v1565
    %5696 = vmatpush1.msra.mxu0 %v1564
    %5697 = vmatprep.subr.mxu0 %v1561
    %5698 = vmatpush1.msra.mxu0 %v1560
    %5699 = vmatprep.subr.mxu0 %v1557
    %5700 = vmatpush1.msra.mxu0 %v1556
    %5701 = vmatprep.subr.mxu0 %v1553
    %5702 = vmatpush1.msra.mxu0 %v1552
    %5703 = vmatprep.subr.mxu0 %v1549
    %5704 = vmatpush1.msra.mxu0 %v1548
    %5705 = vmatprep.subr.mxu0 %v1545
    %5706 = vmatpush1.msra.mxu0 %v1544
    %5707 = vmatprep.subr.mxu0 %v1541
    %5708 = vmatpush1.msra.mxu0 %v1540
    %5709 = vmatprep.subr.mxu0 %v1537
    %5710 = vmatpush1.msra.mxu0 %v1536
    %5711 = vmatprep.subr.mxu0 0.0
    %5712 = vmatpush2.msra.mxu0 0.0
    %5713 = vmatprep.subr.mxu0 0.0
    %5714 = vmatpush2.msra.mxu0 0.0
    %5715 = vmatprep.subr.mxu0 0.0
    %5716 = vmatpush2.msra.mxu0 0.0
    %5717 = vmatprep.subr.mxu0 0.0
    %5718 = vmatpush2.msra.mxu0 0.0
    %5719 = vmatprep.subr.mxu0 0.0
    %5720 = vmatpush2.msra.mxu0 0.0
    %5721 = vmatprep.subr.mxu0 0.0
    %5722 = vmatpush2.msra.mxu0 0.0
    %5723 = vmatprep.subr.mxu0 0.0
    %5724 = vmatpush2.msra.mxu0 0.0
    %5725 = vmatprep.subr.mxu0 0.0
    %5726 = vmatpush2.msra.mxu0 0.0
    %5727 = vmatprep.subr.mxu0 0.0
    %5728 = vmatpush2.msra.mxu0 0.0
    %5729 = vmatprep.subr.mxu0 0.0
    %5730 = vmatpush2.msra.mxu0 0.0
    %5731 = vmatprep.subr.mxu0 0.0
    %5732 = vmatpush2.msra.mxu0 0.0
    %5733 = vmatprep.subr.mxu0 0.0
    %5734 = vmatpush2.msra.mxu0 0.0
    %5735 = vmatprep.subr.mxu0 0.0
    %5736 = vmatpush2.msra.mxu0 0.0
    %5737 = vmatprep.subr.mxu0 0.0
    %5738 = vmatpush2.msra.mxu0 0.0
    %5739 = vmatprep.subr.mxu0 0.0
    %5740 = vmatpush2.msra.mxu0 0.0
    %5741 = vmatprep.subr.mxu0 0.0
    %5742 = vmatpush2.msra.mxu0 0.0
    %5743 = vmatprep.mubr.f32.mxu0 0.0
    %5744 = vmatmul.mubr.f32.gmra.mxu0 %v4656
    %v5745 = vpop.f32.mrf.mxu0
    %v5746 = vadd.f32 0.0, %v5745
    %v5747 = vpop.f32.mrf.mxu0
    %v5748 = vadd.f32 0.0, %v5747
    %5749 = vdwg.mxu0
    %5750 = vmatprep.subr.mxu0 %v1599
    %5751 = vmatpush1.msra.mxu0 %v1598
    %5752 = vmatprep.subr.mxu0 %v1595
    %5753 = vmatpush1.msra.mxu0 %v1594
    %5754 = vmatprep.subr.mxu0 %v1591
    %5755 = vmatpush1.msra.mxu0 %v1590
    %5756 = vmatprep.subr.mxu0 %v1587
    %5757 = vmatpush1.msra.mxu0 %v1586
    %5758 = vmatprep.subr.mxu0 %v1583
    %5759 = vmatpush1.msra.mxu0 %v1582
    %5760 = vmatprep.subr.mxu0 %v1579
    %5761 = vmatpush1.msra.mxu0 %v1578
    %5762 = vmatprep.subr.mxu0 %v1575
    %5763 = vmatpush1.msra.mxu0 %v1574
    %5764 = vmatprep.subr.mxu0 %v1571
    %5765 = vmatpush1.msra.mxu0 %v1570
    %5766 = vmatprep.subr.mxu0 %v1567
    %5767 = vmatpush1.msra.mxu0 %v1566
    %5768 = vmatprep.subr.mxu0 %v1563
    %5769 = vmatpush1.msra.mxu0 %v1562
    %5770 = vmatprep.subr.mxu0 %v1559
    %5771 = vmatpush1.msra.mxu0 %v1558
    %5772 = vmatprep.subr.mxu0 %v1555
    %5773 = vmatpush1.msra.mxu0 %v1554
    %5774 = vmatprep.subr.mxu0 %v1551
    %5775 = vmatpush1.msra.mxu0 %v1550
    %5776 = vmatprep.subr.mxu0 %v1547
    %5777 = vmatpush1.msra.mxu0 %v1546
    %5778 = vmatprep.subr.mxu0 %v1543
    %5779 = vmatpush1.msra.mxu0 %v1542
    %5780 = vmatprep.subr.mxu0 %v1539
    %5781 = vmatpush1.msra.mxu0 %v1538
    %5782 = vmatprep.subr.mxu0 0.0
    %5783 = vmatpush2.msra.mxu0 0.0
    %5784 = vmatprep.subr.mxu0 0.0
    %5785 = vmatpush2.msra.mxu0 0.0
    %5786 = vmatprep.subr.mxu0 0.0
    %5787 = vmatpush2.msra.mxu0 0.0
    %5788 = vmatprep.subr.mxu0 0.0
    %5789 = vmatpush2.msra.mxu0 0.0
    %5790 = vmatprep.subr.mxu0 0.0
    %5791 = vmatpush2.msra.mxu0 0.0
    %5792 = vmatprep.subr.mxu0 0.0
    %5793 = vmatpush2.msra.mxu0 0.0
    %5794 = vmatprep.subr.mxu0 0.0
    %5795 = vmatpush2.msra.mxu0 0.0
    %5796 = vmatprep.subr.mxu0 0.0
    %5797 = vmatpush2.msra.mxu0 0.0
    %5798 = vmatprep.subr.mxu0 0.0
    %5799 = vmatpush2.msra.mxu0 0.0
    %5800 = vmatprep.subr.mxu0 0.0
    %5801 = vmatpush2.msra.mxu0 0.0
    %5802 = vmatprep.subr.mxu0 0.0
    %5803 = vmatpush2.msra.mxu0 0.0
    %5804 = vmatprep.subr.mxu0 0.0
    %5805 = vmatpush2.msra.mxu0 0.0
    %5806 = vmatprep.subr.mxu0 0.0
    %5807 = vmatpush2.msra.mxu0 0.0
    %5808 = vmatprep.subr.mxu0 0.0
    %5809 = vmatpush2.msra.mxu0 0.0
    %5810 = vmatprep.subr.mxu0 0.0
    %5811 = vmatpush2.msra.mxu0 0.0
    %5812 = vmatprep.subr.mxu0 0.0
    %5813 = vmatpush2.msra.mxu0 0.0
    %5814 = vmatprep.mubr.f32.mxu0 0.0
    %5815 = vmatmul.mubr.f32.gmra.mxu0 %v4656
    %v5816 = vpop.f32.mrf.mxu0
    %v5817 = vadd.f32 0.0, %v5816
    %v5818 = vpop.f32.mrf.mxu0
    %v5819 = vadd.f32 0.0, %v5818
    %5820 = vdwg.mxu0
    %5821 = vmatprep.subr.mxu0 %v1533
    %5822 = vmatpush1.msra.mxu0 %v1532
    %5823 = vmatprep.subr.mxu0 %v1529
    %5824 = vmatpush1.msra.mxu0 %v1528
    %5825 = vmatprep.subr.mxu0 %v1525
    %5826 = vmatpush1.msra.mxu0 %v1524
    %5827 = vmatprep.subr.mxu0 %v1521
    %5828 = vmatpush1.msra.mxu0 %v1520
    %5829 = vmatprep.subr.mxu0 %v1517
    %5830 = vmatpush1.msra.mxu0 %v1516
    %5831 = vmatprep.subr.mxu0 %v1513
    %5832 = vmatpush1.msra.mxu0 %v1512
    %5833 = vmatprep.subr.mxu0 %v1509
    %5834 = vmatpush1.msra.mxu0 %v1508
    %5835 = vmatprep.subr.mxu0 %v1505
    %5836 = vmatpush1.msra.mxu0 %v1504
    %5837 = vmatprep.subr.mxu0 %v1501
    %5838 = vmatpush1.msra.mxu0 %v1500
    %5839 = vmatprep.subr.mxu0 %v1497
    %5840 = vmatpush1.msra.mxu0 %v1496
    %5841 = vmatprep.subr.mxu0 %v1493
    %5842 = vmatpush1.msra.mxu0 %v1492
    %5843 = vmatprep.subr.mxu0 %v1489
    %5844 = vmatpush1.msra.mxu0 %v1488
    %5845 = vmatprep.subr.mxu0 %v1485
    %5846 = vmatpush1.msra.mxu0 %v1484
    %5847 = vmatprep.subr.mxu0 %v1481
    %5848 = vmatpush1.msra.mxu0 %v1480
    %5849 = vmatprep.subr.mxu0 %v1477
    %5850 = vmatpush1.msra.mxu0 %v1476
    %5851 = vmatprep.subr.mxu0 %v1473
    %5852 = vmatpush1.msra.mxu0 %v1472
    %5853 = vmatprep.subr.mxu0 0.0
    %5854 = vmatpush2.msra.mxu0 0.0
    %5855 = vmatprep.subr.mxu0 0.0
    %5856 = vmatpush2.msra.mxu0 0.0
    %5857 = vmatprep.subr.mxu0 0.0
    %5858 = vmatpush2.msra.mxu0 0.0
    %5859 = vmatprep.subr.mxu0 0.0
    %5860 = vmatpush2.msra.mxu0 0.0
    %5861 = vmatprep.subr.mxu0 0.0
    %5862 = vmatpush2.msra.mxu0 0.0
    %5863 = vmatprep.subr.mxu0 0.0
    %5864 = vmatpush2.msra.mxu0 0.0
    %5865 = vmatprep.subr.mxu0 0.0
    %5866 = vmatpush2.msra.mxu0 0.0
    %5867 = vmatprep.subr.mxu0 0.0
    %5868 = vmatpush2.msra.mxu0 0.0
    %5869 = vmatprep.subr.mxu0 0.0
    %5870 = vmatpush2.msra.mxu0 0.0
    %5871 = vmatprep.subr.mxu0 0.0
    %5872 = vmatpush2.msra.mxu0 0.0
    %5873 = vmatprep.subr.mxu0 0.0
    %5874 = vmatpush2.msra.mxu0 0.0
    %5875 = vmatprep.subr.mxu0 0.0
    %5876 = vmatpush2.msra.mxu0 0.0
    %5877 = vmatprep.subr.mxu0 0.0
    %5878 = vmatpush2.msra.mxu0 0.0
    %5879 = vmatprep.subr.mxu0 0.0
    %5880 = vmatpush2.msra.mxu0 0.0
    %5881 = vmatprep.subr.mxu0 0.0
    %5882 = vmatpush2.msra.mxu0 0.0
    %5883 = vmatprep.subr.mxu0 0.0
    %5884 = vmatpush2.msra.mxu0 0.0
    %5885 = vmatprep.mubr.f32.mxu0 0.0
    %5886 = vmatmul.mubr.f32.gmra.mxu0 %v5678
    %v5887 = vpop.f32.mrf.mxu0
    %v5888 = vadd.f32 %v5746, %v5887
    %v5889 = vpop.f32.mrf.mxu0
    %v5890 = vadd.f32 %v5748, %v5889
    %5891 = vdwg.mxu0
    %5892 = vmatprep.subr.mxu0 %v1535
    %5893 = vmatpush1.msra.mxu0 %v1534
    %5894 = vmatprep.subr.mxu0 %v1531
    %5895 = vmatpush1.msra.mxu0 %v1530
    %5896 = vmatprep.subr.mxu0 %v1527
    %5897 = vmatpush1.msra.mxu0 %v1526
    %5898 = vmatprep.subr.mxu0 %v1523
    %5899 = vmatpush1.msra.mxu0 %v1522
    %5900 = vmatprep.subr.mxu0 %v1519
    %5901 = vmatpush1.msra.mxu0 %v1518
    %5902 = vmatprep.subr.mxu0 %v1515
    %5903 = vmatpush1.msra.mxu0 %v1514
    %5904 = vmatprep.subr.mxu0 %v1511
    %5905 = vmatpush1.msra.mxu0 %v1510
    %5906 = vmatprep.subr.mxu0 %v1507
    %5907 = vmatpush1.msra.mxu0 %v1506
    %5908 = vmatprep.subr.mxu0 %v1503
    %5909 = vmatpush1.msra.mxu0 %v1502
    %5910 = vmatprep.subr.mxu0 %v1499
    %5911 = vmatpush1.msra.mxu0 %v1498
    %5912 = vmatprep.subr.mxu0 %v1495
    %5913 = vmatpush1.msra.mxu0 %v1494
    %5914 = vmatprep.subr.mxu0 %v1491
    %5915 = vmatpush1.msra.mxu0 %v1490
    %5916 = vmatprep.subr.mxu0 %v1487
    %5917 = vmatpush1.msra.mxu0 %v1486
    %5918 = vmatprep.subr.mxu0 %v1483
    %5919 = vmatpush1.msra.mxu0 %v1482
    %5920 = vmatprep.subr.mxu0 %v1479
    %5921 = vmatpush1.msra.mxu0 %v1478
    %5922 = vmatprep.subr.mxu0 %v1475
    %5923 = vmatpush1.msra.mxu0 %v1474
    %5924 = vmatprep.subr.mxu0 0.0
    %5925 = vmatpush2.msra.mxu0 0.0
    %5926 = vmatprep.subr.mxu0 0.0
    %5927 = vmatpush2.msra.mxu0 0.0
    %5928 = vmatprep.subr.mxu0 0.0
    %5929 = vmatpush2.msra.mxu0 0.0
    %5930 = vmatprep.subr.mxu0 0.0
    %5931 = vmatpush2.msra.mxu0 0.0
    %5932 = vmatprep.subr.mxu0 0.0
    %5933 = vmatpush2.msra.mxu0 0.0
    %5934 = vmatprep.subr.mxu0 0.0
    %5935 = vmatpush2.msra.mxu0 0.0
    %5936 = vmatprep.subr.mxu0 0.0
    %5937 = vmatpush2.msra.mxu0 0.0
    %5938 = vmatprep.subr.mxu0 0.0
    %5939 = vmatpush2.msra.mxu0 0.0
    %5940 = vmatprep.subr.mxu0 0.0
    %5941 = vmatpush2.msra.mxu0 0.0
    %5942 = vmatprep.subr.mxu0 0.0
    %5943 = vmatpush2.msra.mxu0 0.0
    %5944 = vmatprep.subr.mxu0 0.0
    %5945 = vmatpush2.msra.mxu0 0.0
    %5946 = vmatprep.subr.mxu0 0.0
    %5947 = vmatpush2.msra.mxu0 0.0
    %5948 = vmatprep.subr.mxu0 0.0
    %5949 = vmatpush2.msra.mxu0 0.0
    %5950 = vmatprep.subr.mxu0 0.0
    %5951 = vmatpush2.msra.mxu0 0.0
    %5952 = vmatprep.subr.mxu0 0.0
    %5953 = vmatpush2.msra.mxu0 0.0
    %5954 = vmatprep.subr.mxu0 0.0
    %5955 = vmatpush2.msra.mxu0 0.0
    %5956 = vmatprep.mubr.f32.mxu0 0.0
    %5957 = vmatmul.mubr.f32.gmra.mxu0 %v5678
    %v5958 = vpop.f32.mrf.mxu0
    %v5959 = vadd.f32 %v5817, %v5958
    %v5960 = vpop.f32.mrf.mxu0
    %v5961 = vadd.f32 %v5819, %v5960
    %5962 = vdwg.mxu0
    %v5963 = vadd.f32 %v5888, %v1889
    %v5964 = vadd.f32 %v5890, %v1893
    %v5965 = vadd.f32 %v5959, %v1897
    %v5966 = vadd.f32 %v5961, %v1901
    %v5967 = vxor.u32 %v5963, 2147483648
    %v5968 = vmul.f32 %v5967, 1.442695
    %v5969 = vpow.pop %v5968
    %v5970 = vadd.f32 %v5969, 1.0
    %v5971 = vrcp.pop %v5970
    %v5972 = vmul.f32 1.0, %v5971
    %v5973 = vxor.u32 %v5964, 2147483648
    %v5974 = vmul.f32 %v5973, 1.442695
    %v5975 = vpow.pop %v5974
    %v5976 = vadd.f32 %v5975, 1.0
    %v5977 = vrcp.pop %v5976
    %v5978 = vmul.f32 1.0, %v5977
    %v5979 = vtanh.pop %v5965
    %v5980 = vxor.u32 %v5966, 2147483648
    %v5981 = vmul.f32 %v5980, 1.442695
    %v5982 = vpow.pop %v5981
    %v5983 = vadd.f32 %v5982, 1.0
    %v5984 = vrcp.pop %v5983
    %v5985 = vmul.f32 1.0, %v5984
    %v5986 = vmul.f32 %v5978, %v4654
    %v5987 = vmul.f32 %v5972, %v5979
    %v5988 = vadd.f32 %v5986, %v5987
    %v5989 = vtanh.pop %v5988
    %v5990 = vmul.f32 %v5985, %v5989
    %5991 = vmatprep.subr.mxu0 %v1965
    %5992 = vmatpush1.msra.mxu0 %v1964
    %5993 = vmatprep.subr.mxu0 %v1963
    %5994 = vmatpush1.msra.mxu0 %v1962
    %5995 = vmatprep.subr.mxu0 %v1961
    %5996 = vmatpush1.msra.mxu0 %v1960
    %5997 = vmatprep.subr.mxu0 %v1959
    %5998 = vmatpush1.msra.mxu0 %v1958
    %5999 = vmatprep.subr.mxu0 %v1957
    %6000 = vmatpush1.msra.mxu0 %v1956
    %6001 = vmatprep.subr.mxu0 %v1955
    %6002 = vmatpush1.msra.mxu0 %v1954
    %6003 = vmatprep.subr.mxu0 %v1953
    %6004 = vmatpush1.msra.mxu0 %v1952
    %6005 = vmatprep.subr.mxu0 %v1951
    %6006 = vmatpush1.msra.mxu0 %v1950
    %6007 = vmatprep.subr.mxu0 %v1949
    %6008 = vmatpush1.msra.mxu0 %v1948
    %6009 = vmatprep.subr.mxu0 %v1947
    %6010 = vmatpush1.msra.mxu0 %v1946
    %6011 = vmatprep.subr.mxu0 %v1945
    %6012 = vmatpush1.msra.mxu0 %v1944
    %6013 = vmatprep.subr.mxu0 %v1943
    %6014 = vmatpush1.msra.mxu0 %v1942
    %6015 = vmatprep.subr.mxu0 %v1941
    %6016 = vmatpush1.msra.mxu0 %v1940
    %6017 = vmatprep.subr.mxu0 %v1939
    %6018 = vmatpush1.msra.mxu0 %v1938
    %6019 = vmatprep.subr.mxu0 %v1937
    %6020 = vmatpush1.msra.mxu0 %v1936
    %6021 = vmatprep.subr.mxu0 %v1935
    %6022 = vmatpush1.msra.mxu0 %v1934
    %6023 = vmatprep.subr.mxu0 0.0
    %6024 = vmatpush2.msra.mxu0 0.0
    %6025 = vmatprep.subr.mxu0 0.0
    %6026 = vmatpush2.msra.mxu0 0.0
    %6027 = vmatprep.subr.mxu0 0.0
    %6028 = vmatpush2.msra.mxu0 0.0
    %6029 = vmatprep.subr.mxu0 0.0
    %6030 = vmatpush2.msra.mxu0 0.0
    %6031 = vmatprep.subr.mxu0 0.0
    %6032 = vmatpush2.msra.mxu0 0.0
    %6033 = vmatprep.subr.mxu0 0.0
    %6034 = vmatpush2.msra.mxu0 0.0
    %6035 = vmatprep.subr.mxu0 0.0
    %6036 = vmatpush2.msra.mxu0 0.0
    %6037 = vmatprep.subr.mxu0 0.0
    %6038 = vmatpush2.msra.mxu0 0.0
    %6039 = vmatprep.subr.mxu0 0.0
    %6040 = vmatpush2.msra.mxu0 0.0
    %6041 = vmatprep.subr.mxu0 0.0
    %6042 = vmatpush2.msra.mxu0 0.0
    %6043 = vmatprep.subr.mxu0 0.0
    %6044 = vmatpush2.msra.mxu0 0.0
    %6045 = vmatprep.subr.mxu0 0.0
    %6046 = vmatpush2.msra.mxu0 0.0
    %6047 = vmatprep.subr.mxu0 0.0
    %6048 = vmatpush2.msra.mxu0 0.0
    %6049 = vmatprep.subr.mxu0 0.0
    %6050 = vmatpush2.msra.mxu0 0.0
    %6051 = vmatprep.subr.mxu0 0.0
    %6052 = vmatpush2.msra.mxu0 0.0
    %6053 = vmatprep.subr.mxu0 0.0
    %6054 = vmatpush2.msra.mxu0 0.0
    %6055 = vmatprep.mubr.f32.mxu0 0.0
    %6056 = vmatmul.mubr.f32.gmra.mxu0 %v5990
    %v6057 = vpop.f32.mrf.mxu0
    %v6058 = vadd.f32 0.0, %v6057
    %v6059 = vpop.f32.mrf.mxu0
    %v6060 = vadd.f32 0.0, %v6059
    %6061 = vdwg.mxu0
    %v6062 = vadd.f32 %v6058, %v2041
    %v6063 = vadd.f32 %v6060, %v356
    %v6064 = vsel %vm2045, %v6062, -inf
    %6065 = vmax.xlane.f32.xlu0 %v6064
    %v6066 = vpop.xlane.xlu0 %6065
    %v6067 = vsub.f32 %v6062, %v6066
    %v6068 = vmul.f32 %v6067, 1.442695
    %v6069 = vpow.pop %v6068
    %v6070 = vsel %vm2045, %v6069, 0.0
    %6071 = vadd.xlane.f32.xlu0 %v6070
    %v6072 = vpop.xlane.xlu0 %6071
    %v6073 = vlog2.pop %v6072
    %v6074 = vmul.f32 %v6073, 0.6931472
    %v6075 = vsub.f32 %v6067, %v6074
    %vm6076 = vcmp.eq.f32.partialorder %v6062, %v6066
    %v6077 = vsel %vm6076, %v351, 128
    %v6078 = vsel %vm2045, %v6077, 2147483647
    %v6079 = vand.u32 %v6078, 65535
    %v6080 = vshra.s32 %v6078, 16
    %v6081 = vcvt.s32.f32 %v6079
    %v6082 = vcvt.s32.f32 %v6080
    %6083 = vmin.xlane.f32.xlu0 %v6082
    %v6084 = vpop.xlane.xlu0 %6083
    %vm6085 = vcmp.eq.f32.partialorder %v6082, %v6084
    %v6086 = vsel %vm6085, %v6081, inf
    %6087 = vmin.xlane.f32.xlu0 %v6086
    %v6088 = vpop.xlane.xlu0 %6087
    %v6089 = vcvt.f32.s32 %v6088
    %v6090 = vcvt.f32.s32 %v6084
    %v6091 = vshll.u32 %v6090, 16
    %v6092 = vadd.s32 %v6091, %v6089
    %vm6093 = vcmp.eq.s32.totalorder %v351, %v6092
    %v6094 = vsel %vm6093, 1, 0
    %v6095 = vcvt.s32.f32 %v6094
    %6096 = vmatprep.subr.mxu0 0.0
    %6097 = vmatpush1.msra.mxu0 %v2093
    %6098 = vmatprep.subr.mxu0 0.0
    %6099 = vmatpush1.msra.mxu0 %v2092
    %6100 = vmatprep.subr.mxu0 0.0
    %6101 = vmatpush1.msra.mxu0 %v2091
    %6102 = vmatprep.subr.mxu0 0.0
    %6103 = vmatpush1.msra.mxu0 %v2090
    %6104 = vmatprep.subr.mxu0 0.0
    %6105 = vmatpush1.msra.mxu0 %v2089
    %6106 = vmatprep.subr.mxu0 0.0
    %6107 = vmatpush1.msra.mxu0 %v2088
    %6108 = vmatprep.subr.mxu0 0.0
    %6109 = vmatpush1.msra.mxu0 %v2087
    %6110 = vmatprep.subr.mxu0 0.0
    %6111 = vmatpush1.msra.mxu0 %v2086
    %6112 = vmatprep.subr.mxu0 0.0
    %6113 = vmatpush1.msra.mxu0 %v2085
    %6114 = vmatprep.subr.mxu0 0.0
    %6115 = vmatpush1.msra.mxu0 %v2084
    %6116 = vmatprep.subr.mxu0 0.0
    %6117 = vmatpush1.msra.mxu0 %v2083
    %6118 = vmatprep.subr.mxu0 0.0
    %6119 = vmatpush1.msra.mxu0 %v2082
    %6120 = vmatprep.subr.mxu0 0.0
    %6121 = vmatpush1.msra.mxu0 %v2081
    %6122 = vmatprep.subr.mxu0 0.0
    %6123 = vmatpush1.msra.mxu0 %v2080
    %6124 = vmatprep.subr.mxu0 0.0
    %6125 = vmatpush1.msra.mxu0 %v2079
    %6126 = vmatprep.subr.mxu0 0.0
    %6127 = vmatpush1.msra.mxu0 %v2078
    %6128 = vmatprep.subr.mxu0 0.0
    %6129 = vmatpush2.msra.mxu0 0.0
    %6130 = vmatprep.subr.mxu0 0.0
    %6131 = vmatpush2.msra.mxu0 0.0
    %6132 = vmatprep.subr.mxu0 0.0
    %6133 = vmatpush2.msra.mxu0 0.0
    %6134 = vmatprep.subr.mxu0 0.0
    %6135 = vmatpush2.msra.mxu0 0.0
    %6136 = vmatprep.subr.mxu0 0.0
    %6137 = vmatpush2.msra.mxu0 0.0
    %6138 = vmatprep.subr.mxu0 0.0
    %6139 = vmatpush2.msra.mxu0 0.0
    %6140 = vmatprep.subr.mxu0 0.0
    %6141 = vmatpush2.msra.mxu0 0.0
    %6142 = vmatprep.subr.mxu0 0.0
    %6143 = vmatpush2.msra.mxu0 0.0
    %6144 = vmatprep.subr.mxu0 0.0
    %6145 = vmatpush2.msra.mxu0 0.0
    %6146 = vmatprep.subr.mxu0 0.0
    %6147 = vmatpush2.msra.mxu0 0.0
    %6148 = vmatprep.subr.mxu0 0.0
    %6149 = vmatpush2.msra.mxu0 0.0
    %6150 = vmatprep.subr.mxu0 0.0
    %6151 = vmatpush2.msra.mxu0 0.0
    %6152 = vmatprep.subr.mxu0 0.0
    %6153 = vmatpush2.msra.mxu0 0.0
    %6154 = vmatprep.subr.mxu0 0.0
    %6155 = vmatpush2.msra.mxu0 0.0
    %6156 = vmatprep.subr.mxu0 0.0
    %6157 = vmatpush2.msra.mxu0 0.0
    %6158 = vmatprep.subr.mxu0 0.0
    %6159 = vmatpush2.msra.mxu0 0.0
    %6160 = vmatprep.mubr.f32.mxu0 0.0
    %6161 = vmatmul.mubr.f32.gmra.mxu0 %v6095
    %v6162 = vpop.f32.mrf.mxu0
    %v6163 = vadd.f32 0.0, %v6162
    %v6164 = vpop.f32.mrf.mxu0
    %6165 = vdwg.mxu0
    %v6166 = vlaneseq
    %v6167 = vshrl.u32 %v6166, 7
    %v6168 = vsub.s32 0, %v6167
    %v6169 = vrot.slane %v6063, %v6168
    %v6170 = vadd.f32 %v273, %v6169
    %v6171 = vmax.f32 %v6170, 0.0
    %v6172 = vmul.f32 %v6171, %v364
    %6173 = vadd.xlane.f32.xlu0 %v6172
    %v6174 = vpop.xlane.xlu0 %6173
    %v6175 = vrot.slane %v6174, 4
    %v6176 = vmax.f32 %v6174, %v6175
    %v6177 = vrot.slane %v6176, 2
    %v6178 = vmax.f32 %v6176, %v6177
    %v6179 = vrot.slane %v6178, 1
    %v6180 = vmax.f32 %v6178, %v6179
    %v6181 = vsub.f32 %v6174, %v6180
    %v6182 = vmul.f32 %v6181, 1.442695
    %v6183 = vpow.pop %v6182
    %v6184 = vrot.slane %v6183, 4
    %v6185 = vadd.f32 %v6183, %v6184
    %v6186 = vrot.slane %v6185, 2
    %v6187 = vadd.f32 %v6185, %v6186
    %v6188 = vrot.slane %v6187, 1
    %v6189 = vadd.f32 %v6187, %v6188
    %v6190 = vlog2.pop %v6189
    %v6191 = vmul.f32 %v6190, 0.6931472
    %v6192 = vsub.f32 %v6181, %v6191
    %v6193 = vmul.f32 %v6192, %v195
    %v6194 = vsel %vm202, %v6193, 0.0
    %v6195 = vrot.slane %v6194, 4
    %v6196 = vadd.f32 %v6194, %v6195
    %v6197 = vrot.slane %v6196, 2
    %v6198 = vadd.f32 %v6196, %v6197
    %v6199 = vrot.slane %v6198, 1
    %v6200 = vadd.f32 %v6198, %v6199
    %v6201 = vlaneseq
    %v6202 = vshrl.u32 %v6201, 7
    %v6203 = vsub.s32 1, %v6202
    %v6204 = vrot.slane %v6063, %v6203
    %v6205 = vadd.f32 %v346, %v6204
    %v6206 = vmax.f32 %v6205, 0.0
    %v6207 = vmul.f32 %v6206, %v364
    %6208 = vadd.xlane.f32.xlu0 %v6207
    %v6209 = vpop.xlane.xlu0 %6208
    %v6210 = vrot.slane %v6209, 4
    %v6211 = vmax.f32 %v6209, %v6210
    %v6212 = vrot.slane %v6211, 2
    %v6213 = vmax.f32 %v6211, %v6212
    %v6214 = vrot.slane %v6213, 1
    %v6215 = vmax.f32 %v6213, %v6214
    %v6216 = vsub.f32 %v6209, %v6215
    %v6217 = vmul.f32 %v6216, 1.442695
    %v6218 = vpow.pop %v6217
    %v6219 = vrot.slane %v6218, 4
    %v6220 = vadd.f32 %v6218, %v6219
    %v6221 = vrot.slane %v6220, 2
    %v6222 = vadd.f32 %v6220, %v6221
    %v6223 = vrot.slane %v6222, 1
    %v6224 = vadd.f32 %v6222, %v6223
    %v6225 = vlog2.pop %v6224
    %v6226 = vmul.f32 %v6225, 0.6931472
    %v6227 = vsub.f32 %v6216, %v6226
    %v6228 = vmul.f32 %v6227, %v197
    %v6229 = vsel %vm202, %v6228, 0.0
    %v6230 = vrot.slane %v6229, 4
    %v6231 = vadd.f32 %v6229, %v6230
    %v6232 = vrot.slane %v6231, 2
    %v6233 = vadd.f32 %v6231, %v6232
    %v6234 = vrot.slane %v6233, 1
    %v6235 = vadd.f32 %v6233, %v6234
    %v6236 = vsel %vm426, %v6200, %v6235
    %v6238 = vsel %vm202, %v6236, 0
    %6240 = vmatprep.subr.mxu0 0.0
    %6241 = vmatpush1.msra.mxu0 0.0
    %6242 = vmatprep.subr.mxu0 0.0
    %6243 = vmatpush1.msra.mxu0 0.0
    %6244 = vmatprep.subr.mxu0 0.0
    %6245 = vmatpush1.msra.mxu0 0.0
    %6246 = vmatprep.subr.mxu0 0.0
    %6247 = vmatpush1.msra.mxu0 0.0
    %6248 = vmatprep.subr.mxu0 0.0
    %6249 = vmatpush1.msra.mxu0 0.0
    %6250 = vmatprep.subr.mxu0 0.0
    %6251 = vmatpush1.msra.mxu0 0.0
    %6252 = vmatprep.subr.mxu0 0.0
    %6253 = vmatpush1.msra.mxu0 0.0
    %6254 = vmatprep.subr.mxu0 0.0
    %6255 = vmatpush1.msra.mxu0 0.0
    %6256 = vmatprep.subr.mxu0 0.0
    %6257 = vmatpush1.msra.mxu0 0.0
    %6258 = vmatprep.subr.mxu0 0.0
    %6259 = vmatpush1.msra.mxu0 0.0
    %6260 = vmatprep.subr.mxu0 0.0
    %6261 = vmatpush1.msra.mxu0 0.0
    %6262 = vmatprep.subr.mxu0 0.0
    %6263 = vmatpush1.msra.mxu0 0.0
    %6264 = vmatprep.subr.mxu0 %v457
    %6265 = vmatpush1.msra.mxu0 %v456
    %6266 = vmatprep.subr.mxu0 %v453
    %6267 = vmatpush1.msra.mxu0 %v452
    %6268 = vmatprep.subr.mxu0 %v449
    %6269 = vmatpush1.msra.mxu0 %v448
    %6270 = vmatprep.subr.mxu0 %v445
    %6271 = vmatpush1.msra.mxu0 %v444
    %6272 = vmatprep.subr.mxu0 0.0
    %6273 = vmatpush2.msra.mxu0 0.0
    %6274 = vmatprep.subr.mxu0 0.0
    %6275 = vmatpush2.msra.mxu0 0.0
    %6276 = vmatprep.subr.mxu0 0.0
    %6277 = vmatpush2.msra.mxu0 0.0
    %6278 = vmatprep.subr.mxu0 0.0
    %6279 = vmatpush2.msra.mxu0 0.0
    %6280 = vmatprep.subr.mxu0 0.0
    %6281 = vmatpush2.msra.mxu0 0.0
    %6282 = vmatprep.subr.mxu0 0.0
    %6283 = vmatpush2.msra.mxu0 0.0
    %6284 = vmatprep.subr.mxu0 0.0
    %6285 = vmatpush2.msra.mxu0 0.0
    %6286 = vmatprep.subr.mxu0 0.0
    %6287 = vmatpush2.msra.mxu0 0.0
    %6288 = vmatprep.subr.mxu0 0.0
    %6289 = vmatpush2.msra.mxu0 0.0
    %6290 = vmatprep.subr.mxu0 0.0
    %6291 = vmatpush2.msra.mxu0 0.0
    %6292 = vmatprep.subr.mxu0 0.0
    %6293 = vmatpush2.msra.mxu0 0.0
    %6294 = vmatprep.subr.mxu0 0.0
    %6295 = vmatpush2.msra.mxu0 0.0
    %6296 = vmatprep.subr.mxu0 0.0
    %6297 = vmatpush2.msra.mxu0 0.0
    %6298 = vmatprep.subr.mxu0 0.0
    %6299 = vmatpush2.msra.mxu0 0.0
    %6300 = vmatprep.subr.mxu0 0.0
    %6301 = vmatpush2.msra.mxu0 0.0
    %6302 = vmatprep.subr.mxu0 0.0
    %6303 = vmatpush2.msra.mxu0 0.0
    %6304 = vmatprep.mubr.f32.mxu0 0.0
    %6305 = vmatmul.mubr.f32.gmra.mxu0 %v6238
    %v6306 = vpop.f32.mrf.mxu0
    %v6307 = vadd.f32 0.0, %v6306
    %v6308 = vpop.f32.mrf.mxu0
    %v6309 = vadd.f32 0.0, %v6308
    %6310 = vdwg.mxu0
    %6311 = vmatprep.subr.mxu0 0.0
    %6312 = vmatpush1.msra.mxu0 0.0
    %6313 = vmatprep.subr.mxu0 0.0
    %6314 = vmatpush1.msra.mxu0 0.0
    %6315 = vmatprep.subr.mxu0 0.0
    %6316 = vmatpush1.msra.mxu0 0.0
    %6317 = vmatprep.subr.mxu0 0.0
    %6318 = vmatpush1.msra.mxu0 0.0
    %6319 = vmatprep.subr.mxu0 0.0
    %6320 = vmatpush1.msra.mxu0 0.0
    %6321 = vmatprep.subr.mxu0 0.0
    %6322 = vmatpush1.msra.mxu0 0.0
    %6323 = vmatprep.subr.mxu0 0.0
    %6324 = vmatpush1.msra.mxu0 0.0
    %6325 = vmatprep.subr.mxu0 0.0
    %6326 = vmatpush1.msra.mxu0 0.0
    %6327 = vmatprep.subr.mxu0 0.0
    %6328 = vmatpush1.msra.mxu0 0.0
    %6329 = vmatprep.subr.mxu0 0.0
    %6330 = vmatpush1.msra.mxu0 0.0
    %6331 = vmatprep.subr.mxu0 0.0
    %6332 = vmatpush1.msra.mxu0 0.0
    %6333 = vmatprep.subr.mxu0 0.0
    %6334 = vmatpush1.msra.mxu0 0.0
    %6335 = vmatprep.subr.mxu0 %v459
    %6336 = vmatpush1.msra.mxu0 %v458
    %6337 = vmatprep.subr.mxu0 %v455
    %6338 = vmatpush1.msra.mxu0 %v454
    %6339 = vmatprep.subr.mxu0 %v451
    %6340 = vmatpush1.msra.mxu0 %v450
    %6341 = vmatprep.subr.mxu0 %v447
    %6342 = vmatpush1.msra.mxu0 %v446
    %6343 = vmatprep.subr.mxu0 0.0
    %6344 = vmatpush2.msra.mxu0 0.0
    %6345 = vmatprep.subr.mxu0 0.0
    %6346 = vmatpush2.msra.mxu0 0.0
    %6347 = vmatprep.subr.mxu0 0.0
    %6348 = vmatpush2.msra.mxu0 0.0
    %6349 = vmatprep.subr.mxu0 0.0
    %6350 = vmatpush2.msra.mxu0 0.0
    %6351 = vmatprep.subr.mxu0 0.0
    %6352 = vmatpush2.msra.mxu0 0.0
    %6353 = vmatprep.subr.mxu0 0.0
    %6354 = vmatpush2.msra.mxu0 0.0
    %6355 = vmatprep.subr.mxu0 0.0
    %6356 = vmatpush2.msra.mxu0 0.0
    %6357 = vmatprep.subr.mxu0 0.0
    %6358 = vmatpush2.msra.mxu0 0.0
    %6359 = vmatprep.subr.mxu0 0.0
    %6360 = vmatpush2.msra.mxu0 0.0
    %6361 = vmatprep.subr.mxu0 0.0
    %6362 = vmatpush2.msra.mxu0 0.0
    %6363 = vmatprep.subr.mxu0 0.0
    %6364 = vmatpush2.msra.mxu0 0.0
    %6365 = vmatprep.subr.mxu0 0.0
    %6366 = vmatpush2.msra.mxu0 0.0
    %6367 = vmatprep.subr.mxu0 0.0
    %6368 = vmatpush2.msra.mxu0 0.0
    %6369 = vmatprep.subr.mxu0 0.0
    %6370 = vmatpush2.msra.mxu0 0.0
    %6371 = vmatprep.subr.mxu0 0.0
    %6372 = vmatpush2.msra.mxu0 0.0
    %6373 = vmatprep.subr.mxu0 0.0
    %6374 = vmatpush2.msra.mxu0 0.0
    %6375 = vmatprep.mubr.f32.mxu0 0.0
    %6376 = vmatmul.mubr.f32.gmra.mxu0 %v6238
    %v6377 = vpop.f32.mrf.mxu0
    %v6378 = vadd.f32 0.0, %v6377
    %v6379 = vpop.f32.mrf.mxu0
    %v6380 = vadd.f32 0.0, %v6379
    %6381 = vdwg.mxu0
    %v6383 = vsel %vm202, %v6163, 0
    %6385 = vmatprep.subr.mxu0 0.0
    %6386 = vmatpush1.msra.mxu0 0.0
    %6387 = vmatprep.subr.mxu0 0.0
    %6388 = vmatpush1.msra.mxu0 0.0
    %6389 = vmatprep.subr.mxu0 0.0
    %6390 = vmatpush1.msra.mxu0 0.0
    %6391 = vmatprep.subr.mxu0 0.0
    %6392 = vmatpush1.msra.mxu0 0.0
    %6393 = vmatprep.subr.mxu0 0.0
    %6394 = vmatpush1.msra.mxu0 0.0
    %6395 = vmatprep.subr.mxu0 0.0
    %6396 = vmatpush1.msra.mxu0 0.0
    %6397 = vmatprep.subr.mxu0 0.0
    %6398 = vmatpush1.msra.mxu0 0.0
    %6399 = vmatprep.subr.mxu0 0.0
    %6400 = vmatpush1.msra.mxu0 0.0
    %6401 = vmatprep.subr.mxu0 0.0
    %6402 = vmatpush1.msra.mxu0 0.0
    %6403 = vmatprep.subr.mxu0 0.0
    %6404 = vmatpush1.msra.mxu0 0.0
    %6405 = vmatprep.subr.mxu0 0.0
    %6406 = vmatpush1.msra.mxu0 0.0
    %6407 = vmatprep.subr.mxu0 0.0
    %6408 = vmatpush1.msra.mxu0 0.0
    %6409 = vmatprep.subr.mxu0 %v441
    %6410 = vmatpush1.msra.mxu0 %v440
    %6411 = vmatprep.subr.mxu0 %v437
    %6412 = vmatpush1.msra.mxu0 %v436
    %6413 = vmatprep.subr.mxu0 %v433
    %6414 = vmatpush1.msra.mxu0 %v432
    %6415 = vmatprep.subr.mxu0 %v429
    %6416 = vmatpush1.msra.mxu0 %v428
    %6417 = vmatprep.subr.mxu0 0.0
    %6418 = vmatpush2.msra.mxu0 0.0
    %6419 = vmatprep.subr.mxu0 0.0
    %6420 = vmatpush2.msra.mxu0 0.0
    %6421 = vmatprep.subr.mxu0 0.0
    %6422 = vmatpush2.msra.mxu0 0.0
    %6423 = vmatprep.subr.mxu0 0.0
    %6424 = vmatpush2.msra.mxu0 0.0
    %6425 = vmatprep.subr.mxu0 0.0
    %6426 = vmatpush2.msra.mxu0 0.0
    %6427 = vmatprep.subr.mxu0 0.0
    %6428 = vmatpush2.msra.mxu0 0.0
    %6429 = vmatprep.subr.mxu0 0.0
    %6430 = vmatpush2.msra.mxu0 0.0
    %6431 = vmatprep.subr.mxu0 0.0
    %6432 = vmatpush2.msra.mxu0 0.0
    %6433 = vmatprep.subr.mxu0 0.0
    %6434 = vmatpush2.msra.mxu0 0.0
    %6435 = vmatprep.subr.mxu0 0.0
    %6436 = vmatpush2.msra.mxu0 0.0
    %6437 = vmatprep.subr.mxu0 0.0
    %6438 = vmatpush2.msra.mxu0 0.0
    %6439 = vmatprep.subr.mxu0 0.0
    %6440 = vmatpush2.msra.mxu0 0.0
    %6441 = vmatprep.subr.mxu0 0.0
    %6442 = vmatpush2.msra.mxu0 0.0
    %6443 = vmatprep.subr.mxu0 0.0
    %6444 = vmatpush2.msra.mxu0 0.0
    %6445 = vmatprep.subr.mxu0 0.0
    %6446 = vmatpush2.msra.mxu0 0.0
    %6447 = vmatprep.subr.mxu0 0.0
    %6448 = vmatpush2.msra.mxu0 0.0
    %6449 = vmatprep.mubr.f32.mxu0 0.0
    %6450 = vmatmul.mubr.f32.gmra.mxu0 %v6383
    %v6451 = vpop.f32.mrf.mxu0
    %v6452 = vadd.f32 %v6307, %v6451
    %v6453 = vpop.f32.mrf.mxu0
    %v6454 = vadd.f32 %v6309, %v6453
    %6455 = vdwg.mxu0
    %6456 = vmatprep.subr.mxu0 0.0
    %6457 = vmatpush1.msra.mxu0 0.0
    %6458 = vmatprep.subr.mxu0 0.0
    %6459 = vmatpush1.msra.mxu0 0.0
    %6460 = vmatprep.subr.mxu0 0.0
    %6461 = vmatpush1.msra.mxu0 0.0
    %6462 = vmatprep.subr.mxu0 0.0
    %6463 = vmatpush1.msra.mxu0 0.0
    %6464 = vmatprep.subr.mxu0 0.0
    %6465 = vmatpush1.msra.mxu0 0.0
    %6466 = vmatprep.subr.mxu0 0.0
    %6467 = vmatpush1.msra.mxu0 0.0
    %6468 = vmatprep.subr.mxu0 0.0
    %6469 = vmatpush1.msra.mxu0 0.0
    %6470 = vmatprep.subr.mxu0 0.0
    %6471 = vmatpush1.msra.mxu0 0.0
    %6472 = vmatprep.subr.mxu0 0.0
    %6473 = vmatpush1.msra.mxu0 0.0
    %6474 = vmatprep.subr.mxu0 0.0
    %6475 = vmatpush1.msra.mxu0 0.0
    %6476 = vmatprep.subr.mxu0 0.0
    %6477 = vmatpush1.msra.mxu0 0.0
    %6478 = vmatprep.subr.mxu0 0.0
    %6479 = vmatpush1.msra.mxu0 0.0
    %6480 = vmatprep.subr.mxu0 %v443
    %6481 = vmatpush1.msra.mxu0 %v442
    %6482 = vmatprep.subr.mxu0 %v439
    %6483 = vmatpush1.msra.mxu0 %v438
    %6484 = vmatprep.subr.mxu0 %v435
    %6485 = vmatpush1.msra.mxu0 %v434
    %6486 = vmatprep.subr.mxu0 %v431
    %6487 = vmatpush1.msra.mxu0 %v430
    %6488 = vmatprep.subr.mxu0 0.0
    %6489 = vmatpush2.msra.mxu0 0.0
    %6490 = vmatprep.subr.mxu0 0.0
    %6491 = vmatpush2.msra.mxu0 0.0
    %6492 = vmatprep.subr.mxu0 0.0
    %6493 = vmatpush2.msra.mxu0 0.0
    %6494 = vmatprep.subr.mxu0 0.0
    %6495 = vmatpush2.msra.mxu0 0.0
    %6496 = vmatprep.subr.mxu0 0.0
    %6497 = vmatpush2.msra.mxu0 0.0
    %6498 = vmatprep.subr.mxu0 0.0
    %6499 = vmatpush2.msra.mxu0 0.0
    %6500 = vmatprep.subr.mxu0 0.0
    %6501 = vmatpush2.msra.mxu0 0.0
    %6502 = vmatprep.subr.mxu0 0.0
    %6503 = vmatpush2.msra.mxu0 0.0
    %6504 = vmatprep.subr.mxu0 0.0
    %6505 = vmatpush2.msra.mxu0 0.0
    %6506 = vmatprep.subr.mxu0 0.0
    %6507 = vmatpush2.msra.mxu0 0.0
    %6508 = vmatprep.subr.mxu0 0.0
    %6509 = vmatpush2.msra.mxu0 0.0
    %6510 = vmatprep.subr.mxu0 0.0
    %6511 = vmatpush2.msra.mxu0 0.0
    %6512 = vmatprep.subr.mxu0 0.0
    %6513 = vmatpush2.msra.mxu0 0.0
    %6514 = vmatprep.subr.mxu0 0.0
    %6515 = vmatpush2.msra.mxu0 0.0
    %6516 = vmatprep.subr.mxu0 0.0
    %6517 = vmatpush2.msra.mxu0 0.0
    %6518 = vmatprep.subr.mxu0 0.0
    %6519 = vmatpush2.msra.mxu0 0.0
    %6520 = vmatprep.mubr.f32.mxu0 0.0
    %6521 = vmatmul.mubr.f32.gmra.mxu0 %v6383
    %v6522 = vpop.f32.mrf.mxu0
    %v6523 = vadd.f32 %v6378, %v6522
    %v6524 = vpop.f32.mrf.mxu0
    %v6525 = vadd.f32 %v6380, %v6524
    %6526 = vdwg.mxu0
    %6527 = vmatprep.subr.mxu0 %v811
    %6528 = vmatpush1.msra.mxu0 %v810
    %6529 = vmatprep.subr.mxu0 %v807
    %6530 = vmatpush1.msra.mxu0 %v806
    %6531 = vmatprep.subr.mxu0 %v803
    %6532 = vmatpush1.msra.mxu0 %v802
    %6533 = vmatprep.subr.mxu0 %v799
    %6534 = vmatpush1.msra.mxu0 %v798
    %6535 = vmatprep.subr.mxu0 %v795
    %6536 = vmatpush1.msra.mxu0 %v794
    %6537 = vmatprep.subr.mxu0 %v791
    %6538 = vmatpush1.msra.mxu0 %v790
    %6539 = vmatprep.subr.mxu0 %v787
    %6540 = vmatpush1.msra.mxu0 %v786
    %6541 = vmatprep.subr.mxu0 %v783
    %6542 = vmatpush1.msra.mxu0 %v782
    %6543 = vmatprep.subr.mxu0 %v779
    %6544 = vmatpush1.msra.mxu0 %v778
    %6545 = vmatprep.subr.mxu0 %v775
    %6546 = vmatpush1.msra.mxu0 %v774
    %6547 = vmatprep.subr.mxu0 %v771
    %6548 = vmatpush1.msra.mxu0 %v770
    %6549 = vmatprep.subr.mxu0 %v767
    %6550 = vmatpush1.msra.mxu0 %v766
    %6551 = vmatprep.subr.mxu0 %v763
    %6552 = vmatpush1.msra.mxu0 %v762
    %6553 = vmatprep.subr.mxu0 %v759
    %6554 = vmatpush1.msra.mxu0 %v758
    %6555 = vmatprep.subr.mxu0 %v755
    %6556 = vmatpush1.msra.mxu0 %v754
    %6557 = vmatprep.subr.mxu0 %v751
    %6558 = vmatpush1.msra.mxu0 %v750
    %6559 = vmatprep.subr.mxu0 0.0
    %6560 = vmatpush2.msra.mxu0 0.0
    %6561 = vmatprep.subr.mxu0 0.0
    %6562 = vmatpush2.msra.mxu0 0.0
    %6563 = vmatprep.subr.mxu0 0.0
    %6564 = vmatpush2.msra.mxu0 0.0
    %6565 = vmatprep.subr.mxu0 0.0
    %6566 = vmatpush2.msra.mxu0 0.0
    %6567 = vmatprep.subr.mxu0 0.0
    %6568 = vmatpush2.msra.mxu0 0.0
    %6569 = vmatprep.subr.mxu0 0.0
    %6570 = vmatpush2.msra.mxu0 0.0
    %6571 = vmatprep.subr.mxu0 0.0
    %6572 = vmatpush2.msra.mxu0 0.0
    %6573 = vmatprep.subr.mxu0 0.0
    %6574 = vmatpush2.msra.mxu0 0.0
    %6575 = vmatprep.subr.mxu0 0.0
    %6576 = vmatpush2.msra.mxu0 0.0
    %6577 = vmatprep.subr.mxu0 0.0
    %6578 = vmatpush2.msra.mxu0 0.0
    %6579 = vmatprep.subr.mxu0 0.0
    %6580 = vmatpush2.msra.mxu0 0.0
    %6581 = vmatprep.subr.mxu0 0.0
    %6582 = vmatpush2.msra.mxu0 0.0
    %6583 = vmatprep.subr.mxu0 0.0
    %6584 = vmatpush2.msra.mxu0 0.0
    %6585 = vmatprep.subr.mxu0 0.0
    %6586 = vmatpush2.msra.mxu0 0.0
    %6587 = vmatprep.subr.mxu0 0.0
    %6588 = vmatpush2.msra.mxu0 0.0
    %6589 = vmatprep.subr.mxu0 0.0
    %6590 = vmatpush2.msra.mxu0 0.0
    %6591 = vmatprep.mubr.f32.mxu0 0.0
    %6592 = vmatmul.mubr.f32.gmra.mxu0 %v5366
    %v6593 = vpop.f32.mrf.mxu0
    %v6594 = vadd.f32 0.0, %v6593
    %v6595 = vpop.f32.mrf.mxu0
    %v6596 = vadd.f32 0.0, %v6595
    %6597 = vdwg.mxu0
    %6598 = vmatprep.subr.mxu0 %v813
    %6599 = vmatpush1.msra.mxu0 %v812
    %6600 = vmatprep.subr.mxu0 %v809
    %6601 = vmatpush1.msra.mxu0 %v808
    %6602 = vmatprep.subr.mxu0 %v805
    %6603 = vmatpush1.msra.mxu0 %v804
    %6604 = vmatprep.subr.mxu0 %v801
    %6605 = vmatpush1.msra.mxu0 %v800
    %6606 = vmatprep.subr.mxu0 %v797
    %6607 = vmatpush1.msra.mxu0 %v796
    %6608 = vmatprep.subr.mxu0 %v793
    %6609 = vmatpush1.msra.mxu0 %v792
    %6610 = vmatprep.subr.mxu0 %v789
    %6611 = vmatpush1.msra.mxu0 %v788
    %6612 = vmatprep.subr.mxu0 %v785
    %6613 = vmatpush1.msra.mxu0 %v784
    %6614 = vmatprep.subr.mxu0 %v781
    %6615 = vmatpush1.msra.mxu0 %v780
    %6616 = vmatprep.subr.mxu0 %v777
    %6617 = vmatpush1.msra.mxu0 %v776
    %6618 = vmatprep.subr.mxu0 %v773
    %6619 = vmatpush1.msra.mxu0 %v772
    %6620 = vmatprep.subr.mxu0 %v769
    %6621 = vmatpush1.msra.mxu0 %v768
    %6622 = vmatprep.subr.mxu0 %v765
    %6623 = vmatpush1.msra.mxu0 %v764
    %6624 = vmatprep.subr.mxu0 %v761
    %6625 = vmatpush1.msra.mxu0 %v760
    %6626 = vmatprep.subr.mxu0 %v757
    %6627 = vmatpush1.msra.mxu0 %v756
    %6628 = vmatprep.subr.mxu0 %v753
    %6629 = vmatpush1.msra.mxu0 %v752
    %6630 = vmatprep.subr.mxu0 0.0
    %6631 = vmatpush2.msra.mxu0 0.0
    %6632 = vmatprep.subr.mxu0 0.0
    %6633 = vmatpush2.msra.mxu0 0.0
    %6634 = vmatprep.subr.mxu0 0.0
    %6635 = vmatpush2.msra.mxu0 0.0
    %6636 = vmatprep.subr.mxu0 0.0
    %6637 = vmatpush2.msra.mxu0 0.0
    %6638 = vmatprep.subr.mxu0 0.0
    %6639 = vmatpush2.msra.mxu0 0.0
    %6640 = vmatprep.subr.mxu0 0.0
    %6641 = vmatpush2.msra.mxu0 0.0
    %6642 = vmatprep.subr.mxu0 0.0
    %6643 = vmatpush2.msra.mxu0 0.0
    %6644 = vmatprep.subr.mxu0 0.0
    %6645 = vmatpush2.msra.mxu0 0.0
    %6646 = vmatprep.subr.mxu0 0.0
    %6647 = vmatpush2.msra.mxu0 0.0
    %6648 = vmatprep.subr.mxu0 0.0
    %6649 = vmatpush2.msra.mxu0 0.0
    %6650 = vmatprep.subr.mxu0 0.0
    %6651 = vmatpush2.msra.mxu0 0.0
    %6652 = vmatprep.subr.mxu0 0.0
    %6653 = vmatpush2.msra.mxu0 0.0
    %6654 = vmatprep.subr.mxu0 0.0
    %6655 = vmatpush2.msra.mxu0 0.0
    %6656 = vmatprep.subr.mxu0 0.0
    %6657 = vmatpush2.msra.mxu0 0.0
    %6658 = vmatprep.subr.mxu0 0.0
    %6659 = vmatpush2.msra.mxu0 0.0
    %6660 = vmatprep.subr.mxu0 0.0
    %6661 = vmatpush2.msra.mxu0 0.0
    %6662 = vmatprep.mubr.f32.mxu0 0.0
    %6663 = vmatmul.mubr.f32.gmra.mxu0 %v5366
    %v6664 = vpop.f32.mrf.mxu0
    %v6665 = vadd.f32 0.0, %v6664
    %v6666 = vpop.f32.mrf.mxu0
    %v6667 = vadd.f32 0.0, %v6666
    %6668 = vdwg.mxu0
    %v6669 = vadd.f32 %v6452, %v6594
    %v6670 = vadd.f32 %v6454, %v6596
    %v6671 = vadd.f32 %v6523, %v6665
    %v6672 = vadd.f32 %v6525, %v6667
    %v6673 = vadd.f32 %v6669, %v965
    %v6674 = vadd.f32 %v6670, %v969
    %v6675 = vadd.f32 %v6671, %v973
    %v6676 = vadd.f32 %v6672, %v977
    %v6677 = vxor.u32 %v6673, 2147483648
    %v6678 = vmul.f32 %v6677, 1.442695
    %v6679 = vpow.pop %v6678
    %v6680 = vadd.f32 %v6679, 1.0
    %v6681 = vrcp.pop %v6680
    %v6682 = vmul.f32 1.0, %v6681
    %v6683 = vxor.u32 %v6674, 2147483648
    %v6684 = vmul.f32 %v6683, 1.442695
    %v6685 = vpow.pop %v6684
    %v6686 = vadd.f32 %v6685, 1.0
    %v6687 = vrcp.pop %v6686
    %v6688 = vmul.f32 1.0, %v6687
    %v6689 = vtanh.pop %v6675
    %v6690 = vxor.u32 %v6676, 2147483648
    %v6691 = vmul.f32 %v6690, 1.442695
    %v6692 = vpow.pop %v6691
    %v6693 = vadd.f32 %v6692, 1.0
    %v6694 = vrcp.pop %v6693
    %v6695 = vmul.f32 1.0, %v6694
    %v6696 = vmul.f32 %v6688, %v5364
    %v6697 = vmul.f32 %v6682, %v6689
    %v6698 = vadd.f32 %v6696, %v6697
    %v6699 = vtanh.pop %v6698
    %v6700 = vmul.f32 %v6695, %v6699
    %6701 = vmatprep.subr.mxu0 %v1135
    %6702 = vmatpush1.msra.mxu0 %v1134
    %6703 = vmatprep.subr.mxu0 %v1131
    %6704 = vmatpush1.msra.mxu0 %v1130
    %6705 = vmatprep.subr.mxu0 %v1127
    %6706 = vmatpush1.msra.mxu0 %v1126
    %6707 = vmatprep.subr.mxu0 %v1123
    %6708 = vmatpush1.msra.mxu0 %v1122
    %6709 = vmatprep.subr.mxu0 %v1119
    %6710 = vmatpush1.msra.mxu0 %v1118
    %6711 = vmatprep.subr.mxu0 %v1115
    %6712 = vmatpush1.msra.mxu0 %v1114
    %6713 = vmatprep.subr.mxu0 %v1111
    %6714 = vmatpush1.msra.mxu0 %v1110
    %6715 = vmatprep.subr.mxu0 %v1107
    %6716 = vmatpush1.msra.mxu0 %v1106
    %6717 = vmatprep.subr.mxu0 %v1103
    %6718 = vmatpush1.msra.mxu0 %v1102
    %6719 = vmatprep.subr.mxu0 %v1099
    %6720 = vmatpush1.msra.mxu0 %v1098
    %6721 = vmatprep.subr.mxu0 %v1095
    %6722 = vmatpush1.msra.mxu0 %v1094
    %6723 = vmatprep.subr.mxu0 %v1091
    %6724 = vmatpush1.msra.mxu0 %v1090
    %6725 = vmatprep.subr.mxu0 %v1087
    %6726 = vmatpush1.msra.mxu0 %v1086
    %6727 = vmatprep.subr.mxu0 %v1083
    %6728 = vmatpush1.msra.mxu0 %v1082
    %6729 = vmatprep.subr.mxu0 %v1079
    %6730 = vmatpush1.msra.mxu0 %v1078
    %6731 = vmatprep.subr.mxu0 %v1075
    %6732 = vmatpush1.msra.mxu0 %v1074
    %6733 = vmatprep.subr.mxu0 0.0
    %6734 = vmatpush2.msra.mxu0 0.0
    %6735 = vmatprep.subr.mxu0 0.0
    %6736 = vmatpush2.msra.mxu0 0.0
    %6737 = vmatprep.subr.mxu0 0.0
    %6738 = vmatpush2.msra.mxu0 0.0
    %6739 = vmatprep.subr.mxu0 0.0
    %6740 = vmatpush2.msra.mxu0 0.0
    %6741 = vmatprep.subr.mxu0 0.0
    %6742 = vmatpush2.msra.mxu0 0.0
    %6743 = vmatprep.subr.mxu0 0.0
    %6744 = vmatpush2.msra.mxu0 0.0
    %6745 = vmatprep.subr.mxu0 0.0
    %6746 = vmatpush2.msra.mxu0 0.0
    %6747 = vmatprep.subr.mxu0 0.0
    %6748 = vmatpush2.msra.mxu0 0.0
    %6749 = vmatprep.subr.mxu0 0.0
    %6750 = vmatpush2.msra.mxu0 0.0
    %6751 = vmatprep.subr.mxu0 0.0
    %6752 = vmatpush2.msra.mxu0 0.0
    %6753 = vmatprep.subr.mxu0 0.0
    %6754 = vmatpush2.msra.mxu0 0.0
    %6755 = vmatprep.subr.mxu0 0.0
    %6756 = vmatpush2.msra.mxu0 0.0
    %6757 = vmatprep.subr.mxu0 0.0
    %6758 = vmatpush2.msra.mxu0 0.0
    %6759 = vmatprep.subr.mxu0 0.0
    %6760 = vmatpush2.msra.mxu0 0.0
    %6761 = vmatprep.subr.mxu0 0.0
    %6762 = vmatpush2.msra.mxu0 0.0
    %6763 = vmatprep.subr.mxu0 0.0
    %6764 = vmatpush2.msra.mxu0 0.0
    %6765 = vmatprep.mubr.f32.mxu0 0.0
    %6766 = vmatmul.mubr.f32.gmra.mxu0 %v5678
    %v6767 = vpop.f32.mrf.mxu0
    %v6768 = vadd.f32 0.0, %v6767
    %v6769 = vpop.f32.mrf.mxu0
    %v6770 = vadd.f32 0.0, %v6769
    %6771 = vdwg.mxu0
    %6772 = vmatprep.subr.mxu0 %v1137
    %6773 = vmatpush1.msra.mxu0 %v1136
    %6774 = vmatprep.subr.mxu0 %v1133
    %6775 = vmatpush1.msra.mxu0 %v1132
    %6776 = vmatprep.subr.mxu0 %v1129
    %6777 = vmatpush1.msra.mxu0 %v1128
    %6778 = vmatprep.subr.mxu0 %v1125
    %6779 = vmatpush1.msra.mxu0 %v1124
    %6780 = vmatprep.subr.mxu0 %v1121
    %6781 = vmatpush1.msra.mxu0 %v1120
    %6782 = vmatprep.subr.mxu0 %v1117
    %6783 = vmatpush1.msra.mxu0 %v1116
    %6784 = vmatprep.subr.mxu0 %v1113
    %6785 = vmatpush1.msra.mxu0 %v1112
    %6786 = vmatprep.subr.mxu0 %v1109
    %6787 = vmatpush1.msra.mxu0 %v1108
    %6788 = vmatprep.subr.mxu0 %v1105
    %6789 = vmatpush1.msra.mxu0 %v1104
    %6790 = vmatprep.subr.mxu0 %v1101
    %6791 = vmatpush1.msra.mxu0 %v1100
    %6792 = vmatprep.subr.mxu0 %v1097
    %6793 = vmatpush1.msra.mxu0 %v1096
    %6794 = vmatprep.subr.mxu0 %v1093
    %6795 = vmatpush1.msra.mxu0 %v1092
    %6796 = vmatprep.subr.mxu0 %v1089
    %6797 = vmatpush1.msra.mxu0 %v1088
    %6798 = vmatprep.subr.mxu0 %v1085
    %6799 = vmatpush1.msra.mxu0 %v1084
    %6800 = vmatprep.subr.mxu0 %v1081
    %6801 = vmatpush1.msra.mxu0 %v1080
    %6802 = vmatprep.subr.mxu0 %v1077
    %6803 = vmatpush1.msra.mxu0 %v1076
    %6804 = vmatprep.subr.mxu0 0.0
    %6805 = vmatpush2.msra.mxu0 0.0
    %6806 = vmatprep.subr.mxu0 0.0
    %6807 = vmatpush2.msra.mxu0 0.0
    %6808 = vmatprep.subr.mxu0 0.0
    %6809 = vmatpush2.msra.mxu0 0.0
    %6810 = vmatprep.subr.mxu0 0.0
    %6811 = vmatpush2.msra.mxu0 0.0
    %6812 = vmatprep.subr.mxu0 0.0
    %6813 = vmatpush2.msra.mxu0 0.0
    %6814 = vmatprep.subr.mxu0 0.0
    %6815 = vmatpush2.msra.mxu0 0.0
    %6816 = vmatprep.subr.mxu0 0.0
    %6817 = vmatpush2.msra.mxu0 0.0
    %6818 = vmatprep.subr.mxu0 0.0
    %6819 = vmatpush2.msra.mxu0 0.0
    %6820 = vmatprep.subr.mxu0 0.0
    %6821 = vmatpush2.msra.mxu0 0.0
    %6822 = vmatprep.subr.mxu0 0.0
    %6823 = vmatpush2.msra.mxu0 0.0
    %6824 = vmatprep.subr.mxu0 0.0
    %6825 = vmatpush2.msra.mxu0 0.0
    %6826 = vmatprep.subr.mxu0 0.0
    %6827 = vmatpush2.msra.mxu0 0.0
    %6828 = vmatprep.subr.mxu0 0.0
    %6829 = vmatpush2.msra.mxu0 0.0
    %6830 = vmatprep.subr.mxu0 0.0
    %6831 = vmatpush2.msra.mxu0 0.0
    %6832 = vmatprep.subr.mxu0 0.0
    %6833 = vmatpush2.msra.mxu0 0.0
    %6834 = vmatprep.subr.mxu0 0.0
    %6835 = vmatpush2.msra.mxu0 0.0
    %6836 = vmatprep.mubr.f32.mxu0 0.0
    %6837 = vmatmul.mubr.f32.gmra.mxu0 %v5678
    %v6838 = vpop.f32.mrf.mxu0
    %v6839 = vadd.f32 0.0, %v6838
    %v6840 = vpop.f32.mrf.mxu0
    %v6841 = vadd.f32 0.0, %v6840
    %6842 = vdwg.mxu0
    %6843 = vmatprep.subr.mxu0 %v1071
    %6844 = vmatpush1.msra.mxu0 %v1070
    %6845 = vmatprep.subr.mxu0 %v1067
    %6846 = vmatpush1.msra.mxu0 %v1066
    %6847 = vmatprep.subr.mxu0 %v1063
    %6848 = vmatpush1.msra.mxu0 %v1062
    %6849 = vmatprep.subr.mxu0 %v1059
    %6850 = vmatpush1.msra.mxu0 %v1058
    %6851 = vmatprep.subr.mxu0 %v1055
    %6852 = vmatpush1.msra.mxu0 %v1054
    %6853 = vmatprep.subr.mxu0 %v1051
    %6854 = vmatpush1.msra.mxu0 %v1050
    %6855 = vmatprep.subr.mxu0 %v1047
    %6856 = vmatpush1.msra.mxu0 %v1046
    %6857 = vmatprep.subr.mxu0 %v1043
    %6858 = vmatpush1.msra.mxu0 %v1042
    %6859 = vmatprep.subr.mxu0 %v1039
    %6860 = vmatpush1.msra.mxu0 %v1038
    %6861 = vmatprep.subr.mxu0 %v1035
    %6862 = vmatpush1.msra.mxu0 %v1034
    %6863 = vmatprep.subr.mxu0 %v1031
    %6864 = vmatpush1.msra.mxu0 %v1030
    %6865 = vmatprep.subr.mxu0 %v1027
    %6866 = vmatpush1.msra.mxu0 %v1026
    %6867 = vmatprep.subr.mxu0 %v1023
    %6868 = vmatpush1.msra.mxu0 %v1022
    %6869 = vmatprep.subr.mxu0 %v1019
    %6870 = vmatpush1.msra.mxu0 %v1018
    %6871 = vmatprep.subr.mxu0 %v1015
    %6872 = vmatpush1.msra.mxu0 %v1014
    %6873 = vmatprep.subr.mxu0 %v1011
    %6874 = vmatpush1.msra.mxu0 %v1010
    %6875 = vmatprep.subr.mxu0 0.0
    %6876 = vmatpush2.msra.mxu0 0.0
    %6877 = vmatprep.subr.mxu0 0.0
    %6878 = vmatpush2.msra.mxu0 0.0
    %6879 = vmatprep.subr.mxu0 0.0
    %6880 = vmatpush2.msra.mxu0 0.0
    %6881 = vmatprep.subr.mxu0 0.0
    %6882 = vmatpush2.msra.mxu0 0.0
    %6883 = vmatprep.subr.mxu0 0.0
    %6884 = vmatpush2.msra.mxu0 0.0
    %6885 = vmatprep.subr.mxu0 0.0
    %6886 = vmatpush2.msra.mxu0 0.0
    %6887 = vmatprep.subr.mxu0 0.0
    %6888 = vmatpush2.msra.mxu0 0.0
    %6889 = vmatprep.subr.mxu0 0.0
    %6890 = vmatpush2.msra.mxu0 0.0
    %6891 = vmatprep.subr.mxu0 0.0
    %6892 = vmatpush2.msra.mxu0 0.0
    %6893 = vmatprep.subr.mxu0 0.0
    %6894 = vmatpush2.msra.mxu0 0.0
    %6895 = vmatprep.subr.mxu0 0.0
    %6896 = vmatpush2.msra.mxu0 0.0
    %6897 = vmatprep.subr.mxu0 0.0
    %6898 = vmatpush2.msra.mxu0 0.0
    %6899 = vmatprep.subr.mxu0 0.0
    %6900 = vmatpush2.msra.mxu0 0.0
    %6901 = vmatprep.subr.mxu0 0.0
    %6902 = vmatpush2.msra.mxu0 0.0
    %6903 = vmatprep.subr.mxu0 0.0
    %6904 = vmatpush2.msra.mxu0 0.0
    %6905 = vmatprep.subr.mxu0 0.0
    %6906 = vmatpush2.msra.mxu0 0.0
    %6907 = vmatprep.mubr.f32.mxu0 0.0
    %6908 = vmatmul.mubr.f32.gmra.mxu0 %v6700
    %v6909 = vpop.f32.mrf.mxu0
    %v6910 = vadd.f32 %v6768, %v6909
    %v6911 = vpop.f32.mrf.mxu0
    %v6912 = vadd.f32 %v6770, %v6911
    %6913 = vdwg.mxu0
    %6914 = vmatprep.subr.mxu0 %v1073
    %6915 = vmatpush1.msra.mxu0 %v1072
    %6916 = vmatprep.subr.mxu0 %v1069
    %6917 = vmatpush1.msra.mxu0 %v1068
    %6918 = vmatprep.subr.mxu0 %v1065
    %6919 = vmatpush1.msra.mxu0 %v1064
    %6920 = vmatprep.subr.mxu0 %v1061
    %6921 = vmatpush1.msra.mxu0 %v1060
    %6922 = vmatprep.subr.mxu0 %v1057
    %6923 = vmatpush1.msra.mxu0 %v1056
    %6924 = vmatprep.subr.mxu0 %v1053
    %6925 = vmatpush1.msra.mxu0 %v1052
    %6926 = vmatprep.subr.mxu0 %v1049
    %6927 = vmatpush1.msra.mxu0 %v1048
    %6928 = vmatprep.subr.mxu0 %v1045
    %6929 = vmatpush1.msra.mxu0 %v1044
    %6930 = vmatprep.subr.mxu0 %v1041
    %6931 = vmatpush1.msra.mxu0 %v1040
    %6932 = vmatprep.subr.mxu0 %v1037
    %6933 = vmatpush1.msra.mxu0 %v1036
    %6934 = vmatprep.subr.mxu0 %v1033
    %6935 = vmatpush1.msra.mxu0 %v1032
    %6936 = vmatprep.subr.mxu0 %v1029
    %6937 = vmatpush1.msra.mxu0 %v1028
    %6938 = vmatprep.subr.mxu0 %v1025
    %6939 = vmatpush1.msra.mxu0 %v1024
    %6940 = vmatprep.subr.mxu0 %v1021
    %6941 = vmatpush1.msra.mxu0 %v1020
    %6942 = vmatprep.subr.mxu0 %v1017
    %6943 = vmatpush1.msra.mxu0 %v1016
    %6944 = vmatprep.subr.mxu0 %v1013
    %6945 = vmatpush1.msra.mxu0 %v1012
    %6946 = vmatprep.subr.mxu0 0.0
    %6947 = vmatpush2.msra.mxu0 0.0
    %6948 = vmatprep.subr.mxu0 0.0
    %6949 = vmatpush2.msra.mxu0 0.0
    %6950 = vmatprep.subr.mxu0 0.0
    %6951 = vmatpush2.msra.mxu0 0.0
    %6952 = vmatprep.subr.mxu0 0.0
    %6953 = vmatpush2.msra.mxu0 0.0
    %6954 = vmatprep.subr.mxu0 0.0
    %6955 = vmatpush2.msra.mxu0 0.0
    %6956 = vmatprep.subr.mxu0 0.0
    %6957 = vmatpush2.msra.mxu0 0.0
    %6958 = vmatprep.subr.mxu0 0.0
    %6959 = vmatpush2.msra.mxu0 0.0
    %6960 = vmatprep.subr.mxu0 0.0
    %6961 = vmatpush2.msra.mxu0 0.0
    %6962 = vmatprep.subr.mxu0 0.0
    %6963 = vmatpush2.msra.mxu0 0.0
    %6964 = vmatprep.subr.mxu0 0.0
    %6965 = vmatpush2.msra.mxu0 0.0
    %6966 = vmatprep.subr.mxu0 0.0
    %6967 = vmatpush2.msra.mxu0 0.0
    %6968 = vmatprep.subr.mxu0 0.0
    %6969 = vmatpush2.msra.mxu0 0.0
    %6970 = vmatprep.subr.mxu0 0.0
    %6971 = vmatpush2.msra.mxu0 0.0
    %6972 = vmatprep.subr.mxu0 0.0
    %6973 = vmatpush2.msra.mxu0 0.0
    %6974 = vmatprep.subr.mxu0 0.0
    %6975 = vmatpush2.msra.mxu0 0.0
    %6976 = vmatprep.subr.mxu0 0.0
    %6977 = vmatpush2.msra.mxu0 0.0
    %6978 = vmatprep.mubr.f32.mxu0 0.0
    %6979 = vmatmul.mubr.f32.gmra.mxu0 %v6700
    %v6980 = vpop.f32.mrf.mxu0
    %v6981 = vadd.f32 %v6839, %v6980
    %v6982 = vpop.f32.mrf.mxu0
    %v6983 = vadd.f32 %v6841, %v6982
    %6984 = vdwg.mxu0
    %v6985 = vadd.f32 %v6910, %v1427
    %v6986 = vadd.f32 %v6912, %v1431
    %v6987 = vadd.f32 %v6981, %v1435
    %v6988 = vadd.f32 %v6983, %v1439
    %v6989 = vxor.u32 %v6985, 2147483648
    %v6990 = vmul.f32 %v6989, 1.442695
    %v6991 = vpow.pop %v6990
    %v6992 = vadd.f32 %v6991, 1.0
    %v6993 = vrcp.pop %v6992
    %v6994 = vmul.f32 1.0, %v6993
    %v6995 = vxor.u32 %v6986, 2147483648
    %v6996 = vmul.f32 %v6995, 1.442695
    %v6997 = vpow.pop %v6996
    %v6998 = vadd.f32 %v6997, 1.0
    %v6999 = vrcp.pop %v6998
    %v7000 = vmul.f32 1.0, %v6999
    %v7001 = vtanh.pop %v6987
    %v7002 = vxor.u32 %v6988, 2147483648
    %v7003 = vmul.f32 %v7002, 1.442695
    %v7004 = vpow.pop %v7003
    %v7005 = vadd.f32 %v7004, 1.0
    %v7006 = vrcp.pop %v7005
    %v7007 = vmul.f32 1.0, %v7006
    %v7008 = vmul.f32 %v7000, %v5676
    %v7009 = vmul.f32 %v6994, %v7001
    %v7010 = vadd.f32 %v7008, %v7009
    %v7011 = vtanh.pop %v7010
    %v7012 = vmul.f32 %v7007, %v7011
    %7013 = vmatprep.subr.mxu0 %v1597
    %7014 = vmatpush1.msra.mxu0 %v1596
    %7015 = vmatprep.subr.mxu0 %v1593
    %7016 = vmatpush1.msra.mxu0 %v1592
    %7017 = vmatprep.subr.mxu0 %v1589
    %7018 = vmatpush1.msra.mxu0 %v1588
    %7019 = vmatprep.subr.mxu0 %v1585
    %7020 = vmatpush1.msra.mxu0 %v1584
    %7021 = vmatprep.subr.mxu0 %v1581
    %7022 = vmatpush1.msra.mxu0 %v1580
    %7023 = vmatprep.subr.mxu0 %v1577
    %7024 = vmatpush1.msra.mxu0 %v1576
    %7025 = vmatprep.subr.mxu0 %v1573
    %7026 = vmatpush1.msra.mxu0 %v1572
    %7027 = vmatprep.subr.mxu0 %v1569
    %7028 = vmatpush1.msra.mxu0 %v1568
    %7029 = vmatprep.subr.mxu0 %v1565
    %7030 = vmatpush1.msra.mxu0 %v1564
    %7031 = vmatprep.subr.mxu0 %v1561
    %7032 = vmatpush1.msra.mxu0 %v1560
    %7033 = vmatprep.subr.mxu0 %v1557
    %7034 = vmatpush1.msra.mxu0 %v1556
    %7035 = vmatprep.subr.mxu0 %v1553
    %7036 = vmatpush1.msra.mxu0 %v1552
    %7037 = vmatprep.subr.mxu0 %v1549
    %7038 = vmatpush1.msra.mxu0 %v1548
    %7039 = vmatprep.subr.mxu0 %v1545
    %7040 = vmatpush1.msra.mxu0 %v1544
    %7041 = vmatprep.subr.mxu0 %v1541
    %7042 = vmatpush1.msra.mxu0 %v1540
    %7043 = vmatprep.subr.mxu0 %v1537
    %7044 = vmatpush1.msra.mxu0 %v1536
    %7045 = vmatprep.subr.mxu0 0.0
    %7046 = vmatpush2.msra.mxu0 0.0
    %7047 = vmatprep.subr.mxu0 0.0
    %7048 = vmatpush2.msra.mxu0 0.0
    %7049 = vmatprep.subr.mxu0 0.0
    %7050 = vmatpush2.msra.mxu0 0.0
    %7051 = vmatprep.subr.mxu0 0.0
    %7052 = vmatpush2.msra.mxu0 0.0
    %7053 = vmatprep.subr.mxu0 0.0
    %7054 = vmatpush2.msra.mxu0 0.0
    %7055 = vmatprep.subr.mxu0 0.0
    %7056 = vmatpush2.msra.mxu0 0.0
    %7057 = vmatprep.subr.mxu0 0.0
    %7058 = vmatpush2.msra.mxu0 0.0
    %7059 = vmatprep.subr.mxu0 0.0
    %7060 = vmatpush2.msra.mxu0 0.0
    %7061 = vmatprep.subr.mxu0 0.0
    %7062 = vmatpush2.msra.mxu0 0.0
    %7063 = vmatprep.subr.mxu0 0.0
    %7064 = vmatpush2.msra.mxu0 0.0
    %7065 = vmatprep.subr.mxu0 0.0
    %7066 = vmatpush2.msra.mxu0 0.0
    %7067 = vmatprep.subr.mxu0 0.0
    %7068 = vmatpush2.msra.mxu0 0.0
    %7069 = vmatprep.subr.mxu0 0.0
    %7070 = vmatpush2.msra.mxu0 0.0
    %7071 = vmatprep.subr.mxu0 0.0
    %7072 = vmatpush2.msra.mxu0 0.0
    %7073 = vmatprep.subr.mxu0 0.0
    %7074 = vmatpush2.msra.mxu0 0.0
    %7075 = vmatprep.subr.mxu0 0.0
    %7076 = vmatpush2.msra.mxu0 0.0
    %7077 = vmatprep.mubr.f32.mxu0 0.0
    %7078 = vmatmul.mubr.f32.gmra.mxu0 %v5990
    %v7079 = vpop.f32.mrf.mxu0
    %v7080 = vadd.f32 0.0, %v7079
    %v7081 = vpop.f32.mrf.mxu0
    %v7082 = vadd.f32 0.0, %v7081
    %7083 = vdwg.mxu0
    %7084 = vmatprep.subr.mxu0 %v1599
    %7085 = vmatpush1.msra.mxu0 %v1598
    %7086 = vmatprep.subr.mxu0 %v1595
    %7087 = vmatpush1.msra.mxu0 %v1594
    %7088 = vmatprep.subr.mxu0 %v1591
    %7089 = vmatpush1.msra.mxu0 %v1590
    %7090 = vmatprep.subr.mxu0 %v1587
    %7091 = vmatpush1.msra.mxu0 %v1586
    %7092 = vmatprep.subr.mxu0 %v1583
    %7093 = vmatpush1.msra.mxu0 %v1582
    %7094 = vmatprep.subr.mxu0 %v1579
    %7095 = vmatpush1.msra.mxu0 %v1578
    %7096 = vmatprep.subr.mxu0 %v1575
    %7097 = vmatpush1.msra.mxu0 %v1574
    %7098 = vmatprep.subr.mxu0 %v1571
    %7099 = vmatpush1.msra.mxu0 %v1570
    %7100 = vmatprep.subr.mxu0 %v1567
    %7101 = vmatpush1.msra.mxu0 %v1566
    %7102 = vmatprep.subr.mxu0 %v1563
    %7103 = vmatpush1.msra.mxu0 %v1562
    %7104 = vmatprep.subr.mxu0 %v1559
    %7105 = vmatpush1.msra.mxu0 %v1558
    %7106 = vmatprep.subr.mxu0 %v1555
    %7107 = vmatpush1.msra.mxu0 %v1554
    %7108 = vmatprep.subr.mxu0 %v1551
    %7109 = vmatpush1.msra.mxu0 %v1550
    %7110 = vmatprep.subr.mxu0 %v1547
    %7111 = vmatpush1.msra.mxu0 %v1546
    %7112 = vmatprep.subr.mxu0 %v1543
    %7113 = vmatpush1.msra.mxu0 %v1542
    %7114 = vmatprep.subr.mxu0 %v1539
    %7115 = vmatpush1.msra.mxu0 %v1538
    %7116 = vmatprep.subr.mxu0 0.0
    %7117 = vmatpush2.msra.mxu0 0.0
    %7118 = vmatprep.subr.mxu0 0.0
    %7119 = vmatpush2.msra.mxu0 0.0
    %7120 = vmatprep.subr.mxu0 0.0
    %7121 = vmatpush2.msra.mxu0 0.0
    %7122 = vmatprep.subr.mxu0 0.0
    %7123 = vmatpush2.msra.mxu0 0.0
    %7124 = vmatprep.subr.mxu0 0.0
    %7125 = vmatpush2.msra.mxu0 0.0
    %7126 = vmatprep.subr.mxu0 0.0
    %7127 = vmatpush2.msra.mxu0 0.0
    %7128 = vmatprep.subr.mxu0 0.0
    %7129 = vmatpush2.msra.mxu0 0.0
    %7130 = vmatprep.subr.mxu0 0.0
    %7131 = vmatpush2.msra.mxu0 0.0
    %7132 = vmatprep.subr.mxu0 0.0
    %7133 = vmatpush2.msra.mxu0 0.0
    %7134 = vmatprep.subr.mxu0 0.0
    %7135 = vmatpush2.msra.mxu0 0.0
    %7136 = vmatprep.subr.mxu0 0.0
    %7137 = vmatpush2.msra.mxu0 0.0
    %7138 = vmatprep.subr.mxu0 0.0
    %7139 = vmatpush2.msra.mxu0 0.0
    %7140 = vmatprep.subr.mxu0 0.0
    %7141 = vmatpush2.msra.mxu0 0.0
    %7142 = vmatprep.subr.mxu0 0.0
    %7143 = vmatpush2.msra.mxu0 0.0
    %7144 = vmatprep.subr.mxu0 0.0
    %7145 = vmatpush2.msra.mxu0 0.0
    %7146 = vmatprep.subr.mxu0 0.0
    %7147 = vmatpush2.msra.mxu0 0.0
    %7148 = vmatprep.mubr.f32.mxu0 0.0
    %7149 = vmatmul.mubr.f32.gmra.mxu0 %v5990
    %v7150 = vpop.f32.mrf.mxu0
    %v7151 = vadd.f32 0.0, %v7150
    %v7152 = vpop.f32.mrf.mxu0
    %v7153 = vadd.f32 0.0, %v7152
    %7154 = vdwg.mxu0
    %7155 = vmatprep.subr.mxu0 %v1533
    %7156 = vmatpush1.msra.mxu0 %v1532
    %7157 = vmatprep.subr.mxu0 %v1529
    %7158 = vmatpush1.msra.mxu0 %v1528
    %7159 = vmatprep.subr.mxu0 %v1525
    %7160 = vmatpush1.msra.mxu0 %v1524
    %7161 = vmatprep.subr.mxu0 %v1521
    %7162 = vmatpush1.msra.mxu0 %v1520
    %7163 = vmatprep.subr.mxu0 %v1517
    %7164 = vmatpush1.msra.mxu0 %v1516
    %7165 = vmatprep.subr.mxu0 %v1513
    %7166 = vmatpush1.msra.mxu0 %v1512
    %7167 = vmatprep.subr.mxu0 %v1509
    %7168 = vmatpush1.msra.mxu0 %v1508
    %7169 = vmatprep.subr.mxu0 %v1505
    %7170 = vmatpush1.msra.mxu0 %v1504
    %7171 = vmatprep.subr.mxu0 %v1501
    %7172 = vmatpush1.msra.mxu0 %v1500
    %7173 = vmatprep.subr.mxu0 %v1497
    %7174 = vmatpush1.msra.mxu0 %v1496
    %7175 = vmatprep.subr.mxu0 %v1493
    %7176 = vmatpush1.msra.mxu0 %v1492
    %7177 = vmatprep.subr.mxu0 %v1489
    %7178 = vmatpush1.msra.mxu0 %v1488
    %7179 = vmatprep.subr.mxu0 %v1485
    %7180 = vmatpush1.msra.mxu0 %v1484
    %7181 = vmatprep.subr.mxu0 %v1481
    %7182 = vmatpush1.msra.mxu0 %v1480
    %7183 = vmatprep.subr.mxu0 %v1477
    %7184 = vmatpush1.msra.mxu0 %v1476
    %7185 = vmatprep.subr.mxu0 %v1473
    %7186 = vmatpush1.msra.mxu0 %v1472
    %7187 = vmatprep.subr.mxu0 0.0
    %7188 = vmatpush2.msra.mxu0 0.0
    %7189 = vmatprep.subr.mxu0 0.0
    %7190 = vmatpush2.msra.mxu0 0.0
    %7191 = vmatprep.subr.mxu0 0.0
    %7192 = vmatpush2.msra.mxu0 0.0
    %7193 = vmatprep.subr.mxu0 0.0
    %7194 = vmatpush2.msra.mxu0 0.0
    %7195 = vmatprep.subr.mxu0 0.0
    %7196 = vmatpush2.msra.mxu0 0.0
    %7197 = vmatprep.subr.mxu0 0.0
    %7198 = vmatpush2.msra.mxu0 0.0
    %7199 = vmatprep.subr.mxu0 0.0
    %7200 = vmatpush2.msra.mxu0 0.0
    %7201 = vmatprep.subr.mxu0 0.0
    %7202 = vmatpush2.msra.mxu0 0.0
    %7203 = vmatprep.subr.mxu0 0.0
    %7204 = vmatpush2.msra.mxu0 0.0
    %7205 = vmatprep.subr.mxu0 0.0
    %7206 = vmatpush2.msra.mxu0 0.0
    %7207 = vmatprep.subr.mxu0 0.0
    %7208 = vmatpush2.msra.mxu0 0.0
    %7209 = vmatprep.subr.mxu0 0.0
    %7210 = vmatpush2.msra.mxu0 0.0
    %7211 = vmatprep.subr.mxu0 0.0
    %7212 = vmatpush2.msra.mxu0 0.0
    %7213 = vmatprep.subr.mxu0 0.0
    %7214 = vmatpush2.msra.mxu0 0.0
    %7215 = vmatprep.subr.mxu0 0.0
    %7216 = vmatpush2.msra.mxu0 0.0
    %7217 = vmatprep.subr.mxu0 0.0
    %7218 = vmatpush2.msra.mxu0 0.0
    %7219 = vmatprep.mubr.f32.mxu0 0.0
    %7220 = vmatmul.mubr.f32.gmra.mxu0 %v7012
    %v7221 = vpop.f32.mrf.mxu0
    %v7222 = vadd.f32 %v7080, %v7221
    %v7223 = vpop.f32.mrf.mxu0
    %v7224 = vadd.f32 %v7082, %v7223
    %7225 = vdwg.mxu0
    %7226 = vmatprep.subr.mxu0 %v1535
    %7227 = vmatpush1.msra.mxu0 %v1534
    %7228 = vmatprep.subr.mxu0 %v1531
    %7229 = vmatpush1.msra.mxu0 %v1530
    %7230 = vmatprep.subr.mxu0 %v1527
    %7231 = vmatpush1.msra.mxu0 %v1526
    %7232 = vmatprep.subr.mxu0 %v1523
    %7233 = vmatpush1.msra.mxu0 %v1522
    %7234 = vmatprep.subr.mxu0 %v1519
    %7235 = vmatpush1.msra.mxu0 %v1518
    %7236 = vmatprep.subr.mxu0 %v1515
    %7237 = vmatpush1.msra.mxu0 %v1514
    %7238 = vmatprep.subr.mxu0 %v1511
    %7239 = vmatpush1.msra.mxu0 %v1510
    %7240 = vmatprep.subr.mxu0 %v1507
    %7241 = vmatpush1.msra.mxu0 %v1506
    %7242 = vmatprep.subr.mxu0 %v1503
    %7243 = vmatpush1.msra.mxu0 %v1502
    %7244 = vmatprep.subr.mxu0 %v1499
    %7245 = vmatpush1.msra.mxu0 %v1498
    %7246 = vmatprep.subr.mxu0 %v1495
    %7247 = vmatpush1.msra.mxu0 %v1494
    %7248 = vmatprep.subr.mxu0 %v1491
    %7249 = vmatpush1.msra.mxu0 %v1490
    %7250 = vmatprep.subr.mxu0 %v1487
    %7251 = vmatpush1.msra.mxu0 %v1486
    %7252 = vmatprep.subr.mxu0 %v1483
    %7253 = vmatpush1.msra.mxu0 %v1482
    %7254 = vmatprep.subr.mxu0 %v1479
    %7255 = vmatpush1.msra.mxu0 %v1478
    %7256 = vmatprep.subr.mxu0 %v1475
    %7257 = vmatpush1.msra.mxu0 %v1474
    %7258 = vmatprep.subr.mxu0 0.0
    %7259 = vmatpush2.msra.mxu0 0.0
    %7260 = vmatprep.subr.mxu0 0.0
    %7261 = vmatpush2.msra.mxu0 0.0
    %7262 = vmatprep.subr.mxu0 0.0
    %7263 = vmatpush2.msra.mxu0 0.0
    %7264 = vmatprep.subr.mxu0 0.0
    %7265 = vmatpush2.msra.mxu0 0.0
    %7266 = vmatprep.subr.mxu0 0.0
    %7267 = vmatpush2.msra.mxu0 0.0
    %7268 = vmatprep.subr.mxu0 0.0
    %7269 = vmatpush2.msra.mxu0 0.0
    %7270 = vmatprep.subr.mxu0 0.0
    %7271 = vmatpush2.msra.mxu0 0.0
    %7272 = vmatprep.subr.mxu0 0.0
    %7273 = vmatpush2.msra.mxu0 0.0
    %7274 = vmatprep.subr.mxu0 0.0
    %7275 = vmatpush2.msra.mxu0 0.0
    %7276 = vmatprep.subr.mxu0 0.0
    %7277 = vmatpush2.msra.mxu0 0.0
    %7278 = vmatprep.subr.mxu0 0.0
    %7279 = vmatpush2.msra.mxu0 0.0
    %7280 = vmatprep.subr.mxu0 0.0
    %7281 = vmatpush2.msra.mxu0 0.0
    %7282 = vmatprep.subr.mxu0 0.0
    %7283 = vmatpush2.msra.mxu0 0.0
    %7284 = vmatprep.subr.mxu0 0.0
    %7285 = vmatpush2.msra.mxu0 0.0
    %7286 = vmatprep.subr.mxu0 0.0
    %7287 = vmatpush2.msra.mxu0 0.0
    %7288 = vmatprep.subr.mxu0 0.0
    %7289 = vmatpush2.msra.mxu0 0.0
    %7290 = vmatprep.mubr.f32.mxu0 0.0
    %7291 = vmatmul.mubr.f32.gmra.mxu0 %v7012
    %v7292 = vpop.f32.mrf.mxu0
    %v7293 = vadd.f32 %v7151, %v7292
    %v7294 = vpop.f32.mrf.mxu0
    %v7295 = vadd.f32 %v7153, %v7294
    %7296 = vdwg.mxu0
    %v7297 = vadd.f32 %v7222, %v1889
    %v7298 = vadd.f32 %v7224, %v1893
    %v7299 = vadd.f32 %v7293, %v1897
    %v7300 = vadd.f32 %v7295, %v1901
    %v7301 = vxor.u32 %v7297, 2147483648
    %v7302 = vmul.f32 %v7301, 1.442695
    %v7303 = vpow.pop %v7302
    %v7304 = vadd.f32 %v7303, 1.0
    %v7305 = vrcp.pop %v7304
    %v7306 = vmul.f32 1.0, %v7305
    %v7307 = vxor.u32 %v7298, 2147483648
    %v7308 = vmul.f32 %v7307, 1.442695
    %v7309 = vpow.pop %v7308
    %v7310 = vadd.f32 %v7309, 1.0
    %v7311 = vrcp.pop %v7310
    %v7312 = vmul.f32 1.0, %v7311
    %v7313 = vtanh.pop %v7299
    %v7314 = vxor.u32 %v7300, 2147483648
    %v7315 = vmul.f32 %v7314, 1.442695
    %v7316 = vpow.pop %v7315
    %v7317 = vadd.f32 %v7316, 1.0
    %v7318 = vrcp.pop %v7317
    %v7319 = vmul.f32 1.0, %v7318
    %v7320 = vmul.f32 %v7312, %v5988
    %v7321 = vmul.f32 %v7306, %v7313
    %v7322 = vadd.f32 %v7320, %v7321
    %v7323 = vtanh.pop %v7322
    %v7324 = vmul.f32 %v7319, %v7323
    %7325 = vmatprep.subr.mxu0 %v1965
    %7326 = vmatpush1.msra.mxu0 %v1964
    %7327 = vmatprep.subr.mxu0 %v1963
    %7328 = vmatpush1.msra.mxu0 %v1962
    %7329 = vmatprep.subr.mxu0 %v1961
    %7330 = vmatpush1.msra.mxu0 %v1960
    %7331 = vmatprep.subr.mxu0 %v1959
    %7332 = vmatpush1.msra.mxu0 %v1958
    %7333 = vmatprep.subr.mxu0 %v1957
    %7334 = vmatpush1.msra.mxu0 %v1956
    %7335 = vmatprep.subr.mxu0 %v1955
    %7336 = vmatpush1.msra.mxu0 %v1954
    %7337 = vmatprep.subr.mxu0 %v1953
    %7338 = vmatpush1.msra.mxu0 %v1952
    %7339 = vmatprep.subr.mxu0 %v1951
    %7340 = vmatpush1.msra.mxu0 %v1950
    %7341 = vmatprep.subr.mxu0 %v1949
    %7342 = vmatpush1.msra.mxu0 %v1948
    %7343 = vmatprep.subr.mxu0 %v1947
    %7344 = vmatpush1.msra.mxu0 %v1946
    %7345 = vmatprep.subr.mxu0 %v1945
    %7346 = vmatpush1.msra.mxu0 %v1944
    %7347 = vmatprep.subr.mxu0 %v1943
    %7348 = vmatpush1.msra.mxu0 %v1942
    %7349 = vmatprep.subr.mxu0 %v1941
    %7350 = vmatpush1.msra.mxu0 %v1940
    %7351 = vmatprep.subr.mxu0 %v1939
    %7352 = vmatpush1.msra.mxu0 %v1938
    %7353 = vmatprep.subr.mxu0 %v1937
    %7354 = vmatpush1.msra.mxu0 %v1936
    %7355 = vmatprep.subr.mxu0 %v1935
    %7356 = vmatpush1.msra.mxu0 %v1934
    %7357 = vmatprep.subr.mxu0 0.0
    %7358 = vmatpush2.msra.mxu0 0.0
    %7359 = vmatprep.subr.mxu0 0.0
    %7360 = vmatpush2.msra.mxu0 0.0
    %7361 = vmatprep.subr.mxu0 0.0
    %7362 = vmatpush2.msra.mxu0 0.0
    %7363 = vmatprep.subr.mxu0 0.0
    %7364 = vmatpush2.msra.mxu0 0.0
    %7365 = vmatprep.subr.mxu0 0.0
    %7366 = vmatpush2.msra.mxu0 0.0
    %7367 = vmatprep.subr.mxu0 0.0
    %7368 = vmatpush2.msra.mxu0 0.0
    %7369 = vmatprep.subr.mxu0 0.0
    %7370 = vmatpush2.msra.mxu0 0.0
    %7371 = vmatprep.subr.mxu0 0.0
    %7372 = vmatpush2.msra.mxu0 0.0
    %7373 = vmatprep.subr.mxu0 0.0
    %7374 = vmatpush2.msra.mxu0 0.0
    %7375 = vmatprep.subr.mxu0 0.0
    %7376 = vmatpush2.msra.mxu0 0.0
    %7377 = vmatprep.subr.mxu0 0.0
    %7378 = vmatpush2.msra.mxu0 0.0
    %7379 = vmatprep.subr.mxu0 0.0
    %7380 = vmatpush2.msra.mxu0 0.0
    %7381 = vmatprep.subr.mxu0 0.0
    %7382 = vmatpush2.msra.mxu0 0.0
    %7383 = vmatprep.subr.mxu0 0.0
    %7384 = vmatpush2.msra.mxu0 0.0
    %7385 = vmatprep.subr.mxu0 0.0
    %7386 = vmatpush2.msra.mxu0 0.0
    %7387 = vmatprep.subr.mxu0 0.0
    %7388 = vmatpush2.msra.mxu0 0.0
    %7389 = vmatprep.mubr.f32.mxu0 0.0
    %7390 = vmatmul.mubr.f32.gmra.mxu0 %v7324
    %v7391 = vpop.f32.mrf.mxu0
    %v7392 = vadd.f32 0.0, %v7391
    %v7393 = vpop.f32.mrf.mxu0
    %v7394 = vadd.f32 0.0, %v7393
    %7395 = vdwg.mxu0
    %v7396 = vadd.f32 %v7392, %v2041
    %v7397 = vadd.f32 %v7394, %v356
    %v7398 = vsel %vm2045, %v7396, -inf
    %7399 = vmax.xlane.f32.xlu0 %v7398
    %v7400 = vpop.xlane.xlu0 %7399
    %v7401 = vsub.f32 %v7396, %v7400
    %v7402 = vmul.f32 %v7401, 1.442695
    %v7403 = vpow.pop %v7402
    %v7404 = vsel %vm2045, %v7403, 0.0
    %7405 = vadd.xlane.f32.xlu0 %v7404
    %v7406 = vpop.xlane.xlu0 %7405
    %v7407 = vlog2.pop %v7406
    %v7408 = vmul.f32 %v7407, 0.6931472
    %v7409 = vsub.f32 %v7401, %v7408
    %vm7410 = vcmp.eq.f32.partialorder %v7396, %v7400
    %v7411 = vsel %vm7410, %v351, 128
    %v7412 = vsel %vm2045, %v7411, 2147483647
    %v7413 = vand.u32 %v7412, 65535
    %v7414 = vshra.s32 %v7412, 16
    %v7415 = vcvt.s32.f32 %v7413
    %v7416 = vcvt.s32.f32 %v7414
    %7417 = vmin.xlane.f32.xlu0 %v7416
    %v7418 = vpop.xlane.xlu0 %7417
    %vm7419 = vcmp.eq.f32.partialorder %v7416, %v7418
    %v7420 = vsel %vm7419, %v7415, inf
    %7421 = vmin.xlane.f32.xlu0 %v7420
    %v7422 = vpop.xlane.xlu0 %7421
    %v7423 = vcvt.f32.s32 %v7422
    %v7424 = vcvt.f32.s32 %v7418
    %v7425 = vshll.u32 %v7424, 16
    %v7426 = vadd.s32 %v7425, %v7423
    %vm7427 = vcmp.eq.s32.totalorder %v351, %v7426
    %v7428 = vsel %vm7427, 1, 0
    %v7429 = vcvt.s32.f32 %v7428
    %7430 = vmatprep.subr.mxu0 0.0
    %7431 = vmatpush1.msra.mxu0 %v2093
    %7432 = vmatprep.subr.mxu0 0.0
    %7433 = vmatpush1.msra.mxu0 %v2092
    %7434 = vmatprep.subr.mxu0 0.0
    %7435 = vmatpush1.msra.mxu0 %v2091
    %7436 = vmatprep.subr.mxu0 0.0
    %7437 = vmatpush1.msra.mxu0 %v2090
    %7438 = vmatprep.subr.mxu0 0.0
    %7439 = vmatpush1.msra.mxu0 %v2089
    %7440 = vmatprep.subr.mxu0 0.0
    %7441 = vmatpush1.msra.mxu0 %v2088
    %7442 = vmatprep.subr.mxu0 0.0
    %7443 = vmatpush1.msra.mxu0 %v2087
    %7444 = vmatprep.subr.mxu0 0.0
    %7445 = vmatpush1.msra.mxu0 %v2086
    %7446 = vmatprep.subr.mxu0 0.0
    %7447 = vmatpush1.msra.mxu0 %v2085
    %7448 = vmatprep.subr.mxu0 0.0
    %7449 = vmatpush1.msra.mxu0 %v2084
    %7450 = vmatprep.subr.mxu0 0.0
    %7451 = vmatpush1.msra.mxu0 %v2083
    %7452 = vmatprep.subr.mxu0 0.0
    %7453 = vmatpush1.msra.mxu0 %v2082
    %7454 = vmatprep.subr.mxu0 0.0
    %7455 = vmatpush1.msra.mxu0 %v2081
    %7456 = vmatprep.subr.mxu0 0.0
    %7457 = vmatpush1.msra.mxu0 %v2080
    %7458 = vmatprep.subr.mxu0 0.0
    %7459 = vmatpush1.msra.mxu0 %v2079
    %7460 = vmatprep.subr.mxu0 0.0
    %7461 = vmatpush1.msra.mxu0 %v2078
    %7462 = vmatprep.subr.mxu0 0.0
    %7463 = vmatpush2.msra.mxu0 0.0
    %7464 = vmatprep.subr.mxu0 0.0
    %7465 = vmatpush2.msra.mxu0 0.0
    %7466 = vmatprep.subr.mxu0 0.0
    %7467 = vmatpush2.msra.mxu0 0.0
    %7468 = vmatprep.subr.mxu0 0.0
    %7469 = vmatpush2.msra.mxu0 0.0
    %7470 = vmatprep.subr.mxu0 0.0
    %7471 = vmatpush2.msra.mxu0 0.0
    %7472 = vmatprep.subr.mxu0 0.0
    %7473 = vmatpush2.msra.mxu0 0.0
    %7474 = vmatprep.subr.mxu0 0.0
    %7475 = vmatpush2.msra.mxu0 0.0
    %7476 = vmatprep.subr.mxu0 0.0
    %7477 = vmatpush2.msra.mxu0 0.0
    %7478 = vmatprep.subr.mxu0 0.0
    %7479 = vmatpush2.msra.mxu0 0.0
    %7480 = vmatprep.subr.mxu0 0.0
    %7481 = vmatpush2.msra.mxu0 0.0
    %7482 = vmatprep.subr.mxu0 0.0
    %7483 = vmatpush2.msra.mxu0 0.0
    %7484 = vmatprep.subr.mxu0 0.0
    %7485 = vmatpush2.msra.mxu0 0.0
    %7486 = vmatprep.subr.mxu0 0.0
    %7487 = vmatpush2.msra.mxu0 0.0
    %7488 = vmatprep.subr.mxu0 0.0
    %7489 = vmatpush2.msra.mxu0 0.0
    %7490 = vmatprep.subr.mxu0 0.0
    %7491 = vmatpush2.msra.mxu0 0.0
    %7492 = vmatprep.subr.mxu0 0.0
    %7493 = vmatpush2.msra.mxu0 0.0
    %7494 = vmatprep.mubr.f32.mxu0 0.0
    %7495 = vmatmul.mubr.f32.gmra.mxu0 %v7429
    %v7496 = vpop.f32.mrf.mxu0
    %v7497 = vadd.f32 0.0, %v7496
    %v7498 = vpop.f32.mrf.mxu0
    %7499 = vdwg.mxu0
    %v7500 = vlaneseq
    %v7501 = vshrl.u32 %v7500, 7
    %v7502 = vsub.s32 0, %v7501
    %v7503 = vrot.slane %v7397, %v7502
    %v7504 = vadd.f32 %v273, %v7503
    %v7505 = vmax.f32 %v7504, 0.0
    %v7506 = vmul.f32 %v7505, %v364
    %7507 = vadd.xlane.f32.xlu0 %v7506
    %v7508 = vpop.xlane.xlu0 %7507
    %v7509 = vrot.slane %v7508, 4
    %v7510 = vmax.f32 %v7508, %v7509
    %v7511 = vrot.slane %v7510, 2
    %v7512 = vmax.f32 %v7510, %v7511
    %v7513 = vrot.slane %v7512, 1
    %v7514 = vmax.f32 %v7512, %v7513
    %v7515 = vsub.f32 %v7508, %v7514
    %v7516 = vmul.f32 %v7515, 1.442695
    %v7517 = vpow.pop %v7516
    %v7518 = vrot.slane %v7517, 4
    %v7519 = vadd.f32 %v7517, %v7518
    %v7520 = vrot.slane %v7519, 2
    %v7521 = vadd.f32 %v7519, %v7520
    %v7522 = vrot.slane %v7521, 1
    %v7523 = vadd.f32 %v7521, %v7522
    %v7524 = vlog2.pop %v7523
    %v7525 = vmul.f32 %v7524, 0.6931472
    %v7526 = vsub.f32 %v7515, %v7525
    %v7527 = vmul.f32 %v7526, %v195
    %v7528 = vsel %vm202, %v7527, 0.0
    %v7529 = vrot.slane %v7528, 4
    %v7530 = vadd.f32 %v7528, %v7529
    %v7531 = vrot.slane %v7530, 2
    %v7532 = vadd.f32 %v7530, %v7531
    %v7533 = vrot.slane %v7532, 1
    %v7534 = vadd.f32 %v7532, %v7533
    %v7535 = vlaneseq
    %v7536 = vshrl.u32 %v7535, 7
    %v7537 = vsub.s32 1, %v7536
    %v7538 = vrot.slane %v7397, %v7537
    %v7539 = vadd.f32 %v346, %v7538
    %v7540 = vmax.f32 %v7539, 0.0
    %v7541 = vmul.f32 %v7540, %v364
    %7542 = vadd.xlane.f32.xlu0 %v7541
    %v7543 = vpop.xlane.xlu0 %7542
    %v7544 = vrot.slane %v7543, 4
    %v7545 = vmax.f32 %v7543, %v7544
    %v7546 = vrot.slane %v7545, 2
    %v7547 = vmax.f32 %v7545, %v7546
    %v7548 = vrot.slane %v7547, 1
    %v7549 = vmax.f32 %v7547, %v7548
    %v7550 = vsub.f32 %v7543, %v7549
    %v7551 = vmul.f32 %v7550, 1.442695
    %v7552 = vpow.pop %v7551
    %v7553 = vrot.slane %v7552, 4
    %v7554 = vadd.f32 %v7552, %v7553
    %v7555 = vrot.slane %v7554, 2
    %v7556 = vadd.f32 %v7554, %v7555
    %v7557 = vrot.slane %v7556, 1
    %v7558 = vadd.f32 %v7556, %v7557
    %v7559 = vlog2.pop %v7558
    %v7560 = vmul.f32 %v7559, 0.6931472
    %v7561 = vsub.f32 %v7550, %v7560
    %v7562 = vmul.f32 %v7561, %v197
    %v7563 = vsel %vm202, %v7562, 0.0
    %v7564 = vrot.slane %v7563, 4
    %v7565 = vadd.f32 %v7563, %v7564
    %v7566 = vrot.slane %v7565, 2
    %v7567 = vadd.f32 %v7565, %v7566
    %v7568 = vrot.slane %v7567, 1
    %v7569 = vadd.f32 %v7567, %v7568
    %v7570 = vsel %vm426, %v7534, %v7569
    %v7572 = vsel %vm202, %v7570, 0
    %7574 = vmatprep.subr.mxu0 0.0
    %7575 = vmatpush1.msra.mxu0 0.0
    %7576 = vmatprep.subr.mxu0 0.0
    %7577 = vmatpush1.msra.mxu0 0.0
    %7578 = vmatprep.subr.mxu0 0.0
    %7579 = vmatpush1.msra.mxu0 0.0
    %7580 = vmatprep.subr.mxu0 0.0
    %7581 = vmatpush1.msra.mxu0 0.0
    %7582 = vmatprep.subr.mxu0 0.0
    %7583 = vmatpush1.msra.mxu0 0.0
    %7584 = vmatprep.subr.mxu0 0.0
    %7585 = vmatpush1.msra.mxu0 0.0
    %7586 = vmatprep.subr.mxu0 0.0
    %7587 = vmatpush1.msra.mxu0 0.0
    %7588 = vmatprep.subr.mxu0 0.0
    %7589 = vmatpush1.msra.mxu0 0.0
    %7590 = vmatprep.subr.mxu0 0.0
    %7591 = vmatpush1.msra.mxu0 0.0
    %7592 = vmatprep.subr.mxu0 0.0
    %7593 = vmatpush1.msra.mxu0 0.0
    %7594 = vmatprep.subr.mxu0 0.0
    %7595 = vmatpush1.msra.mxu0 0.0
    %7596 = vmatprep.subr.mxu0 0.0
    %7597 = vmatpush1.msra.mxu0 0.0
    %7598 = vmatprep.subr.mxu0 %v457
    %7599 = vmatpush1.msra.mxu0 %v456
    %7600 = vmatprep.subr.mxu0 %v453
    %7601 = vmatpush1.msra.mxu0 %v452
    %7602 = vmatprep.subr.mxu0 %v449
    %7603 = vmatpush1.msra.mxu0 %v448
    %7604 = vmatprep.subr.mxu0 %v445
    %7605 = vmatpush1.msra.mxu0 %v444
    %7606 = vmatprep.subr.mxu0 0.0
    %7607 = vmatpush2.msra.mxu0 0.0
    %7608 = vmatprep.subr.mxu0 0.0
    %7609 = vmatpush2.msra.mxu0 0.0
    %7610 = vmatprep.subr.mxu0 0.0
    %7611 = vmatpush2.msra.mxu0 0.0
    %7612 = vmatprep.subr.mxu0 0.0
    %7613 = vmatpush2.msra.mxu0 0.0
    %7614 = vmatprep.subr.mxu0 0.0
    %7615 = vmatpush2.msra.mxu0 0.0
    %7616 = vmatprep.subr.mxu0 0.0
    %7617 = vmatpush2.msra.mxu0 0.0
    %7618 = vmatprep.subr.mxu0 0.0
    %7619 = vmatpush2.msra.mxu0 0.0
    %7620 = vmatprep.subr.mxu0 0.0
    %7621 = vmatpush2.msra.mxu0 0.0
    %7622 = vmatprep.subr.mxu0 0.0
    %7623 = vmatpush2.msra.mxu0 0.0
    %7624 = vmatprep.subr.mxu0 0.0
    %7625 = vmatpush2.msra.mxu0 0.0
    %7626 = vmatprep.subr.mxu0 0.0
    %7627 = vmatpush2.msra.mxu0 0.0
    %7628 = vmatprep.subr.mxu0 0.0
    %7629 = vmatpush2.msra.mxu0 0.0
    %7630 = vmatprep.subr.mxu0 0.0
    %7631 = vmatpush2.msra.mxu0 0.0
    %7632 = vmatprep.subr.mxu0 0.0
    %7633 = vmatpush2.msra.mxu0 0.0
    %7634 = vmatprep.subr.mxu0 0.0
    %7635 = vmatpush2.msra.mxu0 0.0
    %7636 = vmatprep.subr.mxu0 0.0
    %7637 = vmatpush2.msra.mxu0 0.0
    %7638 = vmatprep.mubr.f32.mxu0 0.0
    %7639 = vmatmul.mubr.f32.gmra.mxu0 %v7572
    %v7640 = vpop.f32.mrf.mxu0
    %v7641 = vadd.f32 0.0, %v7640
    %v7642 = vpop.f32.mrf.mxu0
    %v7643 = vadd.f32 0.0, %v7642
    %7644 = vdwg.mxu0
    %7645 = vmatprep.subr.mxu0 0.0
    %7646 = vmatpush1.msra.mxu0 0.0
    %7647 = vmatprep.subr.mxu0 0.0
    %7648 = vmatpush1.msra.mxu0 0.0
    %7649 = vmatprep.subr.mxu0 0.0
    %7650 = vmatpush1.msra.mxu0 0.0
    %7651 = vmatprep.subr.mxu0 0.0
    %7652 = vmatpush1.msra.mxu0 0.0
    %7653 = vmatprep.subr.mxu0 0.0
    %7654 = vmatpush1.msra.mxu0 0.0
    %7655 = vmatprep.subr.mxu0 0.0
    %7656 = vmatpush1.msra.mxu0 0.0
    %7657 = vmatprep.subr.mxu0 0.0
    %7658 = vmatpush1.msra.mxu0 0.0
    %7659 = vmatprep.subr.mxu0 0.0
    %7660 = vmatpush1.msra.mxu0 0.0
    %7661 = vmatprep.subr.mxu0 0.0
    %7662 = vmatpush1.msra.mxu0 0.0
    %7663 = vmatprep.subr.mxu0 0.0
    %7664 = vmatpush1.msra.mxu0 0.0
    %7665 = vmatprep.subr.mxu0 0.0
    %7666 = vmatpush1.msra.mxu0 0.0
    %7667 = vmatprep.subr.mxu0 0.0
    %7668 = vmatpush1.msra.mxu0 0.0
    %7669 = vmatprep.subr.mxu0 %v459
    %7670 = vmatpush1.msra.mxu0 %v458
    %7671 = vmatprep.subr.mxu0 %v455
    %7672 = vmatpush1.msra.mxu0 %v454
    %7673 = vmatprep.subr.mxu0 %v451
    %7674 = vmatpush1.msra.mxu0 %v450
    %7675 = vmatprep.subr.mxu0 %v447
    %7676 = vmatpush1.msra.mxu0 %v446
    %7677 = vmatprep.subr.mxu0 0.0
    %7678 = vmatpush2.msra.mxu0 0.0
    %7679 = vmatprep.subr.mxu0 0.0
    %7680 = vmatpush2.msra.mxu0 0.0
    %7681 = vmatprep.subr.mxu0 0.0
    %7682 = vmatpush2.msra.mxu0 0.0
    %7683 = vmatprep.subr.mxu0 0.0
    %7684 = vmatpush2.msra.mxu0 0.0
    %7685 = vmatprep.subr.mxu0 0.0
    %7686 = vmatpush2.msra.mxu0 0.0
    %7687 = vmatprep.subr.mxu0 0.0
    %7688 = vmatpush2.msra.mxu0 0.0
    %7689 = vmatprep.subr.mxu0 0.0
    %7690 = vmatpush2.msra.mxu0 0.0
    %7691 = vmatprep.subr.mxu0 0.0
    %7692 = vmatpush2.msra.mxu0 0.0
    %7693 = vmatprep.subr.mxu0 0.0
    %7694 = vmatpush2.msra.mxu0 0.0
    %7695 = vmatprep.subr.mxu0 0.0
    %7696 = vmatpush2.msra.mxu0 0.0
    %7697 = vmatprep.subr.mxu0 0.0
    %7698 = vmatpush2.msra.mxu0 0.0
    %7699 = vmatprep.subr.mxu0 0.0
    %7700 = vmatpush2.msra.mxu0 0.0
    %7701 = vmatprep.subr.mxu0 0.0
    %7702 = vmatpush2.msra.mxu0 0.0
    %7703 = vmatprep.subr.mxu0 0.0
    %7704 = vmatpush2.msra.mxu0 0.0
    %7705 = vmatprep.subr.mxu0 0.0
    %7706 = vmatpush2.msra.mxu0 0.0
    %7707 = vmatprep.subr.mxu0 0.0
    %7708 = vmatpush2.msra.mxu0 0.0
    %7709 = vmatprep.mubr.f32.mxu0 0.0
    %7710 = vmatmul.mubr.f32.gmra.mxu0 %v7572
    %v7711 = vpop.f32.mrf.mxu0
    %v7712 = vadd.f32 0.0, %v7711
    %v7713 = vpop.f32.mrf.mxu0
    %v7714 = vadd.f32 0.0, %v7713
    %7715 = vdwg.mxu0
    %v7717 = vsel %vm202, %v7497, 0
    %7719 = vmatprep.subr.mxu0 0.0
    %7720 = vmatpush1.msra.mxu0 0.0
    %7721 = vmatprep.subr.mxu0 0.0
    %7722 = vmatpush1.msra.mxu0 0.0
    %7723 = vmatprep.subr.mxu0 0.0
    %7724 = vmatpush1.msra.mxu0 0.0
    %7725 = vmatprep.subr.mxu0 0.0
    %7726 = vmatpush1.msra.mxu0 0.0
    %7727 = vmatprep.subr.mxu0 0.0
    %7728 = vmatpush1.msra.mxu0 0.0
    %7729 = vmatprep.subr.mxu0 0.0
    %7730 = vmatpush1.msra.mxu0 0.0
    %7731 = vmatprep.subr.mxu0 0.0
    %7732 = vmatpush1.msra.mxu0 0.0
    %7733 = vmatprep.subr.mxu0 0.0
    %7734 = vmatpush1.msra.mxu0 0.0
    %7735 = vmatprep.subr.mxu0 0.0
    %7736 = vmatpush1.msra.mxu0 0.0
    %7737 = vmatprep.subr.mxu0 0.0
    %7738 = vmatpush1.msra.mxu0 0.0
    %7739 = vmatprep.subr.mxu0 0.0
    %7740 = vmatpush1.msra.mxu0 0.0
    %7741 = vmatprep.subr.mxu0 0.0
    %7742 = vmatpush1.msra.mxu0 0.0
    %7743 = vmatprep.subr.mxu0 %v441
    %7744 = vmatpush1.msra.mxu0 %v440
    %7745 = vmatprep.subr.mxu0 %v437
    %7746 = vmatpush1.msra.mxu0 %v436
    %7747 = vmatprep.subr.mxu0 %v433
    %7748 = vmatpush1.msra.mxu0 %v432
    %7749 = vmatprep.subr.mxu0 %v429
    %7750 = vmatpush1.msra.mxu0 %v428
    %7751 = vmatprep.subr.mxu0 0.0
    %7752 = vmatpush2.msra.mxu0 0.0
    %7753 = vmatprep.subr.mxu0 0.0
    %7754 = vmatpush2.msra.mxu0 0.0
    %7755 = vmatprep.subr.mxu0 0.0
    %7756 = vmatpush2.msra.mxu0 0.0
    %7757 = vmatprep.subr.mxu0 0.0
    %7758 = vmatpush2.msra.mxu0 0.0
    %7759 = vmatprep.subr.mxu0 0.0
    %7760 = vmatpush2.msra.mxu0 0.0
    %7761 = vmatprep.subr.mxu0 0.0
    %7762 = vmatpush2.msra.mxu0 0.0
    %7763 = vmatprep.subr.mxu0 0.0
    %7764 = vmatpush2.msra.mxu0 0.0
    %7765 = vmatprep.subr.mxu0 0.0
    %7766 = vmatpush2.msra.mxu0 0.0
    %7767 = vmatprep.subr.mxu0 0.0
    %7768 = vmatpush2.msra.mxu0 0.0
    %7769 = vmatprep.subr.mxu0 0.0
    %7770 = vmatpush2.msra.mxu0 0.0
    %7771 = vmatprep.subr.mxu0 0.0
    %7772 = vmatpush2.msra.mxu0 0.0
    %7773 = vmatprep.subr.mxu0 0.0
    %7774 = vmatpush2.msra.mxu0 0.0
    %7775 = vmatprep.subr.mxu0 0.0
    %7776 = vmatpush2.msra.mxu0 0.0
    %7777 = vmatprep.subr.mxu0 0.0
    %7778 = vmatpush2.msra.mxu0 0.0
    %7779 = vmatprep.subr.mxu0 0.0
    %7780 = vmatpush2.msra.mxu0 0.0
    %7781 = vmatprep.subr.mxu0 0.0
    %7782 = vmatpush2.msra.mxu0 0.0
    %7783 = vmatprep.mubr.f32.mxu0 0.0
    %7784 = vmatmul.mubr.f32.gmra.mxu0 %v7717
    %v7785 = vpop.f32.mrf.mxu0
    %v7786 = vadd.f32 %v7641, %v7785
    %v7787 = vpop.f32.mrf.mxu0
    %v7788 = vadd.f32 %v7643, %v7787
    %7789 = vdwg.mxu0
    %7790 = vmatprep.subr.mxu0 0.0
    %7791 = vmatpush1.msra.mxu0 0.0
    %7792 = vmatprep.subr.mxu0 0.0
    %7793 = vmatpush1.msra.mxu0 0.0
    %7794 = vmatprep.subr.mxu0 0.0
    %7795 = vmatpush1.msra.mxu0 0.0
    %7796 = vmatprep.subr.mxu0 0.0
    %7797 = vmatpush1.msra.mxu0 0.0
    %7798 = vmatprep.subr.mxu0 0.0
    %7799 = vmatpush1.msra.mxu0 0.0
    %7800 = vmatprep.subr.mxu0 0.0
    %7801 = vmatpush1.msra.mxu0 0.0
    %7802 = vmatprep.subr.mxu0 0.0
    %7803 = vmatpush1.msra.mxu0 0.0
    %7804 = vmatprep.subr.mxu0 0.0
    %7805 = vmatpush1.msra.mxu0 0.0
    %7806 = vmatprep.subr.mxu0 0.0
    %7807 = vmatpush1.msra.mxu0 0.0
    %7808 = vmatprep.subr.mxu0 0.0
    %7809 = vmatpush1.msra.mxu0 0.0
    %7810 = vmatprep.subr.mxu0 0.0
    %7811 = vmatpush1.msra.mxu0 0.0
    %7812 = vmatprep.subr.mxu0 0.0
    %7813 = vmatpush1.msra.mxu0 0.0
    %7814 = vmatprep.subr.mxu0 %v443
    %7815 = vmatpush1.msra.mxu0 %v442
    %7816 = vmatprep.subr.mxu0 %v439
    %7817 = vmatpush1.msra.mxu0 %v438
    %7818 = vmatprep.subr.mxu0 %v435
    %7819 = vmatpush1.msra.mxu0 %v434
    %7820 = vmatprep.subr.mxu0 %v431
    %7821 = vmatpush1.msra.mxu0 %v430
    %7822 = vmatprep.subr.mxu0 0.0
    %7823 = vmatpush2.msra.mxu0 0.0
    %7824 = vmatprep.subr.mxu0 0.0
    %7825 = vmatpush2.msra.mxu0 0.0
    %7826 = vmatprep.subr.mxu0 0.0
    %7827 = vmatpush2.msra.mxu0 0.0
    %7828 = vmatprep.subr.mxu0 0.0
    %7829 = vmatpush2.msra.mxu0 0.0
    %7830 = vmatprep.subr.mxu0 0.0
    %7831 = vmatpush2.msra.mxu0 0.0
    %7832 = vmatprep.subr.mxu0 0.0
    %7833 = vmatpush2.msra.mxu0 0.0
    %7834 = vmatprep.subr.mxu0 0.0
    %7835 = vmatpush2.msra.mxu0 0.0
    %7836 = vmatprep.subr.mxu0 0.0
    %7837 = vmatpush2.msra.mxu0 0.0
    %7838 = vmatprep.subr.mxu0 0.0
    %7839 = vmatpush2.msra.mxu0 0.0
    %7840 = vmatprep.subr.mxu0 0.0
    %7841 = vmatpush2.msra.mxu0 0.0
    %7842 = vmatprep.subr.mxu0 0.0
    %7843 = vmatpush2.msra.mxu0 0.0
    %7844 = vmatprep.subr.mxu0 0.0
    %7845 = vmatpush2.msra.mxu0 0.0
    %7846 = vmatprep.subr.mxu0 0.0
    %7847 = vmatpush2.msra.mxu0 0.0
    %7848 = vmatprep.subr.mxu0 0.0
    %7849 = vmatpush2.msra.mxu0 0.0
    %7850 = vmatprep.subr.mxu0 0.0
    %7851 = vmatpush2.msra.mxu0 0.0
    %7852 = vmatprep.subr.mxu0 0.0
    %7853 = vmatpush2.msra.mxu0 0.0
    %7854 = vmatprep.mubr.f32.mxu0 0.0
    %7855 = vmatmul.mubr.f32.gmra.mxu0 %v7717
    %v7856 = vpop.f32.mrf.mxu0
    %v7857 = vadd.f32 %v7712, %v7856
    %v7858 = vpop.f32.mrf.mxu0
    %v7859 = vadd.f32 %v7714, %v7858
    %7860 = vdwg.mxu0
    %7861 = vmatprep.subr.mxu0 %v811
    %7862 = vmatpush1.msra.mxu0 %v810
    %7863 = vmatprep.subr.mxu0 %v807
    %7864 = vmatpush1.msra.mxu0 %v806
    %7865 = vmatprep.subr.mxu0 %v803
    %7866 = vmatpush1.msra.mxu0 %v802
    %7867 = vmatprep.subr.mxu0 %v799
    %7868 = vmatpush1.msra.mxu0 %v798
    %7869 = vmatprep.subr.mxu0 %v795
    %7870 = vmatpush1.msra.mxu0 %v794
    %7871 = vmatprep.subr.mxu0 %v791
    %7872 = vmatpush1.msra.mxu0 %v790
    %7873 = vmatprep.subr.mxu0 %v787
    %7874 = vmatpush1.msra.mxu0 %v786
    %7875 = vmatprep.subr.mxu0 %v783
    %7876 = vmatpush1.msra.mxu0 %v782
    %7877 = vmatprep.subr.mxu0 %v779
    %7878 = vmatpush1.msra.mxu0 %v778
    %7879 = vmatprep.subr.mxu0 %v775
    %7880 = vmatpush1.msra.mxu0 %v774
    %7881 = vmatprep.subr.mxu0 %v771
    %7882 = vmatpush1.msra.mxu0 %v770
    %7883 = vmatprep.subr.mxu0 %v767
    %7884 = vmatpush1.msra.mxu0 %v766
    %7885 = vmatprep.subr.mxu0 %v763
    %7886 = vmatpush1.msra.mxu0 %v762
    %7887 = vmatprep.subr.mxu0 %v759
    %7888 = vmatpush1.msra.mxu0 %v758
    %7889 = vmatprep.subr.mxu0 %v755
    %7890 = vmatpush1.msra.mxu0 %v754
    %7891 = vmatprep.subr.mxu0 %v751
    %7892 = vmatpush1.msra.mxu0 %v750
    %7893 = vmatprep.subr.mxu0 0.0
    %7894 = vmatpush2.msra.mxu0 0.0
    %7895 = vmatprep.subr.mxu0 0.0
    %7896 = vmatpush2.msra.mxu0 0.0
    %7897 = vmatprep.subr.mxu0 0.0
    %7898 = vmatpush2.msra.mxu0 0.0
    %7899 = vmatprep.subr.mxu0 0.0
    %7900 = vmatpush2.msra.mxu0 0.0
    %7901 = vmatprep.subr.mxu0 0.0
    %7902 = vmatpush2.msra.mxu0 0.0
    %7903 = vmatprep.subr.mxu0 0.0
    %7904 = vmatpush2.msra.mxu0 0.0
    %7905 = vmatprep.subr.mxu0 0.0
    %7906 = vmatpush2.msra.mxu0 0.0
    %7907 = vmatprep.subr.mxu0 0.0
    %7908 = vmatpush2.msra.mxu0 0.0
    %7909 = vmatprep.subr.mxu0 0.0
    %7910 = vmatpush2.msra.mxu0 0.0
    %7911 = vmatprep.subr.mxu0 0.0
    %7912 = vmatpush2.msra.mxu0 0.0
    %7913 = vmatprep.subr.mxu0 0.0
    %7914 = vmatpush2.msra.mxu0 0.0
    %7915 = vmatprep.subr.mxu0 0.0
    %7916 = vmatpush2.msra.mxu0 0.0
    %7917 = vmatprep.subr.mxu0 0.0
    %7918 = vmatpush2.msra.mxu0 0.0
    %7919 = vmatprep.subr.mxu0 0.0
    %7920 = vmatpush2.msra.mxu0 0.0
    %7921 = vmatprep.subr.mxu0 0.0
    %7922 = vmatpush2.msra.mxu0 0.0
    %7923 = vmatprep.subr.mxu0 0.0
    %7924 = vmatpush2.msra.mxu0 0.0
    %7925 = vmatprep.mubr.f32.mxu0 0.0
    %7926 = vmatmul.mubr.f32.gmra.mxu0 %v6700
    %v7927 = vpop.f32.mrf.mxu0
    %v7928 = vadd.f32 0.0, %v7927
    %v7929 = vpop.f32.mrf.mxu0
    %v7930 = vadd.f32 0.0, %v7929
    %7931 = vdwg.mxu0
    %7932 = vmatprep.subr.mxu0 %v813
    %7933 = vmatpush1.msra.mxu0 %v812
    %7934 = vmatprep.subr.mxu0 %v809
    %7935 = vmatpush1.msra.mxu0 %v808
    %7936 = vmatprep.subr.mxu0 %v805
    %7937 = vmatpush1.msra.mxu0 %v804
    %7938 = vmatprep.subr.mxu0 %v801
    %7939 = vmatpush1.msra.mxu0 %v800
    %7940 = vmatprep.subr.mxu0 %v797
    %7941 = vmatpush1.msra.mxu0 %v796
    %7942 = vmatprep.subr.mxu0 %v793
    %7943 = vmatpush1.msra.mxu0 %v792
    %7944 = vmatprep.subr.mxu0 %v789
    %7945 = vmatpush1.msra.mxu0 %v788
    %7946 = vmatprep.subr.mxu0 %v785
    %7947 = vmatpush1.msra.mxu0 %v784
    %7948 = vmatprep.subr.mxu0 %v781
    %7949 = vmatpush1.msra.mxu0 %v780
    %7950 = vmatprep.subr.mxu0 %v777
    %7951 = vmatpush1.msra.mxu0 %v776
    %7952 = vmatprep.subr.mxu0 %v773
    %7953 = vmatpush1.msra.mxu0 %v772
    %7954 = vmatprep.subr.mxu0 %v769
    %7955 = vmatpush1.msra.mxu0 %v768
    %7956 = vmatprep.subr.mxu0 %v765
    %7957 = vmatpush1.msra.mxu0 %v764
    %7958 = vmatprep.subr.mxu0 %v761
    %7959 = vmatpush1.msra.mxu0 %v760
    %7960 = vmatprep.subr.mxu0 %v757
    %7961 = vmatpush1.msra.mxu0 %v756
    %7962 = vmatprep.subr.mxu0 %v753
    %7963 = vmatpush1.msra.mxu0 %v752
    %7964 = vmatprep.subr.mxu0 0.0
    %7965 = vmatpush2.msra.mxu0 0.0
    %7966 = vmatprep.subr.mxu0 0.0
    %7967 = vmatpush2.msra.mxu0 0.0
    %7968 = vmatprep.subr.mxu0 0.0
    %7969 = vmatpush2.msra.mxu0 0.0
    %7970 = vmatprep.subr.mxu0 0.0
    %7971 = vmatpush2.msra.mxu0 0.0
    %7972 = vmatprep.subr.mxu0 0.0
    %7973 = vmatpush2.msra.mxu0 0.0
    %7974 = vmatprep.subr.mxu0 0.0
    %7975 = vmatpush2.msra.mxu0 0.0
    %7976 = vmatprep.subr.mxu0 0.0
    %7977 = vmatpush2.msra.mxu0 0.0
    %7978 = vmatprep.subr.mxu0 0.0
    %7979 = vmatpush2.msra.mxu0 0.0
    %7980 = vmatprep.subr.mxu0 0.0
    %7981 = vmatpush2.msra.mxu0 0.0
    %7982 = vmatprep.subr.mxu0 0.0
    %7983 = vmatpush2.msra.mxu0 0.0
    %7984 = vmatprep.subr.mxu0 0.0
    %7985 = vmatpush2.msra.mxu0 0.0
    %7986 = vmatprep.subr.mxu0 0.0
    %7987 = vmatpush2.msra.mxu0 0.0
    %7988 = vmatprep.subr.mxu0 0.0
    %7989 = vmatpush2.msra.mxu0 0.0
    %7990 = vmatprep.subr.mxu0 0.0
    %7991 = vmatpush2.msra.mxu0 0.0
    %7992 = vmatprep.subr.mxu0 0.0
    %7993 = vmatpush2.msra.mxu0 0.0
    %7994 = vmatprep.subr.mxu0 0.0
    %7995 = vmatpush2.msra.mxu0 0.0
    %7996 = vmatprep.mubr.f32.mxu0 0.0
    %7997 = vmatmul.mubr.f32.gmra.mxu0 %v6700
    %v7998 = vpop.f32.mrf.mxu0
    %v7999 = vadd.f32 0.0, %v7998
    %v8000 = vpop.f32.mrf.mxu0
    %v8001 = vadd.f32 0.0, %v8000
    %8002 = vdwg.mxu0
    %v8003 = vadd.f32 %v7786, %v7928
    %v8004 = vadd.f32 %v7788, %v7930
    %v8005 = vadd.f32 %v7857, %v7999
    %v8006 = vadd.f32 %v7859, %v8001
    %v8007 = vadd.f32 %v8003, %v965
    %v8008 = vadd.f32 %v8004, %v969
    %v8009 = vadd.f32 %v8005, %v973
    %v8010 = vadd.f32 %v8006, %v977
    %v8011 = vxor.u32 %v8007, 2147483648
    %v8012 = vmul.f32 %v8011, 1.442695
    %v8013 = vpow.pop %v8012
    %v8014 = vadd.f32 %v8013, 1.0
    %v8015 = vrcp.pop %v8014
    %v8016 = vmul.f32 1.0, %v8015
    %v8017 = vxor.u32 %v8008, 2147483648
    %v8018 = vmul.f32 %v8017, 1.442695
    %v8019 = vpow.pop %v8018
    %v8020 = vadd.f32 %v8019, 1.0
    %v8021 = vrcp.pop %v8020
    %v8022 = vmul.f32 1.0, %v8021
    %v8023 = vtanh.pop %v8009
    %v8024 = vxor.u32 %v8010, 2147483648
    %v8025 = vmul.f32 %v8024, 1.442695
    %v8026 = vpow.pop %v8025
    %v8027 = vadd.f32 %v8026, 1.0
    %v8028 = vrcp.pop %v8027
    %v8029 = vmul.f32 1.0, %v8028
    %v8030 = vmul.f32 %v8022, %v6698
    %v8031 = vmul.f32 %v8016, %v8023
    %v8032 = vadd.f32 %v8030, %v8031
    %v8033 = vtanh.pop %v8032
    %v8034 = vmul.f32 %v8029, %v8033
    %8035 = vmatprep.subr.mxu0 %v1135
    %8036 = vmatpush1.msra.mxu0 %v1134
    %8037 = vmatprep.subr.mxu0 %v1131
    %8038 = vmatpush1.msra.mxu0 %v1130
    %8039 = vmatprep.subr.mxu0 %v1127
    %8040 = vmatpush1.msra.mxu0 %v1126
    %8041 = vmatprep.subr.mxu0 %v1123
    %8042 = vmatpush1.msra.mxu0 %v1122
    %8043 = vmatprep.subr.mxu0 %v1119
    %8044 = vmatpush1.msra.mxu0 %v1118
    %8045 = vmatprep.subr.mxu0 %v1115
    %8046 = vmatpush1.msra.mxu0 %v1114
    %8047 = vmatprep.subr.mxu0 %v1111
    %8048 = vmatpush1.msra.mxu0 %v1110
    %8049 = vmatprep.subr.mxu0 %v1107
    %8050 = vmatpush1.msra.mxu0 %v1106
    %8051 = vmatprep.subr.mxu0 %v1103
    %8052 = vmatpush1.msra.mxu0 %v1102
    %8053 = vmatprep.subr.mxu0 %v1099
    %8054 = vmatpush1.msra.mxu0 %v1098
    %8055 = vmatprep.subr.mxu0 %v1095
    %8056 = vmatpush1.msra.mxu0 %v1094
    %8057 = vmatprep.subr.mxu0 %v1091
    %8058 = vmatpush1.msra.mxu0 %v1090
    %8059 = vmatprep.subr.mxu0 %v1087
    %8060 = vmatpush1.msra.mxu0 %v1086
    %8061 = vmatprep.subr.mxu0 %v1083
    %8062 = vmatpush1.msra.mxu0 %v1082
    %8063 = vmatprep.subr.mxu0 %v1079
    %8064 = vmatpush1.msra.mxu0 %v1078
    %8065 = vmatprep.subr.mxu0 %v1075
    %8066 = vmatpush1.msra.mxu0 %v1074
    %8067 = vmatprep.subr.mxu0 0.0
    %8068 = vmatpush2.msra.mxu0 0.0
    %8069 = vmatprep.subr.mxu0 0.0
    %8070 = vmatpush2.msra.mxu0 0.0
    %8071 = vmatprep.subr.mxu0 0.0
    %8072 = vmatpush2.msra.mxu0 0.0
    %8073 = vmatprep.subr.mxu0 0.0
    %8074 = vmatpush2.msra.mxu0 0.0
    %8075 = vmatprep.subr.mxu0 0.0
    %8076 = vmatpush2.msra.mxu0 0.0
    %8077 = vmatprep.subr.mxu0 0.0
    %8078 = vmatpush2.msra.mxu0 0.0
    %8079 = vmatprep.subr.mxu0 0.0
    %8080 = vmatpush2.msra.mxu0 0.0
    %8081 = vmatprep.subr.mxu0 0.0
    %8082 = vmatpush2.msra.mxu0 0.0
    %8083 = vmatprep.subr.mxu0 0.0
    %8084 = vmatpush2.msra.mxu0 0.0
    %8085 = vmatprep.subr.mxu0 0.0
    %8086 = vmatpush2.msra.mxu0 0.0
    %8087 = vmatprep.subr.mxu0 0.0
    %8088 = vmatpush2.msra.mxu0 0.0
    %8089 = vmatprep.subr.mxu0 0.0
    %8090 = vmatpush2.msra.mxu0 0.0
    %8091 = vmatprep.subr.mxu0 0.0
    %8092 = vmatpush2.msra.mxu0 0.0
    %8093 = vmatprep.subr.mxu0 0.0
    %8094 = vmatpush2.msra.mxu0 0.0
    %8095 = vmatprep.subr.mxu0 0.0
    %8096 = vmatpush2.msra.mxu0 0.0
    %8097 = vmatprep.subr.mxu0 0.0
    %8098 = vmatpush2.msra.mxu0 0.0
    %8099 = vmatprep.mubr.f32.mxu0 0.0
    %8100 = vmatmul.mubr.f32.gmra.mxu0 %v7012
    %v8101 = vpop.f32.mrf.mxu0
    %v8102 = vadd.f32 0.0, %v8101
    %v8103 = vpop.f32.mrf.mxu0
    %v8104 = vadd.f32 0.0, %v8103
    %8105 = vdwg.mxu0
    %8106 = vmatprep.subr.mxu0 %v1137
    %8107 = vmatpush1.msra.mxu0 %v1136
    %8108 = vmatprep.subr.mxu0 %v1133
    %8109 = vmatpush1.msra.mxu0 %v1132
    %8110 = vmatprep.subr.mxu0 %v1129
    %8111 = vmatpush1.msra.mxu0 %v1128
    %8112 = vmatprep.subr.mxu0 %v1125
    %8113 = vmatpush1.msra.mxu0 %v1124
    %8114 = vmatprep.subr.mxu0 %v1121
    %8115 = vmatpush1.msra.mxu0 %v1120
    %8116 = vmatprep.subr.mxu0 %v1117
    %8117 = vmatpush1.msra.mxu0 %v1116
    %8118 = vmatprep.subr.mxu0 %v1113
    %8119 = vmatpush1.msra.mxu0 %v1112
    %8120 = vmatprep.subr.mxu0 %v1109
    %8121 = vmatpush1.msra.mxu0 %v1108
    %8122 = vmatprep.subr.mxu0 %v1105
    %8123 = vmatpush1.msra.mxu0 %v1104
    %8124 = vmatprep.subr.mxu0 %v1101
    %8125 = vmatpush1.msra.mxu0 %v1100
    %8126 = vmatprep.subr.mxu0 %v1097
    %8127 = vmatpush1.msra.mxu0 %v1096
    %8128 = vmatprep.subr.mxu0 %v1093
    %8129 = vmatpush1.msra.mxu0 %v1092
    %8130 = vmatprep.subr.mxu0 %v1089
    %8131 = vmatpush1.msra.mxu0 %v1088
    %8132 = vmatprep.subr.mxu0 %v1085
    %8133 = vmatpush1.msra.mxu0 %v1084
    %8134 = vmatprep.subr.mxu0 %v1081
    %8135 = vmatpush1.msra.mxu0 %v1080
    %8136 = vmatprep.subr.mxu0 %v1077
    %8137 = vmatpush1.msra.mxu0 %v1076
    %8138 = vmatprep.subr.mxu0 0.0
    %8139 = vmatpush2.msra.mxu0 0.0
    %8140 = vmatprep.subr.mxu0 0.0
    %8141 = vmatpush2.msra.mxu0 0.0
    %8142 = vmatprep.subr.mxu0 0.0
    %8143 = vmatpush2.msra.mxu0 0.0
    %8144 = vmatprep.subr.mxu0 0.0
    %8145 = vmatpush2.msra.mxu0 0.0
    %8146 = vmatprep.subr.mxu0 0.0
    %8147 = vmatpush2.msra.mxu0 0.0
    %8148 = vmatprep.subr.mxu0 0.0
    %8149 = vmatpush2.msra.mxu0 0.0
    %8150 = vmatprep.subr.mxu0 0.0
    %8151 = vmatpush2.msra.mxu0 0.0
    %8152 = vmatprep.subr.mxu0 0.0
    %8153 = vmatpush2.msra.mxu0 0.0
    %8154 = vmatprep.subr.mxu0 0.0
    %8155 = vmatpush2.msra.mxu0 0.0
    %8156 = vmatprep.subr.mxu0 0.0
    %8157 = vmatpush2.msra.mxu0 0.0
    %8158 = vmatprep.subr.mxu0 0.0
    %8159 = vmatpush2.msra.mxu0 0.0
    %8160 = vmatprep.subr.mxu0 0.0
    %8161 = vmatpush2.msra.mxu0 0.0
    %8162 = vmatprep.subr.mxu0 0.0
    %8163 = vmatpush2.msra.mxu0 0.0
    %8164 = vmatprep.subr.mxu0 0.0
    %8165 = vmatpush2.msra.mxu0 0.0
    %8166 = vmatprep.subr.mxu0 0.0
    %8167 = vmatpush2.msra.mxu0 0.0
    %8168 = vmatprep.subr.mxu0 0.0
    %8169 = vmatpush2.msra.mxu0 0.0
    %8170 = vmatprep.mubr.f32.mxu0 0.0
    %8171 = vmatmul.mubr.f32.gmra.mxu0 %v7012
    %v8172 = vpop.f32.mrf.mxu0
    %v8173 = vadd.f32 0.0, %v8172
    %v8174 = vpop.f32.mrf.mxu0
    %v8175 = vadd.f32 0.0, %v8174
    %8176 = vdwg.mxu0
    %8177 = vmatprep.subr.mxu0 %v1071
    %8178 = vmatpush1.msra.mxu0 %v1070
    %8179 = vmatprep.subr.mxu0 %v1067
    %8180 = vmatpush1.msra.mxu0 %v1066
    %8181 = vmatprep.subr.mxu0 %v1063
    %8182 = vmatpush1.msra.mxu0 %v1062
    %8183 = vmatprep.subr.mxu0 %v1059
    %8184 = vmatpush1.msra.mxu0 %v1058
    %8185 = vmatprep.subr.mxu0 %v1055
    %8186 = vmatpush1.msra.mxu0 %v1054
    %8187 = vmatprep.subr.mxu0 %v1051
    %8188 = vmatpush1.msra.mxu0 %v1050
    %8189 = vmatprep.subr.mxu0 %v1047
    %8190 = vmatpush1.msra.mxu0 %v1046
    %8191 = vmatprep.subr.mxu0 %v1043
    %8192 = vmatpush1.msra.mxu0 %v1042
    %8193 = vmatprep.subr.mxu0 %v1039
    %8194 = vmatpush1.msra.mxu0 %v1038
    %8195 = vmatprep.subr.mxu0 %v1035
    %8196 = vmatpush1.msra.mxu0 %v1034
    %8197 = vmatprep.subr.mxu0 %v1031
    %8198 = vmatpush1.msra.mxu0 %v1030
    %8199 = vmatprep.subr.mxu0 %v1027
    %8200 = vmatpush1.msra.mxu0 %v1026
    %8201 = vmatprep.subr.mxu0 %v1023
    %8202 = vmatpush1.msra.mxu0 %v1022
    %8203 = vmatprep.subr.mxu0 %v1019
    %8204 = vmatpush1.msra.mxu0 %v1018
    %8205 = vmatprep.subr.mxu0 %v1015
    %8206 = vmatpush1.msra.mxu0 %v1014
    %8207 = vmatprep.subr.mxu0 %v1011
    %8208 = vmatpush1.msra.mxu0 %v1010
    %8209 = vmatprep.subr.mxu0 0.0
    %8210 = vmatpush2.msra.mxu0 0.0
    %8211 = vmatprep.subr.mxu0 0.0
    %8212 = vmatpush2.msra.mxu0 0.0
    %8213 = vmatprep.subr.mxu0 0.0
    %8214 = vmatpush2.msra.mxu0 0.0
    %8215 = vmatprep.subr.mxu0 0.0
    %8216 = vmatpush2.msra.mxu0 0.0
    %8217 = vmatprep.subr.mxu0 0.0
    %8218 = vmatpush2.msra.mxu0 0.0
    %8219 = vmatprep.subr.mxu0 0.0
    %8220 = vmatpush2.msra.mxu0 0.0
    %8221 = vmatprep.subr.mxu0 0.0
    %8222 = vmatpush2.msra.mxu0 0.0
    %8223 = vmatprep.subr.mxu0 0.0
    %8224 = vmatpush2.msra.mxu0 0.0
    %8225 = vmatprep.subr.mxu0 0.0
    %8226 = vmatpush2.msra.mxu0 0.0
    %8227 = vmatprep.subr.mxu0 0.0
    %8228 = vmatpush2.msra.mxu0 0.0
    %8229 = vmatprep.subr.mxu0 0.0
    %8230 = vmatpush2.msra.mxu0 0.0
    %8231 = vmatprep.subr.mxu0 0.0
    %8232 = vmatpush2.msra.mxu0 0.0
    %8233 = vmatprep.subr.mxu0 0.0
    %8234 = vmatpush2.msra.mxu0 0.0
    %8235 = vmatprep.subr.mxu0 0.0
    %8236 = vmatpush2.msra.mxu0 0.0
    %8237 = vmatprep.subr.mxu0 0.0
    %8238 = vmatpush2.msra.mxu0 0.0
    %8239 = vmatprep.subr.mxu0 0.0
    %8240 = vmatpush2.msra.mxu0 0.0
    %8241 = vmatprep.mubr.f32.mxu0 0.0
    %8242 = vmatmul.mubr.f32.gmra.mxu0 %v8034
    %v8243 = vpop.f32.mrf.mxu0
    %v8244 = vadd.f32 %v8102, %v8243
    %v8245 = vpop.f32.mrf.mxu0
    %v8246 = vadd.f32 %v8104, %v8245
    %8247 = vdwg.mxu0
    %8248 = vmatprep.subr.mxu0 %v1073
    %8249 = vmatpush1.msra.mxu0 %v1072
    %8250 = vmatprep.subr.mxu0 %v1069
    %8251 = vmatpush1.msra.mxu0 %v1068
    %8252 = vmatprep.subr.mxu0 %v1065
    %8253 = vmatpush1.msra.mxu0 %v1064
    %8254 = vmatprep.subr.mxu0 %v1061
    %8255 = vmatpush1.msra.mxu0 %v1060
    %8256 = vmatprep.subr.mxu0 %v1057
    %8257 = vmatpush1.msra.mxu0 %v1056
    %8258 = vmatprep.subr.mxu0 %v1053
    %8259 = vmatpush1.msra.mxu0 %v1052
    %8260 = vmatprep.subr.mxu0 %v1049
    %8261 = vmatpush1.msra.mxu0 %v1048
    %8262 = vmatprep.subr.mxu0 %v1045
    %8263 = vmatpush1.msra.mxu0 %v1044
    %8264 = vmatprep.subr.mxu0 %v1041
    %8265 = vmatpush1.msra.mxu0 %v1040
    %8266 = vmatprep.subr.mxu0 %v1037
    %8267 = vmatpush1.msra.mxu0 %v1036
    %8268 = vmatprep.subr.mxu0 %v1033
    %8269 = vmatpush1.msra.mxu0 %v1032
    %8270 = vmatprep.subr.mxu0 %v1029
    %8271 = vmatpush1.msra.mxu0 %v1028
    %8272 = vmatprep.subr.mxu0 %v1025
    %8273 = vmatpush1.msra.mxu0 %v1024
    %8274 = vmatprep.subr.mxu0 %v1021
    %8275 = vmatpush1.msra.mxu0 %v1020
    %8276 = vmatprep.subr.mxu0 %v1017
    %8277 = vmatpush1.msra.mxu0 %v1016
    %8278 = vmatprep.subr.mxu0 %v1013
    %8279 = vmatpush1.msra.mxu0 %v1012
    %8280 = vmatprep.subr.mxu0 0.0
    %8281 = vmatpush2.msra.mxu0 0.0
    %8282 = vmatprep.subr.mxu0 0.0
    %8283 = vmatpush2.msra.mxu0 0.0
    %8284 = vmatprep.subr.mxu0 0.0
    %8285 = vmatpush2.msra.mxu0 0.0
    %8286 = vmatprep.subr.mxu0 0.0
    %8287 = vmatpush2.msra.mxu0 0.0
    %8288 = vmatprep.subr.mxu0 0.0
    %8289 = vmatpush2.msra.mxu0 0.0
    %8290 = vmatprep.subr.mxu0 0.0
    %8291 = vmatpush2.msra.mxu0 0.0
    %8292 = vmatprep.subr.mxu0 0.0
    %8293 = vmatpush2.msra.mxu0 0.0
    %8294 = vmatprep.subr.mxu0 0.0
    %8295 = vmatpush2.msra.mxu0 0.0
    %8296 = vmatprep.subr.mxu0 0.0
    %8297 = vmatpush2.msra.mxu0 0.0
    %8298 = vmatprep.subr.mxu0 0.0
    %8299 = vmatpush2.msra.mxu0 0.0
    %8300 = vmatprep.subr.mxu0 0.0
    %8301 = vmatpush2.msra.mxu0 0.0
    %8302 = vmatprep.subr.mxu0 0.0
    %8303 = vmatpush2.msra.mxu0 0.0
    %8304 = vmatprep.subr.mxu0 0.0
    %8305 = vmatpush2.msra.mxu0 0.0
    %8306 = vmatprep.subr.mxu0 0.0
    %8307 = vmatpush2.msra.mxu0 0.0
    %8308 = vmatprep.subr.mxu0 0.0
    %8309 = vmatpush2.msra.mxu0 0.0
    %8310 = vmatprep.subr.mxu0 0.0
    %8311 = vmatpush2.msra.mxu0 0.0
    %8312 = vmatprep.mubr.f32.mxu0 0.0
    %8313 = vmatmul.mubr.f32.gmra.mxu0 %v8034
    %v8314 = vpop.f32.mrf.mxu0
    %v8315 = vadd.f32 %v8173, %v8314
    %v8316 = vpop.f32.mrf.mxu0
    %v8317 = vadd.f32 %v8175, %v8316
    %8318 = vdwg.mxu0
    %v8319 = vadd.f32 %v8244, %v1427
    %v8320 = vadd.f32 %v8246, %v1431
    %v8321 = vadd.f32 %v8315, %v1435
    %v8322 = vadd.f32 %v8317, %v1439
    %v8323 = vxor.u32 %v8319, 2147483648
    %v8324 = vmul.f32 %v8323, 1.442695
    %v8325 = vpow.pop %v8324
    %v8326 = vadd.f32 %v8325, 1.0
    %v8327 = vrcp.pop %v8326
    %v8328 = vmul.f32 1.0, %v8327
    %v8329 = vxor.u32 %v8320, 2147483648
    %v8330 = vmul.f32 %v8329, 1.442695
    %v8331 = vpow.pop %v8330
    %v8332 = vadd.f32 %v8331, 1.0
    %v8333 = vrcp.pop %v8332
    %v8334 = vmul.f32 1.0, %v8333
    %v8335 = vtanh.pop %v8321
    %v8336 = vxor.u32 %v8322, 2147483648
    %v8337 = vmul.f32 %v8336, 1.442695
    %v8338 = vpow.pop %v8337
    %v8339 = vadd.f32 %v8338, 1.0
    %v8340 = vrcp.pop %v8339
    %v8341 = vmul.f32 1.0, %v8340
    %v8342 = vmul.f32 %v8334, %v7010
    %v8343 = vmul.f32 %v8328, %v8335
    %v8344 = vadd.f32 %v8342, %v8343
    %v8345 = vtanh.pop %v8344
    %v8346 = vmul.f32 %v8341, %v8345
    %8347 = vmatprep.subr.mxu0 %v1597
    %8348 = vmatpush1.msra.mxu0 %v1596
    %8349 = vmatprep.subr.mxu0 %v1593
    %8350 = vmatpush1.msra.mxu0 %v1592
    %8351 = vmatprep.subr.mxu0 %v1589
    %8352 = vmatpush1.msra.mxu0 %v1588
    %8353 = vmatprep.subr.mxu0 %v1585
    %8354 = vmatpush1.msra.mxu0 %v1584
    %8355 = vmatprep.subr.mxu0 %v1581
    %8356 = vmatpush1.msra.mxu0 %v1580
    %8357 = vmatprep.subr.mxu0 %v1577
    %8358 = vmatpush1.msra.mxu0 %v1576
    %8359 = vmatprep.subr.mxu0 %v1573
    %8360 = vmatpush1.msra.mxu0 %v1572
    %8361 = vmatprep.subr.mxu0 %v1569
    %8362 = vmatpush1.msra.mxu0 %v1568
    %8363 = vmatprep.subr.mxu0 %v1565
    %8364 = vmatpush1.msra.mxu0 %v1564
    %8365 = vmatprep.subr.mxu0 %v1561
    %8366 = vmatpush1.msra.mxu0 %v1560
    %8367 = vmatprep.subr.mxu0 %v1557
    %8368 = vmatpush1.msra.mxu0 %v1556
    %8369 = vmatprep.subr.mxu0 %v1553
    %8370 = vmatpush1.msra.mxu0 %v1552
    %8371 = vmatprep.subr.mxu0 %v1549
    %8372 = vmatpush1.msra.mxu0 %v1548
    %8373 = vmatprep.subr.mxu0 %v1545
    %8374 = vmatpush1.msra.mxu0 %v1544
    %8375 = vmatprep.subr.mxu0 %v1541
    %8376 = vmatpush1.msra.mxu0 %v1540
    %8377 = vmatprep.subr.mxu0 %v1537
    %8378 = vmatpush1.msra.mxu0 %v1536
    %8379 = vmatprep.subr.mxu0 0.0
    %8380 = vmatpush2.msra.mxu0 0.0
    %8381 = vmatprep.subr.mxu0 0.0
    %8382 = vmatpush2.msra.mxu0 0.0
    %8383 = vmatprep.subr.mxu0 0.0
    %8384 = vmatpush2.msra.mxu0 0.0
    %8385 = vmatprep.subr.mxu0 0.0
    %8386 = vmatpush2.msra.mxu0 0.0
    %8387 = vmatprep.subr.mxu0 0.0
    %8388 = vmatpush2.msra.mxu0 0.0
    %8389 = vmatprep.subr.mxu0 0.0
    %8390 = vmatpush2.msra.mxu0 0.0
    %8391 = vmatprep.subr.mxu0 0.0
    %8392 = vmatpush2.msra.mxu0 0.0
    %8393 = vmatprep.subr.mxu0 0.0
    %8394 = vmatpush2.msra.mxu0 0.0
    %8395 = vmatprep.subr.mxu0 0.0
    %8396 = vmatpush2.msra.mxu0 0.0
    %8397 = vmatprep.subr.mxu0 0.0
    %8398 = vmatpush2.msra.mxu0 0.0
    %8399 = vmatprep.subr.mxu0 0.0
    %8400 = vmatpush2.msra.mxu0 0.0
    %8401 = vmatprep.subr.mxu0 0.0
    %8402 = vmatpush2.msra.mxu0 0.0
    %8403 = vmatprep.subr.mxu0 0.0
    %8404 = vmatpush2.msra.mxu0 0.0
    %8405 = vmatprep.subr.mxu0 0.0
    %8406 = vmatpush2.msra.mxu0 0.0
    %8407 = vmatprep.subr.mxu0 0.0
    %8408 = vmatpush2.msra.mxu0 0.0
    %8409 = vmatprep.subr.mxu0 0.0
    %8410 = vmatpush2.msra.mxu0 0.0
    %8411 = vmatprep.mubr.f32.mxu0 0.0
    %8412 = vmatmul.mubr.f32.gmra.mxu0 %v7324
    %v8413 = vpop.f32.mrf.mxu0
    %v8414 = vadd.f32 0.0, %v8413
    %v8415 = vpop.f32.mrf.mxu0
    %v8416 = vadd.f32 0.0, %v8415
    %8417 = vdwg.mxu0
    %8418 = vmatprep.subr.mxu0 %v1599
    %8419 = vmatpush1.msra.mxu0 %v1598
    %8420 = vmatprep.subr.mxu0 %v1595
    %8421 = vmatpush1.msra.mxu0 %v1594
    %8422 = vmatprep.subr.mxu0 %v1591
    %8423 = vmatpush1.msra.mxu0 %v1590
    %8424 = vmatprep.subr.mxu0 %v1587
    %8425 = vmatpush1.msra.mxu0 %v1586
    %8426 = vmatprep.subr.mxu0 %v1583
    %8427 = vmatpush1.msra.mxu0 %v1582
    %8428 = vmatprep.subr.mxu0 %v1579
    %8429 = vmatpush1.msra.mxu0 %v1578
    %8430 = vmatprep.subr.mxu0 %v1575
    %8431 = vmatpush1.msra.mxu0 %v1574
    %8432 = vmatprep.subr.mxu0 %v1571
    %8433 = vmatpush1.msra.mxu0 %v1570
    %8434 = vmatprep.subr.mxu0 %v1567
    %8435 = vmatpush1.msra.mxu0 %v1566
    %8436 = vmatprep.subr.mxu0 %v1563
    %8437 = vmatpush1.msra.mxu0 %v1562
    %8438 = vmatprep.subr.mxu0 %v1559
    %8439 = vmatpush1.msra.mxu0 %v1558
    %8440 = vmatprep.subr.mxu0 %v1555
    %8441 = vmatpush1.msra.mxu0 %v1554
    %8442 = vmatprep.subr.mxu0 %v1551
    %8443 = vmatpush1.msra.mxu0 %v1550
    %8444 = vmatprep.subr.mxu0 %v1547
    %8445 = vmatpush1.msra.mxu0 %v1546
    %8446 = vmatprep.subr.mxu0 %v1543
    %8447 = vmatpush1.msra.mxu0 %v1542
    %8448 = vmatprep.subr.mxu0 %v1539
    %8449 = vmatpush1.msra.mxu0 %v1538
    %8450 = vmatprep.subr.mxu0 0.0
    %8451 = vmatpush2.msra.mxu0 0.0
    %8452 = vmatprep.subr.mxu0 0.0
    %8453 = vmatpush2.msra.mxu0 0.0
    %8454 = vmatprep.subr.mxu0 0.0
    %8455 = vmatpush2.msra.mxu0 0.0
    %8456 = vmatprep.subr.mxu0 0.0
    %8457 = vmatpush2.msra.mxu0 0.0
    %8458 = vmatprep.subr.mxu0 0.0
    %8459 = vmatpush2.msra.mxu0 0.0
    %8460 = vmatprep.subr.mxu0 0.0
    %8461 = vmatpush2.msra.mxu0 0.0
    %8462 = vmatprep.subr.mxu0 0.0
    %8463 = vmatpush2.msra.mxu0 0.0
    %8464 = vmatprep.subr.mxu0 0.0
    %8465 = vmatpush2.msra.mxu0 0.0
    %8466 = vmatprep.subr.mxu0 0.0
    %8467 = vmatpush2.msra.mxu0 0.0
    %8468 = vmatprep.subr.mxu0 0.0
    %8469 = vmatpush2.msra.mxu0 0.0
    %8470 = vmatprep.subr.mxu0 0.0
    %8471 = vmatpush2.msra.mxu0 0.0
    %8472 = vmatprep.subr.mxu0 0.0
    %8473 = vmatpush2.msra.mxu0 0.0
    %8474 = vmatprep.subr.mxu0 0.0
    %8475 = vmatpush2.msra.mxu0 0.0
    %8476 = vmatprep.subr.mxu0 0.0
    %8477 = vmatpush2.msra.mxu0 0.0
    %8478 = vmatprep.subr.mxu0 0.0
    %8479 = vmatpush2.msra.mxu0 0.0
    %8480 = vmatprep.subr.mxu0 0.0
    %8481 = vmatpush2.msra.mxu0 0.0
    %8482 = vmatprep.mubr.f32.mxu0 0.0
    %8483 = vmatmul.mubr.f32.gmra.mxu0 %v7324
    %v8484 = vpop.f32.mrf.mxu0
    %v8485 = vadd.f32 0.0, %v8484
    %v8486 = vpop.f32.mrf.mxu0
    %v8487 = vadd.f32 0.0, %v8486
    %8488 = vdwg.mxu0
    %8489 = vmatprep.subr.mxu0 %v1533
    %8490 = vmatpush1.msra.mxu0 %v1532
    %8491 = vmatprep.subr.mxu0 %v1529
    %8492 = vmatpush1.msra.mxu0 %v1528
    %8493 = vmatprep.subr.mxu0 %v1525
    %8494 = vmatpush1.msra.mxu0 %v1524
    %8495 = vmatprep.subr.mxu0 %v1521
    %8496 = vmatpush1.msra.mxu0 %v1520
    %8497 = vmatprep.subr.mxu0 %v1517
    %8498 = vmatpush1.msra.mxu0 %v1516
    %8499 = vmatprep.subr.mxu0 %v1513
    %8500 = vmatpush1.msra.mxu0 %v1512
    %8501 = vmatprep.subr.mxu0 %v1509
    %8502 = vmatpush1.msra.mxu0 %v1508
    %8503 = vmatprep.subr.mxu0 %v1505
    %8504 = vmatpush1.msra.mxu0 %v1504
    %8505 = vmatprep.subr.mxu0 %v1501
    %8506 = vmatpush1.msra.mxu0 %v1500
    %8507 = vmatprep.subr.mxu0 %v1497
    %8508 = vmatpush1.msra.mxu0 %v1496
    %8509 = vmatprep.subr.mxu0 %v1493
    %8510 = vmatpush1.msra.mxu0 %v1492
    %8511 = vmatprep.subr.mxu0 %v1489
    %8512 = vmatpush1.msra.mxu0 %v1488
    %8513 = vmatprep.subr.mxu0 %v1485
    %8514 = vmatpush1.msra.mxu0 %v1484
    %8515 = vmatprep.subr.mxu0 %v1481
    %8516 = vmatpush1.msra.mxu0 %v1480
    %8517 = vmatprep.subr.mxu0 %v1477
    %8518 = vmatpush1.msra.mxu0 %v1476
    %8519 = vmatprep.subr.mxu0 %v1473
    %8520 = vmatpush1.msra.mxu0 %v1472
    %8521 = vmatprep.subr.mxu0 0.0
    %8522 = vmatpush2.msra.mxu0 0.0
    %8523 = vmatprep.subr.mxu0 0.0
    %8524 = vmatpush2.msra.mxu0 0.0
    %8525 = vmatprep.subr.mxu0 0.0
    %8526 = vmatpush2.msra.mxu0 0.0
    %8527 = vmatprep.subr.mxu0 0.0
    %8528 = vmatpush2.msra.mxu0 0.0
    %8529 = vmatprep.subr.mxu0 0.0
    %8530 = vmatpush2.msra.mxu0 0.0
    %8531 = vmatprep.subr.mxu0 0.0
    %8532 = vmatpush2.msra.mxu0 0.0
    %8533 = vmatprep.subr.mxu0 0.0
    %8534 = vmatpush2.msra.mxu0 0.0
    %8535 = vmatprep.subr.mxu0 0.0
    %8536 = vmatpush2.msra.mxu0 0.0
    %8537 = vmatprep.subr.mxu0 0.0
    %8538 = vmatpush2.msra.mxu0 0.0
    %8539 = vmatprep.subr.mxu0 0.0
    %8540 = vmatpush2.msra.mxu0 0.0
    %8541 = vmatprep.subr.mxu0 0.0
    %8542 = vmatpush2.msra.mxu0 0.0
    %8543 = vmatprep.subr.mxu0 0.0
    %8544 = vmatpush2.msra.mxu0 0.0
    %8545 = vmatprep.subr.mxu0 0.0
    %8546 = vmatpush2.msra.mxu0 0.0
    %8547 = vmatprep.subr.mxu0 0.0
    %8548 = vmatpush2.msra.mxu0 0.0
    %8549 = vmatprep.subr.mxu0 0.0
    %8550 = vmatpush2.msra.mxu0 0.0
    %8551 = vmatprep.subr.mxu0 0.0
    %8552 = vmatpush2.msra.mxu0 0.0
    %8553 = vmatprep.mubr.f32.mxu0 0.0
    %8554 = vmatmul.mubr.f32.gmra.mxu0 %v8346
    %v8555 = vpop.f32.mrf.mxu0
    %v8556 = vadd.f32 %v8414, %v8555
    %v8557 = vpop.f32.mrf.mxu0
    %v8558 = vadd.f32 %v8416, %v8557
    %8559 = vdwg.mxu0
    %8560 = vmatprep.subr.mxu0 %v1535
    %8561 = vmatpush1.msra.mxu0 %v1534
    %8562 = vmatprep.subr.mxu0 %v1531
    %8563 = vmatpush1.msra.mxu0 %v1530
    %8564 = vmatprep.subr.mxu0 %v1527
    %8565 = vmatpush1.msra.mxu0 %v1526
    %8566 = vmatprep.subr.mxu0 %v1523
    %8567 = vmatpush1.msra.mxu0 %v1522
    %8568 = vmatprep.subr.mxu0 %v1519
    %8569 = vmatpush1.msra.mxu0 %v1518
    %8570 = vmatprep.subr.mxu0 %v1515
    %8571 = vmatpush1.msra.mxu0 %v1514
    %8572 = vmatprep.subr.mxu0 %v1511
    %8573 = vmatpush1.msra.mxu0 %v1510
    %8574 = vmatprep.subr.mxu0 %v1507
    %8575 = vmatpush1.msra.mxu0 %v1506
    %8576 = vmatprep.subr.mxu0 %v1503
    %8577 = vmatpush1.msra.mxu0 %v1502
    %8578 = vmatprep.subr.mxu0 %v1499
    %8579 = vmatpush1.msra.mxu0 %v1498
    %8580 = vmatprep.subr.mxu0 %v1495
    %8581 = vmatpush1.msra.mxu0 %v1494
    %8582 = vmatprep.subr.mxu0 %v1491
    %8583 = vmatpush1.msra.mxu0 %v1490
    %8584 = vmatprep.subr.mxu0 %v1487
    %8585 = vmatpush1.msra.mxu0 %v1486
    %8586 = vmatprep.subr.mxu0 %v1483
    %8587 = vmatpush1.msra.mxu0 %v1482
    %8588 = vmatprep.subr.mxu0 %v1479
    %8589 = vmatpush1.msra.mxu0 %v1478
    %8590 = vmatprep.subr.mxu0 %v1475
    %8591 = vmatpush1.msra.mxu0 %v1474
    %8592 = vmatprep.subr.mxu0 0.0
    %8593 = vmatpush2.msra.mxu0 0.0
    %8594 = vmatprep.subr.mxu0 0.0
    %8595 = vmatpush2.msra.mxu0 0.0
    %8596 = vmatprep.subr.mxu0 0.0
    %8597 = vmatpush2.msra.mxu0 0.0
    %8598 = vmatprep.subr.mxu0 0.0
    %8599 = vmatpush2.msra.mxu0 0.0
    %8600 = vmatprep.subr.mxu0 0.0
    %8601 = vmatpush2.msra.mxu0 0.0
    %8602 = vmatprep.subr.mxu0 0.0
    %8603 = vmatpush2.msra.mxu0 0.0
    %8604 = vmatprep.subr.mxu0 0.0
    %8605 = vmatpush2.msra.mxu0 0.0
    %8606 = vmatprep.subr.mxu0 0.0
    %8607 = vmatpush2.msra.mxu0 0.0
    %8608 = vmatprep.subr.mxu0 0.0
    %8609 = vmatpush2.msra.mxu0 0.0
    %8610 = vmatprep.subr.mxu0 0.0
    %8611 = vmatpush2.msra.mxu0 0.0
    %8612 = vmatprep.subr.mxu0 0.0
    %8613 = vmatpush2.msra.mxu0 0.0
    %8614 = vmatprep.subr.mxu0 0.0
    %8615 = vmatpush2.msra.mxu0 0.0
    %8616 = vmatprep.subr.mxu0 0.0
    %8617 = vmatpush2.msra.mxu0 0.0
    %8618 = vmatprep.subr.mxu0 0.0
    %8619 = vmatpush2.msra.mxu0 0.0
    %8620 = vmatprep.subr.mxu0 0.0
    %8621 = vmatpush2.msra.mxu0 0.0
    %8622 = vmatprep.subr.mxu0 0.0
    %8623 = vmatpush2.msra.mxu0 0.0
    %8624 = vmatprep.mubr.f32.mxu0 0.0
    %8625 = vmatmul.mubr.f32.gmra.mxu0 %v8346
    %v8626 = vpop.f32.mrf.mxu0
    %v8627 = vadd.f32 %v8485, %v8626
    %v8628 = vpop.f32.mrf.mxu0
    %v8629 = vadd.f32 %v8487, %v8628
    %8630 = vdwg.mxu0
    %v8631 = vadd.f32 %v8556, %v1889
    %v8632 = vadd.f32 %v8558, %v1893
    %v8633 = vadd.f32 %v8627, %v1897
    %v8634 = vadd.f32 %v8629, %v1901
    %v8635 = vxor.u32 %v8631, 2147483648
    %v8636 = vmul.f32 %v8635, 1.442695
    %v8637 = vpow.pop %v8636
    %v8638 = vadd.f32 %v8637, 1.0
    %v8639 = vrcp.pop %v8638
    %v8640 = vmul.f32 1.0, %v8639
    %v8641 = vxor.u32 %v8632, 2147483648
    %v8642 = vmul.f32 %v8641, 1.442695
    %v8643 = vpow.pop %v8642
    %v8644 = vadd.f32 %v8643, 1.0
    %v8645 = vrcp.pop %v8644
    %v8646 = vmul.f32 1.0, %v8645
    %v8647 = vtanh.pop %v8633
    %v8648 = vxor.u32 %v8634, 2147483648
    %v8649 = vmul.f32 %v8648, 1.442695
    %v8650 = vpow.pop %v8649
    %v8651 = vadd.f32 %v8650, 1.0
    %v8652 = vrcp.pop %v8651
    %v8653 = vmul.f32 1.0, %v8652
    %v8654 = vmul.f32 %v8646, %v7322
    %v8655 = vmul.f32 %v8640, %v8647
    %v8656 = vadd.f32 %v8654, %v8655
    %v8657 = vtanh.pop %v8656
    %v8658 = vmul.f32 %v8653, %v8657
    %8659 = vmatprep.subr.mxu0 %v1965
    %8660 = vmatpush1.msra.mxu0 %v1964
    %8661 = vmatprep.subr.mxu0 %v1963
    %8662 = vmatpush1.msra.mxu0 %v1962
    %8663 = vmatprep.subr.mxu0 %v1961
    %8664 = vmatpush1.msra.mxu0 %v1960
    %8665 = vmatprep.subr.mxu0 %v1959
    %8666 = vmatpush1.msra.mxu0 %v1958
    %8667 = vmatprep.subr.mxu0 %v1957
    %8668 = vmatpush1.msra.mxu0 %v1956
    %8669 = vmatprep.subr.mxu0 %v1955
    %8670 = vmatpush1.msra.mxu0 %v1954
    %8671 = vmatprep.subr.mxu0 %v1953
    %8672 = vmatpush1.msra.mxu0 %v1952
    %8673 = vmatprep.subr.mxu0 %v1951
    %8674 = vmatpush1.msra.mxu0 %v1950
    %8675 = vmatprep.subr.mxu0 %v1949
    %8676 = vmatpush1.msra.mxu0 %v1948
    %8677 = vmatprep.subr.mxu0 %v1947
    %8678 = vmatpush1.msra.mxu0 %v1946
    %8679 = vmatprep.subr.mxu0 %v1945
    %8680 = vmatpush1.msra.mxu0 %v1944
    %8681 = vmatprep.subr.mxu0 %v1943
    %8682 = vmatpush1.msra.mxu0 %v1942
    %8683 = vmatprep.subr.mxu0 %v1941
    %8684 = vmatpush1.msra.mxu0 %v1940
    %8685 = vmatprep.subr.mxu0 %v1939
    %8686 = vmatpush1.msra.mxu0 %v1938
    %8687 = vmatprep.subr.mxu0 %v1937
    %8688 = vmatpush1.msra.mxu0 %v1936
    %8689 = vmatprep.subr.mxu0 %v1935
    %8690 = vmatpush1.msra.mxu0 %v1934
    %8691 = vmatprep.subr.mxu0 0.0
    %8692 = vmatpush2.msra.mxu0 0.0
    %8693 = vmatprep.subr.mxu0 0.0
    %8694 = vmatpush2.msra.mxu0 0.0
    %8695 = vmatprep.subr.mxu0 0.0
    %8696 = vmatpush2.msra.mxu0 0.0
    %8697 = vmatprep.subr.mxu0 0.0
    %8698 = vmatpush2.msra.mxu0 0.0
    %8699 = vmatprep.subr.mxu0 0.0
    %8700 = vmatpush2.msra.mxu0 0.0
    %8701 = vmatprep.subr.mxu0 0.0
    %8702 = vmatpush2.msra.mxu0 0.0
    %8703 = vmatprep.subr.mxu0 0.0
    %8704 = vmatpush2.msra.mxu0 0.0
    %8705 = vmatprep.subr.mxu0 0.0
    %8706 = vmatpush2.msra.mxu0 0.0
    %8707 = vmatprep.subr.mxu0 0.0
    %8708 = vmatpush2.msra.mxu0 0.0
    %8709 = vmatprep.subr.mxu0 0.0
    %8710 = vmatpush2.msra.mxu0 0.0
    %8711 = vmatprep.subr.mxu0 0.0
    %8712 = vmatpush2.msra.mxu0 0.0
    %8713 = vmatprep.subr.mxu0 0.0
    %8714 = vmatpush2.msra.mxu0 0.0
    %8715 = vmatprep.subr.mxu0 0.0
    %8716 = vmatpush2.msra.mxu0 0.0
    %8717 = vmatprep.subr.mxu0 0.0
    %8718 = vmatpush2.msra.mxu0 0.0
    %8719 = vmatprep.subr.mxu0 0.0
    %8720 = vmatpush2.msra.mxu0 0.0
    %8721 = vmatprep.subr.mxu0 0.0
    %8722 = vmatpush2.msra.mxu0 0.0
    %8723 = vmatprep.mubr.f32.mxu0 0.0
    %8724 = vmatmul.mubr.f32.gmra.mxu0 %v8658
    %v8725 = vpop.f32.mrf.mxu0
    %v8726 = vadd.f32 0.0, %v8725
    %v8727 = vpop.f32.mrf.mxu0
    %8728 = vdwg.mxu0
    %v8729 = vadd.f32 %v8726, %v2041
    %v8730 = vsel %vm2045, %v8729, -inf
    %8731 = vmax.xlane.f32.xlu0 %v8730
    %v8732 = vpop.xlane.xlu0 %8731
    %v8733 = vsub.f32 %v8729, %v8732
    %v8734 = vmul.f32 %v8733, 1.442695
    %v8735 = vpow.pop %v8734
    %v8736 = vsel %vm2045, %v8735, 0.0
    %8737 = vadd.xlane.f32.xlu0 %v8736
    %v8738 = vpop.xlane.xlu0 %8737
    %v8739 = vlog2.pop %v8738
    %v8740 = vmul.f32 %v8739, 0.6931472
    %v8741 = vsub.f32 %v8733, %v8740
    %v8743 = vrot.slane %v3407, 6
    %v8746 = vrot.slane %v4741, 4
    %v8749 = vrot.slane %v6075, 2
    %v8752 = vrot.slane %v8741, 6
    %v8754 = vsel %vm2045, %v2057, %v8743
    %vm8755 = vcmask 1043456
    %v8756 = vsel %vm8755, %v8754, %v8746
    %vm8757 = vcmask 1045504
    %v8758 = vsel %vm8757, %v8756, %v8749
    %v8759 = vsel %vm2045, %v7409, %v8752
    %8760 = vst [vmem:[#allocation19] sm:$0xff] %v8758
    %8761 = vst [vmem:[#allocation19 + $0x8] sm:$0xf] %v8759
    // Predicated region
    $region114: #{tpu_custom_call.1} parent=1 // pred_check
      _
    $region115: #{tpu_custom_call.1} parent=1 // pred_check_branch
      %8763 = sbr.rel (0) target = $region117
    $region116: #{tpu_custom_call.1} parent=1 // pred_region
      %s8765 = ssub.s32 256, 256
      %8766 = vsyncadd [#allocation4], %s8765
      %s8767 = sshll.u32 [#allocation19], 4
      %s8768 = int_to_ptr.vmem [resolvable:$true] %s8767
      %8773 = dma.vmem_to_hbm [thread:$0]  %s8768, 256, %s18, [#allocation4], 128, 128, 8
    $region117: #{tpu_custom_call.1} parent=1 // pred_fallthru
      _
    // Predicated region
    $region118: #{tpu_custom_call.1} parent=1 // pred_check
      _
    $region119: #{tpu_custom_call.1} parent=1 // pred_check_branch
      %8775 = sbr.rel (0) target = $region121
    $region120: #{tpu_custom_call.1} parent=1 // pred_region
      %8776 = dma.done [#allocation4], 256
    $region121: #{tpu_custom_call.1} parent=1 // pred_fallthru
      _
    %8777 = vsyncpa [#allocation3], 1
    %8778 = vsyncpa [#allocation6], 1
    %8779 = vsyncpa [#allocation9], 1
    %8780 = vsyncpa [#allocation12], 1
    %8781 = vsyncpa [#allocation15], 1
    %8782 = vsyncpa [#allocation18], 1
    %8783 = vsyncpa [#allocation4], 1

</llo_original>
